<compile_context>
chip_gen: v5e
topology: v5e:2x2
jax: 0.10.0
libtpu: 0.0.40
codegen_flags: <defaults>
</compile_context>

<pallas_src>
import math
import functools

import jax
import jax.numpy as jnp
from jax.experimental import pallas as pl
from jax.experimental.pallas import tpu as pltpu


# ----------------------------------------------------------------------------
# small helpers
# ----------------------------------------------------------------------------

def _round_up(v, m):
    return ((v + m - 1) // m) * m


def _row_tile(rows, cap=512, tile=256):
    if rows <= cap:
        return rows, rows
    return tile, _round_up(rows, tile)


def _sigmoid(x):
    return 1.0 / (1.0 + jnp.exp(-x))


def _ln(x, g, b, eps=1e-5):
    mean = jnp.mean(x, axis=-1, keepdims=True)
    var = jnp.mean(jnp.square(x - mean), axis=-1, keepdims=True)
    return (x - mean) * jax.lax.rsqrt(var + eps) * g + b


# ----------------------------------------------------------------------------
# Generic tiled matmul kernel: y = act(x @ w + b) [+ residual]
# ----------------------------------------------------------------------------

def _matmul_kernel(*refs, activation, has_residual, nk):
    if has_residual:
        x_ref, w_ref, b_ref, r_ref, o_ref, acc_ref = refs
    else:
        x_ref, w_ref, b_ref, o_ref, acc_ref = refs
        r_ref = None

    @pl.when(pl.program_id(2) == 0)
    def _():
        acc_ref[...] = jnp.zeros_like(acc_ref)

    acc_ref[...] += jnp.dot(x_ref[...].astype(jnp.bfloat16),
                            w_ref[...].astype(jnp.bfloat16),
                            preferred_element_type=jnp.float32)

    @pl.when(pl.program_id(2) == nk - 1)
    def _():
        out = acc_ref[...] + b_ref[...]
        if activation == "relu":
            out = jnp.maximum(out, 0.0)
        if r_ref is not None:
            out = out + r_ref[...].astype(jnp.float32)
        o_ref[...] = out.astype(o_ref.dtype)


def pallas_matmul(x, w, b=None, activation=None, residual=None,
                  out_dtype=jnp.bfloat16):
    """y = act(x @ w + b) (+ residual). bf16 MXU inputs, f32 accumulate."""
    M, K = x.shape
    _, N = w.shape

    tm = M if M <= 512 else 256
    tk = K if K <= 1024 else 512
    tn = N if N <= 512 else 256
    Mp, Kp, Np = _round_up(M, tm), _round_up(K, tk), _round_up(N, tn)

    xp = x if (Mp, Kp) == (M, K) else jnp.pad(x, ((0, Mp - M), (0, Kp - K)))
    wp = w if (Kp, Np) == (K, N) else jnp.pad(w, ((0, Kp - K), (0, Np - N)))

    bias = jnp.zeros((N,), jnp.float32) if b is None else b.astype(jnp.float32)
    if Np != N:
        bias = jnp.pad(bias, (0, Np - N))
    bias = bias.reshape(1, Np)

    has_res = residual is not None
    if has_res:
        r = residual
        if (Mp, Np) != (M, N):
            r = jnp.pad(r, ((0, Mp - M), (0, Np - N)))

    gm, gn, gk = Mp // tm, Np // tn, Kp // tk
    kernel = functools.partial(_matmul_kernel, activation=activation,
                               has_residual=has_res, nk=gk)

    in_specs = [
        pl.BlockSpec((tm, tk), lambda i, j, k: (i, k)),
        pl.BlockSpec((tk, tn), lambda i, j, k: (k, j)),
        pl.BlockSpec((1, tn), lambda i, j, k: (0, j)),
    ]
    inputs = [xp, wp, bias]
    if has_res:
        in_specs.append(pl.BlockSpec((tm, tn), lambda i, j, k: (i, j)))
        inputs.append(r)

    out = pl.pallas_call(
        kernel,
        out_shape=jax.ShapeDtypeStruct((Mp, Np), out_dtype),
        grid=(gm, gn, gk),
        in_specs=in_specs,
        out_specs=pl.BlockSpec((tm, tn), lambda i, j, k: (i, j)),
        scratch_shapes=[pltpu.VMEM((tm, tn), jnp.float32)],
        compiler_params=pltpu.CompilerParams(
            dimension_semantics=("parallel", "parallel", "arbitrary")),
    )(*inputs)
    if (Mp, Np) != (M, N):
        out = out[:M, :N]
    return out


# ----------------------------------------------------------------------------
# Fused feed-forward module: LN + W1 + Swish + W2 + residual (+ optional final LN)
# ----------------------------------------------------------------------------

def _ffn_kernel(x_ref, g1_ref, bt1_ref, w1_ref, b1_ref, w2_ref, b2_ref,
                g2_ref, bt2_ref, o_ref, *, ff_res, final_ln):
    x = x_ref[...].astype(jnp.float32)
    xn = _ln(x, g1_ref[...], bt1_ref[...])
    h = jnp.dot(xn.astype(jnp.bfloat16), w1_ref[...].astype(jnp.bfloat16),
                preferred_element_type=jnp.float32) + b1_ref[...]
    h = h * _sigmoid(h)                                     # Swish
    y = jnp.dot(h.astype(jnp.bfloat16), w2_ref[...].astype(jnp.bfloat16),
                preferred_element_type=jnp.float32) + b2_ref[...]
    out = x + ff_res * y                                    # fused residual
    if final_ln:
        out = _ln(out, g2_ref[...], bt2_ref[...])           # fused block LayerNorm
    o_ref[...] = out.astype(o_ref.dtype)


def ffn_block(x, p, ff_res, final_ln=None):
    B, T, D = x.shape
    rows = B * T
    F = p['w1'].shape[1]
    x2 = x.reshape(rows, D)

    tm, rp = _row_tile(rows)
    if rp != rows:
        x2 = jnp.pad(x2, ((0, rp - rows), (0, 0)))

    use_final = final_ln is not None
    if use_final:
        g2, b2 = final_ln
    else:
        g2, b2 = jnp.ones((D,), jnp.float32), jnp.zeros((D,), jnp.float32)

    kernel = functools.partial(_ffn_kernel, ff_res=ff_res, final_ln=use_final)
    out = pl.pallas_call(
        kernel,
        out_shape=jax.ShapeDtypeStruct((rp, D), jnp.bfloat16),
        grid=(rp // tm,),
        in_specs=[
            pl.BlockSpec((tm, D), lambda i: (i, 0)),
            pl.BlockSpec((1, D), lambda i: (0, 0)),
            pl.BlockSpec((1, D), lambda i: (0, 0)),
            pl.BlockSpec((D, F), lambda i: (0, 0)),
            pl.BlockSpec((1, F), lambda i: (0, 0)),
            pl.BlockSpec((F, D), lambda i: (0, 0)),
            pl.BlockSpec((1, D), lambda i: (0, 0)),
            pl.BlockSpec((1, D), lambda i: (0, 0)),
            pl.BlockSpec((1, D), lambda i: (0, 0)),
        ],
        out_specs=pl.BlockSpec((tm, D), lambda i: (i, 0)),
        compiler_params=pltpu.CompilerParams(dimension_semantics=("parallel",)),
    )(x2,
      p['ln_g'].reshape(1, D), p['ln_b'].reshape(1, D),
      p['w1'], p['b1'].reshape(1, F).astype(jnp.float32),
      p['w2'], p['b2'].reshape(1, D).astype(jnp.float32),
      g2.reshape(1, D), b2.reshape(1, D))
    if rp != rows:
        out = out[:rows]
    return out.reshape(B, T, D)


# ----------------------------------------------------------------------------
# Fused LN + matmul (used for the fused QKV projection)
# ----------------------------------------------------------------------------

def _ln_matmul_kernel(x_ref, g_ref, bt_ref, w_ref, b_ref, o_ref):
    xn = _ln(x_ref[...].astype(jnp.float32), g_ref[...], bt_ref[...])
    out = jnp.dot(xn.astype(jnp.bfloat16), w_ref[...].astype(jnp.bfloat16),
                  preferred_element_type=jnp.float32) + b_ref[...]
    o_ref[...] = out.astype(o_ref.dtype)


def ln_matmul(x2, g, b, w, bias):
    rows, D = x2.shape
    N = w.shape[1]
    tm, rp = _row_tile(rows)
    xp = jnp.pad(x2, ((0, rp - rows), (0, 0))) if rp != rows else x2
    out = pl.pallas_call(
        _ln_matmul_kernel,
        out_shape=jax.ShapeDtypeStruct((rp, N), jnp.bfloat16),
        grid=(rp // tm,),
        in_specs=[
            pl.BlockSpec((tm, D), lambda i: (i, 0)),
            pl.BlockSpec((1, D), lambda i: (0, 0)),
            pl.BlockSpec((1, D), lambda i: (0, 0)),
            pl.BlockSpec((D, N), lambda i: (0, 0)),
            pl.BlockSpec((1, N), lambda i: (0, 0)),
        ],
        out_specs=pl.BlockSpec((tm, N), lambda i: (i, 0)),
        compiler_params=pltpu.CompilerParams(dimension_semantics=("parallel",)),
    )(xp, g.reshape(1, D), b.reshape(1, D),
      w, bias.reshape(1, N).astype(jnp.float32))
    return out[:rows] if rp != rows else out


# ----------------------------------------------------------------------------
# Fully-fused relative-position attention core, grid = (B, H)
#   per head: u/v bias add + content + pos scores + relative shift + softmax + ctx
# ----------------------------------------------------------------------------

def _attn_kernel(q_ref, k_ref, v_ref, pe_ref, u_ref, vb_ref, o_ref, *, scale):
    q = q_ref[0, 0].astype(jnp.float32)                 # (T, dh)
    k = k_ref[0, 0].astype(jnp.bfloat16)
    vv = v_ref[0, 0].astype(jnp.bfloat16)
    pe = pe_ref[0].astype(jnp.bfloat16)                 # (T, dh)
    u = u_ref[0]                                        # (1, dh) f32
    vb = vb_ref[0]

    T = q.shape[0]
    qc = ((q + u) * scale).astype(jnp.bfloat16)
    qp = ((q + vb) * scale).astype(jnp.bfloat16)

    content = jax.lax.dot_general(qc, k, (((1,), (1,)), ((), ())),
                                  preferred_element_type=jnp.float32)   # (T, T)
    p = jax.lax.dot_general(qp, pe, (((1,), (1,)), ((), ())),
                            preferred_element_type=jnp.float32)         # (T, T)

    # Transformer-XL relative shift done in-register:
    #   S[i,j] = P[i, T-1+j-i]   for j <= i
    #   S[i,j] = 0               for j == i+1
    #   S[i,j] = P[i+1, j-i-2]   for j >= i+2
    # built from row-aligned column broadcasts + diagonal masks; the one-row
    # up-shift P_up[i,:] = P[i+1,:] comes from a tiny constant shift-matrix matmul.
    row = jax.lax.broadcasted_iota(jnp.int32, (T, T), 0)
    col = jax.lax.broadcasted_iota(jnp.int32, (T, T), 1)
    diff = col - row
    ushift = jnp.where(col == row + 1, 1.0, 0.0)        # (T,T) constant
    p_up = jnp.dot(ushift, p, preferred_element_type=jnp.float32)

    s = jnp.zeros((T, T), jnp.float32)
    for d in range(T):                                   # sub-diagonals (j <= i)
        s = s + jnp.where(diff == -d, p[:, T - 1 - d:T - d], 0.0)
    for d in range(2, T):                                # super-diagonals (j >= i+2)
        s = s + jnp.where(diff == d, p_up[:, d - 2:d - 1], 0.0)

    scores = content + s
    m = jnp.max(scores, axis=-1, keepdims=True)
    e = jnp.exp(scores - m)
    probs = e * pl.reciprocal(jnp.sum(e, axis=-1, keepdims=True), approx=True)
    ctx = jnp.dot(probs.astype(jnp.bfloat16), vv,
                  preferred_element_type=jnp.float32)
    o_ref[0, 0] = ctx.astype(o_ref.dtype)


def mhsa_forward(x, p, num_heads, pos):
    B, T, D = x.shape
    H = num_heads
    dh = D // H
    scale = 1.0 / math.sqrt(D)
    x2 = x.reshape(B * T, D)

    # fused LayerNorm + combined QKV projection, bf16 out
    qkv = ln_matmul(x2, p['ln_g'], p['ln_b'], p['w_qkv'], p['b_qkv'])   # (B*T, 3D)
    qkv_h = (qkv.reshape(B, T, 3, H, dh)
                .transpose(0, 2, 3, 1, 4)
                .reshape(B, 3 * H, T, dh))                              # head-major

    pe = pallas_matmul(pos, p['wp'])                                    # (T, D) bf16
    peh = pe.reshape(T, H, dh).transpose(1, 0, 2)                       # (H, T, dh)

    u3 = p['u'].reshape(H, 1, dh)
    v3 = p['v'].reshape(H, 1, dh)

    ctx = pl.pallas_call(
        functools.partial(_attn_kernel, scale=scale),
        out_shape=jax.ShapeDtypeStruct((B, H, T, dh), jnp.bfloat16),
        grid=(B, H),
        in_specs=[
            pl.BlockSpec((1, 1, T, dh), lambda b, h: (b, h, 0, 0)),
            pl.BlockSpec((1, 1, T, dh), lambda b, h: (b, H + h, 0, 0)),
            pl.BlockSpec((1, 1, T, dh), lambda b, h: (b, 2 * H + h, 0, 0)),
            pl.BlockSpec((1, T, dh), lambda b, h: (h, 0, 0)),
            pl.BlockSpec((1, 1, dh), lambda b, h: (h, 0, 0)),
            pl.BlockSpec((1, 1, dh), lambda b, h: (h, 0, 0)),
        ],
        out_specs=pl.BlockSpec((1, 1, T, dh), lambda b, h: (b, h, 0, 0)),
        compiler_params=pltpu.CompilerParams(
            dimension_semantics=("parallel", "parallel")),
    )(qkv_h, qkv_h, qkv_h, peh, u3, v3)

    ctx2 = ctx.transpose(0, 2, 1, 3).reshape(B * T, D)
    out = pallas_matmul(ctx2, p['wo'], p['bo'], residual=x2)            # proj + residual
    return out.reshape(B, T, D)


# ----------------------------------------------------------------------------
# Fused convolution module: LN + pw1(value/gate) + GLU + depthwise conv + BN +
#                           Swish + pw2 + residual
# ----------------------------------------------------------------------------

def _conv_block_kernel(x_ref, g_ref, bt_ref, wv_ref, bv_ref, wg_ref, bg_ref,
                       wd_ref, bd_ref, w2_ref, b2_ref, o_ref, pbuf,
                       *, ksize, bn_scale):
    x = x_ref[0].astype(jnp.float32)                 # (T, D)
    T, D = x.shape
    pad = (ksize - 1) // 2

    xn = _ln(x, g_ref[...], bt_ref[...])
    xnb = xn.astype(jnp.bfloat16)
    a = jnp.dot(xnb, wv_ref[...].astype(jnp.bfloat16),
                preferred_element_type=jnp.float32) + bv_ref[...]
    gate = jnp.dot(xnb, wg_ref[...].astype(jnp.bfloat16),
                   preferred_element_type=jnp.float32) + bg_ref[...]
    h = a * _sigmoid(gate)                           # GLU (value/gate split weights)

    # depthwise conv with 'same' padding: zero-padded VMEM scratch, single load,
    # taps taken as static value slices (no k redundant VMEM reloads).
    pbuf[...] = jnp.zeros_like(pbuf)
    pbuf[pl.ds(pad, T), :] = h
    pv = pbuf[...]                                   # (T + 2*pad, D)
    wd = wd_ref[...]                                 # (ksize, D)
    acc = jnp.zeros((T, D), jnp.float32)
    for k in range(ksize):
        acc = acc + jax.lax.slice(pv, (k, 0), (k + T, D)) * wd[k:k + 1, :]
    acc = (acc + bd_ref[...]) * bn_scale             # BatchNorm1d (eval, default stats)
    acc = acc * _sigmoid(acc)                        # Swish

    y = jnp.dot(acc.astype(jnp.bfloat16), w2_ref[...].astype(jnp.bfloat16),
                preferred_element_type=jnp.float32) + b2_ref[...]
    o_ref[0] = (x + y).astype(o_ref.dtype)           # fused residual


def conv_block(x, p, ksize):
    B, T, D = x.shape
    pad = (ksize - 1) // 2
    bn_scale = 1.0 / math.sqrt(1.0 + 1e-5)
    kernel = functools.partial(_conv_block_kernel, ksize=ksize, bn_scale=bn_scale)
    return pl.pallas_call(
        kernel,
        out_shape=jax.ShapeDtypeStruct((B, T, D), jnp.bfloat16),
        grid=(B,),
        in_specs=[
            pl.BlockSpec((1, T, D), lambda b: (b, 0, 0)),
            pl.BlockSpec((1, D), lambda b: (0, 0)),
            pl.BlockSpec((1, D), lambda b: (0, 0)),
            pl.BlockSpec((D, D), lambda b: (0, 0)),
            pl.BlockSpec((1, D), lambda b: (0, 0)),
            pl.BlockSpec((D, D), lambda b: (0, 0)),
            pl.BlockSpec((1, D), lambda b: (0, 0)),
            pl.BlockSpec((ksize, D), lambda b: (0, 0)),
            pl.BlockSpec((1, D), lambda b: (0, 0)),
            pl.BlockSpec((D, D), lambda b: (0, 0)),
            pl.BlockSpec((1, D), lambda b: (0, 0)),
        ],
        out_specs=pl.BlockSpec((1, T, D), lambda b: (b, 0, 0)),
        scratch_shapes=[pltpu.VMEM((T + 2 * pad, D), jnp.float32)],
        compiler_params=pltpu.CompilerParams(dimension_semantics=("parallel",)),
    )(x,
      p['ln_g'].reshape(1, D), p['ln_b'].reshape(1, D),
      p['pw1v_w'], p['pw1v_b'].reshape(1, D).astype(jnp.float32),
      p['pw1g_w'], p['pw1g_b'].reshape(1, D).astype(jnp.float32),
      p['dw_w'].astype(jnp.float32), p['dw_b'].reshape(1, D).astype(jnp.float32),
      p['pw2_w'], p['pw2_b'].reshape(1, D).astype(jnp.float32))


# ----------------------------------------------------------------------------
# Fused classifier: fc matmul + log_softmax (lane-dense 128-wide padded output)
# ----------------------------------------------------------------------------

def _fc_logsoftmax_kernel(x_ref, w_ref, o_ref, *, nc):
    logits = jnp.dot(x_ref[...].astype(jnp.bfloat16), w_ref[...].astype(jnp.bfloat16),
                     preferred_element_type=jnp.float32)
    col = jax.lax.broadcasted_iota(jnp.int32, logits.shape, 1)
    logits = jnp.where(col < nc, logits, -1e30)      # mask lane-padding classes
    m = jnp.max(logits, axis=-1, keepdims=True)
    s = logits - m
    o_ref[...] = s - jnp.log(jnp.sum(jnp.exp(s), axis=-1, keepdims=True))


def fc_logsoftmax(x2, w, nc):
    rows, D = x2.shape
    Np = _round_up(max(nc, 128), 128)
    wp = jnp.pad(w, ((0, 0), (0, Np - nc)))
    tm, rp = _row_tile(rows)
    xp = jnp.pad(x2, ((0, rp - rows), (0, 0))) if rp != rows else x2
    out = pl.pallas_call(
        functools.partial(_fc_logsoftmax_kernel, nc=nc),
        out_shape=jax.ShapeDtypeStruct((rp, Np), jnp.float32),
        grid=(rp // tm,),
        in_specs=[
            pl.BlockSpec((tm, D), lambda i: (i, 0)),
            pl.BlockSpec((D, Np), lambda i: (0, 0)),
        ],
        out_specs=pl.BlockSpec((tm, Np), lambda i: (i, 0)),
        compiler_params=pltpu.CompilerParams(dimension_semantics=("parallel",)),
    )(xp, wp)
    return out[:rows, :nc]


# ----------------------------------------------------------------------------
# Plain-JAX glue: im2col, positional encoding
# ----------------------------------------------------------------------------

def im2col(x, k=3, s=2):
    """x: (B,H,W,C) -> patches (B,Ho,Wo,k*k*C) for a k x k / stride-s conv (no pad)."""
    # TODO(synk): patch extraction still materializes k*k copies in HBM; could be
    # fused into the conv matmul kernel with per-tap index_maps / manual DMA.
    B, H, W, C = x.shape
    Ho = (H - k) // s + 1
    Wo = (W - k) // s + 1
    cols = []
    for di in range(k):
        for dj in range(k):
            cols.append(x[:, di:di + s * (Ho - 1) + 1:s, dj:dj + s * (Wo - 1) + 1:s, :])
    return jnp.concatenate(cols, axis=-1), Ho, Wo


def sinusoidal_pe(length, d_model):
    position = jnp.arange(length, dtype=jnp.float32)[:, None]
    div_term = jnp.exp(
        jnp.arange(0, d_model, 2, dtype=jnp.float32) * (-math.log(10000.0) / d_model)
    )
    pe = jnp.zeros((length, d_model), jnp.float32)
    pe = pe.at[:, 0::2].set(jnp.sin(position * div_term))
    pe = pe.at[:, 1::2].set(jnp.cos(position * div_term))
    return pe


# ----------------------------------------------------------------------------
# Module forwards
# ----------------------------------------------------------------------------

def subsampling_forward(x, lengths, p, encoder_dim):
    # TODO(synk): exact FastConformerSubsampling source not provided; implemented as
    # 3x (Conv2d k=3 s=2, no pad, + ReLU) giving 8x time downsampling, then Linear.
    h = x[..., None]                       # (B, T, F, 1) channels-last
    B = h.shape[0]
    for i in range(3):
        cols, Ho, Wo = im2col(h)
        flat = cols.reshape(-1, cols.shape[-1])
        out = pallas_matmul(flat, p[f'conv{i}_w'], p[f'conv{i}_b'], activation='relu')
        h = out.reshape(B, Ho, Wo, -1)     # bf16 carrier -> later im2col is bf16
    B, To, Fo, C = h.shape
    h = jnp.swapaxes(h, 2, 3).reshape(B, To, C * Fo)    # PyTorch (C, F) flatten order
    out = pallas_matmul(h.reshape(B * To, C * Fo), p['proj_w'], p['proj_b'])
    out = out.reshape(B, To, encoder_dim)
    out_lengths = lengths
    for _ in range(3):                     # exact per-stage length formula
        out_lengths = (out_lengths - 3) // 2 + 1
    return out, out_lengths


def conformer_block(x, p, num_heads, ksize, ff_res, pos):
    x = ffn_block(x, p['ff1'], ff_res)                                  # FF1 + residual
    x = mhsa_forward(x, p['attn'], num_heads, pos)                      # MHSA + residual
    x = conv_block(x, p['conv'], ksize)                                 # Conv + residual
    x = ffn_block(x, p['ff2'], ff_res,                                  # FF2 + residual
                  final_ln=(p['ln_g'], p['ln_b']))                      # + block LayerNorm
    return x


def fast_conformer_forward(params, inputs, input_lengths, config):
    x, out_lengths = subsampling_forward(
        inputs, input_lengths, params['subsampling'], config['encoder_dim'])
    # input dropout: identity in eval mode
    B, T, D = x.shape
    ff_res = 0.5 if config['half_step_residual'] else 1.0
    pos = sinusoidal_pe(T, D)
    for lp in params['layers']:
        x = conformer_block(x, lp, config['num_heads'], config['conv_kernel_size'],
                            ff_res, pos)
    logp = fc_logsoftmax(x.reshape(B * T, D), params['fc_w'], config['num_classes'])
    return logp.reshape(B, T, -1), out_lengths


# ----------------------------------------------------------------------------
# Deterministic parameter init (matmul weights stored bf16 once)
# ----------------------------------------------------------------------------

def init_params(key, config):
    D = config['encoder_dim']
    H = config['num_heads']
    dh = D // H
    K = config['conv_kernel_size']
    ff = config['ff_expansion']
    ce = config['conv_expansion']
    nc = config['num_classes']
    input_dim = config['input_dim']

    keys = iter(jax.random.split(key, 512))

    def lin(fan_in, fan_out, bias=True):
        k1, k2 = next(keys), next(keys)
        bound = 1.0 / math.sqrt(fan_in)
        w = jax.random.uniform(k1, (fan_in, fan_out), jnp.float32,
                               -bound, bound).astype(jnp.bfloat16)
        b = jax.random.uniform(k2, (fan_out,), jnp.float32, -bound, bound) if bias else None
        return w, b

    # subsampling (3 convs k=3 s=2 + proj)
    sub = {}
    cin, f = 1, input_dim
    for i in range(3):
        w, b = lin(3 * 3 * cin, D)
        sub[f'conv{i}_w'], sub[f'conv{i}_b'] = w, b
        cin = D
        f = (f - 3) // 2 + 1
    w, b = lin(D * f, D)
    sub['proj_w'], sub['proj_b'] = w, b

    layers = []
    for _ in range(config['num_layers']):
        lp = {}
        for name in ('ff1', 'ff2'):
            w1, b1 = lin(D, ff * D)
            w2, b2 = lin(ff * D, D)
            lp[name] = dict(ln_g=jnp.ones(D), ln_b=jnp.zeros(D),
                            w1=w1, b1=b1, w2=w2, b2=b2)
        wq, bq = lin(D, D)
        wk, bk = lin(D, D)
        wv, bv = lin(D, D)
        w_qkv = jnp.concatenate([wq, wk, wv], axis=1)      # fused QKV projection
        b_qkv = jnp.concatenate([bq, bk, bv])
        wp, _ = lin(D, D, bias=False)
        wo, bo = lin(D, D)
        u = jax.random.normal(next(keys), (H, dh), jnp.float32) * 0.02
        v = jax.random.normal(next(keys), (H, dh), jnp.float32) * 0.02
        lp['attn'] = dict(ln_g=jnp.ones(D), ln_b=jnp.zeros(D),
                          w_qkv=w_qkv, b_qkv=b_qkv,
                          wp=wp, wo=wo, bo=bo, u=u, v=v)
        pw1_w, pw1_b = lin(D, ce * D)
        dw_w = jax.random.normal(next(keys), (K, D), jnp.float32) * (1.0 / math.sqrt(K))
        dw_b = jnp.zeros(D)
        pw2_w, pw2_b = lin(D, D)
        lp['conv'] = dict(ln_g=jnp.ones(D), ln_b=jnp.zeros(D),
                          pw1v_w=pw1_w[:, :D], pw1v_b=pw1_b[:D],    # GLU value half
                          pw1g_w=pw1_w[:, D:], pw1g_b=pw1_b[D:],    # GLU gate half
                          dw_w=dw_w, dw_b=dw_b,
                          pw2_w=pw2_w, pw2_b=pw2_b)
        lp['ln_g'], lp['ln_b'] = jnp.ones(D), jnp.zeros(D)
        layers.append(lp)

    fc_w, _ = lin(D, nc, bias=False)
    return {'subsampling': sub, 'layers': layers, 'fc_w': fc_w}


# ----------------------------------------------------------------------------
# Main
# ----------------------------------------------------------------------------

if __name__ == "__main__":
    config = dict(
        num_classes=10,
        input_dim=16,
        encoder_dim=32,
        num_layers=2,
        num_heads=4,
        ff_expansion=4,
        conv_expansion=2,
        conv_kernel_size=9,
        half_step_residual=True,
    )
    key = jax.random.PRNGKey(0)
    pkey, xkey = jax.random.split(key)
    params = init_params(pkey, config)

    B, T = 2, 64
    inputs = jax.random.normal(xkey, (B, T, config['input_dim']), jnp.float32)
    input_lengths = jnp.array([64, 48], dtype=jnp.int32)

    fwd = jax.jit(functools.partial(fast_conformer_forward, config=config))
    outputs, out_lengths = fwd(params, inputs, input_lengths)
    jax.block_until_ready(outputs)
    jax.block_until_ready(out_lengths)

    assert outputs.shape == (B, 7, config['num_classes']), outputs.shape
    assert out_lengths.shape == (B,)
    assert bool(jnp.all(jnp.isfinite(outputs)))
    print("KERNEL_OK")
</pallas_src>

<mosaic_0001>
module attributes {stable_mosaic.version = 11 : i64} {
  func.func @_matmul_kernel(%arg0: i32, %arg1: i32, %arg2: i32, %arg3: memref<434x9xf32, #tpu.memory_space<vmem>>, %arg4: memref<9x32xbf16, #tpu.memory_space<vmem>>, %arg5: memref<1x32xf32, #tpu.memory_space<vmem>>, %arg6: memref<434x32xbf16, #tpu.memory_space<vmem>>, %arg7: memref<434x32xf32, #tpu.memory_space<vmem>>) attributes {dimension_semantics = [#tpu.dimension_semantics<parallel>, #tpu.dimension_semantics<parallel>, #tpu.dimension_semantics<arbitrary>], iteration_bounds = array<i64: 1, 1, 1>, scalar_prefetch = 0 : i64, scratch_operands = 1 : i64, tpu.core_type = #tpu.core_type<tc>, window_params = [{transform_indices = @transform_0, window_bounds = array<i64: 434, 9>}, {transform_indices = @transform_1, window_bounds = array<i64: 9, 32>}, {transform_indices = @transform_2, window_bounds = array<i64: 1, 32>}, {transform_indices = @transform_3, window_bounds = array<i64: 434, 32>}]} {
    %c0_i32 = arith.constant 0 : i32
    %0 = arith.cmpi eq, %arg2, %c0_i32 : i32
    %1 = arith.extui %0 : i1 to i32
    %c0_i32_0 = arith.constant 0 : i32
    %2 = arith.cmpi ne, %1, %c0_i32_0 : i32
    scf.if %2 {
      %cst_10 = arith.constant 0.000000e+00 : f32
      %13 = vector.broadcast %cst_10 : f32 to vector<434x32xf32>
      %c0_11 = arith.constant 0 : index
      %c0_12 = arith.constant 0 : index
      %14 = vector.load %arg7[%c0_11, %c0_12] : memref<434x32xf32, #tpu.memory_space<vmem>>, vector<434x32xf32>
      tpu.vector_store %arg7[%c0_11, %c0_12], %13 {strides = array<i32>} : memref<434x32xf32, #tpu.memory_space<vmem>>, vector<434x32xf32>,
    } else {
    }
    %c0 = arith.constant 0 : index
    %c0_1 = arith.constant 0 : index
    %3 = vector.load %arg7[%c0, %c0_1] : memref<434x32xf32, #tpu.memory_space<vmem>>, vector<434x32xf32>
    %c0_2 = arith.constant 0 : index
    %c0_3 = arith.constant 0 : index
    %4 = vector.load %arg3[%c0_2, %c0_3] : memref<434x9xf32, #tpu.memory_space<vmem>>, vector<434x9xf32>
    %5 = arith.truncf %4 : vector<434x9xf32> to vector<434x9xbf16>
    %c0_4 = arith.constant 0 : index
    %c0_5 = arith.constant 0 : index
    %6 = vector.load %arg4[%c0_4, %c0_5] : memref<9x32xbf16, #tpu.memory_space<vmem>>, vector<9x32xbf16>
    %cst = arith.constant dense<0.000000e+00> : vector<434x32xf32>
    %7 = tpu.matmul %5, %6, %cst {dimension_numbers = #tpu.dot_dimension_numbers<[1], [0], [0], [1], [0, 0, 1, 1], [], []>} : vector<434x9xbf16>, vector<9x32xbf16>, vector<434x32xf32> -> vector<434x32xf32>
    %8 = arith.addf %3, %7 : vector<434x32xf32>
    %c0_6 = arith.constant 0 : index
    %c0_7 = arith.constant 0 : index
    %9 = vector.load %arg7[%c0_6, %c0_7] : memref<434x32xf32, #tpu.memory_space<vmem>>, vector<434x32xf32>
    tpu.vector_store %arg7[%c0_6, %c0_7], %8 {strides = array<i32>} : memref<434x32xf32, #tpu.memory_space<vmem>>, vector<434x32xf32>,
    %c0_i32_8 = arith.constant 0 : i32
    %10 = arith.cmpi eq, %arg2, %c0_i32_8 : i32
    %11 = arith.extui %10 : i1 to i32
    %c0_i32_9 = arith.constant 0 : i32
    %12 = arith.cmpi ne, %11, %c0_i32_9 : i32
    scf.if %12 {
      %c0_10 = arith.constant 0 : index
      %c0_11 = arith.constant 0 : index
      %13 = vector.load %arg7[%c0_10, %c0_11] : memref<434x32xf32, #tpu.memory_space<vmem>>, vector<434x32xf32>
      %c0_12 = arith.constant 0 : index
      %c0_13 = arith.constant 0 : index
      %14 = vector.load %arg5[%c0_12, %c0_13] : memref<1x32xf32, #tpu.memory_space<vmem>>, vector<1x32xf32>
      %15 = vector.broadcast %14 : vector<1x32xf32> to vector<434x32xf32>
      %16 = arith.addf %13, %15 : vector<434x32xf32>
      %cst_14 = arith.constant 0.000000e+00 : f32
      %17 = vector.broadcast %cst_14 : f32 to vector<434x32xf32>
      %18 = arith.maximumf %16, %17 : vector<434x32xf32>
      %19 = arith.truncf %18 : vector<434x32xf32> to vector<434x32xbf16>
      %c0_15 = arith.constant 0 : index
      %c0_16 = arith.constant 0 : index
      %20 = vector.load %arg6[%c0_15, %c0_16] : memref<434x32xbf16, #tpu.memory_space<vmem>>, vector<434x32xbf16>
      tpu.vector_store %arg6[%c0_15, %c0_16], %19 {strides = array<i32>} : memref<434x32xbf16, #tpu.memory_space<vmem>>, vector<434x32xbf16>,
    } else {
    }
    return
  }
  func.func @transform_0(%arg0: i32, %arg1: i32, %arg2: i32) -> (i32, i32) {
    %c0_i32 = arith.constant 0 : i32
    return %arg0, %arg2 : i32, i32
  }
  func.func @transform_1(%arg0: i32, %arg1: i32, %arg2: i32) -> (i32, i32) {
    %c0_i32 = arith.constant 0 : i32
    return %arg2, %arg1 : i32, i32
  }
  func.func @transform_2(%arg0: i32, %arg1: i32, %arg2: i32) -> (i32, i32) {
    %c0_i32 = arith.constant 0 : i32
    %c0_i32_0 = arith.constant 0 : i32
    return %c0_i32, %arg1 : i32, i32
  }
  func.func @transform_3(%arg0: i32, %arg1: i32, %arg2: i32) -> (i32, i32) {
    %c0_i32 = arith.constant 0 : i32
    return %arg0, %arg1 : i32, i32
  }
}

module attributes {stable_mosaic.version = 11 : i64} {
  func.func @_matmul_kernel(%arg0: i32, %arg1: i32, %arg2: i32, %arg3: memref<90x288xbf16, #tpu.memory_space<vmem>>, %arg4: memref<288x32xbf16, #tpu.memory_space<vmem>>, %arg5: memref<1x32xf32, #tpu.memory_space<vmem>>, %arg6: memref<90x32xbf16, #tpu.memory_space<vmem>>, %arg7: memref<90x32xf32, #tpu.memory_space<vmem>>) attributes {dimension_semantics = [#tpu.dimension_semantics<parallel>, #tpu.dimension_semantics<parallel>, #tpu.dimension_semantics<arbitrary>], iteration_bounds = array<i64: 1, 1, 1>, scalar_prefetch = 0 : i64, scratch_operands = 1 : i64, tpu.core_type = #tpu.core_type<tc>, window_params = [{transform_indices = @transform_0, window_bounds = array<i64: 90, 288>}, {transform_indices = @transform_1, window_bounds = array<i64: 288, 32>}, {transform_indices = @transform_2, window_bounds = array<i64: 1, 32>}, {transform_indices = @transform_3, window_bounds = array<i64: 90, 32>}]} {
    %c0_i32 = arith.constant 0 : i32
    %0 = arith.cmpi eq, %arg2, %c0_i32 : i32
    %1 = arith.extui %0 : i1 to i32
    %c0_i32_0 = arith.constant 0 : i32
    %2 = arith.cmpi ne, %1, %c0_i32_0 : i32
    scf.if %2 {
      %cst_10 = arith.constant 0.000000e+00 : f32
      %12 = vector.broadcast %cst_10 : f32 to vector<90x32xf32>
      %c0_11 = arith.constant 0 : index
      %c0_12 = arith.constant 0 : index
      %13 = vector.load %arg7[%c0_11, %c0_12] : memref<90x32xf32, #tpu.memory_space<vmem>>, vector<90x32xf32>
      tpu.vector_store %arg7[%c0_11, %c0_12], %12 {strides = array<i32>} : memref<90x32xf32, #tpu.memory_space<vmem>>, vector<90x32xf32>,
    } else {
    }
    %c0 = arith.constant 0 : index
    %c0_1 = arith.constant 0 : index
    %3 = vector.load %arg7[%c0, %c0_1] : memref<90x32xf32, #tpu.memory_space<vmem>>, vector<90x32xf32>
    %c0_2 = arith.constant 0 : index
    %c0_3 = arith.constant 0 : index
    %4 = vector.load %arg3[%c0_2, %c0_3] : memref<90x288xbf16, #tpu.memory_space<vmem>>, vector<90x288xbf16>
    %c0_4 = arith.constant 0 : index
    %c0_5 = arith.constant 0 : index
    %5 = vector.load %arg4[%c0_4, %c0_5] : memref<288x32xbf16, #tpu.memory_space<vmem>>, vector<288x32xbf16>
    %cst = arith.constant dense<0.000000e+00> : vector<90x32xf32>
    %6 = tpu.matmul %4, %5, %cst {dimension_numbers = #tpu.dot_dimension_numbers<[1], [0], [0], [1], [0, 0, 1, 1], [], []>} : vector<90x288xbf16>, vector<288x32xbf16>, vector<90x32xf32> -> vector<90x32xf32>
    %7 = arith.addf %3, %6 : vector<90x32xf32>
    %c0_6 = arith.constant 0 : index
    %c0_7 = arith.constant 0 : index
    %8 = vector.load %arg7[%c0_6, %c0_7] : memref<90x32xf32, #tpu.memory_space<vmem>>, vector<90x32xf32>
    tpu.vector_store %arg7[%c0_6, %c0_7], %7 {strides = array<i32>} : memref<90x32xf32, #tpu.memory_space<vmem>>, vector<90x32xf32>,
    %c0_i32_8 = arith.constant 0 : i32
    %9 = arith.cmpi eq, %arg2, %c0_i32_8 : i32
    %10 = arith.extui %9 : i1 to i32
    %c0_i32_9 = arith.constant 0 : i32
    %11 = arith.cmpi ne, %10, %c0_i32_9 : i32
    scf.if %11 {
      %c0_10 = arith.constant 0 : index
      %c0_11 = arith.constant 0 : index
      %12 = vector.load %arg7[%c0_10, %c0_11] : memref<90x32xf32, #tpu.memory_space<vmem>>, vector<90x32xf32>
      %c0_12 = arith.constant 0 : index
      %c0_13 = arith.constant 0 : index
      %13 = vector.load %arg5[%c0_12, %c0_13] : memref<1x32xf32, #tpu.memory_space<vmem>>, vector<1x32xf32>
      %14 = vector.broadcast %13 : vector<1x32xf32> to vector<90x32xf32>
      %15 = arith.addf %12, %14 : vector<90x32xf32>
      %cst_14 = arith.constant 0.000000e+00 : f32
      %16 = vector.broadcast %cst_14 : f32 to vector<90x32xf32>
      %17 = arith.maximumf %15, %16 : vector<90x32xf32>
      %18 = arith.truncf %17 : vector<90x32xf32> to vector<90x32xbf16>
      %c0_15 = arith.constant 0 : index
      %c0_16 = arith.constant 0 : index
      %19 = vector.load %arg6[%c0_15, %c0_16] : memref<90x32xbf16, #tpu.memory_space<vmem>>, vector<90x32xbf16>
      tpu.vector_store %arg6[%c0_15, %c0_16], %18 {strides = array<i32>} : memref<90x32xbf16, #tpu.memory_space<vmem>>, vector<90x32xbf16>,
    } else {
    }
    return
  }
  func.func @transform_0(%arg0: i32, %arg1: i32, %arg2: i32) -> (i32, i32) {
    %c0_i32 = arith.constant 0 : i32
    return %arg0, %arg2 : i32, i32
  }
  func.func @transform_1(%arg0: i32, %arg1: i32, %arg2: i32) -> (i32, i32) {
    %c0_i32 = arith.constant 0 : i32
    return %arg2, %arg1 : i32, i32
  }
  func.func @transform_2(%arg0: i32, %arg1: i32, %arg2: i32) -> (i32, i32) {
    %c0_i32 = arith.constant 0 : i32
    %c0_i32_0 = arith.constant 0 : i32
    return %c0_i32, %arg1 : i32, i32
  }
  func.func @transform_3(%arg0: i32, %arg1: i32, %arg2: i32) -> (i32, i32) {
    %c0_i32 = arith.constant 0 : i32
    return %arg0, %arg1 : i32, i32
  }
}

module attributes {stable_mosaic.version = 11 : i64} {
  func.func @_matmul_kernel(%arg0: i32, %arg1: i32, %arg2: i32, %arg3: memref<14x288xbf16, #tpu.memory_space<vmem>>, %arg4: memref<288x32xbf16, #tpu.memory_space<vmem>>, %arg5: memref<1x32xf32, #tpu.memory_space<vmem>>, %arg6: memref<14x32xbf16, #tpu.memory_space<vmem>>, %arg7: memref<14x32xf32, #tpu.memory_space<vmem>>) attributes {dimension_semantics = [#tpu.dimension_semantics<parallel>, #tpu.dimension_semantics<parallel>, #tpu.dimension_semantics<arbitrary>], iteration_bounds = array<i64: 1, 1, 1>, scalar_prefetch = 0 : i64, scratch_operands = 1 : i64, tpu.core_type = #tpu.core_type<tc>, window_params = [{transform_indices = @transform_0, window_bounds = array<i64: 14, 288>}, {transform_indices = @transform_1, window_bounds = array<i64: 288, 32>}, {transform_indices = @transform_2, window_bounds = array<i64: 1, 32>}, {transform_indices = @transform_3, window_bounds = array<i64: 14, 32>}]} {
    %c0_i32 = arith.constant 0 : i32
    %0 = arith.cmpi eq, %arg2, %c0_i32 : i32
    %1 = arith.extui %0 : i1 to i32
    %c0_i32_0 = arith.constant 0 : i32
    %2 = arith.cmpi ne, %1, %c0_i32_0 : i32
    scf.if %2 {
      %cst_10 = arith.constant 0.000000e+00 : f32
      %12 = vector.broadcast %cst_10 : f32 to vector<14x32xf32>
      %c0_11 = arith.constant 0 : index
      %c0_12 = arith.constant 0 : index
      %13 = vector.load %arg7[%c0_11, %c0_12] : memref<14x32xf32, #tpu.memory_space<vmem>>, vector<14x32xf32>
      tpu.vector_store %arg7[%c0_11, %c0_12], %12 {strides = array<i32>} : memref<14x32xf32, #tpu.memory_space<vmem>>, vector<14x32xf32>,
    } else {
    }
    %c0 = arith.constant 0 : index
    %c0_1 = arith.constant 0 : index
    %3 = vector.load %arg7[%c0, %c0_1] : memref<14x32xf32, #tpu.memory_space<vmem>>, vector<14x32xf32>
    %c0_2 = arith.constant 0 : index
    %c0_3 = arith.constant 0 : index
    %4 = vector.load %arg3[%c0_2, %c0_3] : memref<14x288xbf16, #tpu.memory_space<vmem>>, vector<14x288xbf16>
    %c0_4 = arith.constant 0 : index
    %c0_5 = arith.constant 0 : index
    %5 = vector.load %arg4[%c0_4, %c0_5] : memref<288x32xbf16, #tpu.memory_space<vmem>>, vector<288x32xbf16>
    %cst = arith.constant dense<0.000000e+00> : vector<14x32xf32>
    %6 = tpu.matmul %4, %5, %cst {dimension_numbers = #tpu.dot_dimension_numbers<[1], [0], [0], [1], [0, 0, 1, 1], [], []>} : vector<14x288xbf16>, vector<288x32xbf16>, vector<14x32xf32> -> vector<14x32xf32>
    %7 = arith.addf %3, %6 : vector<14x32xf32>
    %c0_6 = arith.constant 0 : index
    %c0_7 = arith.constant 0 : index
    %8 = vector.load %arg7[%c0_6, %c0_7] : memref<14x32xf32, #tpu.memory_space<vmem>>, vector<14x32xf32>
    tpu.vector_store %arg7[%c0_6, %c0_7], %7 {strides = array<i32>} : memref<14x32xf32, #tpu.memory_space<vmem>>, vector<14x32xf32>,
    %c0_i32_8 = arith.constant 0 : i32
    %9 = arith.cmpi eq, %arg2, %c0_i32_8 : i32
    %10 = arith.extui %9 : i1 to i32
    %c0_i32_9 = arith.constant 0 : i32
    %11 = arith.cmpi ne, %10, %c0_i32_9 : i32
    scf.if %11 {
      %c0_10 = arith.constant 0 : index
      %c0_11 = arith.constant 0 : index
      %12 = vector.load %arg7[%c0_10, %c0_11] : memref<14x32xf32, #tpu.memory_space<vmem>>, vector<14x32xf32>
      %c0_12 = arith.constant 0 : index
      %c0_13 = arith.constant 0 : index
      %13 = vector.load %arg5[%c0_12, %c0_13] : memref<1x32xf32, #tpu.memory_space<vmem>>, vector<1x32xf32>
      %14 = vector.broadcast %13 : vector<1x32xf32> to vector<14x32xf32>
      %15 = arith.addf %12, %14 : vector<14x32xf32>
      %cst_14 = arith.constant 0.000000e+00 : f32
      %16 = vector.broadcast %cst_14 : f32 to vector<14x32xf32>
      %17 = arith.maximumf %15, %16 : vector<14x32xf32>
      %18 = arith.truncf %17 : vector<14x32xf32> to vector<14x32xbf16>
      %c0_15 = arith.constant 0 : index
      %c0_16 = arith.constant 0 : index
      %19 = vector.load %arg6[%c0_15, %c0_16] : memref<14x32xbf16, #tpu.memory_space<vmem>>, vector<14x32xbf16>
      tpu.vector_store %arg6[%c0_15, %c0_16], %18 {strides = array<i32>} : memref<14x32xbf16, #tpu.memory_space<vmem>>, vector<14x32xbf16>,
    } else {
    }
    return
  }
  func.func @transform_0(%arg0: i32, %arg1: i32, %arg2: i32) -> (i32, i32) {
    %c0_i32 = arith.constant 0 : i32
    return %arg0, %arg2 : i32, i32
  }
  func.func @transform_1(%arg0: i32, %arg1: i32, %arg2: i32) -> (i32, i32) {
    %c0_i32 = arith.constant 0 : i32
    return %arg2, %arg1 : i32, i32
  }
  func.func @transform_2(%arg0: i32, %arg1: i32, %arg2: i32) -> (i32, i32) {
    %c0_i32 = arith.constant 0 : i32
    %c0_i32_0 = arith.constant 0 : i32
    return %c0_i32, %arg1 : i32, i32
  }
  func.func @transform_3(%arg0: i32, %arg1: i32, %arg2: i32) -> (i32, i32) {
    %c0_i32 = arith.constant 0 : i32
    return %arg0, %arg1 : i32, i32
  }
}

module attributes {stable_mosaic.version = 11 : i64} {
  func.func @_matmul_kernel(%arg0: i32, %arg1: i32, %arg2: i32, %arg3: memref<14x32xbf16, #tpu.memory_space<vmem>>, %arg4: memref<32x32xbf16, #tpu.memory_space<vmem>>, %arg5: memref<1x32xf32, #tpu.memory_space<vmem>>, %arg6: memref<14x32xbf16, #tpu.memory_space<vmem>>, %arg7: memref<14x32xf32, #tpu.memory_space<vmem>>) attributes {dimension_semantics = [#tpu.dimension_semantics<parallel>, #tpu.dimension_semantics<parallel>, #tpu.dimension_semantics<arbitrary>], iteration_bounds = array<i64: 1, 1, 1>, scalar_prefetch = 0 : i64, scratch_operands = 1 : i64, tpu.core_type = #tpu.core_type<tc>, window_params = [{transform_indices = @transform_0, window_bounds = array<i64: 14, 32>}, {transform_indices = @transform_1, window_bounds = array<i64: 32, 32>}, {transform_indices = @transform_2, window_bounds = array<i64: 1, 32>}, {transform_indices = @transform_3, window_bounds = array<i64: 14, 32>}]} {
    %c0_i32 = arith.constant 0 : i32
    %0 = arith.cmpi eq, %arg2, %c0_i32 : i32
    %1 = arith.extui %0 : i1 to i32
    %c0_i32_0 = arith.constant 0 : i32
    %2 = arith.cmpi ne, %1, %c0_i32_0 : i32
    scf.if %2 {
      %cst_10 = arith.constant 0.000000e+00 : f32
      %12 = vector.broadcast %cst_10 : f32 to vector<14x32xf32>
      %c0_11 = arith.constant 0 : index
      %c0_12 = arith.constant 0 : index
      %13 = vector.load %arg7[%c0_11, %c0_12] : memref<14x32xf32, #tpu.memory_space<vmem>>, vector<14x32xf32>
      tpu.vector_store %arg7[%c0_11, %c0_12], %12 {strides = array<i32>} : memref<14x32xf32, #tpu.memory_space<vmem>>, vector<14x32xf32>,
    } else {
    }
    %c0 = arith.constant 0 : index
    %c0_1 = arith.constant 0 : index
    %3 = vector.load %arg7[%c0, %c0_1] : memref<14x32xf32, #tpu.memory_space<vmem>>, vector<14x32xf32>
    %c0_2 = arith.constant 0 : index
    %c0_3 = arith.constant 0 : index
    %4 = vector.load %arg3[%c0_2, %c0_3] : memref<14x32xbf16, #tpu.memory_space<vmem>>, vector<14x32xbf16>
    %c0_4 = arith.constant 0 : index
    %c0_5 = arith.constant 0 : index
    %5 = vector.load %arg4[%c0_4, %c0_5] : memref<32x32xbf16, #tpu.memory_space<vmem>>, vector<32x32xbf16>
    %cst = arith.constant dense<0.000000e+00> : vector<14x32xf32>
    %6 = tpu.matmul %4, %5, %cst {dimension_numbers = #tpu.dot_dimension_numbers<[1], [0], [0], [1], [0, 0, 1, 1], [], []>} : vector<14x32xbf16>, vector<32x32xbf16>, vector<14x32xf32> -> vector<14x32xf32>
    %7 = arith.addf %3, %6 : vector<14x32xf32>
    %c0_6 = arith.constant 0 : index
    %c0_7 = arith.constant 0 : index
    %8 = vector.load %arg7[%c0_6, %c0_7] : memref<14x32xf32, #tpu.memory_space<vmem>>, vector<14x32xf32>
    tpu.vector_store %arg7[%c0_6, %c0_7], %7 {strides = array<i32>} : memref<14x32xf32, #tpu.memory_space<vmem>>, vector<14x32xf32>,
    %c0_i32_8 = arith.constant 0 : i32
    %9 = arith.cmpi eq, %arg2, %c0_i32_8 : i32
    %10 = arith.extui %9 : i1 to i32
    %c0_i32_9 = arith.constant 0 : i32
    %11 = arith.cmpi ne, %10, %c0_i32_9 : i32
    scf.if %11 {
      %c0_10 = arith.constant 0 : index
      %c0_11 = arith.constant 0 : index
      %12 = vector.load %arg7[%c0_10, %c0_11] : memref<14x32xf32, #tpu.memory_space<vmem>>, vector<14x32xf32>
      %c0_12 = arith.constant 0 : index
      %c0_13 = arith.constant 0 : index
      %13 = vector.load %arg5[%c0_12, %c0_13] : memref<1x32xf32, #tpu.memory_space<vmem>>, vector<1x32xf32>
      %14 = vector.broadcast %13 : vector<1x32xf32> to vector<14x32xf32>
      %15 = arith.addf %12, %14 : vector<14x32xf32>
      %16 = arith.truncf %15 : vector<14x32xf32> to vector<14x32xbf16>
      %c0_14 = arith.constant 0 : index
      %c0_15 = arith.constant 0 : index
      %17 = vector.load %arg6[%c0_14, %c0_15] : memref<14x32xbf16, #tpu.memory_space<vmem>>, vector<14x32xbf16>
      tpu.vector_store %arg6[%c0_14, %c0_15], %16 {strides = array<i32>} : memref<14x32xbf16, #tpu.memory_space<vmem>>, vector<14x32xbf16>,
    } else {
    }
    return
  }
  func.func @transform_0(%arg0: i32, %arg1: i32, %arg2: i32) -> (i32, i32) {
    %c0_i32 = arith.constant 0 : i32
    return %arg0, %arg2 : i32, i32
  }
  func.func @transform_1(%arg0: i32, %arg1: i32, %arg2: i32) -> (i32, i32) {
    %c0_i32 = arith.constant 0 : i32
    return %arg2, %arg1 : i32, i32
  }
  func.func @transform_2(%arg0: i32, %arg1: i32, %arg2: i32) -> (i32, i32) {
    %c0_i32 = arith.constant 0 : i32
    %c0_i32_0 = arith.constant 0 : i32
    return %c0_i32, %arg1 : i32, i32
  }
  func.func @transform_3(%arg0: i32, %arg1: i32, %arg2: i32) -> (i32, i32) {
    %c0_i32 = arith.constant 0 : i32
    return %arg0, %arg1 : i32, i32
  }
}

module attributes {stable_mosaic.version = 11 : i64} {
  func.func @_ffn_kernel(%arg0: i32, %arg1: memref<14x32xbf16, #tpu.memory_space<vmem>>, %arg2: memref<1x32xf32, #tpu.memory_space<vmem>>, %arg3: memref<1x32xf32, #tpu.memory_space<vmem>>, %arg4: memref<32x128xbf16, #tpu.memory_space<vmem>>, %arg5: memref<1x128xf32, #tpu.memory_space<vmem>>, %arg6: memref<128x32xbf16, #tpu.memory_space<vmem>>, %arg7: memref<1x32xf32, #tpu.memory_space<vmem>>, %arg8: memref<1x32xf32, #tpu.memory_space<vmem>>, %arg9: memref<1x32xf32, #tpu.memory_space<vmem>>, %arg10: memref<14x32xbf16, #tpu.memory_space<vmem>>) attributes {dimension_semantics = [#tpu.dimension_semantics<parallel>], iteration_bounds = array<i64: 1>, scalar_prefetch = 0 : i64, scratch_operands = 0 : i64, tpu.core_type = #tpu.core_type<tc>, window_params = [{transform_indices = @transform_0, window_bounds = array<i64: 14, 32>}, {pipeline_mode = #tpu.pipeline_mode<synchronous>, transform_indices = @transform_1, window_bounds = array<i64: 1, 32>}, {pipeline_mode = #tpu.pipeline_mode<synchronous>, transform_indices = @transform_2, window_bounds = array<i64: 1, 32>}, {pipeline_mode = #tpu.pipeline_mode<synchronous>, transform_indices = @transform_3, window_bounds = array<i64: 32, 128>}, {pipeline_mode = #tpu.pipeline_mode<synchronous>, transform_indices = @transform_4, window_bounds = array<i64: 1, 128>}, {pipeline_mode = #tpu.pipeline_mode<synchronous>, transform_indices = @transform_5, window_bounds = array<i64: 128, 32>}, {pipeline_mode = #tpu.pipeline_mode<synchronous>, transform_indices = @transform_6, window_bounds = array<i64: 1, 32>}, {pipeline_mode = #tpu.pipeline_mode<synchronous>, transform_indices = @transform_7, window_bounds = array<i64: 1, 32>}, {pipeline_mode = #tpu.pipeline_mode<synchronous>, transform_indices = @transform_8, window_bounds = array<i64: 1, 32>}, {transform_indices = @transform_9, window_bounds = array<i64: 14, 32>}]} {
    %c0 = arith.constant 0 : index
    %c0_0 = arith.constant 0 : index
    %0 = vector.load %arg1[%c0, %c0_0] : memref<14x32xbf16, #tpu.memory_space<vmem>>, vector<14x32xbf16>
    %1 = arith.extf %0 : vector<14x32xbf16> to vector<14x32xf32>
    %c0_1 = arith.constant 0 : index
    %c0_2 = arith.constant 0 : index
    %2 = vector.load %arg2[%c0_1, %c0_2] : memref<1x32xf32, #tpu.memory_space<vmem>>, vector<1x32xf32>
    %c0_3 = arith.constant 0 : index
    %c0_4 = arith.constant 0 : index
    %3 = vector.load %arg3[%c0_3, %c0_4] : memref<1x32xf32, #tpu.memory_space<vmem>>, vector<1x32xf32>
    %cst = arith.constant dense<0.000000e+00> : vector<14xf32>
    %4 = vector.multi_reduction <add>, %1, %cst [1] : vector<14x32xf32> to vector<14xf32>
    %5 = vector.shape_cast %4 : vector<14xf32> to vector<14x1xf32>
    %cst_5 = arith.constant 3.200000e+01 : f32
    %6 = vector.broadcast %cst_5 : f32 to vector<14x1xf32>
    %7 = arith.divf %5, %6 : vector<14x1xf32>
    %8 = vector.broadcast %7 : vector<14x1xf32> to vector<14x32xf32>
    %9 = arith.subf %1, %8 : vector<14x32xf32>
    %10 = arith.mulf %9, %9 : vector<14x32xf32>
    %cst_6 = arith.constant dense<0.000000e+00> : vector<14xf32>
    %11 = vector.multi_reduction <add>, %10, %cst_6 [1] : vector<14x32xf32> to vector<14xf32>
    %12 = vector.shape_cast %11 : vector<14xf32> to vector<14x1xf32>
    %cst_7 = arith.constant 3.200000e+01 : f32
    %13 = vector.broadcast %cst_7 : f32 to vector<14x1xf32>
    %14 = arith.divf %12, %13 : vector<14x1xf32>
    %15 = vector.broadcast %7 : vector<14x1xf32> to vector<14x32xf32>
    %16 = arith.subf %1, %15 : vector<14x32xf32>
    %cst_8 = arith.constant 9.99999974E-6 : f32
    %17 = vector.broadcast %cst_8 : f32 to vector<14x1xf32>
    %18 = arith.addf %14, %17 : vector<14x1xf32>
    %19 = math.rsqrt %18 : vector<14x1xf32>
    %20 = vector.broadcast %19 : vector<14x1xf32> to vector<14x32xf32>
    %21 = arith.mulf %16, %20 : vector<14x32xf32>
    %22 = vector.broadcast %2 : vector<1x32xf32> to vector<14x32xf32>
    %23 = arith.mulf %21, %22 : vector<14x32xf32>
    %24 = vector.broadcast %3 : vector<1x32xf32> to vector<14x32xf32>
    %25 = arith.addf %23, %24 : vector<14x32xf32>
    %26 = arith.truncf %25 : vector<14x32xf32> to vector<14x32xbf16>
    %c0_9 = arith.constant 0 : index
    %c0_10 = arith.constant 0 : index
    %27 = vector.load %arg4[%c0_9, %c0_10] : memref<32x128xbf16, #tpu.memory_space<vmem>>, vector<32x128xbf16>
    %cst_11 = arith.constant dense<0.000000e+00> : vector<14x128xf32>
    %28 = tpu.matmul %26, %27, %cst_11 {dimension_numbers = #tpu.dot_dimension_numbers<[1], [0], [0], [1], [0, 0, 1, 1], [], []>} : vector<14x32xbf16>, vector<32x128xbf16>, vector<14x128xf32> -> vector<14x128xf32>
    %c0_12 = arith.constant 0 : index
    %c0_13 = arith.constant 0 : index
    %29 = vector.load %arg5[%c0_12, %c0_13] : memref<1x128xf32, #tpu.memory_space<vmem>>, vector<1x128xf32>
    %30 = vector.broadcast %29 : vector<1x128xf32> to vector<14x128xf32>
    %31 = arith.addf %28, %30 : vector<14x128xf32>
    %cst_14 = arith.constant 0.000000e+00 : f32
    %32 = vector.broadcast %cst_14 : f32 to vector<14x128xf32>
    %33 = arith.subf %32, %31 : vector<14x128xf32>
    %34 = math.exp %33 : vector<14x128xf32>
    %cst_15 = arith.constant 1.000000e+00 : f32
    %35 = vector.broadcast %cst_15 : f32 to vector<14x128xf32>
    %36 = arith.addf %35, %34 : vector<14x128xf32>
    %cst_16 = arith.constant 1.000000e+00 : f32
    %37 = vector.broadcast %cst_16 : f32 to vector<14x128xf32>
    %38 = arith.divf %37, %36 : vector<14x128xf32>
    %39 = arith.mulf %31, %38 : vector<14x128xf32>
    %40 = arith.truncf %39 : vector<14x128xf32> to vector<14x128xbf16>
    %c0_17 = arith.constant 0 : index
    %c0_18 = arith.constant 0 : index
    %41 = vector.load %arg6[%c0_17, %c0_18] : memref<128x32xbf16, #tpu.memory_space<vmem>>, vector<128x32xbf16>
    %cst_19 = arith.constant dense<0.000000e+00> : vector<14x32xf32>
    %42 = tpu.matmul %40, %41, %cst_19 {dimension_numbers = #tpu.dot_dimension_numbers<[1], [0], [0], [1], [0, 0, 1, 1], [], []>} : vector<14x128xbf16>, vector<128x32xbf16>, vector<14x32xf32> -> vector<14x32xf32>
    %c0_20 = arith.constant 0 : index
    %c0_21 = arith.constant 0 : index
    %43 = vector.load %arg7[%c0_20, %c0_21] : memref<1x32xf32, #tpu.memory_space<vmem>>, vector<1x32xf32>
    %44 = vector.broadcast %43 : vector<1x32xf32> to vector<14x32xf32>
    %45 = arith.addf %42, %44 : vector<14x32xf32>
    %cst_22 = arith.constant 5.000000e-01 : f32
    %46 = vector.broadcast %cst_22 : f32 to vector<14x32xf32>
    %47 = arith.mulf %46, %45 : vector<14x32xf32>
    %48 = arith.addf %1, %47 : vector<14x32xf32>
    %49 = arith.truncf %48 : vector<14x32xf32> to vector<14x32xbf16>
    %c0_23 = arith.constant 0 : index
    %c0_24 = arith.constant 0 : index
    %50 = vector.load %arg10[%c0_23, %c0_24] : memref<14x32xbf16, #tpu.memory_space<vmem>>, vector<14x32xbf16>
    tpu.vector_store %arg10[%c0_23, %c0_24], %49 {strides = array<i32>} : memref<14x32xbf16, #tpu.memory_space<vmem>>, vector<14x32xbf16>,
    return
  }
  func.func @transform_0(%arg0: i32) -> (i32, i32) {
    %c0_i32 = arith.constant 0 : i32
    %c0_i32_0 = arith.constant 0 : i32
    return %arg0, %c0_i32 : i32, i32
  }
  func.func @transform_1(%arg0: i32) -> (i32, i32) {
    %c0_i32 = arith.constant 0 : i32
    %c0_i32_0 = arith.constant 0 : i32
    %c0_i32_1 = arith.constant 0 : i32
    return %c0_i32, %c0_i32_0 : i32, i32
  }
  func.func @transform_2(%arg0: i32) -> (i32, i32) {
    %c0_i32 = arith.constant 0 : i32
    %c0_i32_0 = arith.constant 0 : i32
    %c0_i32_1 = arith.constant 0 : i32
    return %c0_i32, %c0_i32_0 : i32, i32
  }
  func.func @transform_3(%arg0: i32) -> (i32, i32) {
    %c0_i32 = arith.constant 0 : i32
    %c0_i32_0 = arith.constant 0 : i32
    %c0_i32_1 = arith.constant 0 : i32
    return %c0_i32, %c0_i32_0 : i32, i32
  }
  func.func @transform_4(%arg0: i32) -> (i32, i32) {
    %c0_i32 = arith.constant 0 : i32
    %c0_i32_0 = arith.constant 0 : i32
    %c0_i32_1 = arith.constant 0 : i32
    return %c0_i32, %c0_i32_0 : i32, i32
  }
  func.func @transform_5(%arg0: i32) -> (i32, i32) {
    %c0_i32 = arith.constant 0 : i32
    %c0_i32_0 = arith.constant 0 : i32
    %c0_i32_1 = arith.constant 0 : i32
    return %c0_i32, %c0_i32_0 : i32, i32
  }
  func.func @transform_6(%arg0: i32) -> (i32, i32) {
    %c0_i32 = arith.constant 0 : i32
    %c0_i32_0 = arith.constant 0 : i32
    %c0_i32_1 = arith.constant 0 : i32
    return %c0_i32, %c0_i32_0 : i32, i32
  }
  func.func @transform_7(%arg0: i32) -> (i32, i32) {
    %c0_i32 = arith.constant 0 : i32
    %c0_i32_0 = arith.constant 0 : i32
    %c0_i32_1 = arith.constant 0 : i32
    return %c0_i32, %c0_i32_0 : i32, i32
  }
  func.func @transform_8(%arg0: i32) -> (i32, i32) {
    %c0_i32 = arith.constant 0 : i32
    %c0_i32_0 = arith.constant 0 : i32
    %c0_i32_1 = arith.constant 0 : i32
    return %c0_i32, %c0_i32_0 : i32, i32
  }
  func.func @transform_9(%arg0: i32) -> (i32, i32) {
    %c0_i32 = arith.constant 0 : i32
    %c0_i32_0 = arith.constant 0 : i32
    return %arg0, %c0_i32 : i32, i32
  }
}

module attributes {stable_mosaic.version = 11 : i64} {
  func.func @_ln_matmul_kernel(%arg0: i32, %arg1: memref<14x32xbf16, #tpu.memory_space<vmem>>, %arg2: memref<1x32xf32, #tpu.memory_space<vmem>>, %arg3: memref<1x32xf32, #tpu.memory_space<vmem>>, %arg4: memref<32x96xbf16, #tpu.memory_space<vmem>>, %arg5: memref<1x96xf32, #tpu.memory_space<vmem>>, %arg6: memref<14x96xbf16, #tpu.memory_space<vmem>>) attributes {dimension_semantics = [#tpu.dimension_semantics<parallel>], iteration_bounds = array<i64: 1>, scalar_prefetch = 0 : i64, scratch_operands = 0 : i64, tpu.core_type = #tpu.core_type<tc>, window_params = [{transform_indices = @transform_0, window_bounds = array<i64: 14, 32>}, {pipeline_mode = #tpu.pipeline_mode<synchronous>, transform_indices = @transform_1, window_bounds = array<i64: 1, 32>}, {pipeline_mode = #tpu.pipeline_mode<synchronous>, transform_indices = @transform_2, window_bounds = array<i64: 1, 32>}, {pipeline_mode = #tpu.pipeline_mode<synchronous>, transform_indices = @transform_3, window_bounds = array<i64: 32, 96>}, {pipeline_mode = #tpu.pipeline_mode<synchronous>, transform_indices = @transform_4, window_bounds = array<i64: 1, 96>}, {transform_indices = @transform_5, window_bounds = array<i64: 14, 96>}]} {
    %c0 = arith.constant 0 : index
    %c0_0 = arith.constant 0 : index
    %0 = vector.load %arg1[%c0, %c0_0] : memref<14x32xbf16, #tpu.memory_space<vmem>>, vector<14x32xbf16>
    %1 = arith.extf %0 : vector<14x32xbf16> to vector<14x32xf32>
    %c0_1 = arith.constant 0 : index
    %c0_2 = arith.constant 0 : index
    %2 = vector.load %arg2[%c0_1, %c0_2] : memref<1x32xf32, #tpu.memory_space<vmem>>, vector<1x32xf32>
    %c0_3 = arith.constant 0 : index
    %c0_4 = arith.constant 0 : index
    %3 = vector.load %arg3[%c0_3, %c0_4] : memref<1x32xf32, #tpu.memory_space<vmem>>, vector<1x32xf32>
    %cst = arith.constant dense<0.000000e+00> : vector<14xf32>
    %4 = vector.multi_reduction <add>, %1, %cst [1] : vector<14x32xf32> to vector<14xf32>
    %5 = vector.shape_cast %4 : vector<14xf32> to vector<14x1xf32>
    %cst_5 = arith.constant 3.200000e+01 : f32
    %6 = vector.broadcast %cst_5 : f32 to vector<14x1xf32>
    %7 = arith.divf %5, %6 : vector<14x1xf32>
    %8 = vector.broadcast %7 : vector<14x1xf32> to vector<14x32xf32>
    %9 = arith.subf %1, %8 : vector<14x32xf32>
    %10 = arith.mulf %9, %9 : vector<14x32xf32>
    %cst_6 = arith.constant dense<0.000000e+00> : vector<14xf32>
    %11 = vector.multi_reduction <add>, %10, %cst_6 [1] : vector<14x32xf32> to vector<14xf32>
    %12 = vector.shape_cast %11 : vector<14xf32> to vector<14x1xf32>
    %cst_7 = arith.constant 3.200000e+01 : f32
    %13 = vector.broadcast %cst_7 : f32 to vector<14x1xf32>
    %14 = arith.divf %12, %13 : vector<14x1xf32>
    %15 = vector.broadcast %7 : vector<14x1xf32> to vector<14x32xf32>
    %16 = arith.subf %1, %15 : vector<14x32xf32>
    %cst_8 = arith.constant 9.99999974E-6 : f32
    %17 = vector.broadcast %cst_8 : f32 to vector<14x1xf32>
    %18 = arith.addf %14, %17 : vector<14x1xf32>
    %19 = math.rsqrt %18 : vector<14x1xf32>
    %20 = vector.broadcast %19 : vector<14x1xf32> to vector<14x32xf32>
    %21 = arith.mulf %16, %20 : vector<14x32xf32>
    %22 = vector.broadcast %2 : vector<1x32xf32> to vector<14x32xf32>
    %23 = arith.mulf %21, %22 : vector<14x32xf32>
    %24 = vector.broadcast %3 : vector<1x32xf32> to vector<14x32xf32>
    %25 = arith.addf %23, %24 : vector<14x32xf32>
    %26 = arith.truncf %25 : vector<14x32xf32> to vector<14x32xbf16>
    %c0_9 = arith.constant 0 : index
    %c0_10 = arith.constant 0 : index
    %27 = vector.load %arg4[%c0_9, %c0_10] : memref<32x96xbf16, #tpu.memory_space<vmem>>, vector<32x96xbf16>
    %cst_11 = arith.constant dense<0.000000e+00> : vector<14x96xf32>
    %28 = tpu.matmul %26, %27, %cst_11 {dimension_numbers = #tpu.dot_dimension_numbers<[1], [0], [0], [1], [0, 0, 1, 1], [], []>} : vector<14x32xbf16>, vector<32x96xbf16>, vector<14x96xf32> -> vector<14x96xf32>
    %c0_12 = arith.constant 0 : index
    %c0_13 = arith.constant 0 : index
    %29 = vector.load %arg5[%c0_12, %c0_13] : memref<1x96xf32, #tpu.memory_space<vmem>>, vector<1x96xf32>
    %30 = vector.broadcast %29 : vector<1x96xf32> to vector<14x96xf32>
    %31 = arith.addf %28, %30 : vector<14x96xf32>
    %32 = arith.truncf %31 : vector<14x96xf32> to vector<14x96xbf16>
    %c0_14 = arith.constant 0 : index
    %c0_15 = arith.constant 0 : index
    %33 = vector.load %arg6[%c0_14, %c0_15] : memref<14x96xbf16, #tpu.memory_space<vmem>>, vector<14x96xbf16>
    tpu.vector_store %arg6[%c0_14, %c0_15], %32 {strides = array<i32>} : memref<14x96xbf16, #tpu.memory_space<vmem>>, vector<14x96xbf16>,
    return
  }
  func.func @transform_0(%arg0: i32) -> (i32, i32) {
    %c0_i32 = arith.constant 0 : i32
    %c0_i32_0 = arith.constant 0 : i32
    return %arg0, %c0_i32 : i32, i32
  }
  func.func @transform_1(%arg0: i32) -> (i32, i32) {
    %c0_i32 = arith.constant 0 : i32
    %c0_i32_0 = arith.constant 0 : i32
    %c0_i32_1 = arith.constant 0 : i32
    return %c0_i32, %c0_i32_0 : i32, i32
  }
  func.func @transform_2(%arg0: i32) -> (i32, i32) {
    %c0_i32 = arith.constant 0 : i32
    %c0_i32_0 = arith.constant 0 : i32
    %c0_i32_1 = arith.constant 0 : i32
    return %c0_i32, %c0_i32_0 : i32, i32
  }
  func.func @transform_3(%arg0: i32) -> (i32, i32) {
    %c0_i32 = arith.constant 0 : i32
    %c0_i32_0 = arith.constant 0 : i32
    %c0_i32_1 = arith.constant 0 : i32
    return %c0_i32, %c0_i32_0 : i32, i32
  }
  func.func @transform_4(%arg0: i32) -> (i32, i32) {
    %c0_i32 = arith.constant 0 : i32
    %c0_i32_0 = arith.constant 0 : i32
    %c0_i32_1 = arith.constant 0 : i32
    return %c0_i32, %c0_i32_0 : i32, i32
  }
  func.func @transform_5(%arg0: i32) -> (i32, i32) {
    %c0_i32 = arith.constant 0 : i32
    %c0_i32_0 = arith.constant 0 : i32
    return %arg0, %c0_i32 : i32, i32
  }
}

module attributes {stable_mosaic.version = 11 : i64} {
  func.func @_matmul_kernel(%arg0: i32, %arg1: i32, %arg2: i32, %arg3: memref<7x32xf32, #tpu.memory_space<vmem>>, %arg4: memref<32x32xbf16, #tpu.memory_space<vmem>>, %arg5: memref<1x32xf32, #tpu.memory_space<vmem>>, %arg6: memref<7x32xbf16, #tpu.memory_space<vmem>>, %arg7: memref<7x32xf32, #tpu.memory_space<vmem>>) attributes {dimension_semantics = [#tpu.dimension_semantics<parallel>, #tpu.dimension_semantics<parallel>, #tpu.dimension_semantics<arbitrary>], iteration_bounds = array<i64: 1, 1, 1>, scalar_prefetch = 0 : i64, scratch_operands = 1 : i64, tpu.core_type = #tpu.core_type<tc>, window_params = [{transform_indices = @transform_0, window_bounds = array<i64: 7, 32>}, {transform_indices = @transform_1, window_bounds = array<i64: 32, 32>}, {transform_indices = @transform_2, window_bounds = array<i64: 1, 32>}, {transform_indices = @transform_3, window_bounds = array<i64: 7, 32>}]} {
    %c0_i32 = arith.constant 0 : i32
    %0 = arith.cmpi eq, %arg2, %c0_i32 : i32
    %1 = arith.extui %0 : i1 to i32
    %c0_i32_0 = arith.constant 0 : i32
    %2 = arith.cmpi ne, %1, %c0_i32_0 : i32
    scf.if %2 {
      %cst_10 = arith.constant 0.000000e+00 : f32
      %13 = vector.broadcast %cst_10 : f32 to vector<7x32xf32>
      %c0_11 = arith.constant 0 : index
      %c0_12 = arith.constant 0 : index
      %14 = vector.load %arg7[%c0_11, %c0_12] : memref<7x32xf32, #tpu.memory_space<vmem>>, vector<7x32xf32>
      tpu.vector_store %arg7[%c0_11, %c0_12], %13 {strides = array<i32>} : memref<7x32xf32, #tpu.memory_space<vmem>>, vector<7x32xf32>,
    } else {
    }
    %c0 = arith.constant 0 : index
    %c0_1 = arith.constant 0 : index
    %3 = vector.load %arg7[%c0, %c0_1] : memref<7x32xf32, #tpu.memory_space<vmem>>, vector<7x32xf32>
    %c0_2 = arith.constant 0 : index
    %c0_3 = arith.constant 0 : index
    %4 = vector.load %arg3[%c0_2, %c0_3] : memref<7x32xf32, #tpu.memory_space<vmem>>, vector<7x32xf32>
    %5 = arith.truncf %4 : vector<7x32xf32> to vector<7x32xbf16>
    %c0_4 = arith.constant 0 : index
    %c0_5 = arith.constant 0 : index
    %6 = vector.load %arg4[%c0_4, %c0_5] : memref<32x32xbf16, #tpu.memory_space<vmem>>, vector<32x32xbf16>
    %cst = arith.constant dense<0.000000e+00> : vector<7x32xf32>
    %7 = tpu.matmul %5, %6, %cst {dimension_numbers = #tpu.dot_dimension_numbers<[1], [0], [0], [1], [0, 0, 1, 1], [], []>} : vector<7x32xbf16>, vector<32x32xbf16>, vector<7x32xf32> -> vector<7x32xf32>
    %8 = arith.addf %3, %7 : vector<7x32xf32>
    %c0_6 = arith.constant 0 : index
    %c0_7 = arith.constant 0 : index
    %9 = vector.load %arg7[%c0_6, %c0_7] : memref<7x32xf32, #tpu.memory_space<vmem>>, vector<7x32xf32>
    tpu.vector_store %arg7[%c0_6, %c0_7], %8 {strides = array<i32>} : memref<7x32xf32, #tpu.memory_space<vmem>>, vector<7x32xf32>,
    %c0_i32_8 = arith.constant 0 : i32
    %10 = arith.cmpi eq, %arg2, %c0_i32_8 : i32
    %11 = arith.extui %10 : i1 to i32
    %c0_i32_9 = arith.constant 0 : i32
    %12 = arith.cmpi ne, %11, %c0_i32_9 : i32
    scf.if %12 {
      %c0_10 = arith.constant 0 : index
      %c0_11 = arith.constant 0 : index
      %13 = vector.load %arg7[%c0_10, %c0_11] : memref<7x32xf32, #tpu.memory_space<vmem>>, vector<7x32xf32>
      %c0_12 = arith.constant 0 : index
      %c0_13 = arith.constant 0 : index
      %14 = vector.load %arg5[%c0_12, %c0_13] : memref<1x32xf32, #tpu.memory_space<vmem>>, vector<1x32xf32>
      %15 = vector.broadcast %14 : vector<1x32xf32> to vector<7x32xf32>
      %16 = arith.addf %13, %15 : vector<7x32xf32>
      %17 = arith.truncf %16 : vector<7x32xf32> to vector<7x32xbf16>
      %c0_14 = arith.constant 0 : index
      %c0_15 = arith.constant 0 : index
      %18 = vector.load %arg6[%c0_14, %c0_15] : memref<7x32xbf16, #tpu.memory_space<vmem>>, vector<7x32xbf16>
      tpu.vector_store %arg6[%c0_14, %c0_15], %17 {strides = array<i32>} : memref<7x32xbf16, #tpu.memory_space<vmem>>, vector<7x32xbf16>,
    } else {
    }
    return
  }
  func.func @transform_0(%arg0: i32, %arg1: i32, %arg2: i32) -> (i32, i32) {
    %c0_i32 = arith.constant 0 : i32
    return %arg0, %arg2 : i32, i32
  }
  func.func @transform_1(%arg0: i32, %arg1: i32, %arg2: i32) -> (i32, i32) {
    %c0_i32 = arith.constant 0 : i32
    return %arg2, %arg1 : i32, i32
  }
  func.func @transform_2(%arg0: i32, %arg1: i32, %arg2: i32) -> (i32, i32) {
    %c0_i32 = arith.constant 0 : i32
    %c0_i32_0 = arith.constant 0 : i32
    return %c0_i32, %arg1 : i32, i32
  }
  func.func @transform_3(%arg0: i32, %arg1: i32, %arg2: i32) -> (i32, i32) {
    %c0_i32 = arith.constant 0 : i32
    return %arg0, %arg1 : i32, i32
  }
}

module attributes {stable_mosaic.version = 11 : i64} {
  func.func @_matmul_kernel(%arg0: i32, %arg1: i32, %arg2: i32, %arg3: memref<14x32xbf16, #tpu.memory_space<vmem>>, %arg4: memref<32x32xbf16, #tpu.memory_space<vmem>>, %arg5: memref<1x32xf32, #tpu.memory_space<vmem>>, %arg6: memref<14x32xbf16, #tpu.memory_space<vmem>>, %arg7: memref<14x32xbf16, #tpu.memory_space<vmem>>, %arg8: memref<14x32xf32, #tpu.memory_space<vmem>>) attributes {dimension_semantics = [#tpu.dimension_semantics<parallel>, #tpu.dimension_semantics<parallel>, #tpu.dimension_semantics<arbitrary>], iteration_bounds = array<i64: 1, 1, 1>, scalar_prefetch = 0 : i64, scratch_operands = 1 : i64, tpu.core_type = #tpu.core_type<tc>, window_params = [{transform_indices = @transform_0, window_bounds = array<i64: 14, 32>}, {transform_indices = @transform_1, window_bounds = array<i64: 32, 32>}, {transform_indices = @transform_2, window_bounds = array<i64: 1, 32>}, {transform_indices = @transform_3, window_bounds = array<i64: 14, 32>}, {transform_indices = @transform_4, window_bounds = array<i64: 14, 32>}]} {
    %c0_i32 = arith.constant 0 : i32
    %0 = arith.cmpi eq, %arg2, %c0_i32 : i32
    %1 = arith.extui %0 : i1 to i32
    %c0_i32_0 = arith.constant 0 : i32
    %2 = arith.cmpi ne, %1, %c0_i32_0 : i32
    scf.if %2 {
      %cst_10 = arith.constant 0.000000e+00 : f32
      %12 = vector.broadcast %cst_10 : f32 to vector<14x32xf32>
      %c0_11 = arith.constant 0 : index
      %c0_12 = arith.constant 0 : index
      %13 = vector.load %arg8[%c0_11, %c0_12] : memref<14x32xf32, #tpu.memory_space<vmem>>, vector<14x32xf32>
      tpu.vector_store %arg8[%c0_11, %c0_12], %12 {strides = array<i32>} : memref<14x32xf32, #tpu.memory_space<vmem>>, vector<14x32xf32>,
    } else {
    }
    %c0 = arith.constant 0 : index
    %c0_1 = arith.constant 0 : index
    %3 = vector.load %arg8[%c0, %c0_1] : memref<14x32xf32, #tpu.memory_space<vmem>>, vector<14x32xf32>
    %c0_2 = arith.constant 0 : index
    %c0_3 = arith.constant 0 : index
    %4 = vector.load %arg3[%c0_2, %c0_3] : memref<14x32xbf16, #tpu.memory_space<vmem>>, vector<14x32xbf16>
    %c0_4 = arith.constant 0 : index
    %c0_5 = arith.constant 0 : index
    %5 = vector.load %arg4[%c0_4, %c0_5] : memref<32x32xbf16, #tpu.memory_space<vmem>>, vector<32x32xbf16>
    %cst = arith.constant dense<0.000000e+00> : vector<14x32xf32>
    %6 = tpu.matmul %4, %5, %cst {dimension_numbers = #tpu.dot_dimension_numbers<[1], [0], [0], [1], [0, 0, 1, 1], [], []>} : vector<14x32xbf16>, vector<32x32xbf16>, vector<14x32xf32> -> vector<14x32xf32>
    %7 = arith.addf %3, %6 : vector<14x32xf32>
    %c0_6 = arith.constant 0 : index
    %c0_7 = arith.constant 0 : index
    %8 = vector.load %arg8[%c0_6, %c0_7] : memref<14x32xf32, #tpu.memory_space<vmem>>, vector<14x32xf32>
    tpu.vector_store %arg8[%c0_6, %c0_7], %7 {strides = array<i32>} : memref<14x32xf32, #tpu.memory_space<vmem>>, vector<14x32xf32>,
    %c0_i32_8 = arith.constant 0 : i32
    %9 = arith.cmpi eq, %arg2, %c0_i32_8 : i32
    %10 = arith.extui %9 : i1 to i32
    %c0_i32_9 = arith.constant 0 : i32
    %11 = arith.cmpi ne, %10, %c0_i32_9 : i32
    scf.if %11 {
      %c0_10 = arith.constant 0 : index
      %c0_11 = arith.constant 0 : index
      %12 = vector.load %arg8[%c0_10, %c0_11] : memref<14x32xf32, #tpu.memory_space<vmem>>, vector<14x32xf32>
      %c0_12 = arith.constant 0 : index
      %c0_13 = arith.constant 0 : index
      %13 = vector.load %arg5[%c0_12, %c0_13] : memref<1x32xf32, #tpu.memory_space<vmem>>, vector<1x32xf32>
      %14 = vector.broadcast %13 : vector<1x32xf32> to vector<14x32xf32>
      %15 = arith.addf %12, %14 : vector<14x32xf32>
      %c0_14 = arith.constant 0 : index
      %c0_15 = arith.constant 0 : index
      %16 = vector.load %arg6[%c0_14, %c0_15] : memref<14x32xbf16, #tpu.memory_space<vmem>>, vector<14x32xbf16>
      %17 = arith.extf %16 : vector<14x32xbf16> to vector<14x32xf32>
      %18 = arith.addf %15, %17 : vector<14x32xf32>
      %19 = arith.truncf %18 : vector<14x32xf32> to vector<14x32xbf16>
      %c0_16 = arith.constant 0 : index
      %c0_17 = arith.constant 0 : index
      %20 = vector.load %arg7[%c0_16, %c0_17] : memref<14x32xbf16, #tpu.memory_space<vmem>>, vector<14x32xbf16>
      tpu.vector_store %arg7[%c0_16, %c0_17], %19 {strides = array<i32>} : memref<14x32xbf16, #tpu.memory_space<vmem>>, vector<14x32xbf16>,
    } else {
    }
    return
  }
  func.func @transform_0(%arg0: i32, %arg1: i32, %arg2: i32) -> (i32, i32) {
    %c0_i32 = arith.constant 0 : i32
    return %arg0, %arg2 : i32, i32
  }
  func.func @transform_1(%arg0: i32, %arg1: i32, %arg2: i32) -> (i32, i32) {
    %c0_i32 = arith.constant 0 : i32
    return %arg2, %arg1 : i32, i32
  }
  func.func @transform_2(%arg0: i32, %arg1: i32, %arg2: i32) -> (i32, i32) {
    %c0_i32 = arith.constant 0 : i32
    %c0_i32_0 = arith.constant 0 : i32
    return %c0_i32, %arg1 : i32, i32
  }
  func.func @transform_3(%arg0: i32, %arg1: i32, %arg2: i32) -> (i32, i32) {
    %c0_i32 = arith.constant 0 : i32
    return %arg0, %arg1 : i32, i32
  }
  func.func @transform_4(%arg0: i32, %arg1: i32, %arg2: i32) -> (i32, i32) {
    %c0_i32 = arith.constant 0 : i32
    return %arg0, %arg1 : i32, i32
  }
}

module attributes {stable_mosaic.version = 11 : i64} {
  func.func @_attn_kernel(%arg0: i32, %arg1: i32, %arg2: memref<1x1x7x8xbf16, #tpu.memory_space<vmem>>, %arg3: memref<1x1x7x8xbf16, #tpu.memory_space<vmem>>, %arg4: memref<1x1x7x8xbf16, #tpu.memory_space<vmem>>, %arg5: memref<1x7x8xbf16, #tpu.memory_space<vmem>>, %arg6: memref<1x1x8xf32, #tpu.memory_space<vmem>>, %arg7: memref<1x1x8xf32, #tpu.memory_space<vmem>>, %arg8: memref<1x1x7x8xbf16, #tpu.memory_space<vmem>>) attributes {dimension_semantics = [#tpu.dimension_semantics<parallel>, #tpu.dimension_semantics<parallel>], iteration_bounds = array<i64: 2, 4>, scalar_prefetch = 0 : i64, scratch_operands = 0 : i64, tpu.core_type = #tpu.core_type<tc>, window_params = [{transform_indices = @transform_0, window_bounds = array<i64: 1, 1, 7, 8>}, {transform_indices = @transform_1, window_bounds = array<i64: 1, 1, 7, 8>}, {transform_indices = @transform_2, window_bounds = array<i64: 1, 1, 7, 8>}, {transform_indices = @transform_3, window_bounds = array<i64: 1, 7, 8>}, {transform_indices = @transform_4, window_bounds = array<i64: 1, 1, 8>}, {transform_indices = @transform_5, window_bounds = array<i64: 1, 1, 8>}, {transform_indices = @transform_6, window_bounds = array<i64: 1, 1, 7, 8>}]} {
    %c0 = arith.constant 0 : index
    %c0_0 = arith.constant 0 : index
    %c0_1 = arith.constant 0 : index
    %c0_2 = arith.constant 0 : index
    %0 = vector.load %arg2[%c0, %c0_0, %c0_1, %c0_2] : memref<1x1x7x8xbf16, #tpu.memory_space<vmem>>, vector<1x1x7x8xbf16>
    %1 = vector.shape_cast %0 : vector<1x1x7x8xbf16> to vector<7x8xbf16>
    %2 = arith.extf %1 : vector<7x8xbf16> to vector<7x8xf32>
    %c0_3 = arith.constant 0 : index
    %c0_4 = arith.constant 0 : index
    %c0_5 = arith.constant 0 : index
    %c0_6 = arith.constant 0 : index
    %3 = vector.load %arg3[%c0_3, %c0_4, %c0_5, %c0_6] : memref<1x1x7x8xbf16, #tpu.memory_space<vmem>>, vector<1x1x7x8xbf16>
    %4 = vector.shape_cast %3 : vector<1x1x7x8xbf16> to vector<7x8xbf16>
    %c0_7 = arith.constant 0 : index
    %c0_8 = arith.constant 0 : index
    %c0_9 = arith.constant 0 : index
    %c0_10 = arith.constant 0 : index
    %5 = vector.load %arg4[%c0_7, %c0_8, %c0_9, %c0_10] : memref<1x1x7x8xbf16, #tpu.memory_space<vmem>>, vector<1x1x7x8xbf16>
    %6 = vector.shape_cast %5 : vector<1x1x7x8xbf16> to vector<7x8xbf16>
    %c0_11 = arith.constant 0 : index
    %c0_12 = arith.constant 0 : index
    %c0_13 = arith.constant 0 : index
    %7 = vector.load %arg5[%c0_11, %c0_12, %c0_13] : memref<1x7x8xbf16, #tpu.memory_space<vmem>>, vector<1x7x8xbf16>
    %8 = vector.shape_cast %7 : vector<1x7x8xbf16> to vector<7x8xbf16>
    %c0_14 = arith.constant 0 : index
    %c0_15 = arith.constant 0 : index
    %c0_16 = arith.constant 0 : index
    %9 = vector.load %arg6[%c0_14, %c0_15, %c0_16] : memref<1x1x8xf32, #tpu.memory_space<vmem>>, vector<1x1x8xf32>
    %10 = vector.shape_cast %9 : vector<1x1x8xf32> to vector<1x8xf32>
    %c0_17 = arith.constant 0 : index
    %c0_18 = arith.constant 0 : index
    %c0_19 = arith.constant 0 : index
    %11 = vector.load %arg7[%c0_17, %c0_18, %c0_19] : memref<1x1x8xf32, #tpu.memory_space<vmem>>, vector<1x1x8xf32>
    %12 = vector.shape_cast %11 : vector<1x1x8xf32> to vector<1x8xf32>
    %13 = vector.broadcast %10 : vector<1x8xf32> to vector<7x8xf32>
    %14 = arith.addf %2, %13 : vector<7x8xf32>
    %cst = arith.constant 0.176776692 : f32
    %15 = vector.broadcast %cst : f32 to vector<7x8xf32>
    %16 = arith.mulf %14, %15 : vector<7x8xf32>
    %17 = arith.truncf %16 : vector<7x8xf32> to vector<7x8xbf16>
    %18 = vector.broadcast %12 : vector<1x8xf32> to vector<7x8xf32>
    %19 = arith.addf %2, %18 : vector<7x8xf32>
    %cst_20 = arith.constant 0.176776692 : f32
    %20 = vector.broadcast %cst_20 : f32 to vector<7x8xf32>
    %21 = arith.mulf %19, %20 : vector<7x8xf32>
    %22 = arith.truncf %21 : vector<7x8xf32> to vector<7x8xbf16>
    %cst_21 = arith.constant dense<0.000000e+00> : vector<7x7xf32>
    %23 = tpu.matmul %17, %4, %cst_21 {dimension_numbers = #tpu.dot_dimension_numbers<[1], [1], [0], [0], [0, 0, 1, 0], [], []>} : vector<7x8xbf16>, vector<7x8xbf16>, vector<7x7xf32> -> vector<7x7xf32>
    %cst_22 = arith.constant dense<0.000000e+00> : vector<7x7xf32>
    %24 = tpu.matmul %22, %8, %cst_22 {dimension_numbers = #tpu.dot_dimension_numbers<[1], [1], [0], [0], [0, 0, 1, 0], [], []>} : vector<7x8xbf16>, vector<7x8xbf16>, vector<7x7xf32> -> vector<7x7xf32>
    %25 = tpu.iota {dimensions = array<i32: 0>} : vector<7x7xi32>
    %26 = tpu.iota {dimensions = array<i32: 1>} : vector<7x7xi32>
    %27 = arith.subi %26, %25 : vector<7x7xi32>
    %c1_i32 = arith.constant 1 : i32
    %28 = vector.broadcast %c1_i32 : i32 to vector<7x7xi32>
    %29 = arith.addi %25, %28 : vector<7x7xi32>
    %30 = arith.cmpi eq, %26, %29 : vector<7x7xi32>
    %cst_23 = arith.constant 1.000000e+00 : f32
    %cst_24 = arith.constant 0.000000e+00 : f32
    %31 = vector.broadcast %cst_23 : f32 to vector<7x7xf32>
    %32 = vector.broadcast %cst_24 : f32 to vector<7x7xf32>
    %33 = arith.select %30, %31, %32 : vector<7x7xi1>, vector<7x7xf32>
    %cst_25 = arith.constant dense<0.000000e+00> : vector<7x7xf32>
    %34 = tpu.matmul %33, %24, %cst_25 {dimension_numbers = #tpu.dot_dimension_numbers<[1], [0], [0], [1], [0, 0, 1, 1], [], []>} : vector<7x7xf32>, vector<7x7xf32>, vector<7x7xf32> -> vector<7x7xf32>
    %cst_26 = arith.constant 0.000000e+00 : f32
    %35 = vector.broadcast %cst_26 : f32 to vector<7x7xf32>
    %c0_i32 = arith.constant 0 : i32
    %36 = vector.broadcast %c0_i32 : i32 to vector<7x7xi32>
    %37 = arith.cmpi eq, %27, %36 : vector<7x7xi32>
    %38 = vector.extract_strided_slice %24 {offsets = [0, 6], sizes = [7, 1], strides = [1, 1]} : vector<7x7xf32> to vector<7x1xf32>
    %cst_27 = arith.constant 0.000000e+00 : f32
    %39 = vector.shape_cast %38 : vector<7x1xf32> to vector<7x1xf32>
    %40 = vector.broadcast %39 : vector<7x1xf32> to vector<7x7xf32>
    %41 = vector.broadcast %cst_27 : f32 to vector<7x7xf32>
    %42 = arith.select %37, %40, %41 : vector<7x7xi1>, vector<7x7xf32>
    %43 = arith.addf %35, %42 : vector<7x7xf32>
    %c-1_i32 = arith.constant -1 : i32
    %44 = vector.broadcast %c-1_i32 : i32 to vector<7x7xi32>
    %45 = arith.cmpi eq, %27, %44 : vector<7x7xi32>
    %46 = vector.extract_strided_slice %24 {offsets = [0, 5], sizes = [7, 1], strides = [1, 1]} : vector<7x7xf32> to vector<7x1xf32>
    %cst_28 = arith.constant 0.000000e+00 : f32
    %47 = vector.shape_cast %46 : vector<7x1xf32> to vector<7x1xf32>
    %48 = vector.broadcast %47 : vector<7x1xf32> to vector<7x7xf32>
    %49 = vector.broadcast %cst_28 : f32 to vector<7x7xf32>
    %50 = arith.select %45, %48, %49 : vector<7x7xi1>, vector<7x7xf32>
    %51 = arith.addf %43, %50 : vector<7x7xf32>
    %c-2_i32 = arith.constant -2 : i32
    %52 = vector.broadcast %c-2_i32 : i32 to vector<7x7xi32>
    %53 = arith.cmpi eq, %27, %52 : vector<7x7xi32>
    %54 = vector.extract_strided_slice %24 {offsets = [0, 4], sizes = [7, 1], strides = [1, 1]} : vector<7x7xf32> to vector<7x1xf32>
    %cst_29 = arith.constant 0.000000e+00 : f32
    %55 = vector.shape_cast %54 : vector<7x1xf32> to vector<7x1xf32>
    %56 = vector.broadcast %55 : vector<7x1xf32> to vector<7x7xf32>
    %57 = vector.broadcast %cst_29 : f32 to vector<7x7xf32>
    %58 = arith.select %53, %56, %57 : vector<7x7xi1>, vector<7x7xf32>
    %59 = arith.addf %51, %58 : vector<7x7xf32>
    %c-3_i32 = arith.constant -3 : i32
    %60 = vector.broadcast %c-3_i32 : i32 to vector<7x7xi32>
    %61 = arith.cmpi eq, %27, %60 : vector<7x7xi32>
    %62 = vector.extract_strided_slice %24 {offsets = [0, 3], sizes = [7, 1], strides = [1, 1]} : vector<7x7xf32> to vector<7x1xf32>
    %cst_30 = arith.constant 0.000000e+00 : f32
    %63 = vector.shape_cast %62 : vector<7x1xf32> to vector<7x1xf32>
    %64 = vector.broadcast %63 : vector<7x1xf32> to vector<7x7xf32>
    %65 = vector.broadcast %cst_30 : f32 to vector<7x7xf32>
    %66 = arith.select %61, %64, %65 : vector<7x7xi1>, vector<7x7xf32>
    %67 = arith.addf %59, %66 : vector<7x7xf32>
    %c-4_i32 = arith.constant -4 : i32
    %68 = vector.broadcast %c-4_i32 : i32 to vector<7x7xi32>
    %69 = arith.cmpi eq, %27, %68 : vector<7x7xi32>
    %70 = vector.extract_strided_slice %24 {offsets = [0, 2], sizes = [7, 1], strides = [1, 1]} : vector<7x7xf32> to vector<7x1xf32>
    %cst_31 = arith.constant 0.000000e+00 : f32
    %71 = vector.shape_cast %70 : vector<7x1xf32> to vector<7x1xf32>
    %72 = vector.broadcast %71 : vector<7x1xf32> to vector<7x7xf32>
    %73 = vector.broadcast %cst_31 : f32 to vector<7x7xf32>
    %74 = arith.select %69, %72, %73 : vector<7x7xi1>, vector<7x7xf32>
    %75 = arith.addf %67, %74 : vector<7x7xf32>
    %c-5_i32 = arith.constant -5 : i32
    %76 = vector.broadcast %c-5_i32 : i32 to vector<7x7xi32>
    %77 = arith.cmpi eq, %27, %76 : vector<7x7xi32>
    %78 = vector.extract_strided_slice %24 {offsets = [0, 1], sizes = [7, 1], strides = [1, 1]} : vector<7x7xf32> to vector<7x1xf32>
    %cst_32 = arith.constant 0.000000e+00 : f32
    %79 = vector.shape_cast %78 : vector<7x1xf32> to vector<7x1xf32>
    %80 = vector.broadcast %79 : vector<7x1xf32> to vector<7x7xf32>
    %81 = vector.broadcast %cst_32 : f32 to vector<7x7xf32>
    %82 = arith.select %77, %80, %81 : vector<7x7xi1>, vector<7x7xf32>
    %83 = arith.addf %75, %82 : vector<7x7xf32>
    %c-6_i32 = arith.constant -6 : i32
    %84 = vector.broadcast %c-6_i32 : i32 to vector<7x7xi32>
    %85 = arith.cmpi eq, %27, %84 : vector<7x7xi32>
    %86 = vector.extract_strided_slice %24 {offsets = [0, 0], sizes = [7, 1], strides = [1, 1]} : vector<7x7xf32> to vector<7x1xf32>
    %cst_33 = arith.constant 0.000000e+00 : f32
    %87 = vector.shape_cast %86 : vector<7x1xf32> to vector<7x1xf32>
    %88 = vector.broadcast %87 : vector<7x1xf32> to vector<7x7xf32>
    %89 = vector.broadcast %cst_33 : f32 to vector<7x7xf32>
    %90 = arith.select %85, %88, %89 : vector<7x7xi1>, vector<7x7xf32>
    %91 = arith.addf %83, %90 : vector<7x7xf32>
    %c2_i32 = arith.constant 2 : i32
    %92 = vector.broadcast %c2_i32 : i32 to vector<7x7xi32>
    %93 = arith.cmpi eq, %27, %92 : vector<7x7xi32>
    %94 = vector.extract_strided_slice %34 {offsets = [0, 0], sizes = [7, 1], strides = [1, 1]} : vector<7x7xf32> to vector<7x1xf32>
    %cst_34 = arith.constant 0.000000e+00 : f32
    %95 = vector.shape_cast %94 : vector<7x1xf32> to vector<7x1xf32>
    %96 = vector.broadcast %95 : vector<7x1xf32> to vector<7x7xf32>
    %97 = vector.broadcast %cst_34 : f32 to vector<7x7xf32>
    %98 = arith.select %93, %96, %97 : vector<7x7xi1>, vector<7x7xf32>
    %99 = arith.addf %91, %98 : vector<7x7xf32>
    %c3_i32 = arith.constant 3 : i32
    %100 = vector.broadcast %c3_i32 : i32 to vector<7x7xi32>
    %101 = arith.cmpi eq, %27, %100 : vector<7x7xi32>
    %102 = vector.extract_strided_slice %34 {offsets = [0, 1], sizes = [7, 1], strides = [1, 1]} : vector<7x7xf32> to vector<7x1xf32>
    %cst_35 = arith.constant 0.000000e+00 : f32
    %103 = vector.shape_cast %102 : vector<7x1xf32> to vector<7x1xf32>
    %104 = vector.broadcast %103 : vector<7x1xf32> to vector<7x7xf32>
    %105 = vector.broadcast %cst_35 : f32 to vector<7x7xf32>
    %106 = arith.select %101, %104, %105 : vector<7x7xi1>, vector<7x7xf32>
    %107 = arith.addf %99, %106 : vector<7x7xf32>
    %c4_i32 = arith.constant 4 : i32
    %108 = vector.broadcast %c4_i32 : i32 to vector<7x7xi32>
    %109 = arith.cmpi eq, %27, %108 : vector<7x7xi32>
    %110 = vector.extract_strided_slice %34 {offsets = [0, 2], sizes = [7, 1], strides = [1, 1]} : vector<7x7xf32> to vector<7x1xf32>
    %cst_36 = arith.constant 0.000000e+00 : f32
    %111 = vector.shape_cast %110 : vector<7x1xf32> to vector<7x1xf32>
    %112 = vector.broadcast %111 : vector<7x1xf32> to vector<7x7xf32>
    %113 = vector.broadcast %cst_36 : f32 to vector<7x7xf32>
    %114 = arith.select %109, %112, %113 : vector<7x7xi1>, vector<7x7xf32>
    %115 = arith.addf %107, %114 : vector<7x7xf32>
    %c5_i32 = arith.constant 5 : i32
    %116 = vector.broadcast %c5_i32 : i32 to vector<7x7xi32>
    %117 = arith.cmpi eq, %27, %116 : vector<7x7xi32>
    %118 = vector.extract_strided_slice %34 {offsets = [0, 3], sizes = [7, 1], strides = [1, 1]} : vector<7x7xf32> to vector<7x1xf32>
    %cst_37 = arith.constant 0.000000e+00 : f32
    %119 = vector.shape_cast %118 : vector<7x1xf32> to vector<7x1xf32>
    %120 = vector.broadcast %119 : vector<7x1xf32> to vector<7x7xf32>
    %121 = vector.broadcast %cst_37 : f32 to vector<7x7xf32>
    %122 = arith.select %117, %120, %121 : vector<7x7xi1>, vector<7x7xf32>
    %123 = arith.addf %115, %122 : vector<7x7xf32>
    %c6_i32 = arith.constant 6 : i32
    %124 = vector.broadcast %c6_i32 : i32 to vector<7x7xi32>
    %125 = arith.cmpi eq, %27, %124 : vector<7x7xi32>
    %126 = vector.extract_strided_slice %34 {offsets = [0, 4], sizes = [7, 1], strides = [1, 1]} : vector<7x7xf32> to vector<7x1xf32>
    %cst_38 = arith.constant 0.000000e+00 : f32
    %127 = vector.shape_cast %126 : vector<7x1xf32> to vector<7x1xf32>
    %128 = vector.broadcast %127 : vector<7x1xf32> to vector<7x7xf32>
    %129 = vector.broadcast %cst_38 : f32 to vector<7x7xf32>
    %130 = arith.select %125, %128, %129 : vector<7x7xi1>, vector<7x7xf32>
    %131 = arith.addf %123, %130 : vector<7x7xf32>
    %132 = arith.addf %23, %131 : vector<7x7xf32>
    %cst_39 = arith.constant dense<0xFF800000> : vector<7xf32>
    %133 = vector.multi_reduction <maximumf>, %132, %cst_39 [1] : vector<7x7xf32> to vector<7xf32>
    %134 = vector.shape_cast %133 : vector<7xf32> to vector<7x1xf32>
    %135 = vector.broadcast %134 : vector<7x1xf32> to vector<7x7xf32>
    %136 = arith.subf %132, %135 : vector<7x7xf32>
    %137 = math.exp %136 : vector<7x7xf32>
    %cst_40 = arith.constant dense<0.000000e+00> : vector<7xf32>
    %138 = vector.multi_reduction <add>, %137, %cst_40 [1] : vector<7x7xf32> to vector<7xf32>
    %139 = vector.shape_cast %138 : vector<7xf32> to vector<7x1xf32>
    %140 = tpu.reciprocal %139 {approx = true} : vector<7x1xf32> -> vector<7x1xf32>
    %141 = vector.broadcast %140 : vector<7x1xf32> to vector<7x7xf32>
    %142 = arith.mulf %137, %141 : vector<7x7xf32>
    %143 = arith.truncf %142 : vector<7x7xf32> to vector<7x7xbf16>
    %cst_41 = arith.constant dense<0.000000e+00> : vector<7x8xf32>
    %144 = tpu.matmul %143, %6, %cst_41 {dimension_numbers = #tpu.dot_dimension_numbers<[1], [0], [0], [1], [0, 0, 1, 1], [], []>} : vector<7x7xbf16>, vector<7x8xbf16>, vector<7x8xf32> -> vector<7x8xf32>
    %145 = arith.truncf %144 : vector<7x8xf32> to vector<7x8xbf16>
    %c0_42 = arith.constant 0 : index
    %c0_43 = arith.constant 0 : index
    %c0_44 = arith.constant 0 : index
    %c0_45 = arith.constant 0 : index
    %146 = vector.load %arg8[%c0_42, %c0_43, %c0_44, %c0_45] : memref<1x1x7x8xbf16, #tpu.memory_space<vmem>>, vector<1x1x7x8xbf16>
    %147 = vector.shape_cast %146 : vector<1x1x7x8xbf16> to vector<7x8xbf16>
    %148 = vector.shape_cast %145 : vector<7x8xbf16> to vector<1x1x7x8xbf16>
    tpu.vector_store %arg8[%c0_42, %c0_43, %c0_44, %c0_45], %148 {strides = array<i32>} : memref<1x1x7x8xbf16, #tpu.memory_space<vmem>>, vector<1x1x7x8xbf16>,
    return
  }
  func.func @transform_0(%arg0: i32, %arg1: i32) -> (i32, i32, i32, i32) {
    %c0_i32 = arith.constant 0 : i32
    %c0_i32_0 = arith.constant 0 : i32
    %c0_i32_1 = arith.constant 0 : i32
    return %arg0, %arg1, %c0_i32, %c0_i32_0 : i32, i32, i32, i32
  }
  func.func @transform_1(%arg0: i32, %arg1: i32) -> (i32, i32, i32, i32) {
    %c4_i32 = arith.constant 4 : i32
    %0 = arith.addi %c4_i32, %arg1 : i32
    %c0_i32 = arith.constant 0 : i32
    %c0_i32_0 = arith.constant 0 : i32
    %c0_i32_1 = arith.constant 0 : i32
    return %arg0, %0, %c0_i32, %c0_i32_0 : i32, i32, i32, i32
  }
  func.func @transform_2(%arg0: i32, %arg1: i32) -> (i32, i32, i32, i32) {
    %c8_i32 = arith.constant 8 : i32
    %0 = arith.addi %c8_i32, %arg1 : i32
    %c0_i32 = arith.constant 0 : i32
    %c0_i32_0 = arith.constant 0 : i32
    %c0_i32_1 = arith.constant 0 : i32
    return %arg0, %0, %c0_i32, %c0_i32_0 : i32, i32, i32, i32
  }
  func.func @transform_3(%arg0: i32, %arg1: i32) -> (i32, i32, i32) {
    %c0_i32 = arith.constant 0 : i32
    %c0_i32_0 = arith.constant 0 : i32
    %c0_i32_1 = arith.constant 0 : i32
    return %arg1, %c0_i32, %c0_i32_0 : i32, i32, i32
  }
  func.func @transform_4(%arg0: i32, %arg1: i32) -> (i32, i32, i32) {
    %c0_i32 = arith.constant 0 : i32
    %c0_i32_0 = arith.constant 0 : i32
    %c0_i32_1 = arith.constant 0 : i32
    return %arg1, %c0_i32, %c0_i32_0 : i32, i32, i32
  }
  func.func @transform_5(%arg0: i32, %arg1: i32) -> (i32, i32, i32) {
    %c0_i32 = arith.constant 0 : i32
    %c0_i32_0 = arith.constant 0 : i32
    %c0_i32_1 = arith.constant 0 : i32
    return %arg1, %c0_i32, %c0_i32_0 : i32, i32, i32
  }
  func.func @transform_6(%arg0: i32, %arg1: i32) -> (i32, i32, i32, i32) {
    %c0_i32 = arith.constant 0 : i32
    %c0_i32_0 = arith.constant 0 : i32
    %c0_i32_1 = arith.constant 0 : i32
    return %arg0, %arg1, %c0_i32, %c0_i32_0 : i32, i32, i32, i32
  }
}

module attributes {stable_mosaic.version = 11 : i64} {
  func.func @_conv_block_kernel(%arg0: i32, %arg1: memref<1x7x32xbf16, #tpu.memory_space<vmem>>, %arg2: memref<1x32xf32, #tpu.memory_space<vmem>>, %arg3: memref<1x32xf32, #tpu.memory_space<vmem>>, %arg4: memref<32x32xbf16, #tpu.memory_space<vmem>>, %arg5: memref<1x32xf32, #tpu.memory_space<vmem>>, %arg6: memref<32x32xbf16, #tpu.memory_space<vmem>>, %arg7: memref<1x32xf32, #tpu.memory_space<vmem>>, %arg8: memref<9x32xf32, #tpu.memory_space<vmem>>, %arg9: memref<1x32xf32, #tpu.memory_space<vmem>>, %arg10: memref<32x32xbf16, #tpu.memory_space<vmem>>, %arg11: memref<1x32xf32, #tpu.memory_space<vmem>>, %arg12: memref<1x7x32xbf16, #tpu.memory_space<vmem>>, %arg13: memref<15x32xf32, #tpu.memory_space<vmem>>) attributes {dimension_semantics = [#tpu.dimension_semantics<parallel>], iteration_bounds = array<i64: 2>, scalar_prefetch = 0 : i64, scratch_operands = 1 : i64, tpu.core_type = #tpu.core_type<tc>, window_params = [{transform_indices = @transform_0, window_bounds = array<i64: 1, 7, 32>}, {pipeline_mode = #tpu.pipeline_mode<synchronous>, transform_indices = @transform_1, window_bounds = array<i64: 1, 32>}, {pipeline_mode = #tpu.pipeline_mode<synchronous>, transform_indices = @transform_2, window_bounds = array<i64: 1, 32>}, {pipeline_mode = #tpu.pipeline_mode<synchronous>, transform_indices = @transform_3, window_bounds = array<i64: 32, 32>}, {pipeline_mode = #tpu.pipeline_mode<synchronous>, transform_indices = @transform_4, window_bounds = array<i64: 1, 32>}, {pipeline_mode = #tpu.pipeline_mode<synchronous>, transform_indices = @transform_5, window_bounds = array<i64: 32, 32>}, {pipeline_mode = #tpu.pipeline_mode<synchronous>, transform_indices = @transform_6, window_bounds = array<i64: 1, 32>}, {pipeline_mode = #tpu.pipeline_mode<synchronous>, transform_indices = @transform_7, window_bounds = array<i64: 9, 32>}, {pipeline_mode = #tpu.pipeline_mode<synchronous>, transform_indices = @transform_8, window_bounds = array<i64: 1, 32>}, {pipeline_mode = #tpu.pipeline_mode<synchronous>, transform_indices = @transform_9, window_bounds = array<i64: 32, 32>}, {pipeline_mode = #tpu.pipeline_mode<synchronous>, transform_indices = @transform_10, window_bounds = array<i64: 1, 32>}, {transform_indices = @transform_11, window_bounds = array<i64: 1, 7, 32>}]} {
    %c0 = arith.constant 0 : index
    %c0_0 = arith.constant 0 : index
    %c0_1 = arith.constant 0 : index
    %0 = vector.load %arg1[%c0, %c0_0, %c0_1] : memref<1x7x32xbf16, #tpu.memory_space<vmem>>, vector<1x7x32xbf16>
    %1 = vector.shape_cast %0 : vector<1x7x32xbf16> to vector<7x32xbf16>
    %2 = arith.extf %1 : vector<7x32xbf16> to vector<7x32xf32>
    %c0_2 = arith.constant 0 : index
    %c0_3 = arith.constant 0 : index
    %3 = vector.load %arg2[%c0_2, %c0_3] : memref<1x32xf32, #tpu.memory_space<vmem>>, vector<1x32xf32>
    %c0_4 = arith.constant 0 : index
    %c0_5 = arith.constant 0 : index
    %4 = vector.load %arg3[%c0_4, %c0_5] : memref<1x32xf32, #tpu.memory_space<vmem>>, vector<1x32xf32>
    %cst = arith.constant dense<0.000000e+00> : vector<7xf32>
    %5 = vector.multi_reduction <add>, %2, %cst [1] : vector<7x32xf32> to vector<7xf32>
    %6 = vector.shape_cast %5 : vector<7xf32> to vector<7x1xf32>
    %cst_6 = arith.constant 3.200000e+01 : f32
    %7 = vector.broadcast %cst_6 : f32 to vector<7x1xf32>
    %8 = arith.divf %6, %7 : vector<7x1xf32>
    %9 = vector.broadcast %8 : vector<7x1xf32> to vector<7x32xf32>
    %10 = arith.subf %2, %9 : vector<7x32xf32>
    %11 = arith.mulf %10, %10 : vector<7x32xf32>
    %cst_7 = arith.constant dense<0.000000e+00> : vector<7xf32>
    %12 = vector.multi_reduction <add>, %11, %cst_7 [1] : vector<7x32xf32> to vector<7xf32>
    %13 = vector.shape_cast %12 : vector<7xf32> to vector<7x1xf32>
    %cst_8 = arith.constant 3.200000e+01 : f32
    %14 = vector.broadcast %cst_8 : f32 to vector<7x1xf32>
    %15 = arith.divf %13, %14 : vector<7x1xf32>
    %16 = vector.broadcast %8 : vector<7x1xf32> to vector<7x32xf32>
    %17 = arith.subf %2, %16 : vector<7x32xf32>
    %cst_9 = arith.constant 9.99999974E-6 : f32
    %18 = vector.broadcast %cst_9 : f32 to vector<7x1xf32>
    %19 = arith.addf %15, %18 : vector<7x1xf32>
    %20 = math.rsqrt %19 : vector<7x1xf32>
    %21 = vector.broadcast %20 : vector<7x1xf32> to vector<7x32xf32>
    %22 = arith.mulf %17, %21 : vector<7x32xf32>
    %23 = vector.broadcast %3 : vector<1x32xf32> to vector<7x32xf32>
    %24 = arith.mulf %22, %23 : vector<7x32xf32>
    %25 = vector.broadcast %4 : vector<1x32xf32> to vector<7x32xf32>
    %26 = arith.addf %24, %25 : vector<7x32xf32>
    %27 = arith.truncf %26 : vector<7x32xf32> to vector<7x32xbf16>
    %c0_10 = arith.constant 0 : index
    %c0_11 = arith.constant 0 : index
    %28 = vector.load %arg4[%c0_10, %c0_11] : memref<32x32xbf16, #tpu.memory_space<vmem>>, vector<32x32xbf16>
    %cst_12 = arith.constant dense<0.000000e+00> : vector<7x32xf32>
    %29 = tpu.matmul %27, %28, %cst_12 {dimension_numbers = #tpu.dot_dimension_numbers<[1], [0], [0], [1], [0, 0, 1, 1], [], []>} : vector<7x32xbf16>, vector<32x32xbf16>, vector<7x32xf32> -> vector<7x32xf32>
    %c0_13 = arith.constant 0 : index
    %c0_14 = arith.constant 0 : index
    %30 = vector.load %arg5[%c0_13, %c0_14] : memref<1x32xf32, #tpu.memory_space<vmem>>, vector<1x32xf32>
    %31 = vector.broadcast %30 : vector<1x32xf32> to vector<7x32xf32>
    %32 = arith.addf %29, %31 : vector<7x32xf32>
    %c0_15 = arith.constant 0 : index
    %c0_16 = arith.constant 0 : index
    %33 = vector.load %arg6[%c0_15, %c0_16] : memref<32x32xbf16, #tpu.memory_space<vmem>>, vector<32x32xbf16>
    %cst_17 = arith.constant dense<0.000000e+00> : vector<7x32xf32>
    %34 = tpu.matmul %27, %33, %cst_17 {dimension_numbers = #tpu.dot_dimension_numbers<[1], [0], [0], [1], [0, 0, 1, 1], [], []>} : vector<7x32xbf16>, vector<32x32xbf16>, vector<7x32xf32> -> vector<7x32xf32>
    %c0_18 = arith.constant 0 : index
    %c0_19 = arith.constant 0 : index
    %35 = vector.load %arg7[%c0_18, %c0_19] : memref<1x32xf32, #tpu.memory_space<vmem>>, vector<1x32xf32>
    %36 = vector.broadcast %35 : vector<1x32xf32> to vector<7x32xf32>
    %37 = arith.addf %34, %36 : vector<7x32xf32>
    %cst_20 = arith.constant 0.000000e+00 : f32
    %38 = vector.broadcast %cst_20 : f32 to vector<7x32xf32>
    %39 = arith.subf %38, %37 : vector<7x32xf32>
    %40 = math.exp %39 : vector<7x32xf32>
    %cst_21 = arith.constant 1.000000e+00 : f32
    %41 = vector.broadcast %cst_21 : f32 to vector<7x32xf32>
    %42 = arith.addf %41, %40 : vector<7x32xf32>
    %cst_22 = arith.constant 1.000000e+00 : f32
    %43 = vector.broadcast %cst_22 : f32 to vector<7x32xf32>
    %44 = arith.divf %43, %42 : vector<7x32xf32>
    %45 = arith.mulf %32, %44 : vector<7x32xf32>
    %cst_23 = arith.constant 0.000000e+00 : f32
    %46 = vector.broadcast %cst_23 : f32 to vector<15x32xf32>
    %c0_24 = arith.constant 0 : index
    %c0_25 = arith.constant 0 : index
    %47 = vector.load %arg13[%c0_24, %c0_25] : memref<15x32xf32, #tpu.memory_space<vmem>>, vector<15x32xf32>
    tpu.vector_store %arg13[%c0_24, %c0_25], %46 {strides = array<i32>} : memref<15x32xf32, #tpu.memory_space<vmem>>, vector<15x32xf32>,
    %c4 = arith.constant 4 : index
    %c0_26 = arith.constant 0 : index
    %48 = vector.load %arg13[%c4, %c0_26] : memref<15x32xf32, #tpu.memory_space<vmem>>, vector<7x32xf32>
    tpu.vector_store %arg13[%c4, %c0_26], %45 {strides = array<i32>} : memref<15x32xf32, #tpu.memory_space<vmem>>, vector<7x32xf32>,
    %c0_27 = arith.constant 0 : index
    %c0_28 = arith.constant 0 : index
    %49 = vector.load %arg13[%c0_27, %c0_28] : memref<15x32xf32, #tpu.memory_space<vmem>>, vector<15x32xf32>
    %c0_29 = arith.constant 0 : index
    %c0_30 = arith.constant 0 : index
    %50 = vector.load %arg8[%c0_29, %c0_30] : memref<9x32xf32, #tpu.memory_space<vmem>>, vector<9x32xf32>
    %cst_31 = arith.constant 0.000000e+00 : f32
    %51 = vector.broadcast %cst_31 : f32 to vector<7x32xf32>
    %52 = vector.extract_strided_slice %49 {offsets = [0, 0], sizes = [7, 32], strides = [1, 1]} : vector<15x32xf32> to vector<7x32xf32>
    %53 = vector.extract_strided_slice %50 {offsets = [0, 0], sizes = [1, 32], strides = [1, 1]} : vector<9x32xf32> to vector<1x32xf32>
    %54 = vector.broadcast %53 : vector<1x32xf32> to vector<7x32xf32>
    %55 = arith.mulf %52, %54 : vector<7x32xf32>
    %56 = arith.addf %51, %55 : vector<7x32xf32>
    %57 = vector.extract_strided_slice %49 {offsets = [1, 0], sizes = [7, 32], strides = [1, 1]} : vector<15x32xf32> to vector<7x32xf32>
    %58 = vector.extract_strided_slice %50 {offsets = [1, 0], sizes = [1, 32], strides = [1, 1]} : vector<9x32xf32> to vector<1x32xf32>
    %59 = vector.broadcast %58 : vector<1x32xf32> to vector<7x32xf32>
    %60 = arith.mulf %57, %59 : vector<7x32xf32>
    %61 = arith.addf %56, %60 : vector<7x32xf32>
    %62 = vector.extract_strided_slice %49 {offsets = [2, 0], sizes = [7, 32], strides = [1, 1]} : vector<15x32xf32> to vector<7x32xf32>
    %63 = vector.extract_strided_slice %50 {offsets = [2, 0], sizes = [1, 32], strides = [1, 1]} : vector<9x32xf32> to vector<1x32xf32>
    %64 = vector.broadcast %63 : vector<1x32xf32> to vector<7x32xf32>
    %65 = arith.mulf %62, %64 : vector<7x32xf32>
    %66 = arith.addf %61, %65 : vector<7x32xf32>
    %67 = vector.extract_strided_slice %49 {offsets = [3, 0], sizes = [7, 32], strides = [1, 1]} : vector<15x32xf32> to vector<7x32xf32>
    %68 = vector.extract_strided_slice %50 {offsets = [3, 0], sizes = [1, 32], strides = [1, 1]} : vector<9x32xf32> to vector<1x32xf32>
    %69 = vector.broadcast %68 : vector<1x32xf32> to vector<7x32xf32>
    %70 = arith.mulf %67, %69 : vector<7x32xf32>
    %71 = arith.addf %66, %70 : vector<7x32xf32>
    %72 = vector.extract_strided_slice %49 {offsets = [4, 0], sizes = [7, 32], strides = [1, 1]} : vector<15x32xf32> to vector<7x32xf32>
    %73 = vector.extract_strided_slice %50 {offsets = [4, 0], sizes = [1, 32], strides = [1, 1]} : vector<9x32xf32> to vector<1x32xf32>
    %74 = vector.broadcast %73 : vector<1x32xf32> to vector<7x32xf32>
    %75 = arith.mulf %72, %74 : vector<7x32xf32>
    %76 = arith.addf %71, %75 : vector<7x32xf32>
    %77 = vector.extract_strided_slice %49 {offsets = [5, 0], sizes = [7, 32], strides = [1, 1]} : vector<15x32xf32> to vector<7x32xf32>
    %78 = vector.extract_strided_slice %50 {offsets = [5, 0], sizes = [1, 32], strides = [1, 1]} : vector<9x32xf32> to vector<1x32xf32>
    %79 = vector.broadcast %78 : vector<1x32xf32> to vector<7x32xf32>
    %80 = arith.mulf %77, %79 : vector<7x32xf32>
    %81 = arith.addf %76, %80 : vector<7x32xf32>
    %82 = vector.extract_strided_slice %49 {offsets = [6, 0], sizes = [7, 32], strides = [1, 1]} : vector<15x32xf32> to vector<7x32xf32>
    %83 = vector.extract_strided_slice %50 {offsets = [6, 0], sizes = [1, 32], strides = [1, 1]} : vector<9x32xf32> to vector<1x32xf32>
    %84 = vector.broadcast %83 : vector<1x32xf32> to vector<7x32xf32>
    %85 = arith.mulf %82, %84 : vector<7x32xf32>
    %86 = arith.addf %81, %85 : vector<7x32xf32>
    %87 = vector.extract_strided_slice %49 {offsets = [7, 0], sizes = [7, 32], strides = [1, 1]} : vector<15x32xf32> to vector<7x32xf32>
    %88 = vector.extract_strided_slice %50 {offsets = [7, 0], sizes = [1, 32], strides = [1, 1]} : vector<9x32xf32> to vector<1x32xf32>
    %89 = vector.broadcast %88 : vector<1x32xf32> to vector<7x32xf32>
    %90 = arith.mulf %87, %89 : vector<7x32xf32>
    %91 = arith.addf %86, %90 : vector<7x32xf32>
    %92 = vector.extract_strided_slice %49 {offsets = [8, 0], sizes = [7, 32], strides = [1, 1]} : vector<15x32xf32> to vector<7x32xf32>
    %93 = vector.extract_strided_slice %50 {offsets = [8, 0], sizes = [1, 32], strides = [1, 1]} : vector<9x32xf32> to vector<1x32xf32>
    %94 = vector.broadcast %93 : vector<1x32xf32> to vector<7x32xf32>
    %95 = arith.mulf %92, %94 : vector<7x32xf32>
    %96 = arith.addf %91, %95 : vector<7x32xf32>
    %c0_32 = arith.constant 0 : index
    %c0_33 = arith.constant 0 : index
    %97 = vector.load %arg9[%c0_32, %c0_33] : memref<1x32xf32, #tpu.memory_space<vmem>>, vector<1x32xf32>
    %98 = vector.broadcast %97 : vector<1x32xf32> to vector<7x32xf32>
    %99 = arith.addf %96, %98 : vector<7x32xf32>
    %cst_34 = arith.constant 0.999994993 : f32
    %100 = vector.broadcast %cst_34 : f32 to vector<7x32xf32>
    %101 = arith.mulf %99, %100 : vector<7x32xf32>
    %cst_35 = arith.constant 0.000000e+00 : f32
    %102 = vector.broadcast %cst_35 : f32 to vector<7x32xf32>
    %103 = arith.subf %102, %101 : vector<7x32xf32>
    %104 = math.exp %103 : vector<7x32xf32>
    %cst_36 = arith.constant 1.000000e+00 : f32
    %105 = vector.broadcast %cst_36 : f32 to vector<7x32xf32>
    %106 = arith.addf %105, %104 : vector<7x32xf32>
    %cst_37 = arith.constant 1.000000e+00 : f32
    %107 = vector.broadcast %cst_37 : f32 to vector<7x32xf32>
    %108 = arith.divf %107, %106 : vector<7x32xf32>
    %109 = arith.mulf %101, %108 : vector<7x32xf32>
    %110 = arith.truncf %109 : vector<7x32xf32> to vector<7x32xbf16>
    %c0_38 = arith.constant 0 : index
    %c0_39 = arith.constant 0 : index
    %111 = vector.load %arg10[%c0_38, %c0_39] : memref<32x32xbf16, #tpu.memory_space<vmem>>, vector<32x32xbf16>
    %cst_40 = arith.constant dense<0.000000e+00> : vector<7x32xf32>
    %112 = tpu.matmul %110, %111, %cst_40 {dimension_numbers = #tpu.dot_dimension_numbers<[1], [0], [0], [1], [0, 0, 1, 1], [], []>} : vector<7x32xbf16>, vector<32x32xbf16>, vector<7x32xf32> -> vector<7x32xf32>
    %c0_41 = arith.constant 0 : index
    %c0_42 = arith.constant 0 : index
    %113 = vector.load %arg11[%c0_41, %c0_42] : memref<1x32xf32, #tpu.memory_space<vmem>>, vector<1x32xf32>
    %114 = vector.broadcast %113 : vector<1x32xf32> to vector<7x32xf32>
    %115 = arith.addf %112, %114 : vector<7x32xf32>
    %116 = arith.addf %2, %115 : vector<7x32xf32>
    %117 = arith.truncf %116 : vector<7x32xf32> to vector<7x32xbf16>
    %c0_43 = arith.constant 0 : index
    %c0_44 = arith.constant 0 : index
    %c0_45 = arith.constant 0 : index
    %118 = vector.load %arg12[%c0_43, %c0_44, %c0_45] : memref<1x7x32xbf16, #tpu.memory_space<vmem>>, vector<1x7x32xbf16>
    %119 = vector.shape_cast %118 : vector<1x7x32xbf16> to vector<7x32xbf16>
    %120 = vector.shape_cast %117 : vector<7x32xbf16> to vector<1x7x32xbf16>
    tpu.vector_store %arg12[%c0_43, %c0_44, %c0_45], %120 {strides = array<i32>} : memref<1x7x32xbf16, #tpu.memory_space<vmem>>, vector<1x7x32xbf16>,
    return
  }
  func.func @transform_0(%arg0: i32) -> (i32, i32, i32) {
    %c0_i32 = arith.constant 0 : i32
    %c0_i32_0 = arith.constant 0 : i32
    %c0_i32_1 = arith.constant 0 : i32
    return %arg0, %c0_i32, %c0_i32_0 : i32, i32, i32
  }
  func.func @transform_1(%arg0: i32) -> (i32, i32) {
    %c0_i32 = arith.constant 0 : i32
    %c0_i32_0 = arith.constant 0 : i32
    %c0_i32_1 = arith.constant 0 : i32
    return %c0_i32, %c0_i32_0 : i32, i32
  }
  func.func @transform_2(%arg0: i32) -> (i32, i32) {
    %c0_i32 = arith.constant 0 : i32
    %c0_i32_0 = arith.constant 0 : i32
    %c0_i32_1 = arith.constant 0 : i32
    return %c0_i32, %c0_i32_0 : i32, i32
  }
  func.func @transform_3(%arg0: i32) -> (i32, i32) {
    %c0_i32 = arith.constant 0 : i32
    %c0_i32_0 = arith.constant 0 : i32
    %c0_i32_1 = arith.constant 0 : i32
    return %c0_i32, %c0_i32_0 : i32, i32
  }
  func.func @transform_4(%arg0: i32) -> (i32, i32) {
    %c0_i32 = arith.constant 0 : i32
    %c0_i32_0 = arith.constant 0 : i32
    %c0_i32_1 = arith.constant 0 : i32
    return %c0_i32, %c0_i32_0 : i32, i32
  }
  func.func @transform_5(%arg0: i32) -> (i32, i32) {
    %c0_i32 = arith.constant 0 : i32
    %c0_i32_0 = arith.constant 0 : i32
    %c0_i32_1 = arith.constant 0 : i32
    return %c0_i32, %c0_i32_0 : i32, i32
  }
  func.func @transform_6(%arg0: i32) -> (i32, i32) {
    %c0_i32 = arith.constant 0 : i32
    %c0_i32_0 = arith.constant 0 : i32
    %c0_i32_1 = arith.constant 0 : i32
    return %c0_i32, %c0_i32_0 : i32, i32
  }
  func.func @transform_7(%arg0: i32) -> (i32, i32) {
    %c0_i32 = arith.constant 0 : i32
    %c0_i32_0 = arith.constant 0 : i32
    %c0_i32_1 = arith.constant 0 : i32
    return %c0_i32, %c0_i32_0 : i32, i32
  }
  func.func @transform_8(%arg0: i32) -> (i32, i32) {
    %c0_i32 = arith.constant 0 : i32
    %c0_i32_0 = arith.constant 0 : i32
    %c0_i32_1 = arith.constant 0 : i32
    return %c0_i32, %c0_i32_0 : i32, i32
  }
  func.func @transform_9(%arg0: i32) -> (i32, i32) {
    %c0_i32 = arith.constant 0 : i32
    %c0_i32_0 = arith.constant 0 : i32
    %c0_i32_1 = arith.constant 0 : i32
    return %c0_i32, %c0_i32_0 : i32, i32
  }
  func.func @transform_10(%arg0: i32) -> (i32, i32) {
    %c0_i32 = arith.constant 0 : i32
    %c0_i32_0 = arith.constant 0 : i32
    %c0_i32_1 = arith.constant 0 : i32
    return %c0_i32, %c0_i32_0 : i32, i32
  }
  func.func @transform_11(%arg0: i32) -> (i32, i32, i32) {
    %c0_i32 = arith.constant 0 : i32
    %c0_i32_0 = arith.constant 0 : i32
    %c0_i32_1 = arith.constant 0 : i32
    return %arg0, %c0_i32, %c0_i32_0 : i32, i32, i32
  }
}

module attributes {stable_mosaic.version = 11 : i64} {
  func.func @_ffn_kernel(%arg0: i32, %arg1: memref<14x32xbf16, #tpu.memory_space<vmem>>, %arg2: memref<1x32xf32, #tpu.memory_space<vmem>>, %arg3: memref<1x32xf32, #tpu.memory_space<vmem>>, %arg4: memref<32x128xbf16, #tpu.memory_space<vmem>>, %arg5: memref<1x128xf32, #tpu.memory_space<vmem>>, %arg6: memref<128x32xbf16, #tpu.memory_space<vmem>>, %arg7: memref<1x32xf32, #tpu.memory_space<vmem>>, %arg8: memref<1x32xf32, #tpu.memory_space<vmem>>, %arg9: memref<1x32xf32, #tpu.memory_space<vmem>>, %arg10: memref<14x32xbf16, #tpu.memory_space<vmem>>) attributes {dimension_semantics = [#tpu.dimension_semantics<parallel>], iteration_bounds = array<i64: 1>, scalar_prefetch = 0 : i64, scratch_operands = 0 : i64, tpu.core_type = #tpu.core_type<tc>, window_params = [{transform_indices = @transform_0, window_bounds = array<i64: 14, 32>}, {pipeline_mode = #tpu.pipeline_mode<synchronous>, transform_indices = @transform_1, window_bounds = array<i64: 1, 32>}, {pipeline_mode = #tpu.pipeline_mode<synchronous>, transform_indices = @transform_2, window_bounds = array<i64: 1, 32>}, {pipeline_mode = #tpu.pipeline_mode<synchronous>, transform_indices = @transform_3, window_bounds = array<i64: 32, 128>}, {pipeline_mode = #tpu.pipeline_mode<synchronous>, transform_indices = @transform_4, window_bounds = array<i64: 1, 128>}, {pipeline_mode = #tpu.pipeline_mode<synchronous>, transform_indices = @transform_5, window_bounds = array<i64: 128, 32>}, {pipeline_mode = #tpu.pipeline_mode<synchronous>, transform_indices = @transform_6, window_bounds = array<i64: 1, 32>}, {pipeline_mode = #tpu.pipeline_mode<synchronous>, transform_indices = @transform_7, window_bounds = array<i64: 1, 32>}, {pipeline_mode = #tpu.pipeline_mode<synchronous>, transform_indices = @transform_8, window_bounds = array<i64: 1, 32>}, {transform_indices = @transform_9, window_bounds = array<i64: 14, 32>}]} {
    %c0 = arith.constant 0 : index
    %c0_0 = arith.constant 0 : index
    %0 = vector.load %arg1[%c0, %c0_0] : memref<14x32xbf16, #tpu.memory_space<vmem>>, vector<14x32xbf16>
    %1 = arith.extf %0 : vector<14x32xbf16> to vector<14x32xf32>
    %c0_1 = arith.constant 0 : index
    %c0_2 = arith.constant 0 : index
    %2 = vector.load %arg2[%c0_1, %c0_2] : memref<1x32xf32, #tpu.memory_space<vmem>>, vector<1x32xf32>
    %c0_3 = arith.constant 0 : index
    %c0_4 = arith.constant 0 : index
    %3 = vector.load %arg3[%c0_3, %c0_4] : memref<1x32xf32, #tpu.memory_space<vmem>>, vector<1x32xf32>
    %cst = arith.constant dense<0.000000e+00> : vector<14xf32>
    %4 = vector.multi_reduction <add>, %1, %cst [1] : vector<14x32xf32> to vector<14xf32>
    %5 = vector.shape_cast %4 : vector<14xf32> to vector<14x1xf32>
    %cst_5 = arith.constant 3.200000e+01 : f32
    %6 = vector.broadcast %cst_5 : f32 to vector<14x1xf32>
    %7 = arith.divf %5, %6 : vector<14x1xf32>
    %8 = vector.broadcast %7 : vector<14x1xf32> to vector<14x32xf32>
    %9 = arith.subf %1, %8 : vector<14x32xf32>
    %10 = arith.mulf %9, %9 : vector<14x32xf32>
    %cst_6 = arith.constant dense<0.000000e+00> : vector<14xf32>
    %11 = vector.multi_reduction <add>, %10, %cst_6 [1] : vector<14x32xf32> to vector<14xf32>
    %12 = vector.shape_cast %11 : vector<14xf32> to vector<14x1xf32>
    %cst_7 = arith.constant 3.200000e+01 : f32
    %13 = vector.broadcast %cst_7 : f32 to vector<14x1xf32>
    %14 = arith.divf %12, %13 : vector<14x1xf32>
    %15 = vector.broadcast %7 : vector<14x1xf32> to vector<14x32xf32>
    %16 = arith.subf %1, %15 : vector<14x32xf32>
    %cst_8 = arith.constant 9.99999974E-6 : f32
    %17 = vector.broadcast %cst_8 : f32 to vector<14x1xf32>
    %18 = arith.addf %14, %17 : vector<14x1xf32>
    %19 = math.rsqrt %18 : vector<14x1xf32>
    %20 = vector.broadcast %19 : vector<14x1xf32> to vector<14x32xf32>
    %21 = arith.mulf %16, %20 : vector<14x32xf32>
    %22 = vector.broadcast %2 : vector<1x32xf32> to vector<14x32xf32>
    %23 = arith.mulf %21, %22 : vector<14x32xf32>
    %24 = vector.broadcast %3 : vector<1x32xf32> to vector<14x32xf32>
    %25 = arith.addf %23, %24 : vector<14x32xf32>
    %26 = arith.truncf %25 : vector<14x32xf32> to vector<14x32xbf16>
    %c0_9 = arith.constant 0 : index
    %c0_10 = arith.constant 0 : index
    %27 = vector.load %arg4[%c0_9, %c0_10] : memref<32x128xbf16, #tpu.memory_space<vmem>>, vector<32x128xbf16>
    %cst_11 = arith.constant dense<0.000000e+00> : vector<14x128xf32>
    %28 = tpu.matmul %26, %27, %cst_11 {dimension_numbers = #tpu.dot_dimension_numbers<[1], [0], [0], [1], [0, 0, 1, 1], [], []>} : vector<14x32xbf16>, vector<32x128xbf16>, vector<14x128xf32> -> vector<14x128xf32>
    %c0_12 = arith.constant 0 : index
    %c0_13 = arith.constant 0 : index
    %29 = vector.load %arg5[%c0_12, %c0_13] : memref<1x128xf32, #tpu.memory_space<vmem>>, vector<1x128xf32>
    %30 = vector.broadcast %29 : vector<1x128xf32> to vector<14x128xf32>
    %31 = arith.addf %28, %30 : vector<14x128xf32>
    %cst_14 = arith.constant 0.000000e+00 : f32
    %32 = vector.broadcast %cst_14 : f32 to vector<14x128xf32>
    %33 = arith.subf %32, %31 : vector<14x128xf32>
    %34 = math.exp %33 : vector<14x128xf32>
    %cst_15 = arith.constant 1.000000e+00 : f32
    %35 = vector.broadcast %cst_15 : f32 to vector<14x128xf32>
    %36 = arith.addf %35, %34 : vector<14x128xf32>
    %cst_16 = arith.constant 1.000000e+00 : f32
    %37 = vector.broadcast %cst_16 : f32 to vector<14x128xf32>
    %38 = arith.divf %37, %36 : vector<14x128xf32>
    %39 = arith.mulf %31, %38 : vector<14x128xf32>
    %40 = arith.truncf %39 : vector<14x128xf32> to vector<14x128xbf16>
    %c0_17 = arith.constant 0 : index
    %c0_18 = arith.constant 0 : index
    %41 = vector.load %arg6[%c0_17, %c0_18] : memref<128x32xbf16, #tpu.memory_space<vmem>>, vector<128x32xbf16>
    %cst_19 = arith.constant dense<0.000000e+00> : vector<14x32xf32>
    %42 = tpu.matmul %40, %41, %cst_19 {dimension_numbers = #tpu.dot_dimension_numbers<[1], [0], [0], [1], [0, 0, 1, 1], [], []>} : vector<14x128xbf16>, vector<128x32xbf16>, vector<14x32xf32> -> vector<14x32xf32>
    %c0_20 = arith.constant 0 : index
    %c0_21 = arith.constant 0 : index
    %43 = vector.load %arg7[%c0_20, %c0_21] : memref<1x32xf32, #tpu.memory_space<vmem>>, vector<1x32xf32>
    %44 = vector.broadcast %43 : vector<1x32xf32> to vector<14x32xf32>
    %45 = arith.addf %42, %44 : vector<14x32xf32>
    %cst_22 = arith.constant 5.000000e-01 : f32
    %46 = vector.broadcast %cst_22 : f32 to vector<14x32xf32>
    %47 = arith.mulf %46, %45 : vector<14x32xf32>
    %48 = arith.addf %1, %47 : vector<14x32xf32>
    %c0_23 = arith.constant 0 : index
    %c0_24 = arith.constant 0 : index
    %49 = vector.load %arg8[%c0_23, %c0_24] : memref<1x32xf32, #tpu.memory_space<vmem>>, vector<1x32xf32>
    %c0_25 = arith.constant 0 : index
    %c0_26 = arith.constant 0 : index
    %50 = vector.load %arg9[%c0_25, %c0_26] : memref<1x32xf32, #tpu.memory_space<vmem>>, vector<1x32xf32>
    %cst_27 = arith.constant dense<0.000000e+00> : vector<14xf32>
    %51 = vector.multi_reduction <add>, %48, %cst_27 [1] : vector<14x32xf32> to vector<14xf32>
    %52 = vector.shape_cast %51 : vector<14xf32> to vector<14x1xf32>
    %cst_28 = arith.constant 3.200000e+01 : f32
    %53 = vector.broadcast %cst_28 : f32 to vector<14x1xf32>
    %54 = arith.divf %52, %53 : vector<14x1xf32>
    %55 = vector.broadcast %54 : vector<14x1xf32> to vector<14x32xf32>
    %56 = arith.subf %48, %55 : vector<14x32xf32>
    %57 = arith.mulf %56, %56 : vector<14x32xf32>
    %cst_29 = arith.constant dense<0.000000e+00> : vector<14xf32>
    %58 = vector.multi_reduction <add>, %57, %cst_29 [1] : vector<14x32xf32> to vector<14xf32>
    %59 = vector.shape_cast %58 : vector<14xf32> to vector<14x1xf32>
    %cst_30 = arith.constant 3.200000e+01 : f32
    %60 = vector.broadcast %cst_30 : f32 to vector<14x1xf32>
    %61 = arith.divf %59, %60 : vector<14x1xf32>
    %62 = vector.broadcast %54 : vector<14x1xf32> to vector<14x32xf32>
    %63 = arith.subf %48, %62 : vector<14x32xf32>
    %cst_31 = arith.constant 9.99999974E-6 : f32
    %64 = vector.broadcast %cst_31 : f32 to vector<14x1xf32>
    %65 = arith.addf %61, %64 : vector<14x1xf32>
    %66 = math.rsqrt %65 : vector<14x1xf32>
    %67 = vector.broadcast %66 : vector<14x1xf32> to vector<14x32xf32>
    %68 = arith.mulf %63, %67 : vector<14x32xf32>
    %69 = vector.broadcast %49 : vector<1x32xf32> to vector<14x32xf32>
    %70 = arith.mulf %68, %69 : vector<14x32xf32>
    %71 = vector.broadcast %50 : vector<1x32xf32> to vector<14x32xf32>
    %72 = arith.addf %70, %71 : vector<14x32xf32>
    %73 = arith.truncf %72 : vector<14x32xf32> to vector<14x32xbf16>
    %c0_32 = arith.constant 0 : index
    %c0_33 = arith.constant 0 : index
    %74 = vector.load %arg10[%c0_32, %c0_33] : memref<14x32xbf16, #tpu.memory_space<vmem>>, vector<14x32xbf16>
    tpu.vector_store %arg10[%c0_32, %c0_33], %73 {strides = array<i32>} : memref<14x32xbf16, #tpu.memory_space<vmem>>, vector<14x32xbf16>,
    return
  }
  func.func @transform_0(%arg0: i32) -> (i32, i32) {
    %c0_i32 = arith.constant 0 : i32
    %c0_i32_0 = arith.constant 0 : i32
    return %arg0, %c0_i32 : i32, i32
  }
  func.func @transform_1(%arg0: i32) -> (i32, i32) {
    %c0_i32 = arith.constant 0 : i32
    %c0_i32_0 = arith.constant 0 : i32
    %c0_i32_1 = arith.constant 0 : i32
    return %c0_i32, %c0_i32_0 : i32, i32
  }
  func.func @transform_2(%arg0: i32) -> (i32, i32) {
    %c0_i32 = arith.constant 0 : i32
    %c0_i32_0 = arith.constant 0 : i32
    %c0_i32_1 = arith.constant 0 : i32
    return %c0_i32, %c0_i32_0 : i32, i32
  }
  func.func @transform_3(%arg0: i32) -> (i32, i32) {
    %c0_i32 = arith.constant 0 : i32
    %c0_i32_0 = arith.constant 0 : i32
    %c0_i32_1 = arith.constant 0 : i32
    return %c0_i32, %c0_i32_0 : i32, i32
  }
  func.func @transform_4(%arg0: i32) -> (i32, i32) {
    %c0_i32 = arith.constant 0 : i32
    %c0_i32_0 = arith.constant 0 : i32
    %c0_i32_1 = arith.constant 0 : i32
    return %c0_i32, %c0_i32_0 : i32, i32
  }
  func.func @transform_5(%arg0: i32) -> (i32, i32) {
    %c0_i32 = arith.constant 0 : i32
    %c0_i32_0 = arith.constant 0 : i32
    %c0_i32_1 = arith.constant 0 : i32
    return %c0_i32, %c0_i32_0 : i32, i32
  }
  func.func @transform_6(%arg0: i32) -> (i32, i32) {
    %c0_i32 = arith.constant 0 : i32
    %c0_i32_0 = arith.constant 0 : i32
    %c0_i32_1 = arith.constant 0 : i32
    return %c0_i32, %c0_i32_0 : i32, i32
  }
  func.func @transform_7(%arg0: i32) -> (i32, i32) {
    %c0_i32 = arith.constant 0 : i32
    %c0_i32_0 = arith.constant 0 : i32
    %c0_i32_1 = arith.constant 0 : i32
    return %c0_i32, %c0_i32_0 : i32, i32
  }
  func.func @transform_8(%arg0: i32) -> (i32, i32) {
    %c0_i32 = arith.constant 0 : i32
    %c0_i32_0 = arith.constant 0 : i32
    %c0_i32_1 = arith.constant 0 : i32
    return %c0_i32, %c0_i32_0 : i32, i32
  }
  func.func @transform_9(%arg0: i32) -> (i32, i32) {
    %c0_i32 = arith.constant 0 : i32
    %c0_i32_0 = arith.constant 0 : i32
    return %arg0, %c0_i32 : i32, i32
  }
}

module attributes {stable_mosaic.version = 11 : i64} {
  func.func @_fc_logsoftmax_kernel(%arg0: i32, %arg1: memref<14x32xbf16, #tpu.memory_space<vmem>>, %arg2: memref<32x128xbf16, #tpu.memory_space<vmem>>, %arg3: memref<14x128xf32, #tpu.memory_space<vmem>>) attributes {dimension_semantics = [#tpu.dimension_semantics<parallel>], iteration_bounds = array<i64: 1>, scalar_prefetch = 0 : i64, scratch_operands = 0 : i64, tpu.core_type = #tpu.core_type<tc>, window_params = [{transform_indices = @transform_0, window_bounds = array<i64: 14, 32>}, {pipeline_mode = #tpu.pipeline_mode<synchronous>, transform_indices = @transform_1, window_bounds = array<i64: 32, 128>}, {transform_indices = @transform_2, window_bounds = array<i64: 14, 128>}]} {
    %c0 = arith.constant 0 : index
    %c0_0 = arith.constant 0 : index
    %0 = vector.load %arg1[%c0, %c0_0] : memref<14x32xbf16, #tpu.memory_space<vmem>>, vector<14x32xbf16>
    %c0_1 = arith.constant 0 : index
    %c0_2 = arith.constant 0 : index
    %1 = vector.load %arg2[%c0_1, %c0_2] : memref<32x128xbf16, #tpu.memory_space<vmem>>, vector<32x128xbf16>
    %cst = arith.constant dense<0.000000e+00> : vector<14x128xf32>
    %2 = tpu.matmul %0, %1, %cst {dimension_numbers = #tpu.dot_dimension_numbers<[1], [0], [0], [1], [0, 0, 1, 1], [], []>} : vector<14x32xbf16>, vector<32x128xbf16>, vector<14x128xf32> -> vector<14x128xf32>
    %3 = tpu.iota {dimensions = array<i32: 1>} : vector<14x128xi32>
    %c10_i32 = arith.constant 10 : i32
    %4 = vector.broadcast %c10_i32 : i32 to vector<14x128xi32>
    %5 = arith.cmpi slt, %3, %4 : vector<14x128xi32>
    %cst_3 = arith.constant -1.000000e+30 : f32
    %6 = vector.broadcast %cst_3 : f32 to vector<14x128xf32>
    %7 = arith.select %5, %2, %6 : vector<14x128xi1>, vector<14x128xf32>
    %cst_4 = arith.constant dense<0xFF800000> : vector<14xf32>
    %8 = vector.multi_reduction <maximumf>, %7, %cst_4 [1] : vector<14x128xf32> to vector<14xf32>
    %9 = vector.shape_cast %8 : vector<14xf32> to vector<14x1xf32>
    %10 = vector.broadcast %9 : vector<14x1xf32> to vector<14x128xf32>
    %11 = arith.subf %7, %10 : vector<14x128xf32>
    %12 = math.exp %11 : vector<14x128xf32>
    %cst_5 = arith.constant dense<0.000000e+00> : vector<14xf32>
    %13 = vector.multi_reduction <add>, %12, %cst_5 [1] : vector<14x128xf32> to vector<14xf32>
    %14 = vector.shape_cast %13 : vector<14xf32> to vector<14x1xf32>
    %15 = math.log %14 : vector<14x1xf32>
    %16 = vector.broadcast %15 : vector<14x1xf32> to vector<14x128xf32>
    %17 = arith.subf %11, %16 : vector<14x128xf32>
    %c0_6 = arith.constant 0 : index
    %c0_7 = arith.constant 0 : index
    %18 = vector.load %arg3[%c0_6, %c0_7] : memref<14x128xf32, #tpu.memory_space<vmem>>, vector<14x128xf32>
    tpu.vector_store %arg3[%c0_6, %c0_7], %17 {strides = array<i32>} : memref<14x128xf32, #tpu.memory_space<vmem>>, vector<14x128xf32>,
    return
  }
  func.func @transform_0(%arg0: i32) -> (i32, i32) {
    %c0_i32 = arith.constant 0 : i32
    %c0_i32_0 = arith.constant 0 : i32
    return %arg0, %c0_i32 : i32, i32
  }
  func.func @transform_1(%arg0: i32) -> (i32, i32) {
    %c0_i32 = arith.constant 0 : i32
    %c0_i32_0 = arith.constant 0 : i32
    %c0_i32_1 = arith.constant 0 : i32
    return %c0_i32, %c0_i32_0 : i32, i32
  }
  func.func @transform_2(%arg0: i32) -> (i32, i32) {
    %c0_i32 = arith.constant 0 : i32
    %c0_i32_0 = arith.constant 0 : i32
    return %arg0, %c0_i32 : i32, i32
  }
}

</mosaic_0001>

<llo_original>
// kernel: fast_conformer_forward.19
$region0: #{fast_conformer_forward.19}
  #allocation0 [shape = 'u32[]', space=smem, size = 0x4, offset = 0x4, fixed_abs, tag = 'smem constant byte address 0x4 - core index']
  #allocation1 [shape = 'u32[72,128]{1,0:T(1,128)}', space=vmem, size = 0x9000, scoped, tag = 'internal scratch']
  #allocation2 [shape = 'f32[434,32]{1,0:T(8,128)}', space=vmem, size = 0x37000, scoped, tag = 'scratch operand']
  %s0 = inlined_call_operand.vmem [shape: f32[434,9], index: 0, kind: input, shape index: {}]
  %s1 = inlined_call_operand.vmem [shape: bf16[9,32], index: 1, kind: input, shape index: {}]
  %s2 = inlined_call_operand.vmem [shape: f32[1,32], index: 2, kind: input, shape index: {}]
  %s3 = inlined_call_operand.vmem [shape: bf16[434,32], index: 3, kind: output, shape index: {}]
  %s4 = sld [smem:[#allocation0]]
  $region30: #{fast_conformer_forward.19} parent=0
    _
  %s6 = ssub.s32 1, %s4
  %s7 = scalar_select 0, %s6, %s4
  // Predicated region
  $region2: #{fast_conformer_forward.19} parent=0 // pred_check
    _
  $region3: #{fast_conformer_forward.19} parent=0 // pred_check_branch
    %9 = sbr.rel (0) target = $region5
  $region4: #{fast_conformer_forward.19} parent=0 // pred_region
    _
  $region5: #{fast_conformer_forward.19} parent=0 // pred_fallthru
    _
  // Predicated region
  $region6: #{fast_conformer_forward.19} parent=0 // pred_check
    _
  $region7: #{fast_conformer_forward.19} parent=0 // pred_check_branch
    %11 = sbr.rel (0) target = $region9
  $region8: #{fast_conformer_forward.19} parent=0 // pred_region
    _
  $region9: #{fast_conformer_forward.19} parent=0 // pred_fallthru
    _
  // Predicated region
  $region10: #{fast_conformer_forward.19} parent=0 // pred_check
    _
  $region11: #{fast_conformer_forward.19} parent=0 // pred_check_branch
    %13 = sbr.rel (0) target = $region13
  $region12: #{fast_conformer_forward.19} parent=0 // pred_region
    _
  $region13: #{fast_conformer_forward.19} parent=0 // pred_fallthru
    _
  %p15 = scmp.eq.s32.totalorder 0, 0
  // Predicated region
  $region14: #{fast_conformer_forward.19} parent=0 // pred_check
    %p16 = pneg %p15
  $region15: #{fast_conformer_forward.19} parent=0 // pred_check_branch
    %18 = sbr.rel (%p16) target = $region17
  $region16: #{fast_conformer_forward.19} parent=0 // pred_region
    %vm19 = vcmask 261120
    %20 = vst.msk [vmem:[#allocation2] sm:$0xff] %vm19, 0.0
    %21 = vst.msk [vmem:[#allocation2 + $0x8] sm:$0xff] %vm19, 0.0
    %22 = vst.msk [vmem:[#allocation2 + $0x10] sm:$0xff] %vm19, 0.0
    %23 = vst.msk [vmem:[#allocation2 + $0x18] sm:$0xff] %vm19, 0.0
    %24 = vst.msk [vmem:[#allocation2 + $0x20] sm:$0xff] %vm19, 0.0
    %25 = vst.msk [vmem:[#allocation2 + $0x28] sm:$0xff] %vm19, 0.0
    %26 = vst.msk [vmem:[#allocation2 + $0x30] sm:$0xff] %vm19, 0.0
    %27 = vst.msk [vmem:[#allocation2 + $0x38] sm:$0xff] %vm19, 0.0
    %28 = vst.msk [vmem:[#allocation2 + $0x40] sm:$0xff] %vm19, 0.0
    %29 = vst.msk [vmem:[#allocation2 + $0x48] sm:$0xff] %vm19, 0.0
    %30 = vst.msk [vmem:[#allocation2 + $0x50] sm:$0xff] %vm19, 0.0
    %31 = vst.msk [vmem:[#allocation2 + $0x58] sm:$0xff] %vm19, 0.0
    %32 = vst.msk [vmem:[#allocation2 + $0x60] sm:$0xff] %vm19, 0.0
    %33 = vst.msk [vmem:[#allocation2 + $0x68] sm:$0xff] %vm19, 0.0
    %34 = vst.msk [vmem:[#allocation2 + $0x70] sm:$0xff] %vm19, 0.0
    %35 = vst.msk [vmem:[#allocation2 + $0x78] sm:$0xff] %vm19, 0.0
    %36 = vst.msk [vmem:[#allocation2 + $0x80] sm:$0xff] %vm19, 0.0
    %37 = vst.msk [vmem:[#allocation2 + $0x88] sm:$0xff] %vm19, 0.0
    %38 = vst.msk [vmem:[#allocation2 + $0x90] sm:$0xff] %vm19, 0.0
    %39 = vst.msk [vmem:[#allocation2 + $0x98] sm:$0xff] %vm19, 0.0
    %40 = vst.msk [vmem:[#allocation2 + $0xa0] sm:$0xff] %vm19, 0.0
    %41 = vst.msk [vmem:[#allocation2 + $0xa8] sm:$0xff] %vm19, 0.0
    %42 = vst.msk [vmem:[#allocation2 + $0xb0] sm:$0xff] %vm19, 0.0
    %43 = vst.msk [vmem:[#allocation2 + $0xb8] sm:$0xff] %vm19, 0.0
    %44 = vst.msk [vmem:[#allocation2 + $0xc0] sm:$0xff] %vm19, 0.0
    %45 = vst.msk [vmem:[#allocation2 + $0xc8] sm:$0xff] %vm19, 0.0
    %46 = vst.msk [vmem:[#allocation2 + $0xd0] sm:$0xff] %vm19, 0.0
    %47 = vst.msk [vmem:[#allocation2 + $0xd8] sm:$0xff] %vm19, 0.0
    %48 = vst.msk [vmem:[#allocation2 + $0xe0] sm:$0xff] %vm19, 0.0
    %49 = vst.msk [vmem:[#allocation2 + $0xe8] sm:$0xff] %vm19, 0.0
    %50 = vst.msk [vmem:[#allocation2 + $0xf0] sm:$0xff] %vm19, 0.0
    %51 = vst.msk [vmem:[#allocation2 + $0xf8] sm:$0xff] %vm19, 0.0
    %52 = vst.msk [vmem:[#allocation2 + $0x100] sm:$0xff] %vm19, 0.0
    %53 = vst.msk [vmem:[#allocation2 + $0x108] sm:$0xff] %vm19, 0.0
    %54 = vst.msk [vmem:[#allocation2 + $0x110] sm:$0xff] %vm19, 0.0
    %55 = vst.msk [vmem:[#allocation2 + $0x118] sm:$0xff] %vm19, 0.0
    %56 = vst.msk [vmem:[#allocation2 + $0x120] sm:$0xff] %vm19, 0.0
    %57 = vst.msk [vmem:[#allocation2 + $0x128] sm:$0xff] %vm19, 0.0
    %58 = vst.msk [vmem:[#allocation2 + $0x130] sm:$0xff] %vm19, 0.0
    %59 = vst.msk [vmem:[#allocation2 + $0x138] sm:$0xff] %vm19, 0.0
    %60 = vst.msk [vmem:[#allocation2 + $0x140] sm:$0xff] %vm19, 0.0
    %61 = vst.msk [vmem:[#allocation2 + $0x148] sm:$0xff] %vm19, 0.0
    %62 = vst.msk [vmem:[#allocation2 + $0x150] sm:$0xff] %vm19, 0.0
    %63 = vst.msk [vmem:[#allocation2 + $0x158] sm:$0xff] %vm19, 0.0
    %64 = vst.msk [vmem:[#allocation2 + $0x160] sm:$0xff] %vm19, 0.0
    %65 = vst.msk [vmem:[#allocation2 + $0x168] sm:$0xff] %vm19, 0.0
    %66 = vst.msk [vmem:[#allocation2 + $0x170] sm:$0xff] %vm19, 0.0
    %67 = vst.msk [vmem:[#allocation2 + $0x178] sm:$0xff] %vm19, 0.0
    %68 = vst.msk [vmem:[#allocation2 + $0x180] sm:$0xff] %vm19, 0.0
    %69 = vst.msk [vmem:[#allocation2 + $0x188] sm:$0xff] %vm19, 0.0
    %70 = vst.msk [vmem:[#allocation2 + $0x190] sm:$0xff] %vm19, 0.0
    %71 = vst.msk [vmem:[#allocation2 + $0x198] sm:$0xff] %vm19, 0.0
    %72 = vst.msk [vmem:[#allocation2 + $0x1a0] sm:$0xff] %vm19, 0.0
    %73 = vst.msk [vmem:[#allocation2 + $0x1a8] sm:$0xff] %vm19, 0.0
    %vm74 = vcmask 254976
    %75 = vst.msk [vmem:[#allocation2 + $0x1b0] sm:$0x3] %vm74, 0.0
  $region17: #{fast_conformer_forward.19} parent=0 // pred_fallthru
    _
  %v76 = vld [vmem:[#allocation2] sm:$0xff]
  %v77 = vld [vmem:[#allocation2 + $0x8] sm:$0xff]
  %v78 = vld [vmem:[#allocation2 + $0x10] sm:$0xff]
  %v79 = vld [vmem:[#allocation2 + $0x18] sm:$0xff]
  %v80 = vld [vmem:[#allocation2 + $0x20] sm:$0xff]
  %v81 = vld [vmem:[#allocation2 + $0x28] sm:$0xff]
  %v82 = vld [vmem:[#allocation2 + $0x30] sm:$0xff]
  %v83 = vld [vmem:[#allocation2 + $0x38] sm:$0xff]
  %v84 = vld [vmem:[#allocation2 + $0x40] sm:$0xff]
  %v85 = vld [vmem:[#allocation2 + $0x48] sm:$0xff]
  %v86 = vld [vmem:[#allocation2 + $0x50] sm:$0xff]
  %v87 = vld [vmem:[#allocation2 + $0x58] sm:$0xff]
  %v88 = vld [vmem:[#allocation2 + $0x60] sm:$0xff]
  %v89 = vld [vmem:[#allocation2 + $0x68] sm:$0xff]
  %v90 = vld [vmem:[#allocation2 + $0x70] sm:$0xff]
  %v91 = vld [vmem:[#allocation2 + $0x78] sm:$0xff]
  %v92 = vld [vmem:[#allocation2 + $0x80] sm:$0xff]
  %v93 = vld [vmem:[#allocation2 + $0x88] sm:$0xff]
  %v94 = vld [vmem:[#allocation2 + $0x90] sm:$0xff]
  %v95 = vld [vmem:[#allocation2 + $0x98] sm:$0xff]
  %v96 = vld [vmem:[#allocation2 + $0xa0] sm:$0xff]
  %v97 = vld [vmem:[#allocation2 + $0xa8] sm:$0xff]
  %v98 = vld [vmem:[#allocation2 + $0xb0] sm:$0xff]
  %v99 = vld [vmem:[#allocation2 + $0xb8] sm:$0xff]
  %v100 = vld [vmem:[#allocation2 + $0xc0] sm:$0xff]
  %v101 = vld [vmem:[#allocation2 + $0xc8] sm:$0xff]
  %v102 = vld [vmem:[#allocation2 + $0xd0] sm:$0xff]
  %v103 = vld [vmem:[#allocation2 + $0xd8] sm:$0xff]
  %v104 = vld [vmem:[#allocation2 + $0xe0] sm:$0xff]
  %v105 = vld [vmem:[#allocation2 + $0xe8] sm:$0xff]
  %v106 = vld [vmem:[#allocation2 + $0xf0] sm:$0xff]
  %v107 = vld [vmem:[#allocation2 + $0xf8] sm:$0xff]
  %v108 = vld [vmem:[#allocation2 + $0x100] sm:$0xff]
  %v109 = vld [vmem:[#allocation2 + $0x108] sm:$0xff]
  %v110 = vld [vmem:[#allocation2 + $0x110] sm:$0xff]
  %v111 = vld [vmem:[#allocation2 + $0x118] sm:$0xff]
  %v112 = vld [vmem:[#allocation2 + $0x120] sm:$0xff]
  %v113 = vld [vmem:[#allocation2 + $0x128] sm:$0xff]
  %v114 = vld [vmem:[#allocation2 + $0x130] sm:$0xff]
  %v115 = vld [vmem:[#allocation2 + $0x138] sm:$0xff]
  %v116 = vld [vmem:[#allocation2 + $0x140] sm:$0xff]
  %v117 = vld [vmem:[#allocation2 + $0x148] sm:$0xff]
  %v118 = vld [vmem:[#allocation2 + $0x150] sm:$0xff]
  %v119 = vld [vmem:[#allocation2 + $0x158] sm:$0xff]
  %v120 = vld [vmem:[#allocation2 + $0x160] sm:$0xff]
  %v121 = vld [vmem:[#allocation2 + $0x168] sm:$0xff]
  %v122 = vld [vmem:[#allocation2 + $0x170] sm:$0xff]
  %v123 = vld [vmem:[#allocation2 + $0x178] sm:$0xff]
  %v124 = vld [vmem:[#allocation2 + $0x180] sm:$0xff]
  %v125 = vld [vmem:[#allocation2 + $0x188] sm:$0xff]
  %v126 = vld [vmem:[#allocation2 + $0x190] sm:$0xff]
  %v127 = vld [vmem:[#allocation2 + $0x198] sm:$0xff]
  %v128 = vld [vmem:[#allocation2 + $0x1a0] sm:$0xff]
  %v129 = vld [vmem:[#allocation2 + $0x1a8] sm:$0xff]
  %v130 = vld [vmem:[#allocation2 + $0x1b0] sm:$0x3]
  %v131 = vld [vmem:[%s0] sm:$0xff]
  %v132 = vld [vmem:[%s0 + $0x8] sm:$0xff]
  %v133 = vld [vmem:[%s0 + $0x10] sm:$0xff]
  %v134 = vld [vmem:[%s0 + $0x18] sm:$0xff]
  %v135 = vld [vmem:[%s0 + $0x20] sm:$0xff]
  %v136 = vld [vmem:[%s0 + $0x28] sm:$0xff]
  %v137 = vld [vmem:[%s0 + $0x30] sm:$0xff]
  %v138 = vld [vmem:[%s0 + $0x38] sm:$0xff]
  %v139 = vld [vmem:[%s0 + $0x40] sm:$0xff]
  %v140 = vld [vmem:[%s0 + $0x48] sm:$0xff]
  %v141 = vld [vmem:[%s0 + $0x50] sm:$0xff]
  %v142 = vld [vmem:[%s0 + $0x58] sm:$0xff]
  %v143 = vld [vmem:[%s0 + $0x60] sm:$0xff]
  %v144 = vld [vmem:[%s0 + $0x68] sm:$0xff]
  %v145 = vld [vmem:[%s0 + $0x70] sm:$0xff]
  %v146 = vld [vmem:[%s0 + $0x78] sm:$0xff]
  %v147 = vld [vmem:[%s0 + $0x80] sm:$0xff]
  %v148 = vld [vmem:[%s0 + $0x88] sm:$0xff]
  %v149 = vld [vmem:[%s0 + $0x90] sm:$0xff]
  %v150 = vld [vmem:[%s0 + $0x98] sm:$0xff]
  %v151 = vld [vmem:[%s0 + $0xa0] sm:$0xff]
  %v152 = vld [vmem:[%s0 + $0xa8] sm:$0xff]
  %v153 = vld [vmem:[%s0 + $0xb0] sm:$0xff]
  %v154 = vld [vmem:[%s0 + $0xb8] sm:$0xff]
  %v155 = vld [vmem:[%s0 + $0xc0] sm:$0xff]
  %v156 = vld [vmem:[%s0 + $0xc8] sm:$0xff]
  %v157 = vld [vmem:[%s0 + $0xd0] sm:$0xff]
  %v158 = vld [vmem:[%s0 + $0xd8] sm:$0xff]
  %v159 = vld [vmem:[%s0 + $0xe0] sm:$0xff]
  %v160 = vld [vmem:[%s0 + $0xe8] sm:$0xff]
  %v161 = vld [vmem:[%s0 + $0xf0] sm:$0xff]
  %v162 = vld [vmem:[%s0 + $0xf8] sm:$0xff]
  %v163 = vld [vmem:[%s0 + $0x100] sm:$0xff]
  %v164 = vld [vmem:[%s0 + $0x108] sm:$0xff]
  %v165 = vld [vmem:[%s0 + $0x110] sm:$0xff]
  %v166 = vld [vmem:[%s0 + $0x118] sm:$0xff]
  %v167 = vld [vmem:[%s0 + $0x120] sm:$0xff]
  %v168 = vld [vmem:[%s0 + $0x128] sm:$0xff]
  %v169 = vld [vmem:[%s0 + $0x130] sm:$0xff]
  %v170 = vld [vmem:[%s0 + $0x138] sm:$0xff]
  %v171 = vld [vmem:[%s0 + $0x140] sm:$0xff]
  %v172 = vld [vmem:[%s0 + $0x148] sm:$0xff]
  %v173 = vld [vmem:[%s0 + $0x150] sm:$0xff]
  %v174 = vld [vmem:[%s0 + $0x158] sm:$0xff]
  %v175 = vld [vmem:[%s0 + $0x160] sm:$0xff]
  %v176 = vld [vmem:[%s0 + $0x168] sm:$0xff]
  %v177 = vld [vmem:[%s0 + $0x170] sm:$0xff]
  %v178 = vld [vmem:[%s0 + $0x178] sm:$0xff]
  %v179 = vld [vmem:[%s0 + $0x180] sm:$0xff]
  %v180 = vld [vmem:[%s0 + $0x188] sm:$0xff]
  %v181 = vld [vmem:[%s0 + $0x190] sm:$0xff]
  %v182 = vld [vmem:[%s0 + $0x198] sm:$0xff]
  %v183 = vld [vmem:[%s0 + $0x1a0] sm:$0xff]
  %v184 = vld [vmem:[%s0 + $0x1a8] sm:$0xff]
  %v185 = vld [vmem:[%s0 + $0x1b0] sm:$0x3]
  %v186 = vpack.c.bf16 %v132, %v131
  %v187 = vpack.c.bf16 %v134, %v133
  %v188 = vpack.c.bf16 %v136, %v135
  %v189 = vpack.c.bf16 %v138, %v137
  %v190 = vpack.c.bf16 %v140, %v139
  %v191 = vpack.c.bf16 %v142, %v141
  %v192 = vpack.c.bf16 %v144, %v143
  %v193 = vpack.c.bf16 %v146, %v145
  %v194 = vpack.c.bf16 %v148, %v147
  %v195 = vpack.c.bf16 %v150, %v149
  %v196 = vpack.c.bf16 %v152, %v151
  %v197 = vpack.c.bf16 %v154, %v153
  %v198 = vpack.c.bf16 %v156, %v155
  %v199 = vpack.c.bf16 %v158, %v157
  %v200 = vpack.c.bf16 %v160, %v159
  %v201 = vpack.c.bf16 %v162, %v161
  %v202 = vpack.c.bf16 %v164, %v163
  %v203 = vpack.c.bf16 %v166, %v165
  %v204 = vpack.c.bf16 %v168, %v167
  %v205 = vpack.c.bf16 %v170, %v169
  %v206 = vpack.c.bf16 %v172, %v171
  %v207 = vpack.c.bf16 %v174, %v173
  %v208 = vpack.c.bf16 %v176, %v175
  %v209 = vpack.c.bf16 %v178, %v177
  %v210 = vpack.c.bf16 %v180, %v179
  %v211 = vpack.c.bf16 %v182, %v181
  %v212 = vpack.c.bf16 %v184, %v183
  %v213 = vpack.c.bf16 %v185, %v185
  %v214 = vld [vmem:[%s1] sm:$0xf]
  %v215 = vld [vmem:[%s1 + $0x4] sm:$0x1]
  %v218 = vunpack.c.l.b16 %v214
  %v219 = vunpack.c.l.b16 %v215
  %v220 = vpack.c.b16 %v219, %v218
  %vm221 = vcmask 72704
  %v223 = vsel %vm221, %v186, 0
  %v226 = vsel %vm221, %v187, 0
  %v229 = vsel %vm221, %v188, 0
  %v232 = vsel %vm221, %v189, 0
  %v235 = vsel %vm221, %v190, 0
  %v238 = vsel %vm221, %v191, 0
  %v241 = vsel %vm221, %v192, 0
  %v244 = vsel %vm221, %v193, 0
  %v247 = vsel %vm221, %v194, 0
  %v250 = vsel %vm221, %v195, 0
  %v253 = vsel %vm221, %v196, 0
  %v256 = vsel %vm221, %v197, 0
  %v259 = vsel %vm221, %v198, 0
  %v262 = vsel %vm221, %v199, 0
  %v265 = vsel %vm221, %v200, 0
  %v268 = vsel %vm221, %v201, 0
  %v271 = vsel %vm221, %v202, 0
  %v274 = vsel %vm221, %v203, 0
  %v277 = vsel %vm221, %v204, 0
  %v280 = vsel %vm221, %v205, 0
  %v283 = vsel %vm221, %v206, 0
  %v286 = vsel %vm221, %v207, 0
  %v289 = vsel %vm221, %v208, 0
  %v292 = vsel %vm221, %v209, 0
  %v295 = vsel %vm221, %v210, 0
  %v298 = vsel %vm221, %v211, 0
  %v301 = vsel %vm221, %v212, 0
  %v304 = vsel %vm221, %v213, 0
  %vm306 = vcmask 1043456
  %vm307 = vcmask 1044480
  %v308 = vsel %vm306, 4294967295, 65535
  %v309 = vsel %vm307, %v308, 0
  %v311 = vand.u32 %v220, %v309
  %313 = vmatpush.bf16.msra.mxu0 0
  %314 = vmatpush.bf16.msra.mxu0 0
  %315 = vmatpush.bf16.msra.mxu0 0
  %316 = vmatpush.bf16.msra.mxu0 0
  %317 = vmatpush.bf16.msra.mxu0 0
  %318 = vmatpush.bf16.msra.mxu0 0
  %319 = vmatpush.bf16.msra.mxu0 0
  %320 = vmatpush.bf16.msra.mxu0 %v311
  %321 = vmatmul.bf16.gmra.mxu0 %v223
  %v322 = vpop.f32.mrf.mxu0
  %v323 = vadd.f32 0.0, %v322
  %v324 = vpop.f32.mrf.mxu0
  %v325 = vadd.f32 0.0, %v324
  %326 = vmatmul.bf16.gmra.mxu0 %v226
  %v327 = vpop.f32.mrf.mxu0
  %v328 = vadd.f32 0.0, %v327
  %v329 = vpop.f32.mrf.mxu0
  %v330 = vadd.f32 0.0, %v329
  %331 = vmatmul.bf16.gmra.mxu0 %v229
  %v332 = vpop.f32.mrf.mxu0
  %v333 = vadd.f32 0.0, %v332
  %v334 = vpop.f32.mrf.mxu0
  %v335 = vadd.f32 0.0, %v334
  %336 = vmatmul.bf16.gmra.mxu0 %v232
  %v337 = vpop.f32.mrf.mxu0
  %v338 = vadd.f32 0.0, %v337
  %v339 = vpop.f32.mrf.mxu0
  %v340 = vadd.f32 0.0, %v339
  %341 = vmatmul.bf16.gmra.mxu0 %v235
  %v342 = vpop.f32.mrf.mxu0
  %v343 = vadd.f32 0.0, %v342
  %v344 = vpop.f32.mrf.mxu0
  %v345 = vadd.f32 0.0, %v344
  %346 = vmatmul.bf16.gmra.mxu0 %v238
  %v347 = vpop.f32.mrf.mxu0
  %v348 = vadd.f32 0.0, %v347
  %v349 = vpop.f32.mrf.mxu0
  %v350 = vadd.f32 0.0, %v349
  %351 = vmatmul.bf16.gmra.mxu0 %v241
  %v352 = vpop.f32.mrf.mxu0
  %v353 = vadd.f32 0.0, %v352
  %v354 = vpop.f32.mrf.mxu0
  %v355 = vadd.f32 0.0, %v354
  %356 = vmatmul.bf16.gmra.mxu0 %v244
  %v357 = vpop.f32.mrf.mxu0
  %v358 = vadd.f32 0.0, %v357
  %v359 = vpop.f32.mrf.mxu0
  %v360 = vadd.f32 0.0, %v359
  %361 = vmatmul.bf16.gmra.mxu0 %v247
  %v362 = vpop.f32.mrf.mxu0
  %v363 = vadd.f32 0.0, %v362
  %v364 = vpop.f32.mrf.mxu0
  %v365 = vadd.f32 0.0, %v364
  %366 = vmatmul.bf16.gmra.mxu0 %v250
  %v367 = vpop.f32.mrf.mxu0
  %v368 = vadd.f32 0.0, %v367
  %v369 = vpop.f32.mrf.mxu0
  %v370 = vadd.f32 0.0, %v369
  %371 = vmatmul.bf16.gmra.mxu0 %v253
  %v372 = vpop.f32.mrf.mxu0
  %v373 = vadd.f32 0.0, %v372
  %v374 = vpop.f32.mrf.mxu0
  %v375 = vadd.f32 0.0, %v374
  %376 = vmatmul.bf16.gmra.mxu0 %v256
  %v377 = vpop.f32.mrf.mxu0
  %v378 = vadd.f32 0.0, %v377
  %v379 = vpop.f32.mrf.mxu0
  %v380 = vadd.f32 0.0, %v379
  %381 = vmatmul.bf16.gmra.mxu0 %v259
  %v382 = vpop.f32.mrf.mxu0
  %v383 = vadd.f32 0.0, %v382
  %v384 = vpop.f32.mrf.mxu0
  %v385 = vadd.f32 0.0, %v384
  %386 = vmatmul.bf16.gmra.mxu0 %v262
  %v387 = vpop.f32.mrf.mxu0
  %v388 = vadd.f32 0.0, %v387
  %v389 = vpop.f32.mrf.mxu0
  %v390 = vadd.f32 0.0, %v389
  %391 = vmatmul.bf16.gmra.mxu0 %v265
  %v392 = vpop.f32.mrf.mxu0
  %v393 = vadd.f32 0.0, %v392
  %v394 = vpop.f32.mrf.mxu0
  %v395 = vadd.f32 0.0, %v394
  %396 = vmatmul.bf16.gmra.mxu0 %v268
  %v397 = vpop.f32.mrf.mxu0
  %v398 = vadd.f32 0.0, %v397
  %v399 = vpop.f32.mrf.mxu0
  %v400 = vadd.f32 0.0, %v399
  %401 = vmatmul.bf16.gmra.mxu0 %v271
  %v402 = vpop.f32.mrf.mxu0
  %v403 = vadd.f32 0.0, %v402
  %v404 = vpop.f32.mrf.mxu0
  %v405 = vadd.f32 0.0, %v404
  %406 = vmatmul.bf16.gmra.mxu0 %v274
  %v407 = vpop.f32.mrf.mxu0
  %v408 = vadd.f32 0.0, %v407
  %v409 = vpop.f32.mrf.mxu0
  %v410 = vadd.f32 0.0, %v409
  %411 = vmatmul.bf16.gmra.mxu0 %v277
  %v412 = vpop.f32.mrf.mxu0
  %v413 = vadd.f32 0.0, %v412
  %v414 = vpop.f32.mrf.mxu0
  %v415 = vadd.f32 0.0, %v414
  %416 = vmatmul.bf16.gmra.mxu0 %v280
  %v417 = vpop.f32.mrf.mxu0
  %v418 = vadd.f32 0.0, %v417
  %v419 = vpop.f32.mrf.mxu0
  %v420 = vadd.f32 0.0, %v419
  %421 = vmatmul.bf16.gmra.mxu0 %v283
  %v422 = vpop.f32.mrf.mxu0
  %v423 = vadd.f32 0.0, %v422
  %v424 = vpop.f32.mrf.mxu0
  %v425 = vadd.f32 0.0, %v424
  %426 = vmatmul.bf16.gmra.mxu0 %v286
  %v427 = vpop.f32.mrf.mxu0
  %v428 = vadd.f32 0.0, %v427
  %v429 = vpop.f32.mrf.mxu0
  %v430 = vadd.f32 0.0, %v429
  %431 = vmatmul.bf16.gmra.mxu0 %v289
  %v432 = vpop.f32.mrf.mxu0
  %v433 = vadd.f32 0.0, %v432
  %v434 = vpop.f32.mrf.mxu0
  %v435 = vadd.f32 0.0, %v434
  %436 = vmatmul.bf16.gmra.mxu0 %v292
  %v437 = vpop.f32.mrf.mxu0
  %v438 = vadd.f32 0.0, %v437
  %v439 = vpop.f32.mrf.mxu0
  %v440 = vadd.f32 0.0, %v439
  %441 = vmatmul.bf16.gmra.mxu0 %v295
  %v442 = vpop.f32.mrf.mxu0
  %v443 = vadd.f32 0.0, %v442
  %v444 = vpop.f32.mrf.mxu0
  %v445 = vadd.f32 0.0, %v444
  %446 = vmatmul.bf16.gmra.mxu0 %v298
  %v447 = vpop.f32.mrf.mxu0
  %v448 = vadd.f32 0.0, %v447
  %v449 = vpop.f32.mrf.mxu0
  %v450 = vadd.f32 0.0, %v449
  %451 = vmatmul.bf16.gmra.mxu0 %v301
  %v452 = vpop.f32.mrf.mxu0
  %v453 = vadd.f32 0.0, %v452
  %v454 = vpop.f32.mrf.mxu0
  %v455 = vadd.f32 0.0, %v454
  %456 = vmatmul.bf16.gmra.mxu0 %v304
  %v457 = vpop.f32.mrf.mxu0
  %v458 = vadd.f32 0.0, %v457
  %v459 = vpop.f32.mrf.mxu0
  %460 = vdwg.mxu0
  %v461 = vadd.f32 %v76, %v323
  %v462 = vadd.f32 %v77, %v325
  %v463 = vadd.f32 %v78, %v328
  %v464 = vadd.f32 %v79, %v330
  %v465 = vadd.f32 %v80, %v333
  %v466 = vadd.f32 %v81, %v335
  %v467 = vadd.f32 %v82, %v338
  %v468 = vadd.f32 %v83, %v340
  %v469 = vadd.f32 %v84, %v343
  %v470 = vadd.f32 %v85, %v345
  %v471 = vadd.f32 %v86, %v348
  %v472 = vadd.f32 %v87, %v350
  %v473 = vadd.f32 %v88, %v353
  %v474 = vadd.f32 %v89, %v355
  %v475 = vadd.f32 %v90, %v358
  %v476 = vadd.f32 %v91, %v360
  %v477 = vadd.f32 %v92, %v363
  %v478 = vadd.f32 %v93, %v365
  %v479 = vadd.f32 %v94, %v368
  %v480 = vadd.f32 %v95, %v370
  %v481 = vadd.f32 %v96, %v373
  %v482 = vadd.f32 %v97, %v375
  %v483 = vadd.f32 %v98, %v378
  %v484 = vadd.f32 %v99, %v380
  %v485 = vadd.f32 %v100, %v383
  %v486 = vadd.f32 %v101, %v385
  %v487 = vadd.f32 %v102, %v388
  %v488 = vadd.f32 %v103, %v390
  %v489 = vadd.f32 %v104, %v393
  %v490 = vadd.f32 %v105, %v395
  %v491 = vadd.f32 %v106, %v398
  %v492 = vadd.f32 %v107, %v400
  %v493 = vadd.f32 %v108, %v403
  %v494 = vadd.f32 %v109, %v405
  %v495 = vadd.f32 %v110, %v408
  %v496 = vadd.f32 %v111, %v410
  %v497 = vadd.f32 %v112, %v413
  %v498 = vadd.f32 %v113, %v415
  %v499 = vadd.f32 %v114, %v418
  %v500 = vadd.f32 %v115, %v420
  %v501 = vadd.f32 %v116, %v423
  %v502 = vadd.f32 %v117, %v425
  %v503 = vadd.f32 %v118, %v428
  %v504 = vadd.f32 %v119, %v430
  %v505 = vadd.f32 %v120, %v433
  %v506 = vadd.f32 %v121, %v435
  %v507 = vadd.f32 %v122, %v438
  %v508 = vadd.f32 %v123, %v440
  %v509 = vadd.f32 %v124, %v443
  %v510 = vadd.f32 %v125, %v445
  %v511 = vadd.f32 %v126, %v448
  %v512 = vadd.f32 %v127, %v450
  %v513 = vadd.f32 %v128, %v453
  %v514 = vadd.f32 %v129, %v455
  %v515 = vadd.f32 %v130, %v458
  %vm516 = vcmask 261120
  %517 = vst.msk [vmem:[#allocation2] sm:$0xff] %vm516, %v461
  %518 = vst.msk [vmem:[#allocation2 + $0x8] sm:$0xff] %vm516, %v462
  %519 = vst.msk [vmem:[#allocation2 + $0x10] sm:$0xff] %vm516, %v463
  %520 = vst.msk [vmem:[#allocation2 + $0x18] sm:$0xff] %vm516, %v464
  %521 = vst.msk [vmem:[#allocation2 + $0x20] sm:$0xff] %vm516, %v465
  %522 = vst.msk [vmem:[#allocation2 + $0x28] sm:$0xff] %vm516, %v466
  %523 = vst.msk [vmem:[#allocation2 + $0x30] sm:$0xff] %vm516, %v467
  %524 = vst.msk [vmem:[#allocation2 + $0x38] sm:$0xff] %vm516, %v468
  %525 = vst.msk [vmem:[#allocation2 + $0x40] sm:$0xff] %vm516, %v469
  %526 = vst.msk [vmem:[#allocation2 + $0x48] sm:$0xff] %vm516, %v470
  %527 = vst.msk [vmem:[#allocation2 + $0x50] sm:$0xff] %vm516, %v471
  %528 = vst.msk [vmem:[#allocation2 + $0x58] sm:$0xff] %vm516, %v472
  %529 = vst.msk [vmem:[#allocation2 + $0x60] sm:$0xff] %vm516, %v473
  %530 = vst.msk [vmem:[#allocation2 + $0x68] sm:$0xff] %vm516, %v474
  %531 = vst.msk [vmem:[#allocation2 + $0x70] sm:$0xff] %vm516, %v475
  %532 = vst.msk [vmem:[#allocation2 + $0x78] sm:$0xff] %vm516, %v476
  %533 = vst.msk [vmem:[#allocation2 + $0x80] sm:$0xff] %vm516, %v477
  %534 = vst.msk [vmem:[#allocation2 + $0x88] sm:$0xff] %vm516, %v478
  %535 = vst.msk [vmem:[#allocation2 + $0x90] sm:$0xff] %vm516, %v479
  %536 = vst.msk [vmem:[#allocation2 + $0x98] sm:$0xff] %vm516, %v480
  %537 = vst.msk [vmem:[#allocation2 + $0xa0] sm:$0xff] %vm516, %v481
  %538 = vst.msk [vmem:[#allocation2 + $0xa8] sm:$0xff] %vm516, %v482
  %539 = vst.msk [vmem:[#allocation2 + $0xb0] sm:$0xff] %vm516, %v483
  %540 = vst.msk [vmem:[#allocation2 + $0xb8] sm:$0xff] %vm516, %v484
  %541 = vst.msk [vmem:[#allocation2 + $0xc0] sm:$0xff] %vm516, %v485
  %542 = vst.msk [vmem:[#allocation2 + $0xc8] sm:$0xff] %vm516, %v486
  %543 = vst.msk [vmem:[#allocation2 + $0xd0] sm:$0xff] %vm516, %v487
  %544 = vst.msk [vmem:[#allocation2 + $0xd8] sm:$0xff] %vm516, %v488
  %545 = vst.msk [vmem:[#allocation2 + $0xe0] sm:$0xff] %vm516, %v489
  %546 = vst.msk [vmem:[#allocation2 + $0xe8] sm:$0xff] %vm516, %v490
  %547 = vst.msk [vmem:[#allocation2 + $0xf0] sm:$0xff] %vm516, %v491
  %548 = vst.msk [vmem:[#allocation2 + $0xf8] sm:$0xff] %vm516, %v492
  %549 = vst.msk [vmem:[#allocation2 + $0x100] sm:$0xff] %vm516, %v493
  %550 = vst.msk [vmem:[#allocation2 + $0x108] sm:$0xff] %vm516, %v494
  %551 = vst.msk [vmem:[#allocation2 + $0x110] sm:$0xff] %vm516, %v495
  %552 = vst.msk [vmem:[#allocation2 + $0x118] sm:$0xff] %vm516, %v496
  %553 = vst.msk [vmem:[#allocation2 + $0x120] sm:$0xff] %vm516, %v497
  %554 = vst.msk [vmem:[#allocation2 + $0x128] sm:$0xff] %vm516, %v498
  %555 = vst.msk [vmem:[#allocation2 + $0x130] sm:$0xff] %vm516, %v499
  %556 = vst.msk [vmem:[#allocation2 + $0x138] sm:$0xff] %vm516, %v500
  %557 = vst.msk [vmem:[#allocation2 + $0x140] sm:$0xff] %vm516, %v501
  %558 = vst.msk [vmem:[#allocation2 + $0x148] sm:$0xff] %vm516, %v502
  %559 = vst.msk [vmem:[#allocation2 + $0x150] sm:$0xff] %vm516, %v503
  %560 = vst.msk [vmem:[#allocation2 + $0x158] sm:$0xff] %vm516, %v504
  %561 = vst.msk [vmem:[#allocation2 + $0x160] sm:$0xff] %vm516, %v505
  %562 = vst.msk [vmem:[#allocation2 + $0x168] sm:$0xff] %vm516, %v506
  %563 = vst.msk [vmem:[#allocation2 + $0x170] sm:$0xff] %vm516, %v507
  %564 = vst.msk [vmem:[#allocation2 + $0x178] sm:$0xff] %vm516, %v508
  %565 = vst.msk [vmem:[#allocation2 + $0x180] sm:$0xff] %vm516, %v509
  %566 = vst.msk [vmem:[#allocation2 + $0x188] sm:$0xff] %vm516, %v510
  %567 = vst.msk [vmem:[#allocation2 + $0x190] sm:$0xff] %vm516, %v511
  %568 = vst.msk [vmem:[#allocation2 + $0x198] sm:$0xff] %vm516, %v512
  %569 = vst.msk [vmem:[#allocation2 + $0x1a0] sm:$0xff] %vm516, %v513
  %570 = vst.msk [vmem:[#allocation2 + $0x1a8] sm:$0xff] %vm516, %v514
  %vm571 = vcmask 254976
  %572 = vst.msk [vmem:[#allocation2 + $0x1b0] sm:$0x3] %vm571, %v515
  // Predicated region
  $region18: #{fast_conformer_forward.19} parent=0 // pred_check
    %p573 = pneg %p15
  $region19: #{fast_conformer_forward.19} parent=0 // pred_check_branch
    %575 = sbr.rel (%p573) target = $region21
  $region20: #{fast_conformer_forward.19} parent=0 // pred_region
    %v576 = vld [vmem:[#allocation2] sm:$0xff]
    %v577 = vld [vmem:[#allocation2 + $0x8] sm:$0xff]
    %v578 = vld [vmem:[#allocation2 + $0x10] sm:$0xff]
    %v579 = vld [vmem:[#allocation2 + $0x18] sm:$0xff]
    %v580 = vld [vmem:[#allocation2 + $0x20] sm:$0xff]
    %v581 = vld [vmem:[#allocation2 + $0x28] sm:$0xff]
    %v582 = vld [vmem:[#allocation2 + $0x30] sm:$0xff]
    %v583 = vld [vmem:[#allocation2 + $0x38] sm:$0xff]
    %v584 = vld [vmem:[#allocation2 + $0x40] sm:$0xff]
    %v585 = vld [vmem:[#allocation2 + $0x48] sm:$0xff]
    %v586 = vld [vmem:[#allocation2 + $0x50] sm:$0xff]
    %v587 = vld [vmem:[#allocation2 + $0x58] sm:$0xff]
    %v588 = vld [vmem:[#allocation2 + $0x60] sm:$0xff]
    %v589 = vld [vmem:[#allocation2 + $0x68] sm:$0xff]
    %v590 = vld [vmem:[#allocation2 + $0x70] sm:$0xff]
    %v591 = vld [vmem:[#allocation2 + $0x78] sm:$0xff]
    %v592 = vld [vmem:[#allocation2 + $0x80] sm:$0xff]
    %v593 = vld [vmem:[#allocation2 + $0x88] sm:$0xff]
    %v594 = vld [vmem:[#allocation2 + $0x90] sm:$0xff]
    %v595 = vld [vmem:[#allocation2 + $0x98] sm:$0xff]
    %v596 = vld [vmem:[#allocation2 + $0xa0] sm:$0xff]
    %v597 = vld [vmem:[#allocation2 + $0xa8] sm:$0xff]
    %v598 = vld [vmem:[#allocation2 + $0xb0] sm:$0xff]
    %v599 = vld [vmem:[#allocation2 + $0xb8] sm:$0xff]
    %v600 = vld [vmem:[#allocation2 + $0xc0] sm:$0xff]
    %v601 = vld [vmem:[#allocation2 + $0xc8] sm:$0xff]
    %v602 = vld [vmem:[#allocation2 + $0xd0] sm:$0xff]
    %v603 = vld [vmem:[#allocation2 + $0xd8] sm:$0xff]
    %v604 = vld [vmem:[#allocation2 + $0xe0] sm:$0xff]
    %v605 = vld [vmem:[#allocation2 + $0xe8] sm:$0xff]
    %v606 = vld [vmem:[#allocation2 + $0xf0] sm:$0xff]
    %v607 = vld [vmem:[#allocation2 + $0xf8] sm:$0xff]
    %v608 = vld [vmem:[#allocation2 + $0x100] sm:$0xff]
    %v609 = vld [vmem:[#allocation2 + $0x108] sm:$0xff]
    %v610 = vld [vmem:[#allocation2 + $0x110] sm:$0xff]
    %v611 = vld [vmem:[#allocation2 + $0x118] sm:$0xff]
    %v612 = vld [vmem:[#allocation2 + $0x120] sm:$0xff]
    %v613 = vld [vmem:[#allocation2 + $0x128] sm:$0xff]
    %v614 = vld [vmem:[#allocation2 + $0x130] sm:$0xff]
    %v615 = vld [vmem:[#allocation2 + $0x138] sm:$0xff]
    %v616 = vld [vmem:[#allocation2 + $0x140] sm:$0xff]
    %v617 = vld [vmem:[#allocation2 + $0x148] sm:$0xff]
    %v618 = vld [vmem:[#allocation2 + $0x150] sm:$0xff]
    %v619 = vld [vmem:[#allocation2 + $0x158] sm:$0xff]
    %v620 = vld [vmem:[#allocation2 + $0x160] sm:$0xff]
    %v621 = vld [vmem:[#allocation2 + $0x168] sm:$0xff]
    %v622 = vld [vmem:[#allocation2 + $0x170] sm:$0xff]
    %v623 = vld [vmem:[#allocation2 + $0x178] sm:$0xff]
    %v624 = vld [vmem:[#allocation2 + $0x180] sm:$0xff]
    %v625 = vld [vmem:[#allocation2 + $0x188] sm:$0xff]
    %v626 = vld [vmem:[#allocation2 + $0x190] sm:$0xff]
    %v627 = vld [vmem:[#allocation2 + $0x198] sm:$0xff]
    %v628 = vld [vmem:[#allocation2 + $0x1a0] sm:$0xff]
    %v629 = vld [vmem:[#allocation2 + $0x1a8] sm:$0xff]
    %v630 = vld [vmem:[#allocation2 + $0x1b0] sm:$0x3]
    %v631 = vld [vmem:[%s2] sm:$0x1]
    %v633 = vperm.slane %v631, 0
    %v635 = vadd.f32 %v576, %v633
    %v636 = vadd.f32 %v577, %v633
    %v637 = vadd.f32 %v578, %v633
    %v638 = vadd.f32 %v579, %v633
    %v639 = vadd.f32 %v580, %v633
    %v640 = vadd.f32 %v581, %v633
    %v641 = vadd.f32 %v582, %v633
    %v642 = vadd.f32 %v583, %v633
    %v643 = vadd.f32 %v584, %v633
    %v644 = vadd.f32 %v585, %v633
    %v645 = vadd.f32 %v586, %v633
    %v646 = vadd.f32 %v587, %v633
    %v647 = vadd.f32 %v588, %v633
    %v648 = vadd.f32 %v589, %v633
    %v649 = vadd.f32 %v590, %v633
    %v650 = vadd.f32 %v591, %v633
    %v651 = vadd.f32 %v592, %v633
    %v652 = vadd.f32 %v593, %v633
    %v653 = vadd.f32 %v594, %v633
    %v654 = vadd.f32 %v595, %v633
    %v655 = vadd.f32 %v596, %v633
    %v656 = vadd.f32 %v597, %v633
    %v657 = vadd.f32 %v598, %v633
    %v658 = vadd.f32 %v599, %v633
    %v659 = vadd.f32 %v600, %v633
    %v660 = vadd.f32 %v601, %v633
    %v661 = vadd.f32 %v602, %v633
    %v662 = vadd.f32 %v603, %v633
    %v663 = vadd.f32 %v604, %v633
    %v664 = vadd.f32 %v605, %v633
    %v665 = vadd.f32 %v606, %v633
    %v666 = vadd.f32 %v607, %v633
    %v667 = vadd.f32 %v608, %v633
    %v668 = vadd.f32 %v609, %v633
    %v669 = vadd.f32 %v610, %v633
    %v670 = vadd.f32 %v611, %v633
    %v671 = vadd.f32 %v612, %v633
    %v672 = vadd.f32 %v613, %v633
    %v673 = vadd.f32 %v614, %v633
    %v674 = vadd.f32 %v615, %v633
    %v675 = vadd.f32 %v616, %v633
    %v676 = vadd.f32 %v617, %v633
    %v677 = vadd.f32 %v618, %v633
    %v678 = vadd.f32 %v619, %v633
    %v679 = vadd.f32 %v620, %v633
    %v680 = vadd.f32 %v621, %v633
    %v681 = vadd.f32 %v622, %v633
    %v682 = vadd.f32 %v623, %v633
    %v683 = vadd.f32 %v624, %v633
    %v684 = vadd.f32 %v625, %v633
    %v685 = vadd.f32 %v626, %v633
    %v686 = vadd.f32 %v627, %v633
    %v687 = vadd.f32 %v628, %v633
    %v688 = vadd.f32 %v629, %v633
    %v689 = vadd.f32 %v630, %v633
    %v690 = vmax.f32 %v635, 0.0
    %v691 = vmax.f32 %v636, 0.0
    %v692 = vmax.f32 %v637, 0.0
    %v693 = vmax.f32 %v638, 0.0
    %v694 = vmax.f32 %v639, 0.0
    %v695 = vmax.f32 %v640, 0.0
    %v696 = vmax.f32 %v641, 0.0
    %v697 = vmax.f32 %v642, 0.0
    %v698 = vmax.f32 %v643, 0.0
    %v699 = vmax.f32 %v644, 0.0
    %v700 = vmax.f32 %v645, 0.0
    %v701 = vmax.f32 %v646, 0.0
    %v702 = vmax.f32 %v647, 0.0
    %v703 = vmax.f32 %v648, 0.0
    %v704 = vmax.f32 %v649, 0.0
    %v705 = vmax.f32 %v650, 0.0
    %v706 = vmax.f32 %v651, 0.0
    %v707 = vmax.f32 %v652, 0.0
    %v708 = vmax.f32 %v653, 0.0
    %v709 = vmax.f32 %v654, 0.0
    %v710 = vmax.f32 %v655, 0.0
    %v711 = vmax.f32 %v656, 0.0
    %v712 = vmax.f32 %v657, 0.0
    %v713 = vmax.f32 %v658, 0.0
    %v714 = vmax.f32 %v659, 0.0
    %v715 = vmax.f32 %v660, 0.0
    %v716 = vmax.f32 %v661, 0.0
    %v717 = vmax.f32 %v662, 0.0
    %v718 = vmax.f32 %v663, 0.0
    %v719 = vmax.f32 %v664, 0.0
    %v720 = vmax.f32 %v665, 0.0
    %v721 = vmax.f32 %v666, 0.0
    %v722 = vmax.f32 %v667, 0.0
    %v723 = vmax.f32 %v668, 0.0
    %v724 = vmax.f32 %v669, 0.0
    %v725 = vmax.f32 %v670, 0.0
    %v726 = vmax.f32 %v671, 0.0
    %v727 = vmax.f32 %v672, 0.0
    %v728 = vmax.f32 %v673, 0.0
    %v729 = vmax.f32 %v674, 0.0
    %v730 = vmax.f32 %v675, 0.0
    %v731 = vmax.f32 %v676, 0.0
    %v732 = vmax.f32 %v677, 0.0
    %v733 = vmax.f32 %v678, 0.0
    %v734 = vmax.f32 %v679, 0.0
    %v735 = vmax.f32 %v680, 0.0
    %v736 = vmax.f32 %v681, 0.0
    %v737 = vmax.f32 %v682, 0.0
    %v738 = vmax.f32 %v683, 0.0
    %v739 = vmax.f32 %v684, 0.0
    %v740 = vmax.f32 %v685, 0.0
    %v741 = vmax.f32 %v686, 0.0
    %v742 = vmax.f32 %v687, 0.0
    %v743 = vmax.f32 %v688, 0.0
    %v744 = vmax.f32 %v689, 0.0
    %v745 = vpack.c.bf16 %v690, %v690
    %v746 = vpack.c.bf16 %v691, %v691
    %v747 = vpack.c.bf16 %v692, %v692
    %v748 = vpack.c.bf16 %v693, %v693
    %v749 = vpack.c.bf16 %v694, %v694
    %v750 = vpack.c.bf16 %v695, %v695
    %v751 = vpack.c.bf16 %v696, %v696
    %v752 = vpack.c.bf16 %v697, %v697
    %v753 = vpack.c.bf16 %v698, %v698
    %v754 = vpack.c.bf16 %v699, %v699
    %v755 = vpack.c.bf16 %v700, %v700
    %v756 = vpack.c.bf16 %v701, %v701
    %v757 = vpack.c.bf16 %v702, %v702
    %v758 = vpack.c.bf16 %v703, %v703
    %v759 = vpack.c.bf16 %v704, %v704
    %v760 = vpack.c.bf16 %v705, %v705
    %v761 = vpack.c.bf16 %v706, %v706
    %v762 = vpack.c.bf16 %v707, %v707
    %v763 = vpack.c.bf16 %v708, %v708
    %v764 = vpack.c.bf16 %v709, %v709
    %v765 = vpack.c.bf16 %v710, %v710
    %v766 = vpack.c.bf16 %v711, %v711
    %v767 = vpack.c.bf16 %v712, %v712
    %v768 = vpack.c.bf16 %v713, %v713
    %v769 = vpack.c.bf16 %v714, %v714
    %v770 = vpack.c.bf16 %v715, %v715
    %v771 = vpack.c.bf16 %v716, %v716
    %v772 = vpack.c.bf16 %v717, %v717
    %v773 = vpack.c.bf16 %v718, %v718
    %v774 = vpack.c.bf16 %v719, %v719
    %v775 = vpack.c.bf16 %v720, %v720
    %v776 = vpack.c.bf16 %v721, %v721
    %v777 = vpack.c.bf16 %v722, %v722
    %v778 = vpack.c.bf16 %v723, %v723
    %v779 = vpack.c.bf16 %v724, %v724
    %v780 = vpack.c.bf16 %v725, %v725
    %v781 = vpack.c.bf16 %v726, %v726
    %v782 = vpack.c.bf16 %v727, %v727
    %v783 = vpack.c.bf16 %v728, %v728
    %v784 = vpack.c.bf16 %v729, %v729
    %v785 = vpack.c.bf16 %v730, %v730
    %v786 = vpack.c.bf16 %v731, %v731
    %v787 = vpack.c.bf16 %v732, %v732
    %v788 = vpack.c.bf16 %v733, %v733
    %v789 = vpack.c.bf16 %v734, %v734
    %v790 = vpack.c.bf16 %v735, %v735
    %v791 = vpack.c.bf16 %v736, %v736
    %v792 = vpack.c.bf16 %v737, %v737
    %v793 = vpack.c.bf16 %v738, %v738
    %v794 = vpack.c.bf16 %v739, %v739
    %v795 = vpack.c.bf16 %v740, %v740
    %v796 = vpack.c.bf16 %v741, %v741
    %v797 = vpack.c.bf16 %v742, %v742
    %v798 = vpack.c.bf16 %v743, %v743
    %v799 = vpack.c.bf16 %v744, %v744
    %vm800 = vcmask 257024
    %801 = vst.msk [vmem:[%s3] sm:$0xf] %vm800, %v745
    %802 = vst.msk [vmem:[%s3 + $0x4] sm:$0xf] %vm800, %v746
    %803 = vst.msk [vmem:[%s3 + $0x8] sm:$0xf] %vm800, %v747
    %804 = vst.msk [vmem:[%s3 + $0xc] sm:$0xf] %vm800, %v748
    %805 = vst.msk [vmem:[%s3 + $0x10] sm:$0xf] %vm800, %v749
    %806 = vst.msk [vmem:[%s3 + $0x14] sm:$0xf] %vm800, %v750
    %807 = vst.msk [vmem:[%s3 + $0x18] sm:$0xf] %vm800, %v751
    %808 = vst.msk [vmem:[%s3 + $0x1c] sm:$0xf] %vm800, %v752
    %809 = vst.msk [vmem:[%s3 + $0x20] sm:$0xf] %vm800, %v753
    %810 = vst.msk [vmem:[%s3 + $0x24] sm:$0xf] %vm800, %v754
    %811 = vst.msk [vmem:[%s3 + $0x28] sm:$0xf] %vm800, %v755
    %812 = vst.msk [vmem:[%s3 + $0x2c] sm:$0xf] %vm800, %v756
    %813 = vst.msk [vmem:[%s3 + $0x30] sm:$0xf] %vm800, %v757
    %814 = vst.msk [vmem:[%s3 + $0x34] sm:$0xf] %vm800, %v758
    %815 = vst.msk [vmem:[%s3 + $0x38] sm:$0xf] %vm800, %v759
    %816 = vst.msk [vmem:[%s3 + $0x3c] sm:$0xf] %vm800, %v760
    %817 = vst.msk [vmem:[%s3 + $0x40] sm:$0xf] %vm800, %v761
    %818 = vst.msk [vmem:[%s3 + $0x44] sm:$0xf] %vm800, %v762
    %819 = vst.msk [vmem:[%s3 + $0x48] sm:$0xf] %vm800, %v763
    %820 = vst.msk [vmem:[%s3 + $0x4c] sm:$0xf] %vm800, %v764
    %821 = vst.msk [vmem:[%s3 + $0x50] sm:$0xf] %vm800, %v765
    %822 = vst.msk [vmem:[%s3 + $0x54] sm:$0xf] %vm800, %v766
    %823 = vst.msk [vmem:[%s3 + $0x58] sm:$0xf] %vm800, %v767
    %824 = vst.msk [vmem:[%s3 + $0x5c] sm:$0xf] %vm800, %v768
    %825 = vst.msk [vmem:[%s3 + $0x60] sm:$0xf] %vm800, %v769
    %826 = vst.msk [vmem:[%s3 + $0x64] sm:$0xf] %vm800, %v770
    %827 = vst.msk [vmem:[%s3 + $0x68] sm:$0xf] %vm800, %v771
    %828 = vst.msk [vmem:[%s3 + $0x6c] sm:$0xf] %vm800, %v772
    %829 = vst.msk [vmem:[%s3 + $0x70] sm:$0xf] %vm800, %v773
    %830 = vst.msk [vmem:[%s3 + $0x74] sm:$0xf] %vm800, %v774
    %831 = vst.msk [vmem:[%s3 + $0x78] sm:$0xf] %vm800, %v775
    %832 = vst.msk [vmem:[%s3 + $0x7c] sm:$0xf] %vm800, %v776
    %833 = vst.msk [vmem:[%s3 + $0x80] sm:$0xf] %vm800, %v777
    %834 = vst.msk [vmem:[%s3 + $0x84] sm:$0xf] %vm800, %v778
    %835 = vst.msk [vmem:[%s3 + $0x88] sm:$0xf] %vm800, %v779
    %836 = vst.msk [vmem:[%s3 + $0x8c] sm:$0xf] %vm800, %v780
    %837 = vst.msk [vmem:[%s3 + $0x90] sm:$0xf] %vm800, %v781
    %838 = vst.msk [vmem:[%s3 + $0x94] sm:$0xf] %vm800, %v782
    %839 = vst.msk [vmem:[%s3 + $0x98] sm:$0xf] %vm800, %v783
    %840 = vst.msk [vmem:[%s3 + $0x9c] sm:$0xf] %vm800, %v784
    %841 = vst.msk [vmem:[%s3 + $0xa0] sm:$0xf] %vm800, %v785
    %842 = vst.msk [vmem:[%s3 + $0xa4] sm:$0xf] %vm800, %v786
    %843 = vst.msk [vmem:[%s3 + $0xa8] sm:$0xf] %vm800, %v787
    %844 = vst.msk [vmem:[%s3 + $0xac] sm:$0xf] %vm800, %v788
    %845 = vst.msk [vmem:[%s3 + $0xb0] sm:$0xf] %vm800, %v789
    %846 = vst.msk [vmem:[%s3 + $0xb4] sm:$0xf] %vm800, %v790
    %847 = vst.msk [vmem:[%s3 + $0xb8] sm:$0xf] %vm800, %v791
    %848 = vst.msk [vmem:[%s3 + $0xbc] sm:$0xf] %vm800, %v792
    %849 = vst.msk [vmem:[%s3 + $0xc0] sm:$0xf] %vm800, %v793
    %850 = vst.msk [vmem:[%s3 + $0xc4] sm:$0xf] %vm800, %v794
    %851 = vst.msk [vmem:[%s3 + $0xc8] sm:$0xf] %vm800, %v795
    %852 = vst.msk [vmem:[%s3 + $0xcc] sm:$0xf] %vm800, %v796
    %853 = vst.msk [vmem:[%s3 + $0xd0] sm:$0xf] %vm800, %v797
    %854 = vst.msk [vmem:[%s3 + $0xd4] sm:$0xf] %vm800, %v798
    %vm855 = vcmask 253952
    %856 = vst.msk [vmem:[%s3 + $0xd8] sm:$0x1] %vm855, %v799
  $region21: #{fast_conformer_forward.19} parent=0 // pred_fallthru
    _
  // Predicated region
  $region22: #{fast_conformer_forward.19} parent=0 // pred_check
    _
  $region23: #{fast_conformer_forward.19} parent=0 // pred_check_branch
    %858 = sbr.rel (0) target = $region25
  $region24: #{fast_conformer_forward.19} parent=0 // pred_region
    _
  $region25: #{fast_conformer_forward.19} parent=0 // pred_fallthru
    _
  // Predicated region
  $region26: #{fast_conformer_forward.19} parent=0 // pred_check
    _
  $region27: #{fast_conformer_forward.19} parent=0 // pred_check_branch
    %860 = sbr.rel (0) target = $region29
  $region28: #{fast_conformer_forward.19} parent=0 // pred_region
    _
  $region29: #{fast_conformer_forward.19} parent=0 // pred_fallthru
    _

// kernel: fast_conformer_forward.20
$region0: #{fast_conformer_forward.20}
  #allocation0 [shape = 'u32[]', space=smem, size = 0x4, offset = 0x4, fixed_abs, tag = 'smem constant byte address 0x4 - core index']
  #allocation1 [shape = 'u32[72,128]{1,0:T(1,128)}', space=vmem, size = 0x9000, scoped, tag = 'internal scratch']
  #allocation2 [shape = 'f32[90,32]{1,0:T(8,128)}', space=vmem, size = 0xc000, scoped, tag = 'scratch operand']
  %s0 = inlined_call_operand.vmem [shape: bf16[90,288], index: 0, kind: input, shape index: {}]
  %s1 = inlined_call_operand.vmem [shape: bf16[288,32], index: 1, kind: input, shape index: {}]
  %s2 = inlined_call_operand.vmem [shape: f32[1,32], index: 2, kind: input, shape index: {}]
  %s3 = inlined_call_operand.vmem [shape: bf16[90,32], index: 3, kind: output, shape index: {}]
  %s4 = sld [smem:[#allocation0]]
  $region30: #{fast_conformer_forward.20} parent=0
    _
  %s6 = ssub.s32 1, %s4
  %s7 = scalar_select 0, %s6, %s4
  // Predicated region
  $region2: #{fast_conformer_forward.20} parent=0 // pred_check
    _
  $region3: #{fast_conformer_forward.20} parent=0 // pred_check_branch
    %9 = sbr.rel (0) target = $region5
  $region4: #{fast_conformer_forward.20} parent=0 // pred_region
    _
  $region5: #{fast_conformer_forward.20} parent=0 // pred_fallthru
    _
  // Predicated region
  $region6: #{fast_conformer_forward.20} parent=0 // pred_check
    _
  $region7: #{fast_conformer_forward.20} parent=0 // pred_check_branch
    %11 = sbr.rel (0) target = $region9
  $region8: #{fast_conformer_forward.20} parent=0 // pred_region
    _
  $region9: #{fast_conformer_forward.20} parent=0 // pred_fallthru
    _
  // Predicated region
  $region10: #{fast_conformer_forward.20} parent=0 // pred_check
    _
  $region11: #{fast_conformer_forward.20} parent=0 // pred_check_branch
    %13 = sbr.rel (0) target = $region13
  $region12: #{fast_conformer_forward.20} parent=0 // pred_region
    _
  $region13: #{fast_conformer_forward.20} parent=0 // pred_fallthru
    _
  %p15 = scmp.eq.s32.totalorder 0, 0
  // Predicated region
  $region14: #{fast_conformer_forward.20} parent=0 // pred_check
    %p16 = pneg %p15
  $region15: #{fast_conformer_forward.20} parent=0 // pred_check_branch
    %18 = sbr.rel (%p16) target = $region17
  $region16: #{fast_conformer_forward.20} parent=0 // pred_region
    %vm19 = vcmask 261120
    %20 = vst.msk [vmem:[#allocation2] sm:$0xff] %vm19, 0.0
    %21 = vst.msk [vmem:[#allocation2 + $0x8] sm:$0xff] %vm19, 0.0
    %22 = vst.msk [vmem:[#allocation2 + $0x10] sm:$0xff] %vm19, 0.0
    %23 = vst.msk [vmem:[#allocation2 + $0x18] sm:$0xff] %vm19, 0.0
    %24 = vst.msk [vmem:[#allocation2 + $0x20] sm:$0xff] %vm19, 0.0
    %25 = vst.msk [vmem:[#allocation2 + $0x28] sm:$0xff] %vm19, 0.0
    %26 = vst.msk [vmem:[#allocation2 + $0x30] sm:$0xff] %vm19, 0.0
    %27 = vst.msk [vmem:[#allocation2 + $0x38] sm:$0xff] %vm19, 0.0
    %28 = vst.msk [vmem:[#allocation2 + $0x40] sm:$0xff] %vm19, 0.0
    %29 = vst.msk [vmem:[#allocation2 + $0x48] sm:$0xff] %vm19, 0.0
    %30 = vst.msk [vmem:[#allocation2 + $0x50] sm:$0xff] %vm19, 0.0
    %vm31 = vcmask 254976
    %32 = vst.msk [vmem:[#allocation2 + $0x58] sm:$0x3] %vm31, 0.0
  $region17: #{fast_conformer_forward.20} parent=0 // pred_fallthru
    _
  %v33 = vld [vmem:[#allocation2] sm:$0xff]
  %v34 = vld [vmem:[#allocation2 + $0x8] sm:$0xff]
  %v35 = vld [vmem:[#allocation2 + $0x10] sm:$0xff]
  %v36 = vld [vmem:[#allocation2 + $0x18] sm:$0xff]
  %v37 = vld [vmem:[#allocation2 + $0x20] sm:$0xff]
  %v38 = vld [vmem:[#allocation2 + $0x28] sm:$0xff]
  %v39 = vld [vmem:[#allocation2 + $0x30] sm:$0xff]
  %v40 = vld [vmem:[#allocation2 + $0x38] sm:$0xff]
  %v41 = vld [vmem:[#allocation2 + $0x40] sm:$0xff]
  %v42 = vld [vmem:[#allocation2 + $0x48] sm:$0xff]
  %v43 = vld [vmem:[#allocation2 + $0x50] sm:$0xff]
  %v44 = vld [vmem:[#allocation2 + $0x58] sm:$0x3]
  %v45 = vld [vmem:[%s0] sm:$0xff]
  %v46 = vld [vmem:[%s0 + $0x8] sm:$0xf]
  %v47 = vld [vmem:[%s0 + $0xc] sm:$0xff]
  %v48 = vld [vmem:[%s0 + $0x14] sm:$0xf]
  %v49 = vld [vmem:[%s0 + $0x18] sm:$0xff]
  %v50 = vld [vmem:[%s0 + $0x20] sm:$0xf]
  %v51 = vld [vmem:[%s0 + $0x24] sm:$0xff]
  %v52 = vld [vmem:[%s0 + $0x2c] sm:$0xf]
  %v53 = vld [vmem:[%s0 + $0x30] sm:$0xff]
  %v54 = vld [vmem:[%s0 + $0x38] sm:$0xf]
  %v55 = vld [vmem:[%s0 + $0x3c] sm:$0xff]
  %v56 = vld [vmem:[%s0 + $0x44] sm:$0xf]
  %v57 = vld [vmem:[%s0 + $0x48] sm:$0xff]
  %v58 = vld [vmem:[%s0 + $0x50] sm:$0xf]
  %v59 = vld [vmem:[%s0 + $0x54] sm:$0xff]
  %v60 = vld [vmem:[%s0 + $0x5c] sm:$0xf]
  %v61 = vld [vmem:[%s0 + $0x60] sm:$0xff]
  %v62 = vld [vmem:[%s0 + $0x68] sm:$0xf]
  %v63 = vld [vmem:[%s0 + $0x6c] sm:$0xff]
  %v64 = vld [vmem:[%s0 + $0x74] sm:$0xf]
  %v65 = vld [vmem:[%s0 + $0x78] sm:$0xff]
  %v66 = vld [vmem:[%s0 + $0x80] sm:$0xf]
  %v67 = vld [vmem:[%s0 + $0x84] sm:$0x11]
  %v68 = vld [vmem:[%s0 + $0x8c] sm:$0x1]
  %v69 = vld [vmem:[%s1] sm:$0xf]
  %v70 = vld [vmem:[%s1 + $0x4] sm:$0xf]
  %v71 = vld [vmem:[%s1 + $0x8] sm:$0xf]
  %v72 = vld [vmem:[%s1 + $0xc] sm:$0xf]
  %v73 = vld [vmem:[%s1 + $0x10] sm:$0xf]
  %v74 = vld [vmem:[%s1 + $0x14] sm:$0xf]
  %v75 = vld [vmem:[%s1 + $0x18] sm:$0xf]
  %v76 = vld [vmem:[%s1 + $0x1c] sm:$0xf]
  %v77 = vld [vmem:[%s1 + $0x20] sm:$0xf]
  %v78 = vld [vmem:[%s1 + $0x24] sm:$0xf]
  %v79 = vld [vmem:[%s1 + $0x28] sm:$0xf]
  %v80 = vld [vmem:[%s1 + $0x2c] sm:$0xf]
  %v81 = vld [vmem:[%s1 + $0x30] sm:$0xf]
  %v82 = vld [vmem:[%s1 + $0x34] sm:$0xf]
  %v83 = vld [vmem:[%s1 + $0x38] sm:$0xf]
  %v84 = vld [vmem:[%s1 + $0x3c] sm:$0xf]
  %v85 = vld [vmem:[%s1 + $0x40] sm:$0xf]
  %v86 = vld [vmem:[%s1 + $0x44] sm:$0xf]
  %v87 = vld [vmem:[%s1 + $0x48] sm:$0xf]
  %v88 = vld [vmem:[%s1 + $0x4c] sm:$0xf]
  %v89 = vld [vmem:[%s1 + $0x50] sm:$0xf]
  %v90 = vld [vmem:[%s1 + $0x54] sm:$0xf]
  %v91 = vld [vmem:[%s1 + $0x58] sm:$0xf]
  %v92 = vld [vmem:[%s1 + $0x5c] sm:$0xf]
  %v93 = vld [vmem:[%s1 + $0x60] sm:$0xf]
  %v94 = vld [vmem:[%s1 + $0x64] sm:$0xf]
  %v95 = vld [vmem:[%s1 + $0x68] sm:$0xf]
  %v96 = vld [vmem:[%s1 + $0x6c] sm:$0xf]
  %v97 = vld [vmem:[%s1 + $0x70] sm:$0xf]
  %v98 = vld [vmem:[%s1 + $0x74] sm:$0xf]
  %v99 = vld [vmem:[%s1 + $0x78] sm:$0xf]
  %v100 = vld [vmem:[%s1 + $0x7c] sm:$0xf]
  %v101 = vld [vmem:[%s1 + $0x80] sm:$0xf]
  %v102 = vld [vmem:[%s1 + $0x84] sm:$0xf]
  %v103 = vld [vmem:[%s1 + $0x88] sm:$0xf]
  %v104 = vld [vmem:[%s1 + $0x8c] sm:$0xf]
  %v129 = vunpack.c.l.b16 %v45
  %v130 = vunpack.c.h.b16 %v45
  %v131 = vunpack.c.l.b16 %v46
  %v132 = vunpack.c.l.b16 %v47
  %v133 = vunpack.c.h.b16 %v47
  %v134 = vunpack.c.l.b16 %v48
  %v135 = vunpack.c.l.b16 %v49
  %v136 = vunpack.c.h.b16 %v49
  %v137 = vunpack.c.l.b16 %v50
  %v138 = vunpack.c.l.b16 %v51
  %v139 = vunpack.c.h.b16 %v51
  %v140 = vunpack.c.l.b16 %v52
  %v141 = vunpack.c.l.b16 %v53
  %v142 = vunpack.c.h.b16 %v53
  %v143 = vunpack.c.l.b16 %v54
  %v144 = vunpack.c.l.b16 %v55
  %v145 = vunpack.c.h.b16 %v55
  %v146 = vunpack.c.l.b16 %v56
  %v147 = vunpack.c.l.b16 %v57
  %v148 = vunpack.c.h.b16 %v57
  %v149 = vunpack.c.l.b16 %v58
  %v150 = vunpack.c.l.b16 %v59
  %v151 = vunpack.c.h.b16 %v59
  %v152 = vunpack.c.l.b16 %v60
  %v153 = vunpack.c.l.b16 %v61
  %v154 = vunpack.c.h.b16 %v61
  %v155 = vunpack.c.l.b16 %v62
  %v156 = vunpack.c.l.b16 %v63
  %v157 = vunpack.c.h.b16 %v63
  %v158 = vunpack.c.l.b16 %v64
  %v159 = vunpack.c.l.b16 %v65
  %v160 = vunpack.c.h.b16 %v65
  %v161 = vunpack.c.l.b16 %v66
  %v162 = vunpack.c.l.b16 %v67
  %v163 = vunpack.c.h.b16 %v67
  %v164 = vunpack.c.l.b16 %v68
  %v165 = vpack.c.b16 %v132, %v129
  %v166 = vpack.c.b16 %v133, %v130
  %v167 = vpack.c.b16 %v134, %v131
  %v168 = vpack.c.b16 %v138, %v135
  %v169 = vpack.c.b16 %v139, %v136
  %v170 = vpack.c.b16 %v140, %v137
  %v171 = vpack.c.b16 %v144, %v141
  %v172 = vpack.c.b16 %v145, %v142
  %v173 = vpack.c.b16 %v146, %v143
  %v174 = vpack.c.b16 %v150, %v147
  %v175 = vpack.c.b16 %v151, %v148
  %v176 = vpack.c.b16 %v152, %v149
  %v177 = vpack.c.b16 %v156, %v153
  %v178 = vpack.c.b16 %v157, %v154
  %v179 = vpack.c.b16 %v158, %v155
  %v180 = vpack.c.b16 %v162, %v159
  %v181 = vpack.c.b16 %v163, %v160
  %v182 = vpack.c.b16 %v164, %v161
  %v231 = vunpack.c.l.b16 %v69
  %v232 = vunpack.c.l.b16 %v70
  %v233 = vunpack.c.l.b16 %v71
  %v234 = vunpack.c.l.b16 %v72
  %v235 = vunpack.c.l.b16 %v73
  %v236 = vunpack.c.l.b16 %v74
  %v237 = vunpack.c.l.b16 %v75
  %v238 = vunpack.c.l.b16 %v76
  %v239 = vunpack.c.l.b16 %v77
  %v240 = vunpack.c.l.b16 %v78
  %v241 = vunpack.c.l.b16 %v79
  %v242 = vunpack.c.l.b16 %v80
  %v243 = vunpack.c.l.b16 %v81
  %v244 = vunpack.c.l.b16 %v82
  %v245 = vunpack.c.l.b16 %v83
  %v246 = vunpack.c.l.b16 %v84
  %v247 = vunpack.c.l.b16 %v85
  %v248 = vunpack.c.l.b16 %v86
  %v249 = vunpack.c.l.b16 %v87
  %v250 = vunpack.c.l.b16 %v88
  %v251 = vunpack.c.l.b16 %v89
  %v252 = vunpack.c.l.b16 %v90
  %v253 = vunpack.c.l.b16 %v91
  %v254 = vunpack.c.l.b16 %v92
  %v255 = vunpack.c.l.b16 %v93
  %v256 = vunpack.c.l.b16 %v94
  %v257 = vunpack.c.l.b16 %v95
  %v258 = vunpack.c.l.b16 %v96
  %v259 = vunpack.c.l.b16 %v97
  %v260 = vunpack.c.l.b16 %v98
  %v261 = vunpack.c.l.b16 %v99
  %v262 = vunpack.c.l.b16 %v100
  %v263 = vunpack.c.l.b16 %v101
  %v264 = vunpack.c.l.b16 %v102
  %v265 = vunpack.c.l.b16 %v103
  %v266 = vunpack.c.l.b16 %v104
  %v267 = vpack.c.b16 %v232, %v231
  %v268 = vpack.c.b16 %v234, %v233
  %v269 = vpack.c.b16 %v236, %v235
  %v270 = vpack.c.b16 %v238, %v237
  %v271 = vpack.c.b16 %v240, %v239
  %v272 = vpack.c.b16 %v242, %v241
  %v273 = vpack.c.b16 %v244, %v243
  %v274 = vpack.c.b16 %v246, %v245
  %v275 = vpack.c.b16 %v248, %v247
  %v276 = vpack.c.b16 %v250, %v249
  %v277 = vpack.c.b16 %v252, %v251
  %v278 = vpack.c.b16 %v254, %v253
  %v279 = vpack.c.b16 %v256, %v255
  %v280 = vpack.c.b16 %v258, %v257
  %v281 = vpack.c.b16 %v260, %v259
  %v282 = vpack.c.b16 %v262, %v261
  %v283 = vpack.c.b16 %v264, %v263
  %v284 = vpack.c.b16 %v266, %v265
  %vm303 = vcmask 261120
  %v305 = vsel %vm303, %v167, 0
  %v308 = vsel %vm303, %v170, 0
  %v311 = vsel %vm303, %v173, 0
  %v314 = vsel %vm303, %v176, 0
  %v317 = vsel %vm303, %v179, 0
  %v320 = vsel %vm303, %v182, 0
  %322 = vmatpush.bf16.msra.mxu0 %v274
  %323 = vmatpush.bf16.msra.mxu0 %v273
  %324 = vmatpush.bf16.msra.mxu0 %v272
  %325 = vmatpush.bf16.msra.mxu0 %v271
  %326 = vmatpush.bf16.msra.mxu0 %v270
  %327 = vmatpush.bf16.msra.mxu0 %v269
  %328 = vmatpush.bf16.msra.mxu0 %v268
  %329 = vmatpush.bf16.msra.mxu0 %v267
  %330 = vmatmul.bf16.gmra.mxu0 %v165
  %v331 = vpop.f32.mrf.mxu0
  %v332 = vadd.f32 0.0, %v331
  %v333 = vpop.f32.mrf.mxu0
  %v334 = vadd.f32 0.0, %v333
  %335 = vmatmul.bf16.gmra.mxu0 %v168
  %v336 = vpop.f32.mrf.mxu0
  %v337 = vadd.f32 0.0, %v336
  %v338 = vpop.f32.mrf.mxu0
  %v339 = vadd.f32 0.0, %v338
  %340 = vmatmul.bf16.gmra.mxu0 %v171
  %v341 = vpop.f32.mrf.mxu0
  %v342 = vadd.f32 0.0, %v341
  %v343 = vpop.f32.mrf.mxu0
  %v344 = vadd.f32 0.0, %v343
  %345 = vmatmul.bf16.gmra.mxu0 %v174
  %v346 = vpop.f32.mrf.mxu0
  %v347 = vadd.f32 0.0, %v346
  %v348 = vpop.f32.mrf.mxu0
  %v349 = vadd.f32 0.0, %v348
  %350 = vmatmul.bf16.gmra.mxu0 %v177
  %v351 = vpop.f32.mrf.mxu0
  %v352 = vadd.f32 0.0, %v351
  %v353 = vpop.f32.mrf.mxu0
  %v354 = vadd.f32 0.0, %v353
  %355 = vmatmul.bf16.gmra.mxu0 %v180
  %v356 = vpop.f32.mrf.mxu0
  %v357 = vadd.f32 0.0, %v356
  %v358 = vpop.f32.mrf.mxu0
  %v359 = vadd.f32 0.0, %v358
  %360 = vdwg.mxu0
  %361 = vmatpush.bf16.msra.mxu0 %v282
  %362 = vmatpush.bf16.msra.mxu0 %v281
  %363 = vmatpush.bf16.msra.mxu0 %v280
  %364 = vmatpush.bf16.msra.mxu0 %v279
  %365 = vmatpush.bf16.msra.mxu0 %v278
  %366 = vmatpush.bf16.msra.mxu0 %v277
  %367 = vmatpush.bf16.msra.mxu0 %v276
  %368 = vmatpush.bf16.msra.mxu0 %v275
  %369 = vmatmul.bf16.gmra.mxu0 %v166
  %v370 = vpop.f32.mrf.mxu0
  %v371 = vadd.f32 %v332, %v370
  %v372 = vpop.f32.mrf.mxu0
  %v373 = vadd.f32 %v334, %v372
  %374 = vmatmul.bf16.gmra.mxu0 %v169
  %v375 = vpop.f32.mrf.mxu0
  %v376 = vadd.f32 %v337, %v375
  %v377 = vpop.f32.mrf.mxu0
  %v378 = vadd.f32 %v339, %v377
  %379 = vmatmul.bf16.gmra.mxu0 %v172
  %v380 = vpop.f32.mrf.mxu0
  %v381 = vadd.f32 %v342, %v380
  %v382 = vpop.f32.mrf.mxu0
  %v383 = vadd.f32 %v344, %v382
  %384 = vmatmul.bf16.gmra.mxu0 %v175
  %v385 = vpop.f32.mrf.mxu0
  %v386 = vadd.f32 %v347, %v385
  %v387 = vpop.f32.mrf.mxu0
  %v388 = vadd.f32 %v349, %v387
  %389 = vmatmul.bf16.gmra.mxu0 %v178
  %v390 = vpop.f32.mrf.mxu0
  %v391 = vadd.f32 %v352, %v390
  %v392 = vpop.f32.mrf.mxu0
  %v393 = vadd.f32 %v354, %v392
  %394 = vmatmul.bf16.gmra.mxu0 %v181
  %v395 = vpop.f32.mrf.mxu0
  %v396 = vadd.f32 %v357, %v395
  %v397 = vpop.f32.mrf.mxu0
  %v398 = vadd.f32 %v359, %v397
  %399 = vdwg.mxu0
  %400 = vmatpush.bf16.msra.mxu0 0
  %401 = vmatpush.bf16.msra.mxu0 0
  %402 = vmatpush.bf16.msra.mxu0 0
  %403 = vmatpush.bf16.msra.mxu0 0
  %404 = vmatpush.bf16.msra.mxu0 0
  %405 = vmatpush.bf16.msra.mxu0 0
  %406 = vmatpush.bf16.msra.mxu0 %v284
  %407 = vmatpush.bf16.msra.mxu0 %v283
  %408 = vmatmul.bf16.gmra.mxu0 %v305
  %v409 = vpop.f32.mrf.mxu0
  %v410 = vadd.f32 %v371, %v409
  %v411 = vpop.f32.mrf.mxu0
  %v412 = vadd.f32 %v373, %v411
  %413 = vmatmul.bf16.gmra.mxu0 %v308
  %v414 = vpop.f32.mrf.mxu0
  %v415 = vadd.f32 %v376, %v414
  %v416 = vpop.f32.mrf.mxu0
  %v417 = vadd.f32 %v378, %v416
  %418 = vmatmul.bf16.gmra.mxu0 %v311
  %v419 = vpop.f32.mrf.mxu0
  %v420 = vadd.f32 %v381, %v419
  %v421 = vpop.f32.mrf.mxu0
  %v422 = vadd.f32 %v383, %v421
  %423 = vmatmul.bf16.gmra.mxu0 %v314
  %v424 = vpop.f32.mrf.mxu0
  %v425 = vadd.f32 %v386, %v424
  %v426 = vpop.f32.mrf.mxu0
  %v427 = vadd.f32 %v388, %v426
  %428 = vmatmul.bf16.gmra.mxu0 %v317
  %v429 = vpop.f32.mrf.mxu0
  %v430 = vadd.f32 %v391, %v429
  %v431 = vpop.f32.mrf.mxu0
  %v432 = vadd.f32 %v393, %v431
  %433 = vmatmul.bf16.gmra.mxu0 %v320
  %v434 = vpop.f32.mrf.mxu0
  %v435 = vadd.f32 %v396, %v434
  %v436 = vpop.f32.mrf.mxu0
  %v437 = vadd.f32 %v398, %v436
  %438 = vdwg.mxu0
  %v439 = vadd.f32 %v33, %v410
  %v440 = vadd.f32 %v34, %v412
  %v441 = vadd.f32 %v35, %v415
  %v442 = vadd.f32 %v36, %v417
  %v443 = vadd.f32 %v37, %v420
  %v444 = vadd.f32 %v38, %v422
  %v445 = vadd.f32 %v39, %v425
  %v446 = vadd.f32 %v40, %v427
  %v447 = vadd.f32 %v41, %v430
  %v448 = vadd.f32 %v42, %v432
  %v449 = vadd.f32 %v43, %v435
  %v450 = vadd.f32 %v44, %v437
  %451 = vst.msk [vmem:[#allocation2] sm:$0xff] %vm303, %v439
  %452 = vst.msk [vmem:[#allocation2 + $0x8] sm:$0xff] %vm303, %v440
  %453 = vst.msk [vmem:[#allocation2 + $0x10] sm:$0xff] %vm303, %v441
  %454 = vst.msk [vmem:[#allocation2 + $0x18] sm:$0xff] %vm303, %v442
  %455 = vst.msk [vmem:[#allocation2 + $0x20] sm:$0xff] %vm303, %v443
  %456 = vst.msk [vmem:[#allocation2 + $0x28] sm:$0xff] %vm303, %v444
  %457 = vst.msk [vmem:[#allocation2 + $0x30] sm:$0xff] %vm303, %v445
  %458 = vst.msk [vmem:[#allocation2 + $0x38] sm:$0xff] %vm303, %v446
  %459 = vst.msk [vmem:[#allocation2 + $0x40] sm:$0xff] %vm303, %v447
  %460 = vst.msk [vmem:[#allocation2 + $0x48] sm:$0xff] %vm303, %v448
  %461 = vst.msk [vmem:[#allocation2 + $0x50] sm:$0xff] %vm303, %v449
  %vm462 = vcmask 254976
  %463 = vst.msk [vmem:[#allocation2 + $0x58] sm:$0x3] %vm462, %v450
  // Predicated region
  $region18: #{fast_conformer_forward.20} parent=0 // pred_check
    %p464 = pneg %p15
  $region19: #{fast_conformer_forward.20} parent=0 // pred_check_branch
    %466 = sbr.rel (%p464) target = $region21
  $region20: #{fast_conformer_forward.20} parent=0 // pred_region
    %v467 = vld [vmem:[#allocation2] sm:$0xff]
    %v468 = vld [vmem:[#allocation2 + $0x8] sm:$0xff]
    %v469 = vld [vmem:[#allocation2 + $0x10] sm:$0xff]
    %v470 = vld [vmem:[#allocation2 + $0x18] sm:$0xff]
    %v471 = vld [vmem:[#allocation2 + $0x20] sm:$0xff]
    %v472 = vld [vmem:[#allocation2 + $0x28] sm:$0xff]
    %v473 = vld [vmem:[#allocation2 + $0x30] sm:$0xff]
    %v474 = vld [vmem:[#allocation2 + $0x38] sm:$0xff]
    %v475 = vld [vmem:[#allocation2 + $0x40] sm:$0xff]
    %v476 = vld [vmem:[#allocation2 + $0x48] sm:$0xff]
    %v477 = vld [vmem:[#allocation2 + $0x50] sm:$0xff]
    %v478 = vld [vmem:[#allocation2 + $0x58] sm:$0x3]
    %v479 = vld [vmem:[%s2] sm:$0x1]
    %v481 = vperm.slane %v479, 0
    %v483 = vadd.f32 %v467, %v481
    %v484 = vadd.f32 %v468, %v481
    %v485 = vadd.f32 %v469, %v481
    %v486 = vadd.f32 %v470, %v481
    %v487 = vadd.f32 %v471, %v481
    %v488 = vadd.f32 %v472, %v481
    %v489 = vadd.f32 %v473, %v481
    %v490 = vadd.f32 %v474, %v481
    %v491 = vadd.f32 %v475, %v481
    %v492 = vadd.f32 %v476, %v481
    %v493 = vadd.f32 %v477, %v481
    %v494 = vadd.f32 %v478, %v481
    %v495 = vmax.f32 %v483, 0.0
    %v496 = vmax.f32 %v484, 0.0
    %v497 = vmax.f32 %v485, 0.0
    %v498 = vmax.f32 %v486, 0.0
    %v499 = vmax.f32 %v487, 0.0
    %v500 = vmax.f32 %v488, 0.0
    %v501 = vmax.f32 %v489, 0.0
    %v502 = vmax.f32 %v490, 0.0
    %v503 = vmax.f32 %v491, 0.0
    %v504 = vmax.f32 %v492, 0.0
    %v505 = vmax.f32 %v493, 0.0
    %v506 = vmax.f32 %v494, 0.0
    %v507 = vpack.c.bf16 %v495, %v495
    %v508 = vpack.c.bf16 %v496, %v496
    %v509 = vpack.c.bf16 %v497, %v497
    %v510 = vpack.c.bf16 %v498, %v498
    %v511 = vpack.c.bf16 %v499, %v499
    %v512 = vpack.c.bf16 %v500, %v500
    %v513 = vpack.c.bf16 %v501, %v501
    %v514 = vpack.c.bf16 %v502, %v502
    %v515 = vpack.c.bf16 %v503, %v503
    %v516 = vpack.c.bf16 %v504, %v504
    %v517 = vpack.c.bf16 %v505, %v505
    %v518 = vpack.c.bf16 %v506, %v506
    %vm519 = vcmask 257024
    %520 = vst.msk [vmem:[%s3] sm:$0xf] %vm519, %v507
    %521 = vst.msk [vmem:[%s3 + $0x4] sm:$0xf] %vm519, %v508
    %522 = vst.msk [vmem:[%s3 + $0x8] sm:$0xf] %vm519, %v509
    %523 = vst.msk [vmem:[%s3 + $0xc] sm:$0xf] %vm519, %v510
    %524 = vst.msk [vmem:[%s3 + $0x10] sm:$0xf] %vm519, %v511
    %525 = vst.msk [vmem:[%s3 + $0x14] sm:$0xf] %vm519, %v512
    %526 = vst.msk [vmem:[%s3 + $0x18] sm:$0xf] %vm519, %v513
    %527 = vst.msk [vmem:[%s3 + $0x1c] sm:$0xf] %vm519, %v514
    %528 = vst.msk [vmem:[%s3 + $0x20] sm:$0xf] %vm519, %v515
    %529 = vst.msk [vmem:[%s3 + $0x24] sm:$0xf] %vm519, %v516
    %530 = vst.msk [vmem:[%s3 + $0x28] sm:$0xf] %vm519, %v517
    %vm531 = vcmask 253952
    %532 = vst.msk [vmem:[%s3 + $0x2c] sm:$0x1] %vm531, %v518
  $region21: #{fast_conformer_forward.20} parent=0 // pred_fallthru
    _
  // Predicated region
  $region22: #{fast_conformer_forward.20} parent=0 // pred_check
    _
  $region23: #{fast_conformer_forward.20} parent=0 // pred_check_branch
    %534 = sbr.rel (0) target = $region25
  $region24: #{fast_conformer_forward.20} parent=0 // pred_region
    _
  $region25: #{fast_conformer_forward.20} parent=0 // pred_fallthru
    _
  // Predicated region
  $region26: #{fast_conformer_forward.20} parent=0 // pred_check
    _
  $region27: #{fast_conformer_forward.20} parent=0 // pred_check_branch
    %536 = sbr.rel (0) target = $region29
  $region28: #{fast_conformer_forward.20} parent=0 // pred_region
    _
  $region29: #{fast_conformer_forward.20} parent=0 // pred_fallthru
    _

// kernel: fast_conformer_forward.22
$region0: #{fast_conformer_forward.22}
  #allocation0 [shape = 'u32[]', space=smem, size = 0x4, offset = 0x4, fixed_abs, tag = 'smem constant byte address 0x4 - core index']
  #allocation1 [shape = 'u32[72,128]{1,0:T(1,128)}', space=vmem, size = 0x9000, scoped, tag = 'internal scratch']
  #allocation2 [shape = 'f32[14,32]{1,0:T(8,128)}', space=vmem, size = 0x2000, scoped, tag = 'scratch operand']
  %s0 = inlined_call_operand.vmem [shape: bf16[14,32], index: 0, kind: input, shape index: {}]
  %s1 = inlined_call_operand.vmem [shape: bf16[32,32], index: 1, kind: input, shape index: {}]
  %s2 = inlined_call_operand.vmem [shape: f32[1,32], index: 2, kind: input, shape index: {}]
  %s3 = inlined_call_operand.vmem [shape: bf16[14,32], index: 3, kind: output, shape index: {}]
  %s4 = sld [smem:[#allocation0]]
  $region30: #{fast_conformer_forward.22} parent=0
    _
  %s6 = ssub.s32 1, %s4
  %s7 = scalar_select 0, %s6, %s4
  // Predicated region
  $region2: #{fast_conformer_forward.22} parent=0 // pred_check
    _
  $region3: #{fast_conformer_forward.22} parent=0 // pred_check_branch
    %9 = sbr.rel (0) target = $region5
  $region4: #{fast_conformer_forward.22} parent=0 // pred_region
    _
  $region5: #{fast_conformer_forward.22} parent=0 // pred_fallthru
    _
  // Predicated region
  $region6: #{fast_conformer_forward.22} parent=0 // pred_check
    _
  $region7: #{fast_conformer_forward.22} parent=0 // pred_check_branch
    %11 = sbr.rel (0) target = $region9
  $region8: #{fast_conformer_forward.22} parent=0 // pred_region
    _
  $region9: #{fast_conformer_forward.22} parent=0 // pred_fallthru
    _
  // Predicated region
  $region10: #{fast_conformer_forward.22} parent=0 // pred_check
    _
  $region11: #{fast_conformer_forward.22} parent=0 // pred_check_branch
    %13 = sbr.rel (0) target = $region13
  $region12: #{fast_conformer_forward.22} parent=0 // pred_region
    _
  $region13: #{fast_conformer_forward.22} parent=0 // pred_fallthru
    _
  %p15 = scmp.eq.s32.totalorder 0, 0
  // Predicated region
  $region14: #{fast_conformer_forward.22} parent=0 // pred_check
    %p16 = pneg %p15
  $region15: #{fast_conformer_forward.22} parent=0 // pred_check_branch
    %18 = sbr.rel (%p16) target = $region17
  $region16: #{fast_conformer_forward.22} parent=0 // pred_region
    %vm19 = vcmask 261120
    %20 = vst.msk [vmem:[#allocation2] sm:$0xff] %vm19, 0.0
    %vm21 = vcmask 259072
    %22 = vst.msk [vmem:[#allocation2 + $0x8] sm:$0x3f] %vm21, 0.0
  $region17: #{fast_conformer_forward.22} parent=0 // pred_fallthru
    _
  %v23 = vld [vmem:[#allocation2] sm:$0xff]
  %v24 = vld [vmem:[#allocation2 + $0x8] sm:$0x3f]
  %v25 = vld [vmem:[%s0] sm:$0xf]
  %v26 = vld [vmem:[%s0 + $0x4] sm:$0x7]
  %v27 = vld [vmem:[%s1] sm:$0xf]
  %v28 = vld [vmem:[%s1 + $0x4] sm:$0xf]
  %v29 = vld [vmem:[%s1 + $0x8] sm:$0xf]
  %v30 = vld [vmem:[%s1 + $0xc] sm:$0xf]
  %v33 = vunpack.c.l.b16 %v25
  %v34 = vunpack.c.l.b16 %v26
  %v35 = vpack.c.b16 %v34, %v33
  %v40 = vunpack.c.l.b16 %v27
  %v41 = vunpack.c.l.b16 %v28
  %v42 = vunpack.c.l.b16 %v29
  %v43 = vunpack.c.l.b16 %v30
  %v44 = vpack.c.b16 %v41, %v40
  %v45 = vpack.c.b16 %v43, %v42
  %vm48 = vcmask 261120
  %v50 = vsel %vm48, %v35, 0
  %52 = vmatpush.bf16.msra.mxu0 0
  %53 = vmatpush.bf16.msra.mxu0 0
  %54 = vmatpush.bf16.msra.mxu0 0
  %55 = vmatpush.bf16.msra.mxu0 0
  %56 = vmatpush.bf16.msra.mxu0 0
  %57 = vmatpush.bf16.msra.mxu0 0
  %58 = vmatpush.bf16.msra.mxu0 %v45
  %59 = vmatpush.bf16.msra.mxu0 %v44
  %60 = vmatmul.bf16.gmra.mxu0 %v50
  %v61 = vpop.f32.mrf.mxu0
  %v62 = vadd.f32 0.0, %v61
  %v63 = vpop.f32.mrf.mxu0
  %v64 = vadd.f32 0.0, %v63
  %65 = vdwg.mxu0
  %v66 = vadd.f32 %v23, %v62
  %v67 = vadd.f32 %v24, %v64
  %68 = vst.msk [vmem:[#allocation2] sm:$0xff] %vm48, %v66
  %vm69 = vcmask 259072
  %70 = vst.msk [vmem:[#allocation2 + $0x8] sm:$0x3f] %vm69, %v67
  // Predicated region
  $region18: #{fast_conformer_forward.22} parent=0 // pred_check
    %p71 = pneg %p15
  $region19: #{fast_conformer_forward.22} parent=0 // pred_check_branch
    %73 = sbr.rel (%p71) target = $region21
  $region20: #{fast_conformer_forward.22} parent=0 // pred_region
    %v74 = vld [vmem:[#allocation2] sm:$0xff]
    %v75 = vld [vmem:[#allocation2 + $0x8] sm:$0x3f]
    %v76 = vld [vmem:[%s2] sm:$0x1]
    %v78 = vperm.slane %v76, 0
    %v80 = vadd.f32 %v74, %v78
    %v81 = vadd.f32 %v75, %v78
    %v82 = vpack.c.bf16 %v80, %v80
    %v83 = vpack.c.bf16 %v81, %v81
    %vm84 = vcmask 257024
    %85 = vst.msk [vmem:[%s3] sm:$0xf] %vm84, %v82
    %vm86 = vcmask 256000
    %87 = vst.msk [vmem:[%s3 + $0x4] sm:$0x7] %vm86, %v83
  $region21: #{fast_conformer_forward.22} parent=0 // pred_fallthru
    _
  // Predicated region
  $region22: #{fast_conformer_forward.22} parent=0 // pred_check
    _
  $region23: #{fast_conformer_forward.22} parent=0 // pred_check_branch
    %89 = sbr.rel (0) target = $region25
  $region24: #{fast_conformer_forward.22} parent=0 // pred_region
    _
  $region25: #{fast_conformer_forward.22} parent=0 // pred_fallthru
    _
  // Predicated region
  $region26: #{fast_conformer_forward.22} parent=0 // pred_check
    _
  $region27: #{fast_conformer_forward.22} parent=0 // pred_check_branch
    %91 = sbr.rel (0) target = $region29
  $region28: #{fast_conformer_forward.22} parent=0 // pred_region
    _
  $region29: #{fast_conformer_forward.22} parent=0 // pred_fallthru
    _

// kernel: fast_conformer_forward.21
$region0: #{fast_conformer_forward.21}
  #allocation0 [shape = 'u32[]', space=smem, size = 0x4, offset = 0x4, fixed_abs, tag = 'smem constant byte address 0x4 - core index']
  #allocation1 [shape = 'u32[72,128]{1,0:T(1,128)}', space=vmem, size = 0x9000, scoped, tag = 'internal scratch']
  #allocation2 [shape = 'f32[14,32]{1,0:T(8,128)}', space=vmem, size = 0x2000, scoped, tag = 'scratch operand']
  %s0 = inlined_call_operand.vmem [shape: bf16[14,288], index: 0, kind: input, shape index: {}]
  %s1 = inlined_call_operand.vmem [shape: bf16[288,32], index: 1, kind: input, shape index: {}]
  %s2 = inlined_call_operand.vmem [shape: f32[1,32], index: 2, kind: input, shape index: {}]
  %s3 = inlined_call_operand.vmem [shape: bf16[14,32], index: 3, kind: output, shape index: {}]
  %s4 = sld [smem:[#allocation0]]
  $region30: #{fast_conformer_forward.21} parent=0
    _
  %s6 = ssub.s32 1, %s4
  %s7 = scalar_select 0, %s6, %s4
  // Predicated region
  $region2: #{fast_conformer_forward.21} parent=0 // pred_check
    _
  $region3: #{fast_conformer_forward.21} parent=0 // pred_check_branch
    %9 = sbr.rel (0) target = $region5
  $region4: #{fast_conformer_forward.21} parent=0 // pred_region
    _
  $region5: #{fast_conformer_forward.21} parent=0 // pred_fallthru
    _
  // Predicated region
  $region6: #{fast_conformer_forward.21} parent=0 // pred_check
    _
  $region7: #{fast_conformer_forward.21} parent=0 // pred_check_branch
    %11 = sbr.rel (0) target = $region9
  $region8: #{fast_conformer_forward.21} parent=0 // pred_region
    _
  $region9: #{fast_conformer_forward.21} parent=0 // pred_fallthru
    _
  // Predicated region
  $region10: #{fast_conformer_forward.21} parent=0 // pred_check
    _
  $region11: #{fast_conformer_forward.21} parent=0 // pred_check_branch
    %13 = sbr.rel (0) target = $region13
  $region12: #{fast_conformer_forward.21} parent=0 // pred_region
    _
  $region13: #{fast_conformer_forward.21} parent=0 // pred_fallthru
    _
  %p15 = scmp.eq.s32.totalorder 0, 0
  // Predicated region
  $region14: #{fast_conformer_forward.21} parent=0 // pred_check
    %p16 = pneg %p15
  $region15: #{fast_conformer_forward.21} parent=0 // pred_check_branch
    %18 = sbr.rel (%p16) target = $region17
  $region16: #{fast_conformer_forward.21} parent=0 // pred_region
    %vm19 = vcmask 261120
    %20 = vst.msk [vmem:[#allocation2] sm:$0xff] %vm19, 0.0
    %vm21 = vcmask 259072
    %22 = vst.msk [vmem:[#allocation2 + $0x8] sm:$0x3f] %vm21, 0.0
  $region17: #{fast_conformer_forward.21} parent=0 // pred_fallthru
    _
  %v23 = vld [vmem:[#allocation2] sm:$0xff]
  %v24 = vld [vmem:[#allocation2 + $0x8] sm:$0x3f]
  %v25 = vld [vmem:[%s0] sm:$0xff]
  %v26 = vld [vmem:[%s0 + $0x8] sm:$0xf]
  %v27 = vld [vmem:[%s0 + $0xc] sm:$0x77]
  %v28 = vld [vmem:[%s0 + $0x14] sm:$0x7]
  %v29 = vld [vmem:[%s1] sm:$0xf]
  %v30 = vld [vmem:[%s1 + $0x4] sm:$0xf]
  %v31 = vld [vmem:[%s1 + $0x8] sm:$0xf]
  %v32 = vld [vmem:[%s1 + $0xc] sm:$0xf]
  %v33 = vld [vmem:[%s1 + $0x10] sm:$0xf]
  %v34 = vld [vmem:[%s1 + $0x14] sm:$0xf]
  %v35 = vld [vmem:[%s1 + $0x18] sm:$0xf]
  %v36 = vld [vmem:[%s1 + $0x1c] sm:$0xf]
  %v37 = vld [vmem:[%s1 + $0x20] sm:$0xf]
  %v38 = vld [vmem:[%s1 + $0x24] sm:$0xf]
  %v39 = vld [vmem:[%s1 + $0x28] sm:$0xf]
  %v40 = vld [vmem:[%s1 + $0x2c] sm:$0xf]
  %v41 = vld [vmem:[%s1 + $0x30] sm:$0xf]
  %v42 = vld [vmem:[%s1 + $0x34] sm:$0xf]
  %v43 = vld [vmem:[%s1 + $0x38] sm:$0xf]
  %v44 = vld [vmem:[%s1 + $0x3c] sm:$0xf]
  %v45 = vld [vmem:[%s1 + $0x40] sm:$0xf]
  %v46 = vld [vmem:[%s1 + $0x44] sm:$0xf]
  %v47 = vld [vmem:[%s1 + $0x48] sm:$0xf]
  %v48 = vld [vmem:[%s1 + $0x4c] sm:$0xf]
  %v49 = vld [vmem:[%s1 + $0x50] sm:$0xf]
  %v50 = vld [vmem:[%s1 + $0x54] sm:$0xf]
  %v51 = vld [vmem:[%s1 + $0x58] sm:$0xf]
  %v52 = vld [vmem:[%s1 + $0x5c] sm:$0xf]
  %v53 = vld [vmem:[%s1 + $0x60] sm:$0xf]
  %v54 = vld [vmem:[%s1 + $0x64] sm:$0xf]
  %v55 = vld [vmem:[%s1 + $0x68] sm:$0xf]
  %v56 = vld [vmem:[%s1 + $0x6c] sm:$0xf]
  %v57 = vld [vmem:[%s1 + $0x70] sm:$0xf]
  %v58 = vld [vmem:[%s1 + $0x74] sm:$0xf]
  %v59 = vld [vmem:[%s1 + $0x78] sm:$0xf]
  %v60 = vld [vmem:[%s1 + $0x7c] sm:$0xf]
  %v61 = vld [vmem:[%s1 + $0x80] sm:$0xf]
  %v62 = vld [vmem:[%s1 + $0x84] sm:$0xf]
  %v63 = vld [vmem:[%s1 + $0x88] sm:$0xf]
  %v64 = vld [vmem:[%s1 + $0x8c] sm:$0xf]
  %v69 = vunpack.c.l.b16 %v25
  %v70 = vunpack.c.h.b16 %v25
  %v71 = vunpack.c.l.b16 %v26
  %v72 = vunpack.c.l.b16 %v27
  %v73 = vunpack.c.h.b16 %v27
  %v74 = vunpack.c.l.b16 %v28
  %v75 = vpack.c.b16 %v72, %v69
  %v76 = vpack.c.b16 %v73, %v70
  %v77 = vpack.c.b16 %v74, %v71
  %v116 = vunpack.c.l.b16 %v29
  %v117 = vunpack.c.l.b16 %v30
  %v118 = vunpack.c.l.b16 %v31
  %v119 = vunpack.c.l.b16 %v32
  %v120 = vunpack.c.l.b16 %v33
  %v121 = vunpack.c.l.b16 %v34
  %v122 = vunpack.c.l.b16 %v35
  %v123 = vunpack.c.l.b16 %v36
  %v124 = vunpack.c.l.b16 %v37
  %v125 = vunpack.c.l.b16 %v38
  %v126 = vunpack.c.l.b16 %v39
  %v127 = vunpack.c.l.b16 %v40
  %v128 = vunpack.c.l.b16 %v41
  %v129 = vunpack.c.l.b16 %v42
  %v130 = vunpack.c.l.b16 %v43
  %v131 = vunpack.c.l.b16 %v44
  %v132 = vunpack.c.l.b16 %v45
  %v133 = vunpack.c.l.b16 %v46
  %v134 = vunpack.c.l.b16 %v47
  %v135 = vunpack.c.l.b16 %v48
  %v136 = vunpack.c.l.b16 %v49
  %v137 = vunpack.c.l.b16 %v50
  %v138 = vunpack.c.l.b16 %v51
  %v139 = vunpack.c.l.b16 %v52
  %v140 = vunpack.c.l.b16 %v53
  %v141 = vunpack.c.l.b16 %v54
  %v142 = vunpack.c.l.b16 %v55
  %v143 = vunpack.c.l.b16 %v56
  %v144 = vunpack.c.l.b16 %v57
  %v145 = vunpack.c.l.b16 %v58
  %v146 = vunpack.c.l.b16 %v59
  %v147 = vunpack.c.l.b16 %v60
  %v148 = vunpack.c.l.b16 %v61
  %v149 = vunpack.c.l.b16 %v62
  %v150 = vunpack.c.l.b16 %v63
  %v151 = vunpack.c.l.b16 %v64
  %v152 = vpack.c.b16 %v117, %v116
  %v153 = vpack.c.b16 %v119, %v118
  %v154 = vpack.c.b16 %v121, %v120
  %v155 = vpack.c.b16 %v123, %v122
  %v156 = vpack.c.b16 %v125, %v124
  %v157 = vpack.c.b16 %v127, %v126
  %v158 = vpack.c.b16 %v129, %v128
  %v159 = vpack.c.b16 %v131, %v130
  %v160 = vpack.c.b16 %v133, %v132
  %v161 = vpack.c.b16 %v135, %v134
  %v162 = vpack.c.b16 %v137, %v136
  %v163 = vpack.c.b16 %v139, %v138
  %v164 = vpack.c.b16 %v141, %v140
  %v165 = vpack.c.b16 %v143, %v142
  %v166 = vpack.c.b16 %v145, %v144
  %v167 = vpack.c.b16 %v147, %v146
  %v168 = vpack.c.b16 %v149, %v148
  %v169 = vpack.c.b16 %v151, %v150
  %vm188 = vcmask 261120
  %v190 = vsel %vm188, %v77, 0
  %192 = vmatpush.bf16.msra.mxu0 %v159
  %193 = vmatpush.bf16.msra.mxu0 %v158
  %194 = vmatpush.bf16.msra.mxu0 %v157
  %195 = vmatpush.bf16.msra.mxu0 %v156
  %196 = vmatpush.bf16.msra.mxu0 %v155
  %197 = vmatpush.bf16.msra.mxu0 %v154
  %198 = vmatpush.bf16.msra.mxu0 %v153
  %199 = vmatpush.bf16.msra.mxu0 %v152
  %200 = vmatmul.bf16.gmra.mxu0 %v75
  %v201 = vpop.f32.mrf.mxu0
  %v202 = vadd.f32 0.0, %v201
  %v203 = vpop.f32.mrf.mxu0
  %v204 = vadd.f32 0.0, %v203
  %205 = vdwg.mxu0
  %206 = vmatpush.bf16.msra.mxu0 %v167
  %207 = vmatpush.bf16.msra.mxu0 %v166
  %208 = vmatpush.bf16.msra.mxu0 %v165
  %209 = vmatpush.bf16.msra.mxu0 %v164
  %210 = vmatpush.bf16.msra.mxu0 %v163
  %211 = vmatpush.bf16.msra.mxu0 %v162
  %212 = vmatpush.bf16.msra.mxu0 %v161
  %213 = vmatpush.bf16.msra.mxu0 %v160
  %214 = vmatmul.bf16.gmra.mxu0 %v76
  %v215 = vpop.f32.mrf.mxu0
  %v216 = vadd.f32 %v202, %v215
  %v217 = vpop.f32.mrf.mxu0
  %v218 = vadd.f32 %v204, %v217
  %219 = vdwg.mxu0
  %220 = vmatpush.bf16.msra.mxu0 0
  %221 = vmatpush.bf16.msra.mxu0 0
  %222 = vmatpush.bf16.msra.mxu0 0
  %223 = vmatpush.bf16.msra.mxu0 0
  %224 = vmatpush.bf16.msra.mxu0 0
  %225 = vmatpush.bf16.msra.mxu0 0
  %226 = vmatpush.bf16.msra.mxu0 %v169
  %227 = vmatpush.bf16.msra.mxu0 %v168
  %228 = vmatmul.bf16.gmra.mxu0 %v190
  %v229 = vpop.f32.mrf.mxu0
  %v230 = vadd.f32 %v216, %v229
  %v231 = vpop.f32.mrf.mxu0
  %v232 = vadd.f32 %v218, %v231
  %233 = vdwg.mxu0
  %v234 = vadd.f32 %v23, %v230
  %v235 = vadd.f32 %v24, %v232
  %236 = vst.msk [vmem:[#allocation2] sm:$0xff] %vm188, %v234
  %vm237 = vcmask 259072
  %238 = vst.msk [vmem:[#allocation2 + $0x8] sm:$0x3f] %vm237, %v235
  // Predicated region
  $region18: #{fast_conformer_forward.21} parent=0 // pred_check
    %p239 = pneg %p15
  $region19: #{fast_conformer_forward.21} parent=0 // pred_check_branch
    %241 = sbr.rel (%p239) target = $region21
  $region20: #{fast_conformer_forward.21} parent=0 // pred_region
    %v242 = vld [vmem:[#allocation2] sm:$0xff]
    %v243 = vld [vmem:[#allocation2 + $0x8] sm:$0x3f]
    %v244 = vld [vmem:[%s2] sm:$0x1]
    %v246 = vperm.slane %v244, 0
    %v248 = vadd.f32 %v242, %v246
    %v249 = vadd.f32 %v243, %v246
    %v250 = vmax.f32 %v248, 0.0
    %v251 = vmax.f32 %v249, 0.0
    %v252 = vpack.c.bf16 %v250, %v250
    %v253 = vpack.c.bf16 %v251, %v251
    %vm254 = vcmask 257024
    %255 = vst.msk [vmem:[%s3] sm:$0xf] %vm254, %v252
    %vm256 = vcmask 256000
    %257 = vst.msk [vmem:[%s3 + $0x4] sm:$0x7] %vm256, %v253
  $region21: #{fast_conformer_forward.21} parent=0 // pred_fallthru
    _
  // Predicated region
  $region22: #{fast_conformer_forward.21} parent=0 // pred_check
    _
  $region23: #{fast_conformer_forward.21} parent=0 // pred_check_branch
    %259 = sbr.rel (0) target = $region25
  $region24: #{fast_conformer_forward.21} parent=0 // pred_region
    _
  $region25: #{fast_conformer_forward.21} parent=0 // pred_fallthru
    _
  // Predicated region
  $region26: #{fast_conformer_forward.21} parent=0 // pred_check
    _
  $region27: #{fast_conformer_forward.21} parent=0 // pred_check_branch
    %261 = sbr.rel (0) target = $region29
  $region28: #{fast_conformer_forward.21} parent=0 // pred_region
    _
  $region29: #{fast_conformer_forward.21} parent=0 // pred_fallthru
    _

// kernel: fast_conformer_forward.23
$region0: #{fast_conformer_forward.23}
  #allocation0 [shape = 'u32[]', space=smem, size = 0x4, offset = 0x4, fixed_abs, tag = 'smem constant byte address 0x4 - core index']
  #allocation1 [shape = 'u32[72,128]{1,0:T(1,128)}', space=vmem, size = 0x9000, scoped, tag = 'internal scratch']
  %s0 = inlined_call_operand.vmem [shape: bf16[14,32], index: 0, kind: input, shape index: {}]
  %s1 = inlined_call_operand.vmem [shape: f32[1,32], index: 1, kind: input, shape index: {}]
  %s2 = inlined_call_operand.vmem [shape: f32[1,32], index: 2, kind: input, shape index: {}]
  %s3 = inlined_call_operand.vmem [shape: bf16[32,128], index: 3, kind: input, shape index: {}]
  %s4 = inlined_call_operand.vmem [shape: f32[1,128], index: 4, kind: input, shape index: {}]
  %s5 = inlined_call_operand.vmem [shape: bf16[128,32], index: 5, kind: input, shape index: {}]
  %s6 = inlined_call_operand.vmem [shape: f32[1,32], index: 6, kind: input, shape index: {}]
  %s7 = inlined_call_operand.vmem [shape: f32[1,32], index: 7, kind: input, shape index: {}]
  %s8 = inlined_call_operand.vmem [shape: f32[1,32], index: 8, kind: input, shape index: {}]
  %s9 = inlined_call_operand.vmem [shape: bf16[14,32], index: 9, kind: output, shape index: {}]
  %s10 = sld [smem:[#allocation0]]
  $region46: #{fast_conformer_forward.23} parent=0
    _
  %s12 = ssub.s32 1, %s10
  %s13 = scalar_select 0, %s12, %s10
  // Predicated region
  $region2: #{fast_conformer_forward.23} parent=0 // pred_check
    _
  $region3: #{fast_conformer_forward.23} parent=0 // pred_check_branch
    %15 = sbr.rel (0) target = $region5
  $region4: #{fast_conformer_forward.23} parent=0 // pred_region
    _
  $region5: #{fast_conformer_forward.23} parent=0 // pred_fallthru
    _
  // Predicated region
  $region6: #{fast_conformer_forward.23} parent=0 // pred_check
    _
  $region7: #{fast_conformer_forward.23} parent=0 // pred_check_branch
    %17 = sbr.rel (0) target = $region9
  $region8: #{fast_conformer_forward.23} parent=0 // pred_region
    _
  $region9: #{fast_conformer_forward.23} parent=0 // pred_fallthru
    _
  // Predicated region
  $region10: #{fast_conformer_forward.23} parent=0 // pred_check
    _
  $region11: #{fast_conformer_forward.23} parent=0 // pred_check_branch
    %19 = sbr.rel (0) target = $region13
  $region12: #{fast_conformer_forward.23} parent=0 // pred_region
    _
  $region13: #{fast_conformer_forward.23} parent=0 // pred_fallthru
    _
  // Predicated region
  $region14: #{fast_conformer_forward.23} parent=0 // pred_check
    _
  $region15: #{fast_conformer_forward.23} parent=0 // pred_check_branch
    %21 = sbr.rel (0) target = $region17
  $region16: #{fast_conformer_forward.23} parent=0 // pred_region
    _
  $region17: #{fast_conformer_forward.23} parent=0 // pred_fallthru
    _
  // Predicated region
  $region18: #{fast_conformer_forward.23} parent=0 // pred_check
    _
  $region19: #{fast_conformer_forward.23} parent=0 // pred_check_branch
    %23 = sbr.rel (0) target = $region21
  $region20: #{fast_conformer_forward.23} parent=0 // pred_region
    _
  $region21: #{fast_conformer_forward.23} parent=0 // pred_fallthru
    _
  // Predicated region
  $region22: #{fast_conformer_forward.23} parent=0 // pred_check
    _
  $region23: #{fast_conformer_forward.23} parent=0 // pred_check_branch
    %25 = sbr.rel (0) target = $region25
  $region24: #{fast_conformer_forward.23} parent=0 // pred_region
    _
  $region25: #{fast_conformer_forward.23} parent=0 // pred_fallthru
    _
  // Predicated region
  $region26: #{fast_conformer_forward.23} parent=0 // pred_check
    _
  $region27: #{fast_conformer_forward.23} parent=0 // pred_check_branch
    %27 = sbr.rel (0) target = $region29
  $region28: #{fast_conformer_forward.23} parent=0 // pred_region
    _
  $region29: #{fast_conformer_forward.23} parent=0 // pred_fallthru
    _
  // Predicated region
  $region30: #{fast_conformer_forward.23} parent=0 // pred_check
    _
  $region31: #{fast_conformer_forward.23} parent=0 // pred_check_branch
    %29 = sbr.rel (0) target = $region33
  $region32: #{fast_conformer_forward.23} parent=0 // pred_region
    _
  $region33: #{fast_conformer_forward.23} parent=0 // pred_fallthru
    _
  // Predicated region
  $region34: #{fast_conformer_forward.23} parent=0 // pred_check
    _
  $region35: #{fast_conformer_forward.23} parent=0 // pred_check_branch
    %31 = sbr.rel (0) target = $region37
  $region36: #{fast_conformer_forward.23} parent=0 // pred_region
    _
  $region37: #{fast_conformer_forward.23} parent=0 // pred_fallthru
    _
  %v33 = vld [vmem:[%s0] sm:$0xf]
  %v34 = vld [vmem:[%s0 + $0x4] sm:$0x7]
  %v35 = vunpack.c.l.bf16 %v33
  %v36 = vunpack.c.l.bf16 %v34
  %v37 = vld [vmem:[%s1] sm:$0x1]
  %v38 = vld [vmem:[%s2] sm:$0x1]
  %vm39 = vcmask 261120
  %v40 = vsel %vm39, %v35, 0.0
  %41 = vadd.xlane.f32.xlu0 %v40
  %v42 = vpop.xlane.xlu0 %41
  %vm43 = vcmask 259072
  %v44 = vsel %vm43, %v36, 0.0
  %45 = vadd.xlane.f32.xlu0 %v44
  %v46 = vpop.xlane.xlu0 %45
  %v47 = vrcp.pop 32.0
  %v48 = vmul.f32 32.0, %v47
  %v49 = vsub.f32 1.0, %v48
  %v50 = vmul.f32 %v47, %v49
  %v51 = vadd.f32 %v47, %v50
  %vm52 = vweird.f32 %v47
  %v53 = vsel %vm52, %v47, %v51
  %v54 = vmul.f32 %v42, %v53
  %v55 = vmul.f32 %v46, %v53
  %v56 = vsub.f32 %v35, %v54
  %v57 = vsub.f32 %v36, %v55
  %v58 = vmul.f32 %v56, %v56
  %v59 = vmul.f32 %v57, %v57
  %v60 = vsel %vm39, %v58, 0.0
  %61 = vadd.xlane.f32.xlu0 %v60
  %v62 = vpop.xlane.xlu0 %61
  %v63 = vsel %vm43, %v59, 0.0
  %64 = vadd.xlane.f32.xlu0 %v63
  %v65 = vpop.xlane.xlu0 %64
  %v66 = vmul.f32 %v62, %v53
  %v67 = vmul.f32 %v65, %v53
  %v68 = vadd.f32 %v66, 1e-05
  %v69 = vadd.f32 %v67, 1e-05
  %v70 = vrsqrt.pop %v68
  %v71 = vmul.f32 %v70, %v68
  %v72 = vmul.f32 %v71, %v70
  %v73 = vmul.f32 0.5, %v72
  %v74 = vsub.f32 1.5, %v73
  %v75 = vmul.f32 %v70, %v74
  %vm76 = vweird.f32 %v68
  %vm77 = vweird.f32 %v70
  %vm78 = vmor %vm76, %vm77
  %v79 = vsel %vm78, %v70, %v75
  %v80 = vrsqrt.pop %v69
  %v81 = vmul.f32 %v80, %v69
  %v82 = vmul.f32 %v81, %v80
  %v83 = vmul.f32 0.5, %v82
  %v84 = vsub.f32 1.5, %v83
  %v85 = vmul.f32 %v80, %v84
  %vm86 = vweird.f32 %v69
  %vm87 = vweird.f32 %v80
  %vm88 = vmor %vm86, %vm87
  %v89 = vsel %vm88, %v80, %v85
  %v90 = vmul.f32 %v56, %v79
  %v91 = vmul.f32 %v57, %v89
  %v93 = vperm.slane %v37, 0
  %v95 = vmul.f32 %v90, %v93
  %v96 = vmul.f32 %v91, %v93
  %v98 = vperm.slane %v38, 0
  %v100 = vadd.f32 %v95, %v98
  %v101 = vadd.f32 %v96, %v98
  %v102 = vpack.c.bf16 %v101, %v100
  %v103 = vld [vmem:[%s3] sm:$0xf]
  %v104 = vld [vmem:[%s3 + $0x4] sm:$0xf]
  %v105 = vld [vmem:[%s3 + $0x8] sm:$0xf]
  %v106 = vld [vmem:[%s3 + $0xc] sm:$0xf]
  %v107 = vld [vmem:[%s4] sm:$0x1]
  %v109 = vperm.slane %v107, 0
  %v115 = vunpack.c.l.b16 %v103
  %v116 = vunpack.c.l.b16 %v104
  %v117 = vunpack.c.l.b16 %v105
  %v118 = vunpack.c.l.b16 %v106
  %v119 = vpack.c.b16 %v116, %v115
  %v120 = vpack.c.b16 %v118, %v117
  %v124 = vsel %vm39, %v102, 0
  %126 = vmatpush.bf16.msra.mxu0 0
  %127 = vmatpush.bf16.msra.mxu0 0
  %128 = vmatpush.bf16.msra.mxu0 0
  %129 = vmatpush.bf16.msra.mxu0 0
  %130 = vmatpush.bf16.msra.mxu0 0
  %131 = vmatpush.bf16.msra.mxu0 0
  %132 = vmatpush.bf16.msra.mxu0 %v120
  %133 = vmatpush.bf16.msra.mxu0 %v119
  %134 = vmatmul.bf16.gmra.mxu0 %v124
  %v135 = vpop.f32.mrf.mxu0
  %v136 = vadd.f32 %v109, %v135
  %v137 = vpop.f32.mrf.mxu0
  %v138 = vadd.f32 %v109, %v137
  %139 = vdwg.mxu0
  %v140 = vsub.f32 0.0, %v136
  %v141 = vsub.f32 0.0, %v138
  %v142 = vmul.f32 %v140, 1.442695
  %v143 = vpow.pop %v142
  %v144 = vmul.f32 %v141, 1.442695
  %v145 = vpow.pop %v144
  %v146 = vadd.f32 %v143, 1.0
  %v147 = vadd.f32 %v145, 1.0
  %v148 = vrcp.pop %v146
  %v149 = vmul.f32 %v146, %v148
  %v150 = vsub.f32 1.0, %v149
  %v151 = vmul.f32 %v148, %v150
  %v152 = vadd.f32 %v148, %v151
  %vm153 = vweird.f32 %v146
  %vm154 = vweird.f32 %v148
  %vm155 = vmor %vm153, %vm154
  %v156 = vsel %vm155, %v148, %v152
  %v157 = vand.u32 2147483647, %v146
  %vm158 = vcmp.eq.f32.partialorder %v157, 8.507059e+37
  %v159 = vand.u32 %v146, 2147483648
  %v160 = vor.u32 1.1754944e-38, %v159
  %v161 = vsel %vm158, %v160, %v156
  %v162 = vmul.f32 1.0, %v161
  %v163 = vrcp.pop %v147
  %v164 = vmul.f32 %v147, %v163
  %v165 = vsub.f32 1.0, %v164
  %v166 = vmul.f32 %v163, %v165
  %v167 = vadd.f32 %v163, %v166
  %vm168 = vweird.f32 %v147
  %vm169 = vweird.f32 %v163
  %vm170 = vmor %vm168, %vm169
  %v171 = vsel %vm170, %v163, %v167
  %v172 = vand.u32 2147483647, %v147
  %vm173 = vcmp.eq.f32.partialorder %v172, 8.507059e+37
  %v174 = vand.u32 %v147, 2147483648
  %v175 = vor.u32 1.1754944e-38, %v174
  %v176 = vsel %vm173, %v175, %v171
  %v177 = vmul.f32 1.0, %v176
  %v178 = vmul.f32 %v136, %v162
  %v179 = vmul.f32 %v138, %v177
  %v180 = vpack.c.bf16 %v179, %v178
  %v181 = vld [vmem:[%s5] sm:$0xf]
  %v182 = vld [vmem:[%s5 + $0x4] sm:$0xf]
  %v183 = vld [vmem:[%s5 + $0x8] sm:$0xf]
  %v184 = vld [vmem:[%s5 + $0xc] sm:$0xf]
  %v185 = vld [vmem:[%s5 + $0x10] sm:$0xf]
  %v186 = vld [vmem:[%s5 + $0x14] sm:$0xf]
  %v187 = vld [vmem:[%s5 + $0x18] sm:$0xf]
  %v188 = vld [vmem:[%s5 + $0x1c] sm:$0xf]
  %v189 = vld [vmem:[%s5 + $0x20] sm:$0xf]
  %v190 = vld [vmem:[%s5 + $0x24] sm:$0xf]
  %v191 = vld [vmem:[%s5 + $0x28] sm:$0xf]
  %v192 = vld [vmem:[%s5 + $0x2c] sm:$0xf]
  %v193 = vld [vmem:[%s5 + $0x30] sm:$0xf]
  %v194 = vld [vmem:[%s5 + $0x34] sm:$0xf]
  %v195 = vld [vmem:[%s5 + $0x38] sm:$0xf]
  %v196 = vld [vmem:[%s5 + $0x3c] sm:$0xf]
  %v197 = vld [vmem:[%s6] sm:$0x1]
  %v199 = vperm.slane %v197, 0
  %v217 = vunpack.c.l.b16 %v181
  %v218 = vunpack.c.l.b16 %v182
  %v219 = vunpack.c.l.b16 %v183
  %v220 = vunpack.c.l.b16 %v184
  %v221 = vunpack.c.l.b16 %v185
  %v222 = vunpack.c.l.b16 %v186
  %v223 = vunpack.c.l.b16 %v187
  %v224 = vunpack.c.l.b16 %v188
  %v225 = vunpack.c.l.b16 %v189
  %v226 = vunpack.c.l.b16 %v190
  %v227 = vunpack.c.l.b16 %v191
  %v228 = vunpack.c.l.b16 %v192
  %v229 = vunpack.c.l.b16 %v193
  %v230 = vunpack.c.l.b16 %v194
  %v231 = vunpack.c.l.b16 %v195
  %v232 = vunpack.c.l.b16 %v196
  %v233 = vpack.c.b16 %v218, %v217
  %v234 = vpack.c.b16 %v220, %v219
  %v235 = vpack.c.b16 %v222, %v221
  %v236 = vpack.c.b16 %v224, %v223
  %v237 = vpack.c.b16 %v226, %v225
  %v238 = vpack.c.b16 %v228, %v227
  %v239 = vpack.c.b16 %v230, %v229
  %v240 = vpack.c.b16 %v232, %v231
  %249 = vmatpush.bf16.msra.mxu0 %v240
  %250 = vmatpush.bf16.msra.mxu0 %v239
  %251 = vmatpush.bf16.msra.mxu0 %v238
  %252 = vmatpush.bf16.msra.mxu0 %v237
  %253 = vmatpush.bf16.msra.mxu0 %v236
  %254 = vmatpush.bf16.msra.mxu0 %v235
  %255 = vmatpush.bf16.msra.mxu0 %v234
  %256 = vmatpush.bf16.msra.mxu0 %v233
  %257 = vmatmul.bf16.gmra.mxu0 %v180
  %v258 = vpop.f32.mrf.mxu0
  %v259 = vadd.f32 %v199, %v258
  %v260 = vpop.f32.mrf.mxu0
  %v261 = vadd.f32 %v199, %v260
  %262 = vdwg.mxu0
  %v263 = vmul.f32 %v259, 0.5
  %v264 = vmul.f32 %v261, 0.5
  %v265 = vadd.f32 %v35, %v263
  %v266 = vadd.f32 %v36, %v264
  %v267 = vpack.c.bf16 %v265, %v265
  %v268 = vpack.c.bf16 %v266, %v266
  %vm269 = vcmask 257024
  %270 = vst.msk [vmem:[%s9] sm:$0xf] %vm269, %v267
  %vm271 = vcmask 256000
  %272 = vst.msk [vmem:[%s9 + $0x4] sm:$0x7] %vm271, %v268
  // Predicated region
  $region38: #{fast_conformer_forward.23} parent=0 // pred_check
    _
  $region39: #{fast_conformer_forward.23} parent=0 // pred_check_branch
    %274 = sbr.rel (0) target = $region41
  $region40: #{fast_conformer_forward.23} parent=0 // pred_region
    _
  $region41: #{fast_conformer_forward.23} parent=0 // pred_fallthru
    _
  // Predicated region
  $region42: #{fast_conformer_forward.23} parent=0 // pred_check
    _
  $region43: #{fast_conformer_forward.23} parent=0 // pred_check_branch
    %276 = sbr.rel (0) target = $region45
  $region44: #{fast_conformer_forward.23} parent=0 // pred_region
    _
  $region45: #{fast_conformer_forward.23} parent=0 // pred_fallthru
    _

// kernel: fast_conformer_forward.24
$region0: #{fast_conformer_forward.24}
  #allocation0 [shape = 'u32[]', space=smem, size = 0x4, offset = 0x4, fixed_abs, tag = 'smem constant byte address 0x4 - core index']
  #allocation1 [shape = 'u32[72,128]{1,0:T(1,128)}', space=vmem, size = 0x9000, scoped, tag = 'internal scratch']
  %s0 = inlined_call_operand.vmem [shape: bf16[14,32], index: 0, kind: input, shape index: {}]
  %s1 = inlined_call_operand.vmem [shape: f32[1,32], index: 1, kind: input, shape index: {}]
  %s2 = inlined_call_operand.vmem [shape: f32[1,32], index: 2, kind: input, shape index: {}]
  %s3 = inlined_call_operand.vmem [shape: bf16[32,96], index: 3, kind: input, shape index: {}]
  %s4 = inlined_call_operand.vmem [shape: f32[1,96], index: 4, kind: input, shape index: {}]
  %s5 = inlined_call_operand.vmem [shape: bf16[14,96], index: 5, kind: output, shape index: {}]
  %s6 = sld [smem:[#allocation0]]
  $region30: #{fast_conformer_forward.24} parent=0
    _
  %s8 = ssub.s32 1, %s6
  %s9 = scalar_select 0, %s8, %s6
  // Predicated region
  $region2: #{fast_conformer_forward.24} parent=0 // pred_check
    _
  $region3: #{fast_conformer_forward.24} parent=0 // pred_check_branch
    %11 = sbr.rel (0) target = $region5
  $region4: #{fast_conformer_forward.24} parent=0 // pred_region
    _
  $region5: #{fast_conformer_forward.24} parent=0 // pred_fallthru
    _
  // Predicated region
  $region6: #{fast_conformer_forward.24} parent=0 // pred_check
    _
  $region7: #{fast_conformer_forward.24} parent=0 // pred_check_branch
    %13 = sbr.rel (0) target = $region9
  $region8: #{fast_conformer_forward.24} parent=0 // pred_region
    _
  $region9: #{fast_conformer_forward.24} parent=0 // pred_fallthru
    _
  // Predicated region
  $region10: #{fast_conformer_forward.24} parent=0 // pred_check
    _
  $region11: #{fast_conformer_forward.24} parent=0 // pred_check_branch
    %15 = sbr.rel (0) target = $region13
  $region12: #{fast_conformer_forward.24} parent=0 // pred_region
    _
  $region13: #{fast_conformer_forward.24} parent=0 // pred_fallthru
    _
  // Predicated region
  $region14: #{fast_conformer_forward.24} parent=0 // pred_check
    _
  $region15: #{fast_conformer_forward.24} parent=0 // pred_check_branch
    %17 = sbr.rel (0) target = $region17
  $region16: #{fast_conformer_forward.24} parent=0 // pred_region
    _
  $region17: #{fast_conformer_forward.24} parent=0 // pred_fallthru
    _
  // Predicated region
  $region18: #{fast_conformer_forward.24} parent=0 // pred_check
    _
  $region19: #{fast_conformer_forward.24} parent=0 // pred_check_branch
    %19 = sbr.rel (0) target = $region21
  $region20: #{fast_conformer_forward.24} parent=0 // pred_region
    _
  $region21: #{fast_conformer_forward.24} parent=0 // pred_fallthru
    _
  %v21 = vld [vmem:[%s0] sm:$0xf]
  %v22 = vld [vmem:[%s0 + $0x4] sm:$0x7]
  %v23 = vunpack.c.l.bf16 %v21
  %v24 = vunpack.c.l.bf16 %v22
  %v25 = vld [vmem:[%s1] sm:$0x1]
  %v26 = vld [vmem:[%s2] sm:$0x1]
  %vm27 = vcmask 261120
  %v28 = vsel %vm27, %v23, 0.0
  %29 = vadd.xlane.f32.xlu0 %v28
  %v30 = vpop.xlane.xlu0 %29
  %vm31 = vcmask 259072
  %v32 = vsel %vm31, %v24, 0.0
  %33 = vadd.xlane.f32.xlu0 %v32
  %v34 = vpop.xlane.xlu0 %33
  %v35 = vrcp.pop 32.0
  %v36 = vmul.f32 32.0, %v35
  %v37 = vsub.f32 1.0, %v36
  %v38 = vmul.f32 %v35, %v37
  %v39 = vadd.f32 %v35, %v38
  %vm40 = vweird.f32 %v35
  %v41 = vsel %vm40, %v35, %v39
  %v42 = vmul.f32 %v30, %v41
  %v43 = vmul.f32 %v34, %v41
  %v44 = vsub.f32 %v23, %v42
  %v45 = vsub.f32 %v24, %v43
  %v46 = vmul.f32 %v44, %v44
  %v47 = vmul.f32 %v45, %v45
  %v48 = vsel %vm27, %v46, 0.0
  %49 = vadd.xlane.f32.xlu0 %v48
  %v50 = vpop.xlane.xlu0 %49
  %v51 = vsel %vm31, %v47, 0.0
  %52 = vadd.xlane.f32.xlu0 %v51
  %v53 = vpop.xlane.xlu0 %52
  %v54 = vmul.f32 %v50, %v41
  %v55 = vmul.f32 %v53, %v41
  %v56 = vadd.f32 %v54, 1e-05
  %v57 = vadd.f32 %v55, 1e-05
  %v58 = vrsqrt.pop %v56
  %v59 = vmul.f32 %v58, %v56
  %v60 = vmul.f32 %v59, %v58
  %v61 = vmul.f32 0.5, %v60
  %v62 = vsub.f32 1.5, %v61
  %v63 = vmul.f32 %v58, %v62
  %vm64 = vweird.f32 %v56
  %vm65 = vweird.f32 %v58
  %vm66 = vmor %vm64, %vm65
  %v67 = vsel %vm66, %v58, %v63
  %v68 = vrsqrt.pop %v57
  %v69 = vmul.f32 %v68, %v57
  %v70 = vmul.f32 %v69, %v68
  %v71 = vmul.f32 0.5, %v70
  %v72 = vsub.f32 1.5, %v71
  %v73 = vmul.f32 %v68, %v72
  %vm74 = vweird.f32 %v57
  %vm75 = vweird.f32 %v68
  %vm76 = vmor %vm74, %vm75
  %v77 = vsel %vm76, %v68, %v73
  %v78 = vmul.f32 %v44, %v67
  %v79 = vmul.f32 %v45, %v77
  %v81 = vperm.slane %v25, 0
  %v83 = vmul.f32 %v78, %v81
  %v84 = vmul.f32 %v79, %v81
  %v86 = vperm.slane %v26, 0
  %v88 = vadd.f32 %v83, %v86
  %v89 = vadd.f32 %v84, %v86
  %v90 = vpack.c.bf16 %v89, %v88
  %v91 = vld [vmem:[%s3] sm:$0xf]
  %v92 = vld [vmem:[%s3 + $0x4] sm:$0xf]
  %v93 = vld [vmem:[%s3 + $0x8] sm:$0xf]
  %v94 = vld [vmem:[%s3 + $0xc] sm:$0xf]
  %v95 = vld [vmem:[%s4] sm:$0x1]
  %v97 = vperm.slane %v95, 0
  %v103 = vunpack.c.l.b16 %v91
  %v104 = vunpack.c.l.b16 %v92
  %v105 = vunpack.c.l.b16 %v93
  %v106 = vunpack.c.l.b16 %v94
  %v107 = vpack.c.b16 %v104, %v103
  %v108 = vpack.c.b16 %v106, %v105
  %v112 = vsel %vm27, %v90, 0
  %114 = vmatpush.bf16.msra.mxu0 0
  %115 = vmatpush.bf16.msra.mxu0 0
  %116 = vmatpush.bf16.msra.mxu0 0
  %117 = vmatpush.bf16.msra.mxu0 0
  %118 = vmatpush.bf16.msra.mxu0 0
  %119 = vmatpush.bf16.msra.mxu0 0
  %120 = vmatpush.bf16.msra.mxu0 %v108
  %121 = vmatpush.bf16.msra.mxu0 %v107
  %122 = vmatmul.bf16.gmra.mxu0 %v112
  %v123 = vpop.f32.mrf.mxu0
  %v124 = vadd.f32 %v97, %v123
  %v125 = vpop.f32.mrf.mxu0
  %v126 = vadd.f32 %v97, %v125
  %127 = vdwg.mxu0
  %v128 = vpack.c.bf16 %v124, %v124
  %v129 = vpack.c.bf16 %v126, %v126
  %vm130 = vcmask 781312
  %131 = vst.msk [vmem:[%s5] sm:$0xf] %vm130, %v128
  %vm132 = vcmask 780288
  %133 = vst.msk [vmem:[%s5 + $0x4] sm:$0x7] %vm132, %v129
  // Predicated region
  $region22: #{fast_conformer_forward.24} parent=0 // pred_check
    _
  $region23: #{fast_conformer_forward.24} parent=0 // pred_check_branch
    %135 = sbr.rel (0) target = $region25
  $region24: #{fast_conformer_forward.24} parent=0 // pred_region
    _
  $region25: #{fast_conformer_forward.24} parent=0 // pred_fallthru
    _
  // Predicated region
  $region26: #{fast_conformer_forward.24} parent=0 // pred_check
    _
  $region27: #{fast_conformer_forward.24} parent=0 // pred_check_branch
    %137 = sbr.rel (0) target = $region29
  $region28: #{fast_conformer_forward.24} parent=0 // pred_region
    _
  $region29: #{fast_conformer_forward.24} parent=0 // pred_fallthru
    _

// kernel: fast_conformer_forward.25
$region0: #{fast_conformer_forward.25}
  #allocation0 [shape = 'u32[]', space=smem, size = 0x4, offset = 0x4, fixed_abs, tag = 'smem constant byte address 0x4 - core index']
  #allocation1 [shape = 'u32[72,128]{1,0:T(1,128)}', space=vmem, size = 0x9000, scoped, tag = 'internal scratch']
  #allocation2 [shape = 'f32[7,32]{1,0:T(8,128)}', space=vmem, size = 0x1000, scoped, tag = 'scratch operand']
  %s0 = inlined_call_operand.vmem [shape: f32[7,32], index: 0, kind: input, shape index: {}]
  %s1 = inlined_call_operand.vmem [shape: bf16[32,32], index: 1, kind: input, shape index: {}]
  %s2 = inlined_call_operand.vmem [shape: f32[1,32], index: 2, kind: input, shape index: {}]
  %s3 = inlined_call_operand.vmem [shape: bf16[7,32], index: 3, kind: output, shape index: {}]
  %s4 = sld [smem:[#allocation0]]
  $region30: #{fast_conformer_forward.25} parent=0
    _
  %s6 = ssub.s32 1, %s4
  %s7 = scalar_select 0, %s6, %s4
  // Predicated region
  $region2: #{fast_conformer_forward.25} parent=0 // pred_check
    _
  $region3: #{fast_conformer_forward.25} parent=0 // pred_check_branch
    %9 = sbr.rel (0) target = $region5
  $region4: #{fast_conformer_forward.25} parent=0 // pred_region
    _
  $region5: #{fast_conformer_forward.25} parent=0 // pred_fallthru
    _
  // Predicated region
  $region6: #{fast_conformer_forward.25} parent=0 // pred_check
    _
  $region7: #{fast_conformer_forward.25} parent=0 // pred_check_branch
    %11 = sbr.rel (0) target = $region9
  $region8: #{fast_conformer_forward.25} parent=0 // pred_region
    _
  $region9: #{fast_conformer_forward.25} parent=0 // pred_fallthru
    _
  // Predicated region
  $region10: #{fast_conformer_forward.25} parent=0 // pred_check
    _
  $region11: #{fast_conformer_forward.25} parent=0 // pred_check_branch
    %13 = sbr.rel (0) target = $region13
  $region12: #{fast_conformer_forward.25} parent=0 // pred_region
    _
  $region13: #{fast_conformer_forward.25} parent=0 // pred_fallthru
    _
  %p15 = scmp.eq.s32.totalorder 0, 0
  // Predicated region
  $region14: #{fast_conformer_forward.25} parent=0 // pred_check
    %p16 = pneg %p15
  $region15: #{fast_conformer_forward.25} parent=0 // pred_check_branch
    %18 = sbr.rel (%p16) target = $region17
  $region16: #{fast_conformer_forward.25} parent=0 // pred_region
    %vm19 = vcmask 260096
    %20 = vst.msk [vmem:[#allocation2] sm:$0x7f] %vm19, 0.0
  $region17: #{fast_conformer_forward.25} parent=0 // pred_fallthru
    _
  %v21 = vld [vmem:[#allocation2] sm:$0x7f]
  %v22 = vld [vmem:[%s0] sm:$0x7f]
  %v23 = vpack.c.bf16 %v22, %v22
  %v24 = vld [vmem:[%s1] sm:$0xf]
  %v25 = vld [vmem:[%s1 + $0x4] sm:$0xf]
  %v26 = vld [vmem:[%s1 + $0x8] sm:$0xf]
  %v27 = vld [vmem:[%s1 + $0xc] sm:$0xf]
  %v32 = vunpack.c.l.b16 %v24
  %v33 = vunpack.c.l.b16 %v25
  %v34 = vunpack.c.l.b16 %v26
  %v35 = vunpack.c.l.b16 %v27
  %v36 = vpack.c.b16 %v33, %v32
  %v37 = vpack.c.b16 %v35, %v34
  %vm40 = vcmask 261120
  %v42 = vsel %vm40, %v23, 0
  %44 = vmatpush.bf16.msra.mxu0 0
  %45 = vmatpush.bf16.msra.mxu0 0
  %46 = vmatpush.bf16.msra.mxu0 0
  %47 = vmatpush.bf16.msra.mxu0 0
  %48 = vmatpush.bf16.msra.mxu0 0
  %49 = vmatpush.bf16.msra.mxu0 0
  %50 = vmatpush.bf16.msra.mxu0 %v37
  %51 = vmatpush.bf16.msra.mxu0 %v36
  %52 = vmatmul.bf16.gmra.mxu0 %v42
  %v53 = vpop.f32.mrf.mxu0
  %v54 = vadd.f32 0.0, %v53
  %v55 = vpop.f32.mrf.mxu0
  %56 = vdwg.mxu0
  %v57 = vadd.f32 %v21, %v54
  %vm58 = vcmask 260096
  %59 = vst.msk [vmem:[#allocation2] sm:$0x7f] %vm58, %v57
  // Predicated region
  $region18: #{fast_conformer_forward.25} parent=0 // pred_check
    %p60 = pneg %p15
  $region19: #{fast_conformer_forward.25} parent=0 // pred_check_branch
    %62 = sbr.rel (%p60) target = $region21
  $region20: #{fast_conformer_forward.25} parent=0 // pred_region
    %v63 = vld [vmem:[#allocation2] sm:$0x7f]
    %v64 = vld [vmem:[%s2] sm:$0x1]
    %v66 = vperm.slane %v64, 0
    %v68 = vadd.f32 %v63, %v66
    %v69 = vpack.c.bf16 %v68, %v68
    %vm70 = vcmask 257024
    %vm71 = vsmask.f32 3328
    %vm72 = vmand %vm70, %vm71
    %v73 = vld [vmem:[%s3] sm:$0xf]
    %v74 = vsel %vm72, %v69, %v73
    %75 = vst [vmem:[%s3] sm:$0xf] %v74
  $region21: #{fast_conformer_forward.25} parent=0 // pred_fallthru
    _
  // Predicated region
  $region22: #{fast_conformer_forward.25} parent=0 // pred_check
    _
  $region23: #{fast_conformer_forward.25} parent=0 // pred_check_branch
    %77 = sbr.rel (0) target = $region25
  $region24: #{fast_conformer_forward.25} parent=0 // pred_region
    _
  $region25: #{fast_conformer_forward.25} parent=0 // pred_fallthru
    _
  // Predicated region
  $region26: #{fast_conformer_forward.25} parent=0 // pred_check
    _
  $region27: #{fast_conformer_forward.25} parent=0 // pred_check_branch
    %79 = sbr.rel (0) target = $region29
  $region28: #{fast_conformer_forward.25} parent=0 // pred_region
    _
  $region29: #{fast_conformer_forward.25} parent=0 // pred_fallthru
    _

// kernel: fast_conformer_forward.27
$region0: #{fast_conformer_forward.27}
  #allocation0 [shape = 'u32[]', space=smem, size = 0x4, offset = 0x4, fixed_abs, tag = 'smem constant byte address 0x4 - core index']
  #allocation1 [shape = 'u32[72,128]{1,0:T(1,128)}', space=vmem, size = 0x9000, scoped, tag = 'internal scratch']
  #allocation2 [shape = 'f32[14,32]{1,0:T(8,128)}', space=vmem, size = 0x2000, scoped, tag = 'scratch operand']
  %s0 = inlined_call_operand.vmem [shape: bf16[14,32], index: 0, kind: input, shape index: {}]
  %s1 = inlined_call_operand.vmem [shape: bf16[32,32], index: 1, kind: input, shape index: {}]
  %s2 = inlined_call_operand.vmem [shape: f32[1,32], index: 2, kind: input, shape index: {}]
  %s3 = inlined_call_operand.vmem [shape: bf16[14,32], index: 3, kind: input, shape index: {}]
  %s4 = inlined_call_operand.vmem [shape: bf16[14,32], index: 4, kind: output, shape index: {}]
  %s5 = sld [smem:[#allocation0]]
  $region34: #{fast_conformer_forward.27} parent=0
    _
  %s7 = ssub.s32 1, %s5
  %s8 = scalar_select 0, %s7, %s5
  // Predicated region
  $region2: #{fast_conformer_forward.27} parent=0 // pred_check
    _
  $region3: #{fast_conformer_forward.27} parent=0 // pred_check_branch
    %10 = sbr.rel (0) target = $region5
  $region4: #{fast_conformer_forward.27} parent=0 // pred_region
    _
  $region5: #{fast_conformer_forward.27} parent=0 // pred_fallthru
    _
  // Predicated region
  $region6: #{fast_conformer_forward.27} parent=0 // pred_check
    _
  $region7: #{fast_conformer_forward.27} parent=0 // pred_check_branch
    %12 = sbr.rel (0) target = $region9
  $region8: #{fast_conformer_forward.27} parent=0 // pred_region
    _
  $region9: #{fast_conformer_forward.27} parent=0 // pred_fallthru
    _
  // Predicated region
  $region10: #{fast_conformer_forward.27} parent=0 // pred_check
    _
  $region11: #{fast_conformer_forward.27} parent=0 // pred_check_branch
    %14 = sbr.rel (0) target = $region13
  $region12: #{fast_conformer_forward.27} parent=0 // pred_region
    _
  $region13: #{fast_conformer_forward.27} parent=0 // pred_fallthru
    _
  // Predicated region
  $region14: #{fast_conformer_forward.27} parent=0 // pred_check
    _
  $region15: #{fast_conformer_forward.27} parent=0 // pred_check_branch
    %16 = sbr.rel (0) target = $region17
  $region16: #{fast_conformer_forward.27} parent=0 // pred_region
    _
  $region17: #{fast_conformer_forward.27} parent=0 // pred_fallthru
    _
  %p18 = scmp.eq.s32.totalorder 0, 0
  // Predicated region
  $region18: #{fast_conformer_forward.27} parent=0 // pred_check
    %p19 = pneg %p18
  $region19: #{fast_conformer_forward.27} parent=0 // pred_check_branch
    %21 = sbr.rel (%p19) target = $region21
  $region20: #{fast_conformer_forward.27} parent=0 // pred_region
    %vm22 = vcmask 261120
    %23 = vst.msk [vmem:[#allocation2] sm:$0xff] %vm22, 0.0
    %vm24 = vcmask 259072
    %25 = vst.msk [vmem:[#allocation2 + $0x8] sm:$0x3f] %vm24, 0.0
  $region21: #{fast_conformer_forward.27} parent=0 // pred_fallthru
    _
  %v26 = vld [vmem:[#allocation2] sm:$0xff]
  %v27 = vld [vmem:[#allocation2 + $0x8] sm:$0x3f]
  %v28 = vld [vmem:[%s0] sm:$0xf]
  %v29 = vld [vmem:[%s0 + $0x4] sm:$0x7]
  %v30 = vld [vmem:[%s1] sm:$0xf]
  %v31 = vld [vmem:[%s1 + $0x4] sm:$0xf]
  %v32 = vld [vmem:[%s1 + $0x8] sm:$0xf]
  %v33 = vld [vmem:[%s1 + $0xc] sm:$0xf]
  %v36 = vunpack.c.l.b16 %v28
  %v37 = vunpack.c.l.b16 %v29
  %v38 = vpack.c.b16 %v37, %v36
  %v43 = vunpack.c.l.b16 %v30
  %v44 = vunpack.c.l.b16 %v31
  %v45 = vunpack.c.l.b16 %v32
  %v46 = vunpack.c.l.b16 %v33
  %v47 = vpack.c.b16 %v44, %v43
  %v48 = vpack.c.b16 %v46, %v45
  %vm51 = vcmask 261120
  %v53 = vsel %vm51, %v38, 0
  %55 = vmatpush.bf16.msra.mxu0 0
  %56 = vmatpush.bf16.msra.mxu0 0
  %57 = vmatpush.bf16.msra.mxu0 0
  %58 = vmatpush.bf16.msra.mxu0 0
  %59 = vmatpush.bf16.msra.mxu0 0
  %60 = vmatpush.bf16.msra.mxu0 0
  %61 = vmatpush.bf16.msra.mxu0 %v48
  %62 = vmatpush.bf16.msra.mxu0 %v47
  %63 = vmatmul.bf16.gmra.mxu0 %v53
  %v64 = vpop.f32.mrf.mxu0
  %v65 = vadd.f32 0.0, %v64
  %v66 = vpop.f32.mrf.mxu0
  %v67 = vadd.f32 0.0, %v66
  %68 = vdwg.mxu0
  %v69 = vadd.f32 %v26, %v65
  %v70 = vadd.f32 %v27, %v67
  %71 = vst.msk [vmem:[#allocation2] sm:$0xff] %vm51, %v69
  %vm72 = vcmask 259072
  %73 = vst.msk [vmem:[#allocation2 + $0x8] sm:$0x3f] %vm72, %v70
  // Predicated region
  $region22: #{fast_conformer_forward.27} parent=0 // pred_check
    %p74 = pneg %p18
  $region23: #{fast_conformer_forward.27} parent=0 // pred_check_branch
    %76 = sbr.rel (%p74) target = $region25
  $region24: #{fast_conformer_forward.27} parent=0 // pred_region
    %v77 = vld [vmem:[#allocation2] sm:$0xff]
    %v78 = vld [vmem:[#allocation2 + $0x8] sm:$0x3f]
    %v79 = vld [vmem:[%s2] sm:$0x1]
    %v81 = vperm.slane %v79, 0
    %v83 = vadd.f32 %v77, %v81
    %v84 = vadd.f32 %v78, %v81
    %v85 = vld [vmem:[%s3] sm:$0xf]
    %v86 = vld [vmem:[%s3 + $0x4] sm:$0x7]
    %v87 = vunpack.c.l.bf16 %v85
    %v88 = vunpack.c.l.bf16 %v86
    %v89 = vadd.f32 %v83, %v87
    %v90 = vadd.f32 %v84, %v88
    %v91 = vpack.c.bf16 %v89, %v89
    %v92 = vpack.c.bf16 %v90, %v90
    %vm93 = vcmask 257024
    %94 = vst.msk [vmem:[%s4] sm:$0xf] %vm93, %v91
    %vm95 = vcmask 256000
    %96 = vst.msk [vmem:[%s4 + $0x4] sm:$0x7] %vm95, %v92
  $region25: #{fast_conformer_forward.27} parent=0 // pred_fallthru
    _
  // Predicated region
  $region26: #{fast_conformer_forward.27} parent=0 // pred_check
    _
  $region27: #{fast_conformer_forward.27} parent=0 // pred_check_branch
    %98 = sbr.rel (0) target = $region29
  $region28: #{fast_conformer_forward.27} parent=0 // pred_region
    _
  $region29: #{fast_conformer_forward.27} parent=0 // pred_fallthru
    _
  // Predicated region
  $region30: #{fast_conformer_forward.27} parent=0 // pred_check
    _
  $region31: #{fast_conformer_forward.27} parent=0 // pred_check_branch
    %100 = sbr.rel (0) target = $region33
  $region32: #{fast_conformer_forward.27} parent=0 // pred_region
    _
  $region33: #{fast_conformer_forward.27} parent=0 // pred_fallthru
    _

// kernel: fast_conformer_forward.26
$region0: #{fast_conformer_forward.26}
  #allocation0 [shape = 'u32[]', space=smem, size = 0x4, offset = 0x4, fixed_abs, tag = 'smem constant byte address 0x4 - core index']
  #allocation1 [shape = 'u32[72,128]{1,0:T(1,128)}', space=vmem, size = 0x9000, scoped, tag = 'internal scratch']
  %s0 = inlined_call_operand.vmem [shape: bf16[2,12,7,8], index: 0, kind: input, shape index: {}, may-alias: {0,1,2}]
  %s1 = inlined_call_operand.vmem [shape: bf16[2,12,7,8], index: 1, kind: input, shape index: {}, may-alias: {0,1,2}]
  %s2 = inlined_call_operand.vmem [shape: bf16[2,12,7,8], index: 2, kind: input, shape index: {}, may-alias: {0,1,2}]
  %s3 = inlined_call_operand.vmem [shape: bf16[4,7,8], index: 3, kind: input, shape index: {}]
  %s4 = inlined_call_operand.vmem [shape: f32[4,1,8], index: 4, kind: input, shape index: {}]
  %s5 = inlined_call_operand.vmem [shape: f32[4,1,8], index: 5, kind: input, shape index: {}]
  %s6 = inlined_call_operand.vmem [shape: bf16[2,4,7,8], index: 6, kind: output, shape index: {}]
  %s7 = sld [smem:[#allocation0]]
  $region57: #{fast_conformer_forward.26} parent=0
    _
  %s9 = ssub.s32 1, %s7
  %s10 = scalar_select 0, %s9, %s7
  loop: start=0, step=1, limit=10
  $region2: #{fast_conformer_forward.26} parent=0 // loop_pre_header
    _
  $region3: #{fast_conformer_forward.26} parent=0 // loop_header
    %s12 = sphi 0, %s16
    %p13 = scmp.ge.s32.totalorder %s12, 10
    %s19 = sphi 0, %s31
    %s20 = sphi 0, %s27
    %s21 = sphi 0, %s19
    %s22 = sphi 0, %s20
    %s23 = sphi 0, %s21
    %s24 = sphi 0, %s22
    %s36 = sphi 0, %s38
    %s39 = sphi 0, %s36
    %s40 = sphi 0, %s39
    %s56 = sphi 0, %s40
    %s66 = sphi 0, %s68
    %s69 = sphi 0, %s66
    %s70 = sphi 0, %s69
    %s86 = sphi 0, %s70
    %s96 = sphi 0, %s98
    %s99 = sphi 0, %s96
    %s100 = sphi 0, %s99
    %s116 = sphi 0, %s100
    %s122 = sphi 0, %s124
    %s125 = sphi 0, %s122
    %s126 = sphi 0, %s125
    %s142 = sphi 0, %s126
    %s148 = sphi 0, %s150
    %s151 = sphi 0, %s148
    %s152 = sphi 0, %s151
    %s168 = sphi 0, %s152
    %s174 = sphi 0, %s176
    %s177 = sphi 0, %s174
    %s178 = sphi 0, %s177
    %s194 = sphi 0, %s178
    %s202 = sphi 0, %s204
    %s205 = sphi 0, %s202
    %s206 = sphi 0, %s205
    %s222 = sphi 0, %s206
  $region4: #{fast_conformer_forward.26} parent=0 // loop_header_branch
    %15 = sbr.rel (%p13) target = $region8
  $region5: #{fast_conformer_forward.26} parent=0 // loop_body
    %s17 = ssub.s32 %s12, 1
    %s18 = ssub.s32 %s12, 2
    %s25 = sadd.s32 1, %s20
    %p26 = scmp.ge.s32.totalorder %s25, 4
    %s27 = scalar_select %p26, 0, %s25
    %s28 = sadd.s32 1, %s19
    %s29 = scalar_select %p26, %s28, %s19
    %p30 = scmp.ge.s32.totalorder %s29, 2
    %s31 = scalar_select %p30, 0, %s29
    %s32 = ssub.s32 %s19, %s31
    %s33 = ssub.s32 %s20, %s27
    %s34 = sor.u32 %s32, %s33
    %p35 = scmp.eq.s32.totalorder %s34, 0
    %s37 = sadd.s32 %s36, 1
    %s38 = scalar_select %p35, %s36, %s37
    %p41 = pneg %p35
    %p42 = scmp.eq.s32.totalorder %s12, 7
    %p43 = por %p41, %p42
    %p44 = scmp.ne.s32.totalorder %s36, %s39
    %p45 = scmp.eq.s32.totalorder %s12, 0
    %p46 = por %p44, %p45
    %p47 = scmp.ne.s32.totalorder %s36, %s39
    %p48 = scmp.eq.s32.totalorder %s17, 7
    %p49 = por %p47, %p48
    %p50 = scmp.ne.s32.totalorder %s39, %s40
    %p51 = scmp.eq.s32.totalorder %s17, 0
    %p52 = por %p50, %p51
    %p53 = scmp.ne.s32.totalorder %s39, %s40
    %p54 = scmp.eq.s32.totalorder %s18, 7
    %p55 = por %p53, %p54
    %p57 = scmp.ne.s32.totalorder %s40, %s56
    %p58 = scmp.eq.s32.totalorder %s18, 0
    %p59 = por %p57, %p58
    %s60 = sadd.s32 %s20, 4
    %s61 = sadd.s32 %s27, 4
    %s62 = ssub.s32 %s19, %s31
    %s63 = ssub.s32 %s60, %s61
    %s64 = sor.u32 %s62, %s63
    %p65 = scmp.eq.s32.totalorder %s64, 0
    %s67 = sadd.s32 %s66, 1
    %s68 = scalar_select %p65, %s66, %s67
    %p71 = pneg %p65
    %p72 = scmp.eq.s32.totalorder %s12, 7
    %p73 = por %p71, %p72
    %p74 = scmp.ne.s32.totalorder %s66, %s69
    %p75 = scmp.eq.s32.totalorder %s12, 0
    %p76 = por %p74, %p75
    %p77 = scmp.ne.s32.totalorder %s66, %s69
    %p78 = scmp.eq.s32.totalorder %s17, 7
    %p79 = por %p77, %p78
    %p80 = scmp.ne.s32.totalorder %s69, %s70
    %p81 = scmp.eq.s32.totalorder %s17, 0
    %p82 = por %p80, %p81
    %p83 = scmp.ne.s32.totalorder %s69, %s70
    %p84 = scmp.eq.s32.totalorder %s18, 7
    %p85 = por %p83, %p84
    %p87 = scmp.ne.s32.totalorder %s70, %s86
    %p88 = scmp.eq.s32.totalorder %s18, 0
    %p89 = por %p87, %p88
    %s90 = sadd.s32 %s20, 8
    %s91 = sadd.s32 %s27, 8
    %s92 = ssub.s32 %s19, %s31
    %s93 = ssub.s32 %s90, %s91
    %s94 = sor.u32 %s92, %s93
    %p95 = scmp.eq.s32.totalorder %s94, 0
    %s97 = sadd.s32 %s96, 1
    %s98 = scalar_select %p95, %s96, %s97
    %p101 = pneg %p95
    %p102 = scmp.eq.s32.totalorder %s12, 7
    %p103 = por %p101, %p102
    %p104 = scmp.ne.s32.totalorder %s96, %s99
    %p105 = scmp.eq.s32.totalorder %s12, 0
    %p106 = por %p104, %p105
    %p107 = scmp.ne.s32.totalorder %s96, %s99
    %p108 = scmp.eq.s32.totalorder %s17, 7
    %p109 = por %p107, %p108
    %p110 = scmp.ne.s32.totalorder %s99, %s100
    %p111 = scmp.eq.s32.totalorder %s17, 0
    %p112 = por %p110, %p111
    %p113 = scmp.ne.s32.totalorder %s99, %s100
    %p114 = scmp.eq.s32.totalorder %s18, 7
    %p115 = por %p113, %p114
    %p117 = scmp.ne.s32.totalorder %s100, %s116
    %p118 = scmp.eq.s32.totalorder %s18, 0
    %p119 = por %p117, %p118
    %s120 = ssub.s32 %s20, %s27
    %p121 = scmp.eq.s32.totalorder %s120, 0
    %s123 = sadd.s32 %s122, 1
    %s124 = scalar_select %p121, %s122, %s123
    %p127 = pneg %p121
    %p128 = scmp.eq.s32.totalorder %s12, 7
    %p129 = por %p127, %p128
    %p130 = scmp.ne.s32.totalorder %s122, %s125
    %p131 = scmp.eq.s32.totalorder %s12, 0
    %p132 = por %p130, %p131
    %p133 = scmp.ne.s32.totalorder %s122, %s125
    %p134 = scmp.eq.s32.totalorder %s17, 7
    %p135 = por %p133, %p134
    %p136 = scmp.ne.s32.totalorder %s125, %s126
    %p137 = scmp.eq.s32.totalorder %s17, 0
    %p138 = por %p136, %p137
    %p139 = scmp.ne.s32.totalorder %s125, %s126
    %p140 = scmp.eq.s32.totalorder %s18, 7
    %p141 = por %p139, %p140
    %p143 = scmp.ne.s32.totalorder %s126, %s142
    %p144 = scmp.eq.s32.totalorder %s18, 0
    %p145 = por %p143, %p144
    %s146 = ssub.s32 %s20, %s27
    %p147 = scmp.eq.s32.totalorder %s146, 0
    %s149 = sadd.s32 %s148, 1
    %s150 = scalar_select %p147, %s148, %s149
    %p153 = pneg %p147
    %p154 = scmp.eq.s32.totalorder %s12, 7
    %p155 = por %p153, %p154
    %p156 = scmp.ne.s32.totalorder %s148, %s151
    %p157 = scmp.eq.s32.totalorder %s12, 0
    %p158 = por %p156, %p157
    %p159 = scmp.ne.s32.totalorder %s148, %s151
    %p160 = scmp.eq.s32.totalorder %s17, 7
    %p161 = por %p159, %p160
    %p162 = scmp.ne.s32.totalorder %s151, %s152
    %p163 = scmp.eq.s32.totalorder %s17, 0
    %p164 = por %p162, %p163
    %p165 = scmp.ne.s32.totalorder %s151, %s152
    %p166 = scmp.eq.s32.totalorder %s18, 7
    %p167 = por %p165, %p166
    %p169 = scmp.ne.s32.totalorder %s152, %s168
    %p170 = scmp.eq.s32.totalorder %s18, 0
    %p171 = por %p169, %p170
    %s172 = ssub.s32 %s20, %s27
    %p173 = scmp.eq.s32.totalorder %s172, 0
    %s175 = sadd.s32 %s174, 1
    %s176 = scalar_select %p173, %s174, %s175
    %p179 = pneg %p173
    %p180 = scmp.eq.s32.totalorder %s12, 7
    %p181 = por %p179, %p180
    %p182 = scmp.ne.s32.totalorder %s174, %s177
    %p183 = scmp.eq.s32.totalorder %s12, 0
    %p184 = por %p182, %p183
    %p185 = scmp.ne.s32.totalorder %s174, %s177
    %p186 = scmp.eq.s32.totalorder %s17, 7
    %p187 = por %p185, %p186
    %p188 = scmp.ne.s32.totalorder %s177, %s178
    %p189 = scmp.eq.s32.totalorder %s17, 0
    %p190 = por %p188, %p189
    %p191 = scmp.ne.s32.totalorder %s177, %s178
    %p192 = scmp.eq.s32.totalorder %s18, 7
    %p193 = por %p191, %p192
    %p195 = scmp.ne.s32.totalorder %s178, %s194
    %p196 = scmp.eq.s32.totalorder %s18, 0
    %p197 = por %p195, %p196
    %s198 = ssub.s32 %s19, %s31
    %s199 = ssub.s32 %s20, %s27
    %s200 = sor.u32 %s198, %s199
    %p201 = scmp.eq.s32.totalorder %s200, 0
    %s203 = sadd.s32 %s202, 1
    %s204 = scalar_select %p201, %s202, %s203
    %p207 = pneg %p201
    %p208 = scmp.eq.s32.totalorder %s12, 7
    %p209 = por %p207, %p208
    %p210 = scmp.ne.s32.totalorder %s202, %s205
    %p211 = scmp.eq.s32.totalorder %s12, 0
    %p212 = por %p210, %p211
    %p213 = scmp.ne.s32.totalorder %s202, %s205
    %p214 = scmp.eq.s32.totalorder %s17, 7
    %p215 = por %p213, %p214
    %p216 = scmp.ne.s32.totalorder %s205, %s206
    %p217 = scmp.eq.s32.totalorder %s17, 0
    %p218 = por %p216, %p217
    %p219 = scmp.ne.s32.totalorder %s205, %s206
    %p220 = scmp.eq.s32.totalorder %s18, 7
    %p221 = por %p219, %p220
    %p223 = scmp.ne.s32.totalorder %s206, %s222
    %p224 = scmp.eq.s32.totalorder %s18, 0
    %p225 = por %p223, %p224
    %p226 = scmp.le.s32.totalorder 1, %s12
    %p227 = scmp.lt.s32.totalorder %s12, 9
    %p228 = pnand %p226, %p227
    %p229 = pneg %p228
    // Predicated region
    $region9: #{fast_conformer_forward.26} parent=5 // pred_check
      _
    $region10: #{fast_conformer_forward.26} parent=5 // pred_check_branch
      %231 = sbr.rel (%p228) target = $region12
    $region11: #{fast_conformer_forward.26} parent=5 // pred_region
      %s232 = ssub.s32 %s12, 1
    $region12: #{fast_conformer_forward.26} parent=5 // pred_fallthru
      _
    %p233 = scmp.lt.s32.totalorder %s12, 8
    // Predicated region
    $region13: #{fast_conformer_forward.26} parent=5 // pred_check
      %p234 = pneg %p233
    $region14: #{fast_conformer_forward.26} parent=5 // pred_check_branch
      %236 = sbr.rel (%p234) target = $region16
    $region15: #{fast_conformer_forward.26} parent=5 // pred_region
      // Predicated region
      $region17: #{fast_conformer_forward.26} parent=15 // pred_check
        %p237 = pneg %p46
      $region18: #{fast_conformer_forward.26} parent=15 // pred_check_branch
        %239 = sbr.rel (%p237) target = $region20
      $region19: #{fast_conformer_forward.26} parent=15 // pred_region
        %p240 = scmp.lt.s32.totalorder %s19, 1
        %s241 = scalar_select %p240, %s19, 1
        %p242 = scmp.lt.s32.totalorder %s20, 11
        %s243 = scalar_select %p242, %s20, 11
        %s244 = smul.addr %s241, 12
        %s245 = sadd.s32 %s243, %s244
        %s246 = smul.addr %s245, 4
        %s247 = scalar_lea.vmem %s0, %s246
      $region20: #{fast_conformer_forward.26} parent=15 // pred_fallthru
        _
      // Predicated region
      $region21: #{fast_conformer_forward.26} parent=15 // pred_check
        %p248 = pneg %p76
      $region22: #{fast_conformer_forward.26} parent=15 // pred_check_branch
        %250 = sbr.rel (%p248) target = $region24
      $region23: #{fast_conformer_forward.26} parent=15 // pred_region
        %s251 = sadd.s32 %s20, 4
        %p252 = scmp.lt.s32.totalorder %s19, 1
        %s253 = scalar_select %p252, %s19, 1
        %p254 = scmp.lt.s32.totalorder %s251, 11
        %s255 = scalar_select %p254, %s251, 11
        %s256 = smul.addr %s253, 12
        %s257 = sadd.s32 %s255, %s256
        %s258 = smul.addr %s257, 4
        %s259 = scalar_lea.vmem %s1, %s258
        %s260 = sadd.s32 %s20, 4
      $region24: #{fast_conformer_forward.26} parent=15 // pred_fallthru
        _
      // Predicated region
      $region25: #{fast_conformer_forward.26} parent=15 // pred_check
        %p261 = pneg %p106
      $region26: #{fast_conformer_forward.26} parent=15 // pred_check_branch
        %263 = sbr.rel (%p261) target = $region28
      $region27: #{fast_conformer_forward.26} parent=15 // pred_region
        %s264 = sadd.s32 %s20, 8
        %p265 = scmp.lt.s32.totalorder %s19, 1
        %s266 = scalar_select %p265, %s19, 1
        %p267 = scmp.lt.s32.totalorder %s264, 11
        %s268 = scalar_select %p267, %s264, 11
        %s269 = smul.addr %s266, 12
        %s270 = sadd.s32 %s268, %s269
        %s271 = smul.addr %s270, 4
        %s272 = scalar_lea.vmem %s2, %s271
        %s273 = sadd.s32 %s20, 8
      $region28: #{fast_conformer_forward.26} parent=15 // pred_fallthru
        _
      // Predicated region
      $region29: #{fast_conformer_forward.26} parent=15 // pred_check
        %p274 = pneg %p132
      $region30: #{fast_conformer_forward.26} parent=15 // pred_check_branch
        %276 = sbr.rel (%p274) target = $region32
      $region31: #{fast_conformer_forward.26} parent=15 // pred_region
        %p277 = scmp.lt.s32.totalorder %s20, 3
        %s278 = scalar_select %p277, %s20, 3
        %s279 = smul.addr %s278, 4
        %s280 = scalar_lea.vmem %s3, %s279
      $region32: #{fast_conformer_forward.26} parent=15 // pred_fallthru
        _
      // Predicated region
      $region33: #{fast_conformer_forward.26} parent=15 // pred_check
        %p281 = pneg %p158
      $region34: #{fast_conformer_forward.26} parent=15 // pred_check_branch
        %283 = sbr.rel (%p281) target = $region36
      $region35: #{fast_conformer_forward.26} parent=15 // pred_region
        %p284 = scmp.lt.s32.totalorder %s20, 3
        %s285 = scalar_select %p284, %s20, 3
        %s286 = scalar_lea.vmem %s4, %s285
      $region36: #{fast_conformer_forward.26} parent=15 // pred_fallthru
        _
      // Predicated region
      $region37: #{fast_conformer_forward.26} parent=15 // pred_check
        %p287 = pneg %p184
      $region38: #{fast_conformer_forward.26} parent=15 // pred_check_branch
        %289 = sbr.rel (%p287) target = $region40
      $region39: #{fast_conformer_forward.26} parent=15 // pred_region
        %p290 = scmp.lt.s32.totalorder %s20, 3
        %s291 = scalar_select %p290, %s20, 3
        %s292 = scalar_lea.vmem %s5, %s291
      $region40: #{fast_conformer_forward.26} parent=15 // pred_fallthru
        _
    $region16: #{fast_conformer_forward.26} parent=5 // pred_fallthru
      _
    %p293 = scmp.le.s32.totalorder 1, %s12
    %p294 = scmp.lt.s32.totalorder %s12, 9
    %p295 = pnand %p293, %p294
    %p296 = pneg %p295
    // Predicated region
    $region41: #{fast_conformer_forward.26} parent=5 // pred_check
      _
    $region42: #{fast_conformer_forward.26} parent=5 // pred_check_branch
      %298 = sbr.rel (%p295) target = $region44
    $region43: #{fast_conformer_forward.26} parent=5 // pred_region
      %s299 = ssub.s32 %s12, 1
      %p300 = scmp.lt.s32.totalorder %s21, 1
      %s301 = scalar_select %p300, %s21, 1
      %p302 = scmp.lt.s32.totalorder %s22, 11
      %s303 = scalar_select %p302, %s22, 11
      %s304 = smul.addr %s301, 12
      %s305 = sadd.s32 %s303, %s304
      %s306 = smul.addr %s305, 4
      %s307 = scalar_lea.vmem %s0, %s306
      %p308 = pneg %p52
      %p309 = pneg %p49
      %s310 = sadd.s32 %s22, 4
      %p311 = scmp.lt.s32.totalorder %s21, 1
      %s312 = scalar_select %p311, %s21, 1
      %p313 = scmp.lt.s32.totalorder %s310, 11
      %s314 = scalar_select %p313, %s310, 11
      %s315 = smul.addr %s312, 12
      %s316 = sadd.s32 %s314, %s315
      %s317 = smul.addr %s316, 4
      %s318 = scalar_lea.vmem %s1, %s317
      %p319 = pneg %p82
      %p320 = pneg %p79
      %s321 = sadd.s32 %s22, 8
      %p322 = scmp.lt.s32.totalorder %s21, 1
      %s323 = scalar_select %p322, %s21, 1
      %p324 = scmp.lt.s32.totalorder %s321, 11
      %s325 = scalar_select %p324, %s321, 11
      %s326 = smul.addr %s323, 12
      %s327 = sadd.s32 %s325, %s326
      %s328 = smul.addr %s327, 4
      %s329 = scalar_lea.vmem %s2, %s328
      %p330 = pneg %p112
      %p331 = pneg %p109
      %p332 = scmp.lt.s32.totalorder %s22, 3
      %s333 = scalar_select %p332, %s22, 3
      %s334 = smul.addr %s333, 4
      %s335 = scalar_lea.vmem %s3, %s334
      %p336 = pneg %p138
      %p337 = pneg %p135
      %p338 = scmp.lt.s32.totalorder %s22, 3
      %s339 = scalar_select %p338, %s22, 3
      %s340 = scalar_lea.vmem %s4, %s339
      %p341 = pneg %p164
      %p342 = pneg %p161
      %p343 = scmp.lt.s32.totalorder %s22, 3
      %s344 = scalar_select %p343, %s22, 3
      %s345 = scalar_lea.vmem %s5, %s344
      %p346 = pneg %p190
      %p347 = pneg %p187
      %p348 = pneg %p218
      %p349 = pneg %p215
      %p350 = scmp.lt.s32.totalorder %s21, 1
      %s351 = scalar_select %p350, %s21, 1
      %p352 = scmp.lt.s32.totalorder %s22, 3
      %s353 = scalar_select %p352, %s22, 3
      %s354 = smul.addr %s351, 4
      %s355 = sadd.s32 %s353, %s354
      %s356 = smul.addr %s355, 4
      %s357 = scalar_lea.vmem %s6, %s356
      %p358 = scmp.lt.s32.totalorder %s21, 1
      %s359 = scalar_select %p358, %s21, 1
      %p360 = scmp.lt.s32.totalorder %s22, 11
      %s361 = scalar_select %p360, %s22, 11
      %s362 = smul.addr %s359, 12
      %s363 = sadd.s32 %s361, %s362
      %s364 = smul.addr %s363, 4
      %s365 = scalar_lea.vmem %s0, %s364
      %s366 = sadd.s32 %s22, 4
      %p367 = scmp.lt.s32.totalorder %s21, 1
      %s368 = scalar_select %p367, %s21, 1
      %p369 = scmp.lt.s32.totalorder %s366, 11
      %s370 = scalar_select %p369, %s366, 11
      %s371 = smul.addr %s368, 12
      %s372 = sadd.s32 %s370, %s371
      %s373 = smul.addr %s372, 4
      %s374 = scalar_lea.vmem %s1, %s373
      %s375 = sadd.s32 %s22, 4
      %s376 = sadd.s32 %s22, 8
      %p377 = scmp.lt.s32.totalorder %s21, 1
      %s378 = scalar_select %p377, %s21, 1
      %p379 = scmp.lt.s32.totalorder %s376, 11
      %s380 = scalar_select %p379, %s376, 11
      %s381 = smul.addr %s378, 12
      %s382 = sadd.s32 %s380, %s381
      %s383 = smul.addr %s382, 4
      %s384 = scalar_lea.vmem %s2, %s383
      %s385 = sadd.s32 %s22, 8
      %p386 = scmp.lt.s32.totalorder %s22, 3
      %s387 = scalar_select %p386, %s22, 3
      %s388 = smul.addr %s387, 4
      %s389 = scalar_lea.vmem %s3, %s388
      %p390 = scmp.lt.s32.totalorder %s22, 3
      %s391 = scalar_select %p390, %s22, 3
      %s392 = scalar_lea.vmem %s4, %s391
      %p393 = scmp.lt.s32.totalorder %s22, 3
      %s394 = scalar_select %p393, %s22, 3
      %s395 = scalar_lea.vmem %s5, %s394
      %p396 = scmp.lt.s32.totalorder %s21, 1
      %s397 = scalar_select %p396, %s21, 1
      %p398 = scmp.lt.s32.totalorder %s22, 3
      %s399 = scalar_select %p398, %s22, 3
      %s400 = smul.addr %s397, 4
      %s401 = sadd.s32 %s399, %s400
      %s402 = smul.addr %s401, 4
      %s403 = scalar_lea.vmem %s6, %s402
      %v405 = vld [vmem:[%s365] sm:$0xf]
      %v406 = vunpack.c.l.bf16 %v405
      %v407 = vld [vmem:[%s374] sm:$0xf]
      %v408 = vld [vmem:[%s384] sm:$0xf]
      %v409 = vld [vmem:[%s389] sm:$0xf]
      %v410 = vld [vmem:[%s392] sm:$0x1]
      %v411 = vld [vmem:[%s395] sm:$0x1]
      %v413 = vperm.slane %v410, 0
      %v415 = vadd.f32 %v406, %v413
      %v416 = vmul.f32 %v415, 0.17677669
      %v417 = vpack.c.bf16 %v416, %v416
      %v419 = vperm.slane %v411, 0
      %v421 = vadd.f32 %v406, %v419
      %v422 = vmul.f32 %v421, 0.17677669
      %v423 = vpack.c.bf16 %v422, %v422
      %vm424 = vcmask 64512
      %v426 = vsel %vm424, %v423, 0
      %v429 = vsel %vm424, %v409, 0
      %431 = vmatpush.bf16.xpose.msra.mxu0 0
      %432 = vmatpush.bf16.xpose.msra.mxu0 0
      %433 = vmatpush.bf16.xpose.msra.mxu0 0
      %434 = vmatpush.bf16.xpose.msra.mxu0 0
      %435 = vmatpush.bf16.xpose.msra.mxu0 0
      %436 = vmatpush.bf16.xpose.msra.mxu0 0
      %437 = vmatpush.bf16.xpose.msra.mxu0 0
      %438 = vmatpush.bf16.xpose.msra.mxu0 %v429
      %439 = vmatmul.bf16.gmra.mxu0 %v426
      %v440 = vpop.f32.mrf.mxu0
      %v441 = vadd.f32 0.0, %v440
      %v442 = vpop.f32.mrf.mxu0
      %443 = vdwg.mxu0
      %v444 = vlaneseq
      %v445 = vshrl.u32 %v444, 7
      %v446 = vlaneseq
      %v447 = vand.u32 %v446, 127
      %v448 = vsub.s32 %v447, %v445
      %v449 = vadd.s32 %v445, 1
      %vm450 = vcmp.eq.s32.totalorder %v447, %v449
      %v451 = vsel %vm450, 1.0, 0.0
      %vm452 = vcmask 56320
      %v454 = vsel %vm452, %v451, 0
      %vm456 = vcmask 1046528
      %v458 = vsel %vm456, %v441, 0
      %460 = vmatpush.msra.mxu0 0.0
      %461 = vmatpush.msra.mxu0 0.0
      %462 = vmatpush.msra.mxu0 0.0
      %463 = vmatpush.msra.mxu0 0.0
      %464 = vmatpush.msra.mxu0 0.0
      %465 = vmatpush.msra.mxu0 0.0
      %466 = vmatpush.msra.mxu0 0.0
      %467 = vmatpush.msra.mxu0 0.0
      %468 = vmatpush.msra.mxu0 0.0
      %469 = vmatpush.msra.mxu0 0.0
      %470 = vmatpush.msra.mxu0 0.0
      %471 = vmatpush.msra.mxu0 0.0
      %472 = vmatpush.msra.mxu0 0.0
      %473 = vmatpush.msra.mxu0 0.0
      %474 = vmatpush.msra.mxu0 0.0
      %475 = vmatpush.msra.mxu0 %v458
      %476 = vmatmul.f32.gmra.mxu0 %v454
      %v477 = vpop.f32.mrf.mxu0
      %v478 = vadd.f32 0.0, %v477
      %479 = vdwg.mxu0
      %vm480 = vcmp.eq.s32.totalorder %v448, 0
      %481 = vset.pattern.permute.xlu0 6
      %482 = vperm.xlu0 %481, %v441
      %v483 = vpop.permute.xlu0 %482
      %v485 = vsel %vm480, %v483, 0.0
      %v486 = vadd.f32 %v485, 0.0
      %vm487 = vcmp.eq.s32.totalorder %v448, 4294967295
      %488 = vset.pattern.permute.xlu0 5
      %489 = vperm.xlu0 %488, %v441
      %v490 = vpop.permute.xlu0 %489
      %v492 = vsel %vm487, %v490, 0.0
      %v493 = vadd.f32 %v486, %v492
      %vm494 = vcmp.eq.s32.totalorder %v448, 4294967294
      %495 = vset.pattern.permute.xlu0 4
      %496 = vperm.xlu0 %495, %v441
      %v497 = vpop.permute.xlu0 %496
      %v499 = vsel %vm494, %v497, 0.0
      %v500 = vadd.f32 %v493, %v499
      %vm501 = vcmp.eq.s32.totalorder %v448, 4294967293
      %502 = vset.pattern.permute.xlu0 3
      %503 = vperm.xlu0 %502, %v441
      %v504 = vpop.permute.xlu0 %503
      %v506 = vsel %vm501, %v504, 0.0
      %v507 = vadd.f32 %v500, %v506
      %vm508 = vcmp.eq.s32.totalorder %v448, 4294967292
      %509 = vset.pattern.permute.xlu0 2
      %510 = vperm.xlu0 %509, %v441
      %v511 = vpop.permute.xlu0 %510
      %v513 = vsel %vm508, %v511, 0.0
      %v514 = vadd.f32 %v507, %v513
      %vm515 = vcmp.eq.s32.totalorder %v448, 4294967291
      %516 = vset.pattern.permute.xlu0 1
      %517 = vperm.xlu0 %516, %v441
      %v518 = vpop.permute.xlu0 %517
      %v520 = vsel %vm515, %v518, 0.0
      %v521 = vadd.f32 %v514, %v520
      %vm522 = vcmp.eq.s32.totalorder %v448, 4294967290
      %523 = vset.pattern.permute.xlu0 0
      %524 = vperm.xlu0 %523, %v441
      %v525 = vpop.permute.xlu0 %524
      %v527 = vsel %vm522, %v525, 0.0
      %v528 = vadd.f32 %v521, %v527
      %vm529 = vcmp.eq.s32.totalorder %v448, 2
      %531 = vset.pattern.permute.xlu0 0
      %532 = vperm.xlu0 %531, %v478
      %v533 = vpop.permute.xlu0 %532
      %v535 = vsel %vm529, %v533, 0.0
      %v536 = vadd.f32 %v528, %v535
      %vm537 = vcmp.eq.s32.totalorder %v448, 3
      %538 = vset.pattern.permute.xlu0 1
      %539 = vperm.xlu0 %538, %v478
      %v540 = vpop.permute.xlu0 %539
      %v542 = vsel %vm537, %v540, 0.0
      %v543 = vadd.f32 %v536, %v542
      %vm544 = vcmp.eq.s32.totalorder %v448, 4
      %545 = vset.pattern.permute.xlu0 2
      %546 = vperm.xlu0 %545, %v478
      %v547 = vpop.permute.xlu0 %546
      %v549 = vsel %vm544, %v547, 0.0
      %v550 = vadd.f32 %v543, %v549
      %vm551 = vcmp.eq.s32.totalorder %v448, 5
      %552 = vset.pattern.permute.xlu0 3
      %553 = vperm.xlu0 %552, %v478
      %v554 = vpop.permute.xlu0 %553
      %v556 = vsel %vm551, %v554, 0.0
      %v557 = vadd.f32 %v550, %v556
      %vm558 = vcmp.eq.s32.totalorder %v448, 6
      %559 = vset.pattern.permute.xlu0 4
      %560 = vperm.xlu0 %559, %v478
      %v561 = vpop.permute.xlu0 %560
      %v563 = vsel %vm558, %v561, 0.0
      %v564 = vadd.f32 %v557, %v563
      %v566 = vsel %vm424, %v417, 0
      %v569 = vsel %vm424, %v407, 0
      %571 = vmatpush.bf16.xpose.msra.mxu0 0
      %572 = vmatpush.bf16.xpose.msra.mxu0 0
      %573 = vmatpush.bf16.xpose.msra.mxu0 0
      %574 = vmatpush.bf16.xpose.msra.mxu0 0
      %575 = vmatpush.bf16.xpose.msra.mxu0 0
      %576 = vmatpush.bf16.xpose.msra.mxu0 0
      %577 = vmatpush.bf16.xpose.msra.mxu0 0
      %578 = vmatpush.bf16.xpose.msra.mxu0 %v569
      %579 = vmatmul.bf16.gmra.mxu0 %v566
      %v580 = vpop.f32.mrf.mxu0
      %v581 = vadd.f32 %v564, %v580
      %v582 = vpop.f32.mrf.mxu0
      %583 = vdwg.mxu0
      %vm584 = vcmask 55296
      %v585 = vsel %vm584, %v581, -inf
      %586 = vmax.xlane.f32.xlu0 %v585
      %v587 = vpop.xlane.xlu0 %586
      %v588 = vsub.f32 %v581, %v587
      %v589 = vmul.f32 %v588, 1.442695
      %v590 = vpow.pop %v589
      %v591 = vsel %vm584, %v590, 0.0
      %592 = vadd.xlane.f32.xlu0 %v591
      %v593 = vpop.xlane.xlu0 %592
      %v594 = vrcp.pop %v593
      %v595 = vmul.f32 %v590, %v594
      %v596 = vpack.c.bf16 %v595, %v595
      %v598 = vsel %vm452, %v596, 0
      %vm600 = vcmask 1042432
      %vm601 = vcmask 1043456
      %v602 = vsel %vm600, 4294967295, 65535
      %v603 = vsel %vm601, %v602, 0
      %v605 = vand.u32 %v408, %v603
      %607 = vmatpush.bf16.msra.mxu0 0
      %608 = vmatpush.bf16.msra.mxu0 0
      %609 = vmatpush.bf16.msra.mxu0 0
      %610 = vmatpush.bf16.msra.mxu0 0
      %611 = vmatpush.bf16.msra.mxu0 0
      %612 = vmatpush.bf16.msra.mxu0 0
      %613 = vmatpush.bf16.msra.mxu0 0
      %614 = vmatpush.bf16.msra.mxu0 %v605
      %615 = vmatmul.bf16.gmra.mxu0 %v598
      %v616 = vpop.f32.mrf.mxu0
      %v617 = vadd.f32 0.0, %v616
      %v618 = vpop.f32.mrf.mxu0
      %619 = vdwg.mxu0
      %v620 = vpack.c.bf16 %v617, %v617
      %vm621 = vcmask 60416
      %vm622 = vsmask.f32 3328
      %vm623 = vmand %vm621, %vm622
      %v624 = vld [vmem:[%s403] sm:$0xf]
      %v625 = vsel %vm623, %v620, %v624
      %626 = vst [vmem:[%s403] sm:$0xf] %v625
      %p627 = scmp.lt.s32.totalorder %s21, 1
      %s628 = scalar_select %p627, %s21, 1
      %p629 = scmp.lt.s32.totalorder %s22, 3
      %s630 = scalar_select %p629, %s22, 3
      %s631 = smul.addr %s628, 4
      %s632 = sadd.s32 %s630, %s631
      %s633 = smul.addr %s632, 4
      %s634 = scalar_lea.vmem %s6, %s633
      // Predicated region
      $region45: #{fast_conformer_forward.26} parent=43 // pred_check
        %p635 = pneg %p215
      $region46: #{fast_conformer_forward.26} parent=43 // pred_check_branch
        %637 = sbr.rel (%p635) target = $region48
      $region47: #{fast_conformer_forward.26} parent=43 // pred_region
        _
      $region48: #{fast_conformer_forward.26} parent=43 // pred_fallthru
        _
    $region44: #{fast_conformer_forward.26} parent=5 // pred_fallthru
      _
    %p638 = scmp.le.s32.totalorder 2, %s12
    // Predicated region
    $region49: #{fast_conformer_forward.26} parent=5 // pred_check
      %p639 = pneg %p638
    $region50: #{fast_conformer_forward.26} parent=5 // pred_check_branch
      %641 = sbr.rel (%p639) target = $region52
    $region51: #{fast_conformer_forward.26} parent=5 // pred_region
      %s642 = ssub.s32 %s12, 2
      // Predicated region
      $region53: #{fast_conformer_forward.26} parent=51 // pred_check
        %p643 = pneg %p221
      $region54: #{fast_conformer_forward.26} parent=51 // pred_check_branch
        %645 = sbr.rel (%p643) target = $region56
      $region55: #{fast_conformer_forward.26} parent=51 // pred_region
        %p646 = scmp.lt.s32.totalorder %s23, 1
        %s647 = scalar_select %p646, %s23, 1
        %p648 = scmp.lt.s32.totalorder %s24, 3
        %s649 = scalar_select %p648, %s24, 3
        %s650 = smul.addr %s647, 4
        %s651 = sadd.s32 %s649, %s650
        %s652 = smul.addr %s651, 4
        %s653 = scalar_lea.vmem %s6, %s652
      $region56: #{fast_conformer_forward.26} parent=51 // pred_fallthru
        _
    $region52: #{fast_conformer_forward.26} parent=5 // pred_fallthru
      _
  $region6: #{fast_conformer_forward.26} parent=0 // loop_footer
    %s16 = sadd.s32 1, %s12
  $region7: #{fast_conformer_forward.26} parent=0 // loop_footer_branch
    %11 = sbr.rel target = $region3
  $region8: #{fast_conformer_forward.26} parent=0 // loop_exit
    _

// kernel: fast_conformer_forward.28
$region0: #{fast_conformer_forward.28}
  #allocation0 [shape = 'u32[]', space=smem, size = 0x4, offset = 0x4, fixed_abs, tag = 'smem constant byte address 0x4 - core index']
  #allocation1 [shape = 'u32[72,128]{1,0:T(1,128)}', space=vmem, size = 0x9000, scoped, tag = 'internal scratch']
  #allocation2 [shape = 'f32[15,32]{1,0:T(8,128)}', space=vmem, size = 0x2000, scoped, tag = 'scratch operand']
  %s0 = inlined_call_operand.vmem [shape: bf16[2,7,32], index: 0, kind: input, shape index: {}]
  %s1 = inlined_call_operand.vmem [shape: f32[1,32], index: 1, kind: input, shape index: {}]
  %s2 = inlined_call_operand.vmem [shape: f32[1,32], index: 2, kind: input, shape index: {}]
  %s3 = inlined_call_operand.vmem [shape: bf16[32,32], index: 3, kind: input, shape index: {}]
  %s4 = inlined_call_operand.vmem [shape: f32[1,32], index: 4, kind: input, shape index: {}]
  %s5 = inlined_call_operand.vmem [shape: bf16[32,32], index: 5, kind: input, shape index: {}]
  %s6 = inlined_call_operand.vmem [shape: f32[1,32], index: 6, kind: input, shape index: {}]
  %s7 = inlined_call_operand.vmem [shape: f32[9,32], index: 7, kind: input, shape index: {}]
  %s8 = inlined_call_operand.vmem [shape: f32[1,32], index: 8, kind: input, shape index: {}]
  %s9 = inlined_call_operand.vmem [shape: bf16[32,32], index: 9, kind: input, shape index: {}]
  %s10 = inlined_call_operand.vmem [shape: f32[1,32], index: 10, kind: input, shape index: {}]
  %s11 = inlined_call_operand.vmem [shape: bf16[2,7,32], index: 11, kind: output, shape index: {}]
  %s12 = sld [smem:[#allocation0]]
  $region77: #{fast_conformer_forward.28} parent=0
    _
  %s14 = ssub.s32 1, %s12
  %s15 = scalar_select 0, %s14, %s12
  loop: start=0, step=1, limit=4
  $region2: #{fast_conformer_forward.28} parent=0 // loop_pre_header
    _
  $region3: #{fast_conformer_forward.28} parent=0 // loop_header
    %s17 = sphi 0, %s21
    %p18 = scmp.ge.s32.totalorder %s17, 4
    %s27 = sphi 0, %s29
    %s30 = sphi 0, %s27
    %s31 = sphi 0, %s30
    %s47 = sphi 0, %s31
    %s51 = sphi 0, %s51
    %s53 = sphi 0, %s51
    %s54 = sphi 0, %s53
    %s68 = sphi 0, %s54
    %s72 = sphi 0, %s72
    %s74 = sphi 0, %s72
    %s75 = sphi 0, %s74
    %s89 = sphi 0, %s75
    %s93 = sphi 0, %s93
    %s95 = sphi 0, %s93
    %s96 = sphi 0, %s95
    %s110 = sphi 0, %s96
    %s114 = sphi 0, %s114
    %s116 = sphi 0, %s114
    %s117 = sphi 0, %s116
    %s131 = sphi 0, %s117
    %s135 = sphi 0, %s135
    %s137 = sphi 0, %s135
    %s138 = sphi 0, %s137
    %s152 = sphi 0, %s138
    %s156 = sphi 0, %s156
    %s158 = sphi 0, %s156
    %s159 = sphi 0, %s158
    %s173 = sphi 0, %s159
    %s177 = sphi 0, %s177
    %s179 = sphi 0, %s177
    %s180 = sphi 0, %s179
    %s194 = sphi 0, %s180
    %s198 = sphi 0, %s198
    %s200 = sphi 0, %s198
    %s201 = sphi 0, %s200
    %s215 = sphi 0, %s201
    %s219 = sphi 0, %s219
    %s221 = sphi 0, %s219
    %s222 = sphi 0, %s221
    %s236 = sphi 0, %s222
    %s240 = sphi 0, %s240
    %s242 = sphi 0, %s240
    %s243 = sphi 0, %s242
    %s257 = sphi 0, %s243
    %s263 = sphi 0, %s265
    %s266 = sphi 0, %s263
    %s267 = sphi 0, %s266
    %s283 = sphi 0, %s267
  $region4: #{fast_conformer_forward.28} parent=0 // loop_header_branch
    %20 = sbr.rel (%p18) target = $region8
  $region5: #{fast_conformer_forward.28} parent=0 // loop_body
    %s22 = ssub.s32 %s17, 1
    %s23 = ssub.s32 %s17, 2
    %s24 = sadd.s32 %s17, 1
    %s25 = ssub.s32 %s17, %s24
    %p26 = scmp.eq.s32.totalorder %s25, 0
    %s28 = sadd.s32 %s27, 1
    %s29 = scalar_select %p26, %s27, %s28
    %p32 = pneg %p26
    %p33 = scmp.eq.s32.totalorder %s17, 1
    %p34 = por %p32, %p33
    %p35 = scmp.ne.s32.totalorder %s27, %s30
    %p36 = scmp.eq.s32.totalorder %s17, 0
    %p37 = por %p35, %p36
    %p38 = scmp.ne.s32.totalorder %s27, %s30
    %p39 = scmp.eq.s32.totalorder %s22, 1
    %p40 = por %p38, %p39
    %p41 = scmp.ne.s32.totalorder %s30, %s31
    %p42 = scmp.eq.s32.totalorder %s22, 0
    %p43 = por %p41, %p42
    %p44 = scmp.ne.s32.totalorder %s30, %s31
    %p45 = scmp.eq.s32.totalorder %s23, 1
    %p46 = por %p44, %p45
    %p48 = scmp.ne.s32.totalorder %s31, %s47
    %p49 = scmp.eq.s32.totalorder %s23, 0
    %p50 = por %p48, %p49
    %s52 = sadd.s32 %s51, 1
    %p55 = scmp.eq.s32.totalorder %s17, 1
    %p56 = scmp.ne.s32.totalorder %s51, %s53
    %p57 = scmp.eq.s32.totalorder %s17, 0
    %p58 = por %p56, %p57
    %p59 = scmp.ne.s32.totalorder %s51, %s53
    %p60 = scmp.eq.s32.totalorder %s22, 1
    %p61 = por %p59, %p60
    %p62 = scmp.ne.s32.totalorder %s53, %s54
    %p63 = scmp.eq.s32.totalorder %s22, 0
    %p64 = por %p62, %p63
    %p65 = scmp.ne.s32.totalorder %s53, %s54
    %p66 = scmp.eq.s32.totalorder %s23, 1
    %p67 = por %p65, %p66
    %p69 = scmp.ne.s32.totalorder %s54, %s68
    %p70 = scmp.eq.s32.totalorder %s23, 0
    %p71 = por %p69, %p70
    %s73 = sadd.s32 %s72, 1
    %p76 = scmp.eq.s32.totalorder %s17, 1
    %p77 = scmp.ne.s32.totalorder %s72, %s74
    %p78 = scmp.eq.s32.totalorder %s17, 0
    %p79 = por %p77, %p78
    %p80 = scmp.ne.s32.totalorder %s72, %s74
    %p81 = scmp.eq.s32.totalorder %s22, 1
    %p82 = por %p80, %p81
    %p83 = scmp.ne.s32.totalorder %s74, %s75
    %p84 = scmp.eq.s32.totalorder %s22, 0
    %p85 = por %p83, %p84
    %p86 = scmp.ne.s32.totalorder %s74, %s75
    %p87 = scmp.eq.s32.totalorder %s23, 1
    %p88 = por %p86, %p87
    %p90 = scmp.ne.s32.totalorder %s75, %s89
    %p91 = scmp.eq.s32.totalorder %s23, 0
    %p92 = por %p90, %p91
    %s94 = sadd.s32 %s93, 1
    %p97 = scmp.eq.s32.totalorder %s17, 1
    %p98 = scmp.ne.s32.totalorder %s93, %s95
    %p99 = scmp.eq.s32.totalorder %s17, 0
    %p100 = por %p98, %p99
    %p101 = scmp.ne.s32.totalorder %s93, %s95
    %p102 = scmp.eq.s32.totalorder %s22, 1
    %p103 = por %p101, %p102
    %p104 = scmp.ne.s32.totalorder %s95, %s96
    %p105 = scmp.eq.s32.totalorder %s22, 0
    %p106 = por %p104, %p105
    %p107 = scmp.ne.s32.totalorder %s95, %s96
    %p108 = scmp.eq.s32.totalorder %s23, 1
    %p109 = por %p107, %p108
    %p111 = scmp.ne.s32.totalorder %s96, %s110
    %p112 = scmp.eq.s32.totalorder %s23, 0
    %p113 = por %p111, %p112
    %s115 = sadd.s32 %s114, 1
    %p118 = scmp.eq.s32.totalorder %s17, 1
    %p119 = scmp.ne.s32.totalorder %s114, %s116
    %p120 = scmp.eq.s32.totalorder %s17, 0
    %p121 = por %p119, %p120
    %p122 = scmp.ne.s32.totalorder %s114, %s116
    %p123 = scmp.eq.s32.totalorder %s22, 1
    %p124 = por %p122, %p123
    %p125 = scmp.ne.s32.totalorder %s116, %s117
    %p126 = scmp.eq.s32.totalorder %s22, 0
    %p127 = por %p125, %p126
    %p128 = scmp.ne.s32.totalorder %s116, %s117
    %p129 = scmp.eq.s32.totalorder %s23, 1
    %p130 = por %p128, %p129
    %p132 = scmp.ne.s32.totalorder %s117, %s131
    %p133 = scmp.eq.s32.totalorder %s23, 0
    %p134 = por %p132, %p133
    %s136 = sadd.s32 %s135, 1
    %p139 = scmp.eq.s32.totalorder %s17, 1
    %p140 = scmp.ne.s32.totalorder %s135, %s137
    %p141 = scmp.eq.s32.totalorder %s17, 0
    %p142 = por %p140, %p141
    %p143 = scmp.ne.s32.totalorder %s135, %s137
    %p144 = scmp.eq.s32.totalorder %s22, 1
    %p145 = por %p143, %p144
    %p146 = scmp.ne.s32.totalorder %s137, %s138
    %p147 = scmp.eq.s32.totalorder %s22, 0
    %p148 = por %p146, %p147
    %p149 = scmp.ne.s32.totalorder %s137, %s138
    %p150 = scmp.eq.s32.totalorder %s23, 1
    %p151 = por %p149, %p150
    %p153 = scmp.ne.s32.totalorder %s138, %s152
    %p154 = scmp.eq.s32.totalorder %s23, 0
    %p155 = por %p153, %p154
    %s157 = sadd.s32 %s156, 1
    %p160 = scmp.eq.s32.totalorder %s17, 1
    %p161 = scmp.ne.s32.totalorder %s156, %s158
    %p162 = scmp.eq.s32.totalorder %s17, 0
    %p163 = por %p161, %p162
    %p164 = scmp.ne.s32.totalorder %s156, %s158
    %p165 = scmp.eq.s32.totalorder %s22, 1
    %p166 = por %p164, %p165
    %p167 = scmp.ne.s32.totalorder %s158, %s159
    %p168 = scmp.eq.s32.totalorder %s22, 0
    %p169 = por %p167, %p168
    %p170 = scmp.ne.s32.totalorder %s158, %s159
    %p171 = scmp.eq.s32.totalorder %s23, 1
    %p172 = por %p170, %p171
    %p174 = scmp.ne.s32.totalorder %s159, %s173
    %p175 = scmp.eq.s32.totalorder %s23, 0
    %p176 = por %p174, %p175
    %s178 = sadd.s32 %s177, 1
    %p181 = scmp.eq.s32.totalorder %s17, 1
    %p182 = scmp.ne.s32.totalorder %s177, %s179
    %p183 = scmp.eq.s32.totalorder %s17, 0
    %p184 = por %p182, %p183
    %p185 = scmp.ne.s32.totalorder %s177, %s179
    %p186 = scmp.eq.s32.totalorder %s22, 1
    %p187 = por %p185, %p186
    %p188 = scmp.ne.s32.totalorder %s179, %s180
    %p189 = scmp.eq.s32.totalorder %s22, 0
    %p190 = por %p188, %p189
    %p191 = scmp.ne.s32.totalorder %s179, %s180
    %p192 = scmp.eq.s32.totalorder %s23, 1
    %p193 = por %p191, %p192
    %p195 = scmp.ne.s32.totalorder %s180, %s194
    %p196 = scmp.eq.s32.totalorder %s23, 0
    %p197 = por %p195, %p196
    %s199 = sadd.s32 %s198, 1
    %p202 = scmp.eq.s32.totalorder %s17, 1
    %p203 = scmp.ne.s32.totalorder %s198, %s200
    %p204 = scmp.eq.s32.totalorder %s17, 0
    %p205 = por %p203, %p204
    %p206 = scmp.ne.s32.totalorder %s198, %s200
    %p207 = scmp.eq.s32.totalorder %s22, 1
    %p208 = por %p206, %p207
    %p209 = scmp.ne.s32.totalorder %s200, %s201
    %p210 = scmp.eq.s32.totalorder %s22, 0
    %p211 = por %p209, %p210
    %p212 = scmp.ne.s32.totalorder %s200, %s201
    %p213 = scmp.eq.s32.totalorder %s23, 1
    %p214 = por %p212, %p213
    %p216 = scmp.ne.s32.totalorder %s201, %s215
    %p217 = scmp.eq.s32.totalorder %s23, 0
    %p218 = por %p216, %p217
    %s220 = sadd.s32 %s219, 1
    %p223 = scmp.eq.s32.totalorder %s17, 1
    %p224 = scmp.ne.s32.totalorder %s219, %s221
    %p225 = scmp.eq.s32.totalorder %s17, 0
    %p226 = por %p224, %p225
    %p227 = scmp.ne.s32.totalorder %s219, %s221
    %p228 = scmp.eq.s32.totalorder %s22, 1
    %p229 = por %p227, %p228
    %p230 = scmp.ne.s32.totalorder %s221, %s222
    %p231 = scmp.eq.s32.totalorder %s22, 0
    %p232 = por %p230, %p231
    %p233 = scmp.ne.s32.totalorder %s221, %s222
    %p234 = scmp.eq.s32.totalorder %s23, 1
    %p235 = por %p233, %p234
    %p237 = scmp.ne.s32.totalorder %s222, %s236
    %p238 = scmp.eq.s32.totalorder %s23, 0
    %p239 = por %p237, %p238
    %s241 = sadd.s32 %s240, 1
    %p244 = scmp.eq.s32.totalorder %s17, 1
    %p245 = scmp.ne.s32.totalorder %s240, %s242
    %p246 = scmp.eq.s32.totalorder %s17, 0
    %p247 = por %p245, %p246
    %p248 = scmp.ne.s32.totalorder %s240, %s242
    %p249 = scmp.eq.s32.totalorder %s22, 1
    %p250 = por %p248, %p249
    %p251 = scmp.ne.s32.totalorder %s242, %s243
    %p252 = scmp.eq.s32.totalorder %s22, 0
    %p253 = por %p251, %p252
    %p254 = scmp.ne.s32.totalorder %s242, %s243
    %p255 = scmp.eq.s32.totalorder %s23, 1
    %p256 = por %p254, %p255
    %p258 = scmp.ne.s32.totalorder %s243, %s257
    %p259 = scmp.eq.s32.totalorder %s23, 0
    %p260 = por %p258, %p259
    %s261 = ssub.s32 %s17, %s24
    %p262 = scmp.eq.s32.totalorder %s261, 0
    %s264 = sadd.s32 %s263, 1
    %s265 = scalar_select %p262, %s263, %s264
    %p268 = pneg %p262
    %p269 = scmp.eq.s32.totalorder %s17, 1
    %p270 = por %p268, %p269
    %p271 = scmp.ne.s32.totalorder %s263, %s266
    %p272 = scmp.eq.s32.totalorder %s17, 0
    %p273 = por %p271, %p272
    %p274 = scmp.ne.s32.totalorder %s263, %s266
    %p275 = scmp.eq.s32.totalorder %s22, 1
    %p276 = por %p274, %p275
    %p277 = scmp.ne.s32.totalorder %s266, %s267
    %p278 = scmp.eq.s32.totalorder %s22, 0
    %p279 = por %p277, %p278
    %p280 = scmp.ne.s32.totalorder %s266, %s267
    %p281 = scmp.eq.s32.totalorder %s23, 1
    %p282 = por %p280, %p281
    %p284 = scmp.ne.s32.totalorder %s267, %s283
    %p285 = scmp.eq.s32.totalorder %s23, 0
    %p286 = por %p284, %p285
    %p287 = scmp.le.s32.totalorder 1, %s17
    %p288 = scmp.lt.s32.totalorder %s17, 3
    %p289 = pnand %p287, %p288
    %p290 = pneg %p289
    // Predicated region
    $region9: #{fast_conformer_forward.28} parent=5 // pred_check
      _
    $region10: #{fast_conformer_forward.28} parent=5 // pred_check_branch
      %292 = sbr.rel (%p289) target = $region12
    $region11: #{fast_conformer_forward.28} parent=5 // pred_region
      %s293 = ssub.s32 %s17, 1
      // Predicated region
      $region13: #{fast_conformer_forward.28} parent=11 // pred_check
        %p294 = pneg %p64
      $region14: #{fast_conformer_forward.28} parent=11 // pred_check_branch
        %296 = sbr.rel (%p294) target = $region16
      $region15: #{fast_conformer_forward.28} parent=11 // pred_region
        _
      $region16: #{fast_conformer_forward.28} parent=11 // pred_fallthru
        _
      // Predicated region
      $region17: #{fast_conformer_forward.28} parent=11 // pred_check
        %p297 = pneg %p85
      $region18: #{fast_conformer_forward.28} parent=11 // pred_check_branch
        %299 = sbr.rel (%p297) target = $region20
      $region19: #{fast_conformer_forward.28} parent=11 // pred_region
        _
      $region20: #{fast_conformer_forward.28} parent=11 // pred_fallthru
        _
      // Predicated region
      $region21: #{fast_conformer_forward.28} parent=11 // pred_check
        %p300 = pneg %p106
      $region22: #{fast_conformer_forward.28} parent=11 // pred_check_branch
        %302 = sbr.rel (%p300) target = $region24
      $region23: #{fast_conformer_forward.28} parent=11 // pred_region
        _
      $region24: #{fast_conformer_forward.28} parent=11 // pred_fallthru
        _
      // Predicated region
      $region25: #{fast_conformer_forward.28} parent=11 // pred_check
        %p303 = pneg %p127
      $region26: #{fast_conformer_forward.28} parent=11 // pred_check_branch
        %305 = sbr.rel (%p303) target = $region28
      $region27: #{fast_conformer_forward.28} parent=11 // pred_region
        _
      $region28: #{fast_conformer_forward.28} parent=11 // pred_fallthru
        _
      // Predicated region
      $region29: #{fast_conformer_forward.28} parent=11 // pred_check
        %p306 = pneg %p148
      $region30: #{fast_conformer_forward.28} parent=11 // pred_check_branch
        %308 = sbr.rel (%p306) target = $region32
      $region31: #{fast_conformer_forward.28} parent=11 // pred_region
        _
      $region32: #{fast_conformer_forward.28} parent=11 // pred_fallthru
        _
      // Predicated region
      $region33: #{fast_conformer_forward.28} parent=11 // pred_check
        %p309 = pneg %p169
      $region34: #{fast_conformer_forward.28} parent=11 // pred_check_branch
        %311 = sbr.rel (%p309) target = $region36
      $region35: #{fast_conformer_forward.28} parent=11 // pred_region
        _
      $region36: #{fast_conformer_forward.28} parent=11 // pred_fallthru
        _
      // Predicated region
      $region37: #{fast_conformer_forward.28} parent=11 // pred_check
        %p312 = pneg %p190
      $region38: #{fast_conformer_forward.28} parent=11 // pred_check_branch
        %314 = sbr.rel (%p312) target = $region40
      $region39: #{fast_conformer_forward.28} parent=11 // pred_region
        _
      $region40: #{fast_conformer_forward.28} parent=11 // pred_fallthru
        _
      // Predicated region
      $region41: #{fast_conformer_forward.28} parent=11 // pred_check
        %p315 = pneg %p211
      $region42: #{fast_conformer_forward.28} parent=11 // pred_check_branch
        %317 = sbr.rel (%p315) target = $region44
      $region43: #{fast_conformer_forward.28} parent=11 // pred_region
        _
      $region44: #{fast_conformer_forward.28} parent=11 // pred_fallthru
        _
      // Predicated region
      $region45: #{fast_conformer_forward.28} parent=11 // pred_check
        %p318 = pneg %p232
      $region46: #{fast_conformer_forward.28} parent=11 // pred_check_branch
        %320 = sbr.rel (%p318) target = $region48
      $region47: #{fast_conformer_forward.28} parent=11 // pred_region
        _
      $region48: #{fast_conformer_forward.28} parent=11 // pred_fallthru
        _
      // Predicated region
      $region49: #{fast_conformer_forward.28} parent=11 // pred_check
        %p321 = pneg %p253
      $region50: #{fast_conformer_forward.28} parent=11 // pred_check_branch
        %323 = sbr.rel (%p321) target = $region52
      $region51: #{fast_conformer_forward.28} parent=11 // pred_region
        _
      $region52: #{fast_conformer_forward.28} parent=11 // pred_fallthru
        _
    $region12: #{fast_conformer_forward.28} parent=5 // pred_fallthru
      _
    %p324 = scmp.lt.s32.totalorder %s17, 2
    // Predicated region
    $region53: #{fast_conformer_forward.28} parent=5 // pred_check
      %p325 = pneg %p324
    $region54: #{fast_conformer_forward.28} parent=5 // pred_check_branch
      %327 = sbr.rel (%p325) target = $region56
    $region55: #{fast_conformer_forward.28} parent=5 // pred_region
      // Predicated region
      $region57: #{fast_conformer_forward.28} parent=55 // pred_check
        %p328 = pneg %p37
      $region58: #{fast_conformer_forward.28} parent=55 // pred_check_branch
        %330 = sbr.rel (%p328) target = $region60
      $region59: #{fast_conformer_forward.28} parent=55 // pred_region
        %p331 = scmp.lt.s32.totalorder %s17, 1
        %s332 = scalar_select %p331, %s17, 1
        %s333 = smul.addr %s332, 4
        %s334 = scalar_lea.vmem %s0, %s333
      $region60: #{fast_conformer_forward.28} parent=55 // pred_fallthru
        _
    $region56: #{fast_conformer_forward.28} parent=5 // pred_fallthru
      _
    %p335 = scmp.le.s32.totalorder 1, %s17
    %p336 = scmp.lt.s32.totalorder %s17, 3
    %p337 = pnand %p335, %p336
    %p338 = pneg %p337
    // Predicated region
    $region61: #{fast_conformer_forward.28} parent=5 // pred_check
      _
    $region62: #{fast_conformer_forward.28} parent=5 // pred_check_branch
      %340 = sbr.rel (%p337) target = $region64
    $region63: #{fast_conformer_forward.28} parent=5 // pred_region
      %s341 = ssub.s32 %s17, 1
      %p342 = scmp.lt.s32.totalorder %s22, 1
      %s343 = scalar_select %p342, %s22, 1
      %s344 = smul.addr %s343, 4
      %s345 = scalar_lea.vmem %s0, %s344
      %p346 = pneg %p43
      %p347 = pneg %p40
      %p348 = pneg %p64
      %p349 = pneg %p61
      %p350 = pneg %p85
      %p351 = pneg %p82
      %p352 = pneg %p106
      %p353 = pneg %p103
      %p354 = pneg %p127
      %p355 = pneg %p124
      %p356 = pneg %p148
      %p357 = pneg %p145
      %p358 = pneg %p169
      %p359 = pneg %p166
      %p360 = pneg %p190
      %p361 = pneg %p187
      %p362 = pneg %p211
      %p363 = pneg %p208
      %p364 = pneg %p232
      %p365 = pneg %p229
      %p366 = pneg %p253
      %p367 = pneg %p250
      %p368 = pneg %p279
      %p369 = pneg %p276
      %p370 = scmp.lt.s32.totalorder %s22, 1
      %s371 = scalar_select %p370, %s22, 1
      %s372 = smul.addr %s371, 4
      %s373 = scalar_lea.vmem %s11, %s372
      %p374 = scmp.lt.s32.totalorder %s22, 1
      %s375 = scalar_select %p374, %s22, 1
      %s376 = smul.addr %s375, 4
      %s377 = scalar_lea.vmem %s0, %s376
      %p378 = scmp.lt.s32.totalorder %s22, 1
      %s379 = scalar_select %p378, %s22, 1
      %s380 = smul.addr %s379, 4
      %s381 = scalar_lea.vmem %s11, %s380
      %v383 = vld [vmem:[%s377] sm:$0xf]
      %v384 = vunpack.c.l.bf16 %v383
      %v385 = vld [vmem:[%s1] sm:$0x1]
      %v386 = vld [vmem:[%s2] sm:$0x1]
      %vm387 = vcmask 260096
      %v388 = vsel %vm387, %v384, 0.0
      %389 = vadd.xlane.f32.xlu0 %v388
      %v390 = vpop.xlane.xlu0 %389
      %v391 = vrcp.pop 32.0
      %v392 = vmul.f32 32.0, %v391
      %v393 = vsub.f32 1.0, %v392
      %v394 = vmul.f32 %v391, %v393
      %v395 = vadd.f32 %v391, %v394
      %vm396 = vweird.f32 %v391
      %v397 = vsel %vm396, %v391, %v395
      %v398 = vmul.f32 %v390, %v397
      %v399 = vsub.f32 %v384, %v398
      %v400 = vmul.f32 %v399, %v399
      %v401 = vsel %vm387, %v400, 0.0
      %402 = vadd.xlane.f32.xlu0 %v401
      %v403 = vpop.xlane.xlu0 %402
      %v404 = vmul.f32 %v403, %v397
      %v405 = vadd.f32 %v404, 1e-05
      %v406 = vrsqrt.pop %v405
      %v407 = vmul.f32 %v406, %v405
      %v408 = vmul.f32 %v407, %v406
      %v409 = vmul.f32 0.5, %v408
      %v410 = vsub.f32 1.5, %v409
      %v411 = vmul.f32 %v406, %v410
      %vm412 = vweird.f32 %v405
      %vm413 = vweird.f32 %v406
      %vm414 = vmor %vm412, %vm413
      %v415 = vsel %vm414, %v406, %v411
      %v416 = vmul.f32 %v399, %v415
      %v418 = vperm.slane %v385, 0
      %v420 = vmul.f32 %v416, %v418
      %v422 = vperm.slane %v386, 0
      %v424 = vadd.f32 %v420, %v422
      %v425 = vpack.c.bf16 %v424, %v424
      %v426 = vld [vmem:[%s3] sm:$0xf]
      %v427 = vld [vmem:[%s3 + $0x4] sm:$0xf]
      %v428 = vld [vmem:[%s3 + $0x8] sm:$0xf]
      %v429 = vld [vmem:[%s3 + $0xc] sm:$0xf]
      %v430 = vld [vmem:[%s4] sm:$0x1]
      %v432 = vperm.slane %v430, 0
      %v438 = vunpack.c.l.b16 %v426
      %v439 = vunpack.c.l.b16 %v427
      %v440 = vunpack.c.l.b16 %v428
      %v441 = vunpack.c.l.b16 %v429
      %v442 = vpack.c.b16 %v439, %v438
      %v443 = vpack.c.b16 %v441, %v440
      %vm446 = vcmask 261120
      %v448 = vsel %vm446, %v425, 0
      %450 = vmatpush.bf16.msra.mxu0 0
      %451 = vmatpush.bf16.msra.mxu0 0
      %452 = vmatpush.bf16.msra.mxu0 0
      %453 = vmatpush.bf16.msra.mxu0 0
      %454 = vmatpush.bf16.msra.mxu0 0
      %455 = vmatpush.bf16.msra.mxu0 0
      %456 = vmatpush.bf16.msra.mxu0 %v443
      %457 = vmatpush.bf16.msra.mxu0 %v442
      %458 = vmatmul.bf16.gmra.mxu0 %v448
      %v459 = vpop.f32.mrf.mxu0
      %v460 = vadd.f32 %v432, %v459
      %v461 = vpop.f32.mrf.mxu0
      %462 = vdwg.mxu0
      %v463 = vld [vmem:[%s5] sm:$0xf]
      %v464 = vld [vmem:[%s5 + $0x4] sm:$0xf]
      %v465 = vld [vmem:[%s5 + $0x8] sm:$0xf]
      %v466 = vld [vmem:[%s5 + $0xc] sm:$0xf]
      %v467 = vld [vmem:[%s6] sm:$0x1]
      %v469 = vperm.slane %v467, 0
      %v475 = vunpack.c.l.b16 %v463
      %v476 = vunpack.c.l.b16 %v464
      %v477 = vunpack.c.l.b16 %v465
      %v478 = vunpack.c.l.b16 %v466
      %v479 = vpack.c.b16 %v476, %v475
      %v480 = vpack.c.b16 %v478, %v477
      %483 = vmatpush.bf16.msra.mxu0 0
      %484 = vmatpush.bf16.msra.mxu0 0
      %485 = vmatpush.bf16.msra.mxu0 0
      %486 = vmatpush.bf16.msra.mxu0 0
      %487 = vmatpush.bf16.msra.mxu0 0
      %488 = vmatpush.bf16.msra.mxu0 0
      %489 = vmatpush.bf16.msra.mxu0 %v480
      %490 = vmatpush.bf16.msra.mxu0 %v479
      %491 = vmatmul.bf16.gmra.mxu0 %v448
      %v492 = vpop.f32.mrf.mxu0
      %v493 = vadd.f32 %v469, %v492
      %v494 = vpop.f32.mrf.mxu0
      %495 = vdwg.mxu0
      %v496 = vsub.f32 0.0, %v493
      %v497 = vmul.f32 %v496, 1.442695
      %v498 = vpow.pop %v497
      %v499 = vadd.f32 %v498, 1.0
      %v500 = vrcp.pop %v499
      %v501 = vmul.f32 %v499, %v500
      %v502 = vsub.f32 1.0, %v501
      %v503 = vmul.f32 %v500, %v502
      %v504 = vadd.f32 %v500, %v503
      %vm505 = vweird.f32 %v499
      %vm506 = vweird.f32 %v500
      %vm507 = vmor %vm505, %vm506
      %v508 = vsel %vm507, %v500, %v504
      %v509 = vand.u32 2147483647, %v499
      %vm510 = vcmp.eq.f32.partialorder %v509, 8.507059e+37
      %v511 = vand.u32 %v499, 2147483648
      %v512 = vor.u32 1.1754944e-38, %v511
      %v513 = vsel %vm510, %v512, %v508
      %v514 = vmul.f32 1.0, %v513
      %v515 = vmul.f32 %v460, %v514
      %516 = vst.msk [vmem:[#allocation2] sm:$0xff] %vm446, 0.0
      %517 = vst.msk [vmem:[#allocation2 + $0x8] sm:$0x7f] %vm387, 0.0
      %518 = vst.msk [vmem:[#allocation2 + $0x4] sm:$0x7f] %vm387, %v515
      %v519 = vld [vmem:[#allocation2] sm:$0xff]
      %v520 = vld [vmem:[#allocation2 + $0x8] sm:$0x7f]
      %v521 = vld [vmem:[%s7] sm:$0xff]
      %v522 = vld [vmem:[%s7 + $0x8] sm:$0x1]
      %v523 = vperm.slane %v521, 0
      %v524 = vmul.f32 %v519, %v523
      %v525 = vadd.f32 %v524, 0.0
      %v526 = vperm.slane %v521, 1
      %v527 = vmul.f32 %v519, %v526
      %v529 = vrot.slane %v527, 1
      %v531 = vadd.f32 %v525, %v529
      %v532 = vperm.slane %v521, 2
      %v533 = vmul.f32 %v519, %v532
      %v534 = vmul.f32 %v520, %v532
      %vm537 = vcmask 1045504
      %v538 = vrot.slane %v533, 2
      %v539 = vrot.slane %v534, 2
      %v540 = vsel %vm537, %v538, %v539
      %v542 = vadd.f32 %v531, %v540
      %v543 = vperm.slane %v521, 3
      %v544 = vmul.f32 %v519, %v543
      %v545 = vmul.f32 %v520, %v543
      %vm548 = vcmask 1044480
      %v549 = vrot.slane %v544, 3
      %v550 = vrot.slane %v545, 3
      %v551 = vsel %vm548, %v549, %v550
      %v553 = vadd.f32 %v542, %v551
      %v554 = vperm.slane %v521, 4
      %v555 = vmul.f32 %v519, %v554
      %v556 = vmul.f32 %v520, %v554
      %vm559 = vcmask 1043456
      %v560 = vrot.slane %v555, 4
      %v561 = vrot.slane %v556, 4
      %v562 = vsel %vm559, %v560, %v561
      %v564 = vadd.f32 %v553, %v562
      %v565 = vperm.slane %v521, 5
      %v566 = vmul.f32 %v519, %v565
      %v567 = vmul.f32 %v520, %v565
      %vm570 = vcmask 1042432
      %v571 = vrot.slane %v566, 5
      %v572 = vrot.slane %v567, 5
      %v573 = vsel %vm570, %v571, %v572
      %v575 = vadd.f32 %v564, %v573
      %v576 = vperm.slane %v521, 6
      %v577 = vmul.f32 %v519, %v576
      %v578 = vmul.f32 %v520, %v576
      %vm581 = vcmask 1041408
      %v582 = vrot.slane %v577, 6
      %v583 = vrot.slane %v578, 6
      %v584 = vsel %vm581, %v582, %v583
      %v586 = vadd.f32 %v575, %v584
      %v587 = vperm.slane %v521, 7
      %v588 = vmul.f32 %v519, %v587
      %v589 = vmul.f32 %v520, %v587
      %vm592 = vcmask 1040384
      %v593 = vrot.slane %v588, 7
      %v594 = vrot.slane %v589, 7
      %v595 = vsel %vm592, %v593, %v594
      %v597 = vadd.f32 %v586, %v595
      %v598 = vperm.slane %v522, 0
      %v599 = vmul.f32 %v520, %v598
      %v600 = vadd.f32 %v597, %v599
      %v601 = vld [vmem:[%s8] sm:$0x1]
      %v603 = vperm.slane %v601, 0
      %v605 = vadd.f32 %v600, %v603
      %v606 = vmul.f32 %v605, 0.999995
      %v607 = vsub.f32 0.0, %v606
      %v608 = vmul.f32 %v607, 1.442695
      %v609 = vpow.pop %v608
      %v610 = vadd.f32 %v609, 1.0
      %v611 = vrcp.pop %v610
      %v612 = vmul.f32 %v610, %v611
      %v613 = vsub.f32 1.0, %v612
      %v614 = vmul.f32 %v611, %v613
      %v615 = vadd.f32 %v611, %v614
      %vm616 = vweird.f32 %v610
      %vm617 = vweird.f32 %v611
      %vm618 = vmor %vm616, %vm617
      %v619 = vsel %vm618, %v611, %v615
      %v620 = vand.u32 2147483647, %v610
      %vm621 = vcmp.eq.f32.partialorder %v620, 8.507059e+37
      %v622 = vand.u32 %v610, 2147483648
      %v623 = vor.u32 1.1754944e-38, %v622
      %v624 = vsel %vm621, %v623, %v619
      %v625 = vmul.f32 1.0, %v624
      %v626 = vmul.f32 %v606, %v625
      %v627 = vpack.c.bf16 %v626, %v626
      %v628 = vld [vmem:[%s9] sm:$0xf]
      %v629 = vld [vmem:[%s9 + $0x4] sm:$0xf]
      %v630 = vld [vmem:[%s9 + $0x8] sm:$0xf]
      %v631 = vld [vmem:[%s9 + $0xc] sm:$0xf]
      %v632 = vld [vmem:[%s10] sm:$0x1]
      %v634 = vperm.slane %v632, 0
      %v640 = vunpack.c.l.b16 %v628
      %v641 = vunpack.c.l.b16 %v629
      %v642 = vunpack.c.l.b16 %v630
      %v643 = vunpack.c.l.b16 %v631
      %v644 = vpack.c.b16 %v641, %v640
      %v645 = vpack.c.b16 %v643, %v642
      %v649 = vsel %vm446, %v627, 0
      %651 = vmatpush.bf16.msra.mxu0 0
      %652 = vmatpush.bf16.msra.mxu0 0
      %653 = vmatpush.bf16.msra.mxu0 0
      %654 = vmatpush.bf16.msra.mxu0 0
      %655 = vmatpush.bf16.msra.mxu0 0
      %656 = vmatpush.bf16.msra.mxu0 0
      %657 = vmatpush.bf16.msra.mxu0 %v645
      %658 = vmatpush.bf16.msra.mxu0 %v644
      %659 = vmatmul.bf16.gmra.mxu0 %v649
      %v660 = vpop.f32.mrf.mxu0
      %v661 = vadd.f32 %v634, %v660
      %v662 = vpop.f32.mrf.mxu0
      %663 = vdwg.mxu0
      %v664 = vadd.f32 %v384, %v661
      %v665 = vpack.c.bf16 %v664, %v664
      %vm666 = vcmask 257024
      %vm667 = vsmask.f32 3328
      %vm668 = vmand %vm666, %vm667
      %v669 = vld [vmem:[%s381] sm:$0xf]
      %v670 = vsel %vm668, %v665, %v669
      %671 = vst [vmem:[%s381] sm:$0xf] %v670
      %p672 = scmp.lt.s32.totalorder %s22, 1
      %s673 = scalar_select %p672, %s22, 1
      %s674 = smul.addr %s673, 4
      %s675 = scalar_lea.vmem %s11, %s674
      // Predicated region
      $region65: #{fast_conformer_forward.28} parent=63 // pred_check
        %p676 = pneg %p276
      $region66: #{fast_conformer_forward.28} parent=63 // pred_check_branch
        %678 = sbr.rel (%p676) target = $region68
      $region67: #{fast_conformer_forward.28} parent=63 // pred_region
        _
      $region68: #{fast_conformer_forward.28} parent=63 // pred_fallthru
        _
    $region64: #{fast_conformer_forward.28} parent=5 // pred_fallthru
      _
    %p679 = scmp.le.s32.totalorder 2, %s17
    // Predicated region
    $region69: #{fast_conformer_forward.28} parent=5 // pred_check
      %p680 = pneg %p679
    $region70: #{fast_conformer_forward.28} parent=5 // pred_check_branch
      %682 = sbr.rel (%p680) target = $region72
    $region71: #{fast_conformer_forward.28} parent=5 // pred_region
      %s683 = ssub.s32 %s17, 2
      // Predicated region
      $region73: #{fast_conformer_forward.28} parent=71 // pred_check
        %p684 = pneg %p282
      $region74: #{fast_conformer_forward.28} parent=71 // pred_check_branch
        %686 = sbr.rel (%p684) target = $region76
      $region75: #{fast_conformer_forward.28} parent=71 // pred_region
        %p687 = scmp.lt.s32.totalorder %s23, 1
        %s688 = scalar_select %p687, %s23, 1
        %s689 = smul.addr %s688, 4
        %s690 = scalar_lea.vmem %s11, %s689
      $region76: #{fast_conformer_forward.28} parent=71 // pred_fallthru
        _
    $region72: #{fast_conformer_forward.28} parent=5 // pred_fallthru
      _
  $region6: #{fast_conformer_forward.28} parent=0 // loop_footer
    %s21 = sadd.s32 1, %s17
  $region7: #{fast_conformer_forward.28} parent=0 // loop_footer_branch
    %16 = sbr.rel target = $region3
  $region8: #{fast_conformer_forward.28} parent=0 // loop_exit
    _

// kernel: fast_conformer_forward.29
$region0: #{fast_conformer_forward.29}
  #allocation0 [shape = 'u32[]', space=smem, size = 0x4, offset = 0x4, fixed_abs, tag = 'smem constant byte address 0x4 - core index']
  #allocation1 [shape = 'u32[72,128]{1,0:T(1,128)}', space=vmem, size = 0x9000, scoped, tag = 'internal scratch']
  %s0 = inlined_call_operand.vmem [shape: bf16[14,32], index: 0, kind: input, shape index: {}]
  %s1 = inlined_call_operand.vmem [shape: f32[1,32], index: 1, kind: input, shape index: {}]
  %s2 = inlined_call_operand.vmem [shape: f32[1,32], index: 2, kind: input, shape index: {}]
  %s3 = inlined_call_operand.vmem [shape: bf16[32,128], index: 3, kind: input, shape index: {}]
  %s4 = inlined_call_operand.vmem [shape: f32[1,128], index: 4, kind: input, shape index: {}]
  %s5 = inlined_call_operand.vmem [shape: bf16[128,32], index: 5, kind: input, shape index: {}]
  %s6 = inlined_call_operand.vmem [shape: f32[1,32], index: 6, kind: input, shape index: {}]
  %s7 = inlined_call_operand.vmem [shape: f32[1,32], index: 7, kind: input, shape index: {}]
  %s8 = inlined_call_operand.vmem [shape: f32[1,32], index: 8, kind: input, shape index: {}]
  %s9 = inlined_call_operand.vmem [shape: bf16[14,32], index: 9, kind: output, shape index: {}]
  %s10 = sld [smem:[#allocation0]]
  $region46: #{fast_conformer_forward.29} parent=0
    _
  %s12 = ssub.s32 1, %s10
  %s13 = scalar_select 0, %s12, %s10
  // Predicated region
  $region2: #{fast_conformer_forward.29} parent=0 // pred_check
    _
  $region3: #{fast_conformer_forward.29} parent=0 // pred_check_branch
    %15 = sbr.rel (0) target = $region5
  $region4: #{fast_conformer_forward.29} parent=0 // pred_region
    _
  $region5: #{fast_conformer_forward.29} parent=0 // pred_fallthru
    _
  // Predicated region
  $region6: #{fast_conformer_forward.29} parent=0 // pred_check
    _
  $region7: #{fast_conformer_forward.29} parent=0 // pred_check_branch
    %17 = sbr.rel (0) target = $region9
  $region8: #{fast_conformer_forward.29} parent=0 // pred_region
    _
  $region9: #{fast_conformer_forward.29} parent=0 // pred_fallthru
    _
  // Predicated region
  $region10: #{fast_conformer_forward.29} parent=0 // pred_check
    _
  $region11: #{fast_conformer_forward.29} parent=0 // pred_check_branch
    %19 = sbr.rel (0) target = $region13
  $region12: #{fast_conformer_forward.29} parent=0 // pred_region
    _
  $region13: #{fast_conformer_forward.29} parent=0 // pred_fallthru
    _
  // Predicated region
  $region14: #{fast_conformer_forward.29} parent=0 // pred_check
    _
  $region15: #{fast_conformer_forward.29} parent=0 // pred_check_branch
    %21 = sbr.rel (0) target = $region17
  $region16: #{fast_conformer_forward.29} parent=0 // pred_region
    _
  $region17: #{fast_conformer_forward.29} parent=0 // pred_fallthru
    _
  // Predicated region
  $region18: #{fast_conformer_forward.29} parent=0 // pred_check
    _
  $region19: #{fast_conformer_forward.29} parent=0 // pred_check_branch
    %23 = sbr.rel (0) target = $region21
  $region20: #{fast_conformer_forward.29} parent=0 // pred_region
    _
  $region21: #{fast_conformer_forward.29} parent=0 // pred_fallthru
    _
  // Predicated region
  $region22: #{fast_conformer_forward.29} parent=0 // pred_check
    _
  $region23: #{fast_conformer_forward.29} parent=0 // pred_check_branch
    %25 = sbr.rel (0) target = $region25
  $region24: #{fast_conformer_forward.29} parent=0 // pred_region
    _
  $region25: #{fast_conformer_forward.29} parent=0 // pred_fallthru
    _
  // Predicated region
  $region26: #{fast_conformer_forward.29} parent=0 // pred_check
    _
  $region27: #{fast_conformer_forward.29} parent=0 // pred_check_branch
    %27 = sbr.rel (0) target = $region29
  $region28: #{fast_conformer_forward.29} parent=0 // pred_region
    _
  $region29: #{fast_conformer_forward.29} parent=0 // pred_fallthru
    _
  // Predicated region
  $region30: #{fast_conformer_forward.29} parent=0 // pred_check
    _
  $region31: #{fast_conformer_forward.29} parent=0 // pred_check_branch
    %29 = sbr.rel (0) target = $region33
  $region32: #{fast_conformer_forward.29} parent=0 // pred_region
    _
  $region33: #{fast_conformer_forward.29} parent=0 // pred_fallthru
    _
  // Predicated region
  $region34: #{fast_conformer_forward.29} parent=0 // pred_check
    _
  $region35: #{fast_conformer_forward.29} parent=0 // pred_check_branch
    %31 = sbr.rel (0) target = $region37
  $region36: #{fast_conformer_forward.29} parent=0 // pred_region
    _
  $region37: #{fast_conformer_forward.29} parent=0 // pred_fallthru
    _
  %v33 = vld [vmem:[%s0] sm:$0xf]
  %v34 = vld [vmem:[%s0 + $0x4] sm:$0x7]
  %v35 = vunpack.c.l.bf16 %v33
  %v36 = vunpack.c.l.bf16 %v34
  %v37 = vld [vmem:[%s1] sm:$0x1]
  %v38 = vld [vmem:[%s2] sm:$0x1]
  %vm39 = vcmask 261120
  %v40 = vsel %vm39, %v35, 0.0
  %41 = vadd.xlane.f32.xlu0 %v40
  %v42 = vpop.xlane.xlu0 %41
  %vm43 = vcmask 259072
  %v44 = vsel %vm43, %v36, 0.0
  %45 = vadd.xlane.f32.xlu0 %v44
  %v46 = vpop.xlane.xlu0 %45
  %v47 = vrcp.pop 32.0
  %v48 = vmul.f32 32.0, %v47
  %v49 = vsub.f32 1.0, %v48
  %v50 = vmul.f32 %v47, %v49
  %v51 = vadd.f32 %v47, %v50
  %vm52 = vweird.f32 %v47
  %v53 = vsel %vm52, %v47, %v51
  %v54 = vmul.f32 %v42, %v53
  %v55 = vmul.f32 %v46, %v53
  %v56 = vsub.f32 %v35, %v54
  %v57 = vsub.f32 %v36, %v55
  %v58 = vmul.f32 %v56, %v56
  %v59 = vmul.f32 %v57, %v57
  %v60 = vsel %vm39, %v58, 0.0
  %61 = vadd.xlane.f32.xlu0 %v60
  %v62 = vpop.xlane.xlu0 %61
  %v63 = vsel %vm43, %v59, 0.0
  %64 = vadd.xlane.f32.xlu0 %v63
  %v65 = vpop.xlane.xlu0 %64
  %v66 = vmul.f32 %v62, %v53
  %v67 = vmul.f32 %v65, %v53
  %v68 = vadd.f32 %v66, 1e-05
  %v69 = vadd.f32 %v67, 1e-05
  %v70 = vrsqrt.pop %v68
  %v71 = vmul.f32 %v70, %v68
  %v72 = vmul.f32 %v71, %v70
  %v73 = vmul.f32 0.5, %v72
  %v74 = vsub.f32 1.5, %v73
  %v75 = vmul.f32 %v70, %v74
  %vm76 = vweird.f32 %v68
  %vm77 = vweird.f32 %v70
  %vm78 = vmor %vm76, %vm77
  %v79 = vsel %vm78, %v70, %v75
  %v80 = vrsqrt.pop %v69
  %v81 = vmul.f32 %v80, %v69
  %v82 = vmul.f32 %v81, %v80
  %v83 = vmul.f32 0.5, %v82
  %v84 = vsub.f32 1.5, %v83
  %v85 = vmul.f32 %v80, %v84
  %vm86 = vweird.f32 %v69
  %vm87 = vweird.f32 %v80
  %vm88 = vmor %vm86, %vm87
  %v89 = vsel %vm88, %v80, %v85
  %v90 = vmul.f32 %v56, %v79
  %v91 = vmul.f32 %v57, %v89
  %v93 = vperm.slane %v37, 0
  %v95 = vmul.f32 %v90, %v93
  %v96 = vmul.f32 %v91, %v93
  %v98 = vperm.slane %v38, 0
  %v100 = vadd.f32 %v95, %v98
  %v101 = vadd.f32 %v96, %v98
  %v102 = vpack.c.bf16 %v101, %v100
  %v103 = vld [vmem:[%s3] sm:$0xf]
  %v104 = vld [vmem:[%s3 + $0x4] sm:$0xf]
  %v105 = vld [vmem:[%s3 + $0x8] sm:$0xf]
  %v106 = vld [vmem:[%s3 + $0xc] sm:$0xf]
  %v107 = vld [vmem:[%s4] sm:$0x1]
  %v109 = vperm.slane %v107, 0
  %v115 = vunpack.c.l.b16 %v103
  %v116 = vunpack.c.l.b16 %v104
  %v117 = vunpack.c.l.b16 %v105
  %v118 = vunpack.c.l.b16 %v106
  %v119 = vpack.c.b16 %v116, %v115
  %v120 = vpack.c.b16 %v118, %v117
  %v124 = vsel %vm39, %v102, 0
  %126 = vmatpush.bf16.msra.mxu0 0
  %127 = vmatpush.bf16.msra.mxu0 0
  %128 = vmatpush.bf16.msra.mxu0 0
  %129 = vmatpush.bf16.msra.mxu0 0
  %130 = vmatpush.bf16.msra.mxu0 0
  %131 = vmatpush.bf16.msra.mxu0 0
  %132 = vmatpush.bf16.msra.mxu0 %v120
  %133 = vmatpush.bf16.msra.mxu0 %v119
  %134 = vmatmul.bf16.gmra.mxu0 %v124
  %v135 = vpop.f32.mrf.mxu0
  %v136 = vadd.f32 %v109, %v135
  %v137 = vpop.f32.mrf.mxu0
  %v138 = vadd.f32 %v109, %v137
  %139 = vdwg.mxu0
  %v140 = vsub.f32 0.0, %v136
  %v141 = vsub.f32 0.0, %v138
  %v142 = vmul.f32 %v140, 1.442695
  %v143 = vpow.pop %v142
  %v144 = vmul.f32 %v141, 1.442695
  %v145 = vpow.pop %v144
  %v146 = vadd.f32 %v143, 1.0
  %v147 = vadd.f32 %v145, 1.0
  %v148 = vrcp.pop %v146
  %v149 = vmul.f32 %v146, %v148
  %v150 = vsub.f32 1.0, %v149
  %v151 = vmul.f32 %v148, %v150
  %v152 = vadd.f32 %v148, %v151
  %vm153 = vweird.f32 %v146
  %vm154 = vweird.f32 %v148
  %vm155 = vmor %vm153, %vm154
  %v156 = vsel %vm155, %v148, %v152
  %v157 = vand.u32 2147483647, %v146
  %vm158 = vcmp.eq.f32.partialorder %v157, 8.507059e+37
  %v159 = vand.u32 %v146, 2147483648
  %v160 = vor.u32 1.1754944e-38, %v159
  %v161 = vsel %vm158, %v160, %v156
  %v162 = vmul.f32 1.0, %v161
  %v163 = vrcp.pop %v147
  %v164 = vmul.f32 %v147, %v163
  %v165 = vsub.f32 1.0, %v164
  %v166 = vmul.f32 %v163, %v165
  %v167 = vadd.f32 %v163, %v166
  %vm168 = vweird.f32 %v147
  %vm169 = vweird.f32 %v163
  %vm170 = vmor %vm168, %vm169
  %v171 = vsel %vm170, %v163, %v167
  %v172 = vand.u32 2147483647, %v147
  %vm173 = vcmp.eq.f32.partialorder %v172, 8.507059e+37
  %v174 = vand.u32 %v147, 2147483648
  %v175 = vor.u32 1.1754944e-38, %v174
  %v176 = vsel %vm173, %v175, %v171
  %v177 = vmul.f32 1.0, %v176
  %v178 = vmul.f32 %v136, %v162
  %v179 = vmul.f32 %v138, %v177
  %v180 = vpack.c.bf16 %v179, %v178
  %v181 = vld [vmem:[%s5] sm:$0xf]
  %v182 = vld [vmem:[%s5 + $0x4] sm:$0xf]
  %v183 = vld [vmem:[%s5 + $0x8] sm:$0xf]
  %v184 = vld [vmem:[%s5 + $0xc] sm:$0xf]
  %v185 = vld [vmem:[%s5 + $0x10] sm:$0xf]
  %v186 = vld [vmem:[%s5 + $0x14] sm:$0xf]
  %v187 = vld [vmem:[%s5 + $0x18] sm:$0xf]
  %v188 = vld [vmem:[%s5 + $0x1c] sm:$0xf]
  %v189 = vld [vmem:[%s5 + $0x20] sm:$0xf]
  %v190 = vld [vmem:[%s5 + $0x24] sm:$0xf]
  %v191 = vld [vmem:[%s5 + $0x28] sm:$0xf]
  %v192 = vld [vmem:[%s5 + $0x2c] sm:$0xf]
  %v193 = vld [vmem:[%s5 + $0x30] sm:$0xf]
  %v194 = vld [vmem:[%s5 + $0x34] sm:$0xf]
  %v195 = vld [vmem:[%s5 + $0x38] sm:$0xf]
  %v196 = vld [vmem:[%s5 + $0x3c] sm:$0xf]
  %v197 = vld [vmem:[%s6] sm:$0x1]
  %v199 = vperm.slane %v197, 0
  %v217 = vunpack.c.l.b16 %v181
  %v218 = vunpack.c.l.b16 %v182
  %v219 = vunpack.c.l.b16 %v183
  %v220 = vunpack.c.l.b16 %v184
  %v221 = vunpack.c.l.b16 %v185
  %v222 = vunpack.c.l.b16 %v186
  %v223 = vunpack.c.l.b16 %v187
  %v224 = vunpack.c.l.b16 %v188
  %v225 = vunpack.c.l.b16 %v189
  %v226 = vunpack.c.l.b16 %v190
  %v227 = vunpack.c.l.b16 %v191
  %v228 = vunpack.c.l.b16 %v192
  %v229 = vunpack.c.l.b16 %v193
  %v230 = vunpack.c.l.b16 %v194
  %v231 = vunpack.c.l.b16 %v195
  %v232 = vunpack.c.l.b16 %v196
  %v233 = vpack.c.b16 %v218, %v217
  %v234 = vpack.c.b16 %v220, %v219
  %v235 = vpack.c.b16 %v222, %v221
  %v236 = vpack.c.b16 %v224, %v223
  %v237 = vpack.c.b16 %v226, %v225
  %v238 = vpack.c.b16 %v228, %v227
  %v239 = vpack.c.b16 %v230, %v229
  %v240 = vpack.c.b16 %v232, %v231
  %249 = vmatpush.bf16.msra.mxu0 %v240
  %250 = vmatpush.bf16.msra.mxu0 %v239
  %251 = vmatpush.bf16.msra.mxu0 %v238
  %252 = vmatpush.bf16.msra.mxu0 %v237
  %253 = vmatpush.bf16.msra.mxu0 %v236
  %254 = vmatpush.bf16.msra.mxu0 %v235
  %255 = vmatpush.bf16.msra.mxu0 %v234
  %256 = vmatpush.bf16.msra.mxu0 %v233
  %257 = vmatmul.bf16.gmra.mxu0 %v180
  %v258 = vpop.f32.mrf.mxu0
  %v259 = vadd.f32 %v199, %v258
  %v260 = vpop.f32.mrf.mxu0
  %v261 = vadd.f32 %v199, %v260
  %262 = vdwg.mxu0
  %v263 = vmul.f32 %v259, 0.5
  %v264 = vmul.f32 %v261, 0.5
  %v265 = vadd.f32 %v35, %v263
  %v266 = vadd.f32 %v36, %v264
  %v267 = vld [vmem:[%s7] sm:$0x1]
  %v268 = vld [vmem:[%s8] sm:$0x1]
  %v269 = vsel %vm39, %v265, 0.0
  %270 = vadd.xlane.f32.xlu0 %v269
  %v271 = vpop.xlane.xlu0 %270
  %v272 = vsel %vm43, %v266, 0.0
  %273 = vadd.xlane.f32.xlu0 %v272
  %v274 = vpop.xlane.xlu0 %273
  %v275 = vmul.f32 %v271, %v53
  %v276 = vmul.f32 %v274, %v53
  %v277 = vsub.f32 %v265, %v275
  %v278 = vsub.f32 %v266, %v276
  %v279 = vmul.f32 %v277, %v277
  %v280 = vmul.f32 %v278, %v278
  %v281 = vsel %vm39, %v279, 0.0
  %282 = vadd.xlane.f32.xlu0 %v281
  %v283 = vpop.xlane.xlu0 %282
  %v284 = vsel %vm43, %v280, 0.0
  %285 = vadd.xlane.f32.xlu0 %v284
  %v286 = vpop.xlane.xlu0 %285
  %v287 = vmul.f32 %v283, %v53
  %v288 = vmul.f32 %v286, %v53
  %v289 = vadd.f32 %v287, 1e-05
  %v290 = vadd.f32 %v288, 1e-05
  %v291 = vrsqrt.pop %v289
  %v292 = vmul.f32 %v291, %v289
  %v293 = vmul.f32 %v292, %v291
  %v294 = vmul.f32 0.5, %v293
  %v295 = vsub.f32 1.5, %v294
  %v296 = vmul.f32 %v291, %v295
  %vm297 = vweird.f32 %v289
  %vm298 = vweird.f32 %v291
  %vm299 = vmor %vm297, %vm298
  %v300 = vsel %vm299, %v291, %v296
  %v301 = vrsqrt.pop %v290
  %v302 = vmul.f32 %v301, %v290
  %v303 = vmul.f32 %v302, %v301
  %v304 = vmul.f32 0.5, %v303
  %v305 = vsub.f32 1.5, %v304
  %v306 = vmul.f32 %v301, %v305
  %vm307 = vweird.f32 %v290
  %vm308 = vweird.f32 %v301
  %vm309 = vmor %vm307, %vm308
  %v310 = vsel %vm309, %v301, %v306
  %v311 = vmul.f32 %v277, %v300
  %v312 = vmul.f32 %v278, %v310
  %v314 = vperm.slane %v267, 0
  %v316 = vmul.f32 %v311, %v314
  %v317 = vmul.f32 %v312, %v314
  %v319 = vperm.slane %v268, 0
  %v321 = vadd.f32 %v316, %v319
  %v322 = vadd.f32 %v317, %v319
  %v323 = vpack.c.bf16 %v321, %v321
  %v324 = vpack.c.bf16 %v322, %v322
  %vm325 = vcmask 257024
  %326 = vst.msk [vmem:[%s9] sm:$0xf] %vm325, %v323
  %vm327 = vcmask 256000
  %328 = vst.msk [vmem:[%s9 + $0x4] sm:$0x7] %vm327, %v324
  // Predicated region
  $region38: #{fast_conformer_forward.29} parent=0 // pred_check
    _
  $region39: #{fast_conformer_forward.29} parent=0 // pred_check_branch
    %330 = sbr.rel (0) target = $region41
  $region40: #{fast_conformer_forward.29} parent=0 // pred_region
    _
  $region41: #{fast_conformer_forward.29} parent=0 // pred_fallthru
    _
  // Predicated region
  $region42: #{fast_conformer_forward.29} parent=0 // pred_check
    _
  $region43: #{fast_conformer_forward.29} parent=0 // pred_check_branch
    %332 = sbr.rel (0) target = $region45
  $region44: #{fast_conformer_forward.29} parent=0 // pred_region
    _
  $region45: #{fast_conformer_forward.29} parent=0 // pred_fallthru
    _

// kernel: fast_conformer_forward.37
$region0: #{fast_conformer_forward.37}
  #allocation0 [shape = 'u32[]', space=smem, size = 0x4, offset = 0x4, fixed_abs, tag = 'smem constant byte address 0x4 - core index']
  #allocation1 [shape = 'u32[72,128]{1,0:T(1,128)}', space=vmem, size = 0x9000, scoped, tag = 'internal scratch']
  %s0 = inlined_call_operand.vmem [shape: bf16[14,32], index: 0, kind: input, shape index: {}]
  %s1 = inlined_call_operand.vmem [shape: bf16[32,128], index: 1, kind: input, shape index: {}]
  %s2 = inlined_call_operand.vmem [shape: f32[14,128], index: 2, kind: output, shape index: {}]
  %s3 = sld [smem:[#allocation0]]
  $region18: #{fast_conformer_forward.37} parent=0
    _
  %s5 = ssub.s32 1, %s3
  %s6 = scalar_select 0, %s5, %s3
  // Predicated region
  $region2: #{fast_conformer_forward.37} parent=0 // pred_check
    _
  $region3: #{fast_conformer_forward.37} parent=0 // pred_check_branch
    %8 = sbr.rel (0) target = $region5
  $region4: #{fast_conformer_forward.37} parent=0 // pred_region
    _
  $region5: #{fast_conformer_forward.37} parent=0 // pred_fallthru
    _
  // Predicated region
  $region6: #{fast_conformer_forward.37} parent=0 // pred_check
    _
  $region7: #{fast_conformer_forward.37} parent=0 // pred_check_branch
    %10 = sbr.rel (0) target = $region9
  $region8: #{fast_conformer_forward.37} parent=0 // pred_region
    _
  $region9: #{fast_conformer_forward.37} parent=0 // pred_fallthru
    _
  %v12 = vld [vmem:[%s0] sm:$0xf]
  %v13 = vld [vmem:[%s0 + $0x4] sm:$0x7]
  %v14 = vld [vmem:[%s1] sm:$0xf]
  %v15 = vld [vmem:[%s1 + $0x4] sm:$0xf]
  %v16 = vld [vmem:[%s1 + $0x8] sm:$0xf]
  %v17 = vld [vmem:[%s1 + $0xc] sm:$0xf]
  %v20 = vunpack.c.l.b16 %v12
  %v21 = vunpack.c.l.b16 %v13
  %v22 = vpack.c.b16 %v21, %v20
  %v27 = vunpack.c.l.b16 %v14
  %v28 = vunpack.c.l.b16 %v15
  %v29 = vunpack.c.l.b16 %v16
  %v30 = vunpack.c.l.b16 %v17
  %v31 = vpack.c.b16 %v28, %v27
  %v32 = vpack.c.b16 %v30, %v29
  %vm35 = vcmask 261120
  %v37 = vsel %vm35, %v22, 0
  %39 = vmatpush.bf16.msra.mxu0 0
  %40 = vmatpush.bf16.msra.mxu0 0
  %41 = vmatpush.bf16.msra.mxu0 0
  %42 = vmatpush.bf16.msra.mxu0 0
  %43 = vmatpush.bf16.msra.mxu0 0
  %44 = vmatpush.bf16.msra.mxu0 0
  %45 = vmatpush.bf16.msra.mxu0 %v32
  %46 = vmatpush.bf16.msra.mxu0 %v31
  %47 = vmatmul.bf16.gmra.mxu0 %v37
  %v48 = vpop.f32.mrf.mxu0
  %v49 = vadd.f32 0.0, %v48
  %v50 = vpop.f32.mrf.mxu0
  %v51 = vadd.f32 0.0, %v50
  %52 = vdwg.mxu0
  %v53 = vlaneseq
  %v54 = vand.u32 %v53, 127
  %vm55 = vcmp.lt.s32.totalorder %v54, 10
  %v56 = vsel %vm55, %v49, -1e+30
  %v57 = vsel %vm55, %v51, -1e+30
  %58 = vmax.xlane.f32.xlu0 %v56
  %v59 = vpop.xlane.xlu0 %58
  %vm60 = vcmask 1045504
  %v61 = vsel %vm60, %v57, -inf
  %62 = vmax.xlane.f32.xlu0 %v61
  %v63 = vpop.xlane.xlu0 %62
  %v64 = vsub.f32 %v56, %v59
  %v65 = vsub.f32 %v57, %v63
  %v66 = vmul.f32 %v64, 1.442695
  %v67 = vpow.pop %v66
  %v68 = vmul.f32 %v65, 1.442695
  %v69 = vpow.pop %v68
  %70 = vadd.xlane.f32.xlu0 %v67
  %v71 = vpop.xlane.xlu0 %70
  %v72 = vsel %vm60, %v69, 0.0
  %73 = vadd.xlane.f32.xlu0 %v72
  %v74 = vpop.xlane.xlu0 %73
  %v75 = vlog2.pop %v71
  %v76 = vmul.f32 %v75, 0.6931472
  %v77 = vlog2.pop %v74
  %v78 = vmul.f32 %v77, 0.6931472
  %v79 = vsub.f32 %v64, %v76
  %v80 = vsub.f32 %v65, %v78
  %81 = vst [vmem:[%s2] sm:$0xff] %v79
  %82 = vst [vmem:[%s2 + $0x8] sm:$0x3f] %v80
  // Predicated region
  $region10: #{fast_conformer_forward.37} parent=0 // pred_check
    _
  $region11: #{fast_conformer_forward.37} parent=0 // pred_check_branch
    %84 = sbr.rel (0) target = $region13
  $region12: #{fast_conformer_forward.37} parent=0 // pred_region
    _
  $region13: #{fast_conformer_forward.37} parent=0 // pred_fallthru
    _
  // Predicated region
  $region14: #{fast_conformer_forward.37} parent=0 // pred_check
    _
  $region15: #{fast_conformer_forward.37} parent=0 // pred_check_branch
    %86 = sbr.rel (0) target = $region17
  $region16: #{fast_conformer_forward.37} parent=0 // pred_region
    _
  $region17: #{fast_conformer_forward.37} parent=0 // pred_fallthru
    _

</llo_original>
